<compile_context>
chip_gen: v7x
topology: tpu7x:2x2x1
jax: 0.10.0
libtpu: 0.0.40
codegen_flags: <defaults>
</compile_context>

<pallas_src>
import jax
import jax.numpy as jnp
from jax.experimental import pallas as pl
from jax.experimental.pallas import tpu as pltpu


def _bottleneck_kernel(x_ref, w1_ref, b1_ref,
                       w2k0_ref, w2k1_ref, w2k2_ref, b2_ref,
                       w3_ref, b3_ref, out_ref):
    nb, H, W, cin = x_ref.shape
    wp = w1_ref.shape[1]          # padded bottleneck width (multiple of 128)
    cout = w3_ref.shape[1]
    M = nb * H * W
    HW = H * W
    f32, bf16 = jnp.float32, jnp.bfloat16

    # ---- conv1 (1x1, BN scale folded into weights) + bias + relu ----
    y1 = jnp.dot(x_ref[...].reshape(M, cin).astype(bf16), w1_ref[...],
                 preferred_element_type=f32)
    y1 = jnp.maximum(y1 + b1_ref[...], 0.0)                          # (M, wp) f32

    # ---- conv2 (3x3, stride=1, pad=1) + bias + relu ----
    # kw taps: sublane rolls of y1 (f32, XLU) with the w boundary zeroed by a
    # cheap (M, 1) mask, assembled into one lane-aligned bf16 patch slab
    # [w-1 | w | w+1] of shape (M, 3*wp).
    wcol = jax.lax.broadcasted_iota(jnp.int32, (M, 1), 0) % W
    left = pltpu.roll(y1, 1, 0) * (wcol > 0).astype(f32)             # y1[.., w-1, :]
    right = pltpu.roll(y1, M - 1, 0) * (wcol < W - 1).astype(f32)    # y1[.., w+1, :]
    patches = jnp.concatenate(
        [left.astype(bf16), y1.astype(bf16), right.astype(bf16)], axis=-1)

    # kh taps: a row shift commutes with a row-wise matmul, so dot the slab
    # once per kh weight slice and roll/mask the f32 outputs by +-W rows
    # instead of materialising shifted copies of the (3x wider) patch slab.
    d0 = jnp.dot(patches, w2k0_ref[...], preferred_element_type=f32)  # kh = 0
    d1 = jnp.dot(patches, w2k1_ref[...], preferred_element_type=f32)  # kh = 1
    d2 = jnp.dot(patches, w2k2_ref[...], preferred_element_type=f32)  # kh = 2
    rimg = jax.lax.broadcasted_iota(jnp.int32, (M, 1), 0) % HW
    mask_top = (rimg >= W).astype(f32)          # input row h-1 exists
    mask_bot = (rimg < HW - W).astype(f32)      # input row h+1 exists
    y2 = d1 + mask_top * pltpu.roll(d0, W, 0) + mask_bot * pltpu.roll(d2, M - W, 0)
    y2 = jnp.maximum(y2 + b2_ref[...], 0.0)                          # (M, wp) f32

    # ---- conv3 (1x1) + bias + residual add + relu ----
    y3 = jnp.dot(y2.astype(bf16), w3_ref[...], preferred_element_type=f32)
    out = jnp.maximum(y3 + b3_ref[...] + x_ref[...].reshape(M, cin), 0.0)
    out_ref[...] = out.reshape(nb, H, W, cout).astype(out_ref.dtype)


def bottleneck_pallas(x_nhwc, params, *, block_n=None):
    """x_nhwc: (N, H, W, Cin) float32. Returns (N, H, W, Cout) float32."""
    N, H, W, cin = x_nhwc.shape
    w1, s1, b1, w2, s2, b2, w3, s3, b3 = params
    width = w1.shape[1]
    cout = w3.shape[1]
    assert cout == cin, "identity residual requires inplanes == planes * 4"
    assert cin % 128 == 0 and cout % 128 == 0, "lane-aligned in/out channels expected"
    # TODO(synk): stride>1 / groups>1 / dilation>1 / downsample branch not implemented.

    if block_n is None:
        # >=4 grid steps so each v7x TensorCore keeps DMA/compute overlap.
        block_n = next((b for b in (8, 4, 2, 1) if N % b == 0 and N // b >= 4), 1)

    # ---- host-side weight prep ----
    # 1) fold BN scales into the conv weights (f32); keep only biases in-kernel
    # 2) zero-pad the bottleneck width to a multiple of 128 (lane-dense interms)
    # 3) cast to bf16; 3x3 weights pre-split into per-kh slabs whose rows are
    #    (kw, cin)-major, matching the in-kernel patch-slab lane layout.
    wp = ((width + 127) // 128) * 128
    pw = wp - width
    w1f = jnp.pad(w1 * s1, ((0, 0), (0, pw)))
    w2f = jnp.pad(w2 * s2.reshape(1, 1, 1, width),
                  ((0, 0), (0, 0), (0, pw), (0, pw)))
    w3f = jnp.pad(w3 * s3, ((0, pw), (0, 0)))
    b1p = jnp.pad(b1, ((0, 0), (0, pw)))
    b2p = jnp.pad(b2, ((0, 0), (0, pw)))
    b3p = b3

    w1b = w1f.astype(jnp.bfloat16)
    w2k = [w2f[kh].reshape(3 * wp, wp).astype(jnp.bfloat16) for kh in range(3)]
    w3b = w3f.astype(jnp.bfloat16)

    full = lambda a: pl.BlockSpec(a.shape, lambda n: (0,) * a.ndim)

    flops = 2 * N * H * W * (cin * wp + 9 * wp * wp + wp * cout)
    bytes_accessed = int(
        (x_nhwc.size + N * H * W * cout) * 4
        + (w1b.size + sum(int(w.size) for w in w2k) + w3b.size) * 2
        + (b1p.size + b2p.size + b3p.size) * 4)
    cost = pl.CostEstimate(flops=flops, transcendentals=0,
                           bytes_accessed=bytes_accessed)

    return pl.pallas_call(
        _bottleneck_kernel,
        out_shape=jax.ShapeDtypeStruct((N, H, W, cout), jnp.float32),
        grid_spec=pltpu.PrefetchScalarGridSpec(
            num_scalar_prefetch=0,
            grid=(N // block_n,),
            in_specs=[
                pl.BlockSpec((block_n, H, W, cin), lambda n: (n, 0, 0, 0)),
                full(w1b), full(b1p),
                full(w2k[0]), full(w2k[1]), full(w2k[2]), full(b2p),
                full(w3b), full(b3p),
            ],
            out_specs=pl.BlockSpec((block_n, H, W, cout), lambda n: (n, 0, 0, 0)),
        ),
        compiler_params=pltpu.CompilerParams(
            dimension_semantics=("parallel",),
            vmem_limit_bytes=32 * 1024 * 1024,
        ),
        cost_estimate=cost,
    )(x_nhwc, w1b, b1p, w2k[0], w2k[1], w2k[2], b2p, w3b, b3p)


# ---------------------- pure-JAX reference (for checking) ----------------------
def _conv_nhwc(x, w, padding):
    return jax.lax.conv_general_dilated(
        x, w, window_strides=(1, 1), padding=padding,
        dimension_numbers=("NHWC", "HWIO", "NHWC"),
        precision=jax.lax.Precision.HIGHEST)


def bottleneck_ref(x_nhwc, params):
    """Reference mirroring the kernel's bf16 weight + activation rounding."""
    w1, s1, b1, w2, s2, b2, w3, s3, b3 = params
    q = lambda a: a.astype(jnp.bfloat16).astype(jnp.float32)
    w1f, w2f, w3f = q(w1 * s1), q(w2 * s2.reshape(1, 1, 1, -1)), q(w3 * s3)
    y = _conv_nhwc(q(x_nhwc), w1f[None, None], "VALID") + b1
    y = q(jnp.maximum(y, 0.0))
    y = _conv_nhwc(y, w2f, [(1, 1), (1, 1)]) + b2
    y = q(jnp.maximum(y, 0.0))
    y = _conv_nhwc(y, w3f[None, None], "VALID") + b3
    return jnp.maximum(y + x_nhwc, 0.0)


def make_params(key, inplanes, planes, base_width=64, groups=1):
    """Deterministic synthetic parameters; BN folded to per-channel scale/bias."""
    width = int(planes * (base_width / 64.0)) * groups
    cout = planes * 4
    eps = 1e-5
    ks = jax.random.split(key, 12)

    def bn_fold(kg, kb, km, kv, c):
        gamma = jax.random.uniform(kg, (c,), jnp.float32, 0.5, 1.5)
        beta = 0.1 * jax.random.normal(kb, (c,), jnp.float32)
        mean = 0.1 * jax.random.normal(km, (c,), jnp.float32)
        var = jax.random.uniform(kv, (c,), jnp.float32, 0.5, 1.5)
        s = gamma / jnp.sqrt(var + eps)
        b = beta - mean * s
        return s.reshape(1, c), b.reshape(1, c)

    w1 = 0.1 * jax.random.normal(ks[0], (inplanes, width), jnp.float32)
    w2 = 0.1 * jax.random.normal(ks[1], (3, 3, width, width), jnp.float32)
    w3 = 0.1 * jax.random.normal(ks[2], (width, cout), jnp.float32)
    s1, b1 = bn_fold(ks[3], ks[4], ks[5], ks[6], width)
    s2, b2 = bn_fold(ks[7], ks[8], ks[9], ks[10], width)
    s3, b3 = bn_fold(ks[11], ks[3], ks[7], ks[0], cout)  # deterministic reuse is fine
    return (w1, s1, b1, w2, s2, b2, w3, s3, b3)


if __name__ == "__main__":
    key = jax.random.PRNGKey(0)
    kx, kp = jax.random.split(key)

    # Real pose_resnet layer1 bottleneck channel config (identity residual,
    # no downsample): inplanes = planes * expansion = 256, width = 64.
    N, H, W = 8, 16, 16
    inplanes, planes = 256, 64

    x_nchw = jax.random.normal(kx, (N, inplanes, H, W), jnp.float32)
    params = make_params(kp, inplanes, planes)

    x_nhwc = jnp.transpose(x_nchw, (0, 2, 3, 1))
    out_nhwc = bottleneck_pallas(x_nhwc, params)
    out_nchw = jnp.transpose(out_nhwc, (0, 3, 1, 2))
    jax.block_until_ready(out_nchw)

    ref_nhwc = bottleneck_ref(x_nhwc, params)
    ref_nchw = jnp.transpose(ref_nhwc, (0, 3, 1, 2))
    assert out_nchw.shape == (N, inplanes, H, W)
    max_err = float(jnp.max(jnp.abs(out_nchw - ref_nchw)))
    # Reference mirrors the kernel's bf16 weight/activation rounding, so only
    # f32 accumulation-order noise remains.
    assert jnp.allclose(out_nchw, ref_nchw, atol=5e-2, rtol=5e-2), (
        "mismatch vs reference: max|diff|=%g" % max_err)

    print("KERNEL_OK")
</pallas_src>

<mosaic_0001>
module attributes {stable_mosaic.version = 11 : i64} {
  func.func @_bottleneck_kernel(%arg0: i32, %arg1: memref<2x16x16x256xf32, #tpu.memory_space<vmem>>, %arg2: memref<256x128xbf16, #tpu.memory_space<vmem>>, %arg3: memref<1x128xf32, #tpu.memory_space<vmem>>, %arg4: memref<384x128xbf16, #tpu.memory_space<vmem>>, %arg5: memref<384x128xbf16, #tpu.memory_space<vmem>>, %arg6: memref<384x128xbf16, #tpu.memory_space<vmem>>, %arg7: memref<1x128xf32, #tpu.memory_space<vmem>>, %arg8: memref<128x256xbf16, #tpu.memory_space<vmem>>, %arg9: memref<1x256xf32, #tpu.memory_space<vmem>>, %arg10: memref<2x16x16x256xf32, #tpu.memory_space<vmem>>) attributes {dimension_semantics = [#tpu.dimension_semantics<parallel>], iteration_bounds = array<i64: 4>, scalar_prefetch = 0 : i64, scratch_operands = 0 : i64, tpu.core_type = #tpu.core_type<tc>, window_params = [{transform_indices = @transform_0, window_bounds = array<i64: 2, 16, 16, 256>}, {pipeline_mode = #tpu.pipeline_mode<synchronous>, transform_indices = @transform_1, window_bounds = array<i64: 256, 128>}, {pipeline_mode = #tpu.pipeline_mode<synchronous>, transform_indices = @transform_2, window_bounds = array<i64: 1, 128>}, {pipeline_mode = #tpu.pipeline_mode<synchronous>, transform_indices = @transform_3, window_bounds = array<i64: 384, 128>}, {pipeline_mode = #tpu.pipeline_mode<synchronous>, transform_indices = @transform_4, window_bounds = array<i64: 384, 128>}, {pipeline_mode = #tpu.pipeline_mode<synchronous>, transform_indices = @transform_5, window_bounds = array<i64: 384, 128>}, {pipeline_mode = #tpu.pipeline_mode<synchronous>, transform_indices = @transform_6, window_bounds = array<i64: 1, 128>}, {pipeline_mode = #tpu.pipeline_mode<synchronous>, transform_indices = @transform_7, window_bounds = array<i64: 128, 256>}, {pipeline_mode = #tpu.pipeline_mode<synchronous>, transform_indices = @transform_8, window_bounds = array<i64: 1, 256>}, {transform_indices = @transform_9, window_bounds = array<i64: 2, 16, 16, 256>}]} {
    %c0 = arith.constant 0 : index
    %c0_0 = arith.constant 0 : index
    %c0_1 = arith.constant 0 : index
    %c0_2 = arith.constant 0 : index
    %0 = vector.load %arg1[%c0, %c0_0, %c0_1, %c0_2] : memref<2x16x16x256xf32, #tpu.memory_space<vmem>>, vector<2x16x16x256xf32>
    %1 = vector.shape_cast %0 : vector<2x16x16x256xf32> to vector<512x256xf32>
    %2 = arith.truncf %1 : vector<512x256xf32> to vector<512x256xbf16>
    %c0_3 = arith.constant 0 : index
    %c0_4 = arith.constant 0 : index
    %3 = vector.load %arg2[%c0_3, %c0_4] : memref<256x128xbf16, #tpu.memory_space<vmem>>, vector<256x128xbf16>
    %cst = arith.constant dense<0.000000e+00> : vector<512x128xf32>
    %4 = tpu.matmul %2, %3, %cst {dimension_numbers = #tpu.dot_dimension_numbers<[1], [0], [0], [1], [0, 0, 1, 1], [], []>} : vector<512x256xbf16>, vector<256x128xbf16>, vector<512x128xf32> -> vector<512x128xf32>
    %c0_5 = arith.constant 0 : index
    %c0_6 = arith.constant 0 : index
    %5 = vector.load %arg3[%c0_5, %c0_6] : memref<1x128xf32, #tpu.memory_space<vmem>>, vector<1x128xf32>
    %6 = vector.broadcast %5 : vector<1x128xf32> to vector<512x128xf32>
    %7 = arith.addf %4, %6 : vector<512x128xf32>
    %cst_7 = arith.constant 0.000000e+00 : f32
    %8 = vector.broadcast %cst_7 : f32 to vector<512x128xf32>
    %9 = arith.maximumf %7, %8 : vector<512x128xf32>
    %10 = tpu.iota {dimensions = array<i32: 0>} : vector<512x1xi32>
    %c16_i32 = arith.constant 16 : i32
    %c0_i32 = arith.constant 0 : i32
    %11 = arith.cmpi eq, %c16_i32, %c0_i32 : i32
    %c1_i32 = arith.constant 1 : i32
    %12 = arith.select %11, %c1_i32, %c16_i32 : i32
    %13 = vector.broadcast %12 : i32 to vector<512x1xi32>
    %14 = arith.remsi %10, %13 : vector<512x1xi32>
    %c0_i32_8 = arith.constant 0 : i32
    %15 = vector.broadcast %c0_i32_8 : i32 to vector<512x1xi32>
    %16 = arith.cmpi ne, %14, %15 : vector<512x1xi32>
    %c0_i32_9 = arith.constant 0 : i32
    %17 = vector.broadcast %c0_i32_9 : i32 to vector<512x1xi32>
    %18 = arith.cmpi slt, %14, %17 : vector<512x1xi32>
    %c0_i32_10 = arith.constant 0 : i32
    %19 = arith.cmpi slt, %12, %c0_i32_10 : i32
    %20 = vector.broadcast %19 : i1 to vector<512x1xi1>
    %21 = vector.broadcast %20 : vector<512x1xi1> to vector<512x1xi1>
    %22 = arith.xori %18, %21 : vector<512x1xi1>
    %23 = arith.andi %22, %16 : vector<512x1xi1>
    %24 = vector.broadcast %12 : i32 to vector<512x1xi32>
    %25 = arith.addi %14, %24 : vector<512x1xi32>
    %26 = arith.select %23, %25, %14 : vector<512x1xi1>, vector<512x1xi32>
    %c1_i32_11 = arith.constant 1 : i32
    %27 = tpu.dynamic_rotate %9 by %c1_i32_11 dim 0 : vector<512x128xf32>, i32 -> vector<512x128xf32>
    %c0_i32_12 = arith.constant 0 : i32
    %28 = vector.broadcast %c0_i32_12 : i32 to vector<512x1xi32>
    %29 = arith.cmpi sgt, %26, %28 : vector<512x1xi32>
    %30 = arith.extui %29 : vector<512x1xi1> to vector<512x1xi32>
    %31 = arith.sitofp %30 : vector<512x1xi32> to vector<512x1xf32>
    %32 = vector.broadcast %31 : vector<512x1xf32> to vector<512x128xf32>
    %33 = arith.mulf %27, %32 : vector<512x128xf32>
    %c511_i32 = arith.constant 511 : i32
    %34 = tpu.dynamic_rotate %9 by %c511_i32 dim 0 : vector<512x128xf32>, i32 -> vector<512x128xf32>
    %c15_i32 = arith.constant 15 : i32
    %35 = vector.broadcast %c15_i32 : i32 to vector<512x1xi32>
    %36 = arith.cmpi slt, %26, %35 : vector<512x1xi32>
    %37 = arith.extui %36 : vector<512x1xi1> to vector<512x1xi32>
    %38 = arith.sitofp %37 : vector<512x1xi32> to vector<512x1xf32>
    %39 = vector.broadcast %38 : vector<512x1xf32> to vector<512x128xf32>
    %40 = arith.mulf %34, %39 : vector<512x128xf32>
    %41 = arith.truncf %33 : vector<512x128xf32> to vector<512x128xbf16>
    %42 = arith.truncf %9 : vector<512x128xf32> to vector<512x128xbf16>
    %43 = arith.truncf %40 : vector<512x128xf32> to vector<512x128xbf16>
    %44 = tpu.concatenate %41, %42, %43 in 1 : vector<512x128xbf16>, vector<512x128xbf16>, vector<512x128xbf16> -> vector<512x384xbf16>
    %c0_13 = arith.constant 0 : index
    %c0_14 = arith.constant 0 : index
    %45 = vector.load %arg4[%c0_13, %c0_14] : memref<384x128xbf16, #tpu.memory_space<vmem>>, vector<384x128xbf16>
    %cst_15 = arith.constant dense<0.000000e+00> : vector<512x128xf32>
    %46 = tpu.matmul %44, %45, %cst_15 {dimension_numbers = #tpu.dot_dimension_numbers<[1], [0], [0], [1], [0, 0, 1, 1], [], []>} : vector<512x384xbf16>, vector<384x128xbf16>, vector<512x128xf32> -> vector<512x128xf32>
    %c0_16 = arith.constant 0 : index
    %c0_17 = arith.constant 0 : index
    %47 = vector.load %arg5[%c0_16, %c0_17] : memref<384x128xbf16, #tpu.memory_space<vmem>>, vector<384x128xbf16>
    %cst_18 = arith.constant dense<0.000000e+00> : vector<512x128xf32>
    %48 = tpu.matmul %44, %47, %cst_18 {dimension_numbers = #tpu.dot_dimension_numbers<[1], [0], [0], [1], [0, 0, 1, 1], [], []>} : vector<512x384xbf16>, vector<384x128xbf16>, vector<512x128xf32> -> vector<512x128xf32>
    %c0_19 = arith.constant 0 : index
    %c0_20 = arith.constant 0 : index
    %49 = vector.load %arg6[%c0_19, %c0_20] : memref<384x128xbf16, #tpu.memory_space<vmem>>, vector<384x128xbf16>
    %cst_21 = arith.constant dense<0.000000e+00> : vector<512x128xf32>
    %50 = tpu.matmul %44, %49, %cst_21 {dimension_numbers = #tpu.dot_dimension_numbers<[1], [0], [0], [1], [0, 0, 1, 1], [], []>} : vector<512x384xbf16>, vector<384x128xbf16>, vector<512x128xf32> -> vector<512x128xf32>
    %51 = tpu.iota {dimensions = array<i32: 0>} : vector<512x1xi32>
    %c256_i32 = arith.constant 256 : i32
    %c0_i32_22 = arith.constant 0 : i32
    %52 = arith.cmpi eq, %c256_i32, %c0_i32_22 : i32
    %c1_i32_23 = arith.constant 1 : i32
    %53 = arith.select %52, %c1_i32_23, %c256_i32 : i32
    %54 = vector.broadcast %53 : i32 to vector<512x1xi32>
    %55 = arith.remsi %51, %54 : vector<512x1xi32>
    %c0_i32_24 = arith.constant 0 : i32
    %56 = vector.broadcast %c0_i32_24 : i32 to vector<512x1xi32>
    %57 = arith.cmpi ne, %55, %56 : vector<512x1xi32>
    %c0_i32_25 = arith.constant 0 : i32
    %58 = vector.broadcast %c0_i32_25 : i32 to vector<512x1xi32>
    %59 = arith.cmpi slt, %55, %58 : vector<512x1xi32>
    %c0_i32_26 = arith.constant 0 : i32
    %60 = arith.cmpi slt, %53, %c0_i32_26 : i32
    %61 = vector.broadcast %60 : i1 to vector<512x1xi1>
    %62 = vector.broadcast %61 : vector<512x1xi1> to vector<512x1xi1>
    %63 = arith.xori %59, %62 : vector<512x1xi1>
    %64 = arith.andi %63, %57 : vector<512x1xi1>
    %65 = vector.broadcast %53 : i32 to vector<512x1xi32>
    %66 = arith.addi %55, %65 : vector<512x1xi32>
    %67 = arith.select %64, %66, %55 : vector<512x1xi1>, vector<512x1xi32>
    %c16_i32_27 = arith.constant 16 : i32
    %68 = vector.broadcast %c16_i32_27 : i32 to vector<512x1xi32>
    %69 = arith.cmpi sge, %67, %68 : vector<512x1xi32>
    %70 = arith.extui %69 : vector<512x1xi1> to vector<512x1xi32>
    %71 = arith.sitofp %70 : vector<512x1xi32> to vector<512x1xf32>
    %c240_i32 = arith.constant 240 : i32
    %72 = vector.broadcast %c240_i32 : i32 to vector<512x1xi32>
    %73 = arith.cmpi slt, %67, %72 : vector<512x1xi32>
    %74 = arith.extui %73 : vector<512x1xi1> to vector<512x1xi32>
    %75 = arith.sitofp %74 : vector<512x1xi32> to vector<512x1xf32>
    %c16_i32_28 = arith.constant 16 : i32
    %76 = tpu.dynamic_rotate %46 by %c16_i32_28 dim 0 : vector<512x128xf32>, i32 -> vector<512x128xf32>
    %77 = vector.broadcast %71 : vector<512x1xf32> to vector<512x128xf32>
    %78 = arith.mulf %77, %76 : vector<512x128xf32>
    %79 = arith.addf %48, %78 : vector<512x128xf32>
    %c496_i32 = arith.constant 496 : i32
    %80 = tpu.dynamic_rotate %50 by %c496_i32 dim 0 : vector<512x128xf32>, i32 -> vector<512x128xf32>
    %81 = vector.broadcast %75 : vector<512x1xf32> to vector<512x128xf32>
    %82 = arith.mulf %81, %80 : vector<512x128xf32>
    %83 = arith.addf %79, %82 : vector<512x128xf32>
    %c0_29 = arith.constant 0 : index
    %c0_30 = arith.constant 0 : index
    %84 = vector.load %arg7[%c0_29, %c0_30] : memref<1x128xf32, #tpu.memory_space<vmem>>, vector<1x128xf32>
    %85 = vector.broadcast %84 : vector<1x128xf32> to vector<512x128xf32>
    %86 = arith.addf %83, %85 : vector<512x128xf32>
    %cst_31 = arith.constant 0.000000e+00 : f32
    %87 = vector.broadcast %cst_31 : f32 to vector<512x128xf32>
    %88 = arith.maximumf %86, %87 : vector<512x128xf32>
    %89 = arith.truncf %88 : vector<512x128xf32> to vector<512x128xbf16>
    %c0_32 = arith.constant 0 : index
    %c0_33 = arith.constant 0 : index
    %90 = vector.load %arg8[%c0_32, %c0_33] : memref<128x256xbf16, #tpu.memory_space<vmem>>, vector<128x256xbf16>
    %cst_34 = arith.constant dense<0.000000e+00> : vector<512x256xf32>
    %91 = tpu.matmul %89, %90, %cst_34 {dimension_numbers = #tpu.dot_dimension_numbers<[1], [0], [0], [1], [0, 0, 1, 1], [], []>} : vector<512x128xbf16>, vector<128x256xbf16>, vector<512x256xf32> -> vector<512x256xf32>
    %c0_35 = arith.constant 0 : index
    %c0_36 = arith.constant 0 : index
    %92 = vector.load %arg9[%c0_35, %c0_36] : memref<1x256xf32, #tpu.memory_space<vmem>>, vector<1x256xf32>
    %93 = vector.broadcast %92 : vector<1x256xf32> to vector<512x256xf32>
    %94 = arith.addf %91, %93 : vector<512x256xf32>
    %c0_37 = arith.constant 0 : index
    %c0_38 = arith.constant 0 : index
    %c0_39 = arith.constant 0 : index
    %c0_40 = arith.constant 0 : index
    %95 = vector.load %arg1[%c0_37, %c0_38, %c0_39, %c0_40] : memref<2x16x16x256xf32, #tpu.memory_space<vmem>>, vector<2x16x16x256xf32>
    %96 = vector.shape_cast %95 : vector<2x16x16x256xf32> to vector<512x256xf32>
    %97 = arith.addf %94, %96 : vector<512x256xf32>
    %cst_41 = arith.constant 0.000000e+00 : f32
    %98 = vector.broadcast %cst_41 : f32 to vector<512x256xf32>
    %99 = arith.maximumf %97, %98 : vector<512x256xf32>
    %100 = vector.shape_cast %99 : vector<512x256xf32> to vector<2x16x16x256xf32>
    %c0_42 = arith.constant 0 : index
    %c0_43 = arith.constant 0 : index
    %c0_44 = arith.constant 0 : index
    %c0_45 = arith.constant 0 : index
    %101 = vector.load %arg10[%c0_42, %c0_43, %c0_44, %c0_45] : memref<2x16x16x256xf32, #tpu.memory_space<vmem>>, vector<2x16x16x256xf32>
    tpu.vector_store %arg10[%c0_42, %c0_43, %c0_44, %c0_45], %100 {strides = array<i32>} : memref<2x16x16x256xf32, #tpu.memory_space<vmem>>, vector<2x16x16x256xf32>,
    return
  }
  func.func @transform_0(%arg0: i32) -> (i32, i32, i32, i32) {
    %c0_i32 = arith.constant 0 : i32
    %c0_i32_0 = arith.constant 0 : i32
    %c0_i32_1 = arith.constant 0 : i32
    %c0_i32_2 = arith.constant 0 : i32
    return %arg0, %c0_i32, %c0_i32_0, %c0_i32_1 : i32, i32, i32, i32
  }
  func.func @transform_1(%arg0: i32) -> (i32, i32) {
    %c0_i32 = arith.constant 0 : i32
    %c0_i32_0 = arith.constant 0 : i32
    %c0_i32_1 = arith.constant 0 : i32
    return %c0_i32, %c0_i32_0 : i32, i32
  }
  func.func @transform_2(%arg0: i32) -> (i32, i32) {
    %c0_i32 = arith.constant 0 : i32
    %c0_i32_0 = arith.constant 0 : i32
    %c0_i32_1 = arith.constant 0 : i32
    return %c0_i32, %c0_i32_0 : i32, i32
  }
  func.func @transform_3(%arg0: i32) -> (i32, i32) {
    %c0_i32 = arith.constant 0 : i32
    %c0_i32_0 = arith.constant 0 : i32
    %c0_i32_1 = arith.constant 0 : i32
    return %c0_i32, %c0_i32_0 : i32, i32
  }
  func.func @transform_4(%arg0: i32) -> (i32, i32) {
    %c0_i32 = arith.constant 0 : i32
    %c0_i32_0 = arith.constant 0 : i32
    %c0_i32_1 = arith.constant 0 : i32
    return %c0_i32, %c0_i32_0 : i32, i32
  }
  func.func @transform_5(%arg0: i32) -> (i32, i32) {
    %c0_i32 = arith.constant 0 : i32
    %c0_i32_0 = arith.constant 0 : i32
    %c0_i32_1 = arith.constant 0 : i32
    return %c0_i32, %c0_i32_0 : i32, i32
  }
  func.func @transform_6(%arg0: i32) -> (i32, i32) {
    %c0_i32 = arith.constant 0 : i32
    %c0_i32_0 = arith.constant 0 : i32
    %c0_i32_1 = arith.constant 0 : i32
    return %c0_i32, %c0_i32_0 : i32, i32
  }
  func.func @transform_7(%arg0: i32) -> (i32, i32) {
    %c0_i32 = arith.constant 0 : i32
    %c0_i32_0 = arith.constant 0 : i32
    %c0_i32_1 = arith.constant 0 : i32
    return %c0_i32, %c0_i32_0 : i32, i32
  }
  func.func @transform_8(%arg0: i32) -> (i32, i32) {
    %c0_i32 = arith.constant 0 : i32
    %c0_i32_0 = arith.constant 0 : i32
    %c0_i32_1 = arith.constant 0 : i32
    return %c0_i32, %c0_i32_0 : i32, i32
  }
  func.func @transform_9(%arg0: i32) -> (i32, i32, i32, i32) {
    %c0_i32 = arith.constant 0 : i32
    %c0_i32_0 = arith.constant 0 : i32
    %c0_i32_1 = arith.constant 0 : i32
    %c0_i32_2 = arith.constant 0 : i32
    return %arg0, %c0_i32, %c0_i32_0, %c0_i32_1 : i32, i32, i32, i32
  }
}

</mosaic_0001>

<llo_original>
// kernel: tpu_custom_call.1
$region0: #{tpu_custom_call.1}
  #allocation0 [shape = 'u32[]', space=smem, size = 0x4, offset = 0x4, fixed_abs, tag = 'smem constant byte address 0x4 - core index']
  #allocation1 [shape = 'u32[144,128]{1,0:T(1,128)}', space=vmem, size = 0x12000, scoped, tag = 'internal scratch']
  %s0 = inlined_call_operand.hbm [shape: f32[8,16,16,256], index: 0, kind: input, shape index: {}]
  %s1 = inlined_call_operand.hbm [shape: bf16[256,128], index: 1, kind: input, shape index: {}]
  %s2 = inlined_call_operand.hbm [shape: f32[1,128], index: 2, kind: input, shape index: {}]
  %s3 = inlined_call_operand.hbm [shape: bf16[384,128], index: 3, kind: input, shape index: {}]
  %s4 = inlined_call_operand.hbm [shape: bf16[384,128], index: 4, kind: input, shape index: {}]
  %s5 = inlined_call_operand.hbm [shape: bf16[384,128], index: 5, kind: input, shape index: {}]
  %s6 = inlined_call_operand.hbm [shape: f32[1,128], index: 6, kind: input, shape index: {}]
  %s7 = inlined_call_operand.hbm [shape: bf16[128,256], index: 7, kind: input, shape index: {}]
  %s8 = inlined_call_operand.hbm [shape: f32[1,256], index: 8, kind: input, shape index: {}]
  %s9 = inlined_call_operand.hbm [shape: f32[8,16,16,256], index: 9, kind: output, shape index: {}]
  %s10 = sld [smem:[#allocation0]]
  $region105: #{tpu_custom_call.1} parent=0
    _
  %s12 = ssub.s32 1, %s10
  %s13 = scalar_select 0, %s12, %s10
  $region1: #{tpu_custom_call.1} parent=0
    #allocation2 [shape = 'u8[1048576]{0}', space=vmem, size = 0x100000, scoped, tag = 'input window, operand 0']
    #allocation3 [shape = 's32[2]{0}', space=sflag, size = 0x8, scoped, tag = 'scoped memory for tpu_custom_call.1']
    #allocation4 [shape = 's32[2]{0}', space=sflag, size = 0x8, scoped, tag = 'scoped memory for tpu_custom_call.1']
    #allocation5 [shape = 'u8[65536]{0}', space=vmem, size = 0x10000, scoped, tag = 'input window, operand 1, single buffered']
    #allocation6 [shape = 's32[1]{0}', space=sflag, size = 0x4, scoped, tag = 'scoped memory for tpu_custom_call.1']
    #allocation7 [shape = 'u8[512]{0}', space=vmem, size = 0x400, scoped, tag = 'input window, operand 2, single buffered']
    #allocation8 [shape = 'u8[98304]{0}', space=vmem, size = 0x18000, scoped, tag = 'input window, operand 3, single buffered']
    #allocation9 [shape = 's32[1]{0}', space=sflag, size = 0x4, scoped, tag = 'scoped memory for tpu_custom_call.1']
    #allocation10 [shape = 'u8[98304]{0}', space=vmem, size = 0x18000, scoped, tag = 'input window, operand 4, single buffered']
    #allocation11 [shape = 'u8[98304]{0}', space=vmem, size = 0x18000, scoped, tag = 'input window, operand 5, single buffered']
    #allocation12 [shape = 's32[1]{0}', space=sflag, size = 0x4, scoped, tag = 'scoped memory for tpu_custom_call.1']
    #allocation13 [shape = 'u8[512]{0}', space=vmem, size = 0x400, scoped, tag = 'input window, operand 6, single buffered']
    #allocation14 [shape = 'u8[65536]{0}', space=vmem, size = 0x10000, scoped, tag = 'input window, operand 7, single buffered']
    #allocation15 [shape = 's32[1]{0}', space=sflag, size = 0x4, scoped, tag = 'scoped memory for tpu_custom_call.1']
    #allocation16 [shape = 'u8[1024]{0}', space=vmem, size = 0x400, scoped, tag = 'input window, operand 8, single buffered']
    #allocation17 [shape = 'u8[1048576]{0}', space=vmem, size = 0x100000, scoped, tag = 'output window, operand 0']
    %14 = vsyncpa [#allocation3], 0
    %s15 = scalar_lea.sflag [#allocation3], 1
    %16 = vsyncpa %s15, 0
    %17 = vsyncpa [#allocation6], 0
    %18 = vsyncpa [#allocation9], 0
    %19 = vsyncpa [#allocation12], 0
    %20 = vsyncpa [#allocation15], 0
    %21 = vsyncpa [#allocation4], 0
    %s22 = scalar_lea.sflag [#allocation4], 1
    %23 = vsyncpa %s22, 0
    loop: start=0, step=1, limit=6
    $region2: #{tpu_custom_call.1} parent=1 // loop_pre_header
      _
    $region3: #{tpu_custom_call.1} parent=1 // loop_header
      %s25 = sphi 0, %s29
      %p26 = scmp.ge.s32.totalorder %s25, 6
      %s35 = sphi 0, %s37
      %s38 = sphi 0, %s35
      %s39 = sphi 0, %s38
      %s55 = sphi 0, %s39
      %s59 = sphi 0, %s59
      %s61 = sphi 0, %s59
      %s62 = sphi 0, %s61
      %s76 = sphi 0, %s62
      %s80 = sphi 0, %s80
      %s82 = sphi 0, %s80
      %s83 = sphi 0, %s82
      %s97 = sphi 0, %s83
      %s101 = sphi 0, %s101
      %s103 = sphi 0, %s101
      %s104 = sphi 0, %s103
      %s118 = sphi 0, %s104
      %s122 = sphi 0, %s122
      %s124 = sphi 0, %s122
      %s125 = sphi 0, %s124
      %s139 = sphi 0, %s125
      %s143 = sphi 0, %s143
      %s145 = sphi 0, %s143
      %s146 = sphi 0, %s145
      %s160 = sphi 0, %s146
      %s164 = sphi 0, %s164
      %s166 = sphi 0, %s164
      %s167 = sphi 0, %s166
      %s181 = sphi 0, %s167
      %s185 = sphi 0, %s185
      %s187 = sphi 0, %s185
      %s188 = sphi 0, %s187
      %s202 = sphi 0, %s188
      %s206 = sphi 0, %s206
      %s208 = sphi 0, %s206
      %s209 = sphi 0, %s208
      %s223 = sphi 0, %s209
      %s229 = sphi 0, %s231
      %s232 = sphi 0, %s229
      %s233 = sphi 0, %s232
      %s249 = sphi 0, %s233
    $region4: #{tpu_custom_call.1} parent=1 // loop_header_branch
      %28 = sbr.rel (%p26) target = $region8
    $region5: #{tpu_custom_call.1} parent=1 // loop_body
      %s30 = ssub.s32 %s25, 1
      %s31 = ssub.s32 %s25, 2
      %s32 = sadd.s32 %s25, 1
      %s33 = ssub.s32 %s25, %s32
      %p34 = scmp.eq.s32.totalorder %s33, 0
      %s36 = sadd.s32 %s35, 1
      %s37 = scalar_select %p34, %s35, %s36
      %p40 = pneg %p34
      %p41 = scmp.eq.s32.totalorder %s25, 3
      %p42 = por %p40, %p41
      %p43 = scmp.ne.s32.totalorder %s35, %s38
      %p44 = scmp.eq.s32.totalorder %s25, 0
      %p45 = por %p43, %p44
      %p46 = scmp.ne.s32.totalorder %s35, %s38
      %p47 = scmp.eq.s32.totalorder %s30, 3
      %p48 = por %p46, %p47
      %p49 = scmp.ne.s32.totalorder %s38, %s39
      %p50 = scmp.eq.s32.totalorder %s30, 0
      %p51 = por %p49, %p50
      %p52 = scmp.ne.s32.totalorder %s38, %s39
      %p53 = scmp.eq.s32.totalorder %s31, 3
      %p54 = por %p52, %p53
      %p56 = scmp.ne.s32.totalorder %s39, %s55
      %p57 = scmp.eq.s32.totalorder %s31, 0
      %p58 = por %p56, %p57
      %s60 = sadd.s32 %s59, 1
      %p63 = scmp.eq.s32.totalorder %s25, 3
      %p64 = scmp.ne.s32.totalorder %s59, %s61
      %p65 = scmp.eq.s32.totalorder %s25, 0
      %p66 = por %p64, %p65
      %p67 = scmp.ne.s32.totalorder %s59, %s61
      %p68 = scmp.eq.s32.totalorder %s30, 3
      %p69 = por %p67, %p68
      %p70 = scmp.ne.s32.totalorder %s61, %s62
      %p71 = scmp.eq.s32.totalorder %s30, 0
      %p72 = por %p70, %p71
      %p73 = scmp.ne.s32.totalorder %s61, %s62
      %p74 = scmp.eq.s32.totalorder %s31, 3
      %p75 = por %p73, %p74
      %p77 = scmp.ne.s32.totalorder %s62, %s76
      %p78 = scmp.eq.s32.totalorder %s31, 0
      %p79 = por %p77, %p78
      %s81 = sadd.s32 %s80, 1
      %p84 = scmp.eq.s32.totalorder %s25, 3
      %p85 = scmp.ne.s32.totalorder %s80, %s82
      %p86 = scmp.eq.s32.totalorder %s25, 0
      %p87 = por %p85, %p86
      %p88 = scmp.ne.s32.totalorder %s80, %s82
      %p89 = scmp.eq.s32.totalorder %s30, 3
      %p90 = por %p88, %p89
      %p91 = scmp.ne.s32.totalorder %s82, %s83
      %p92 = scmp.eq.s32.totalorder %s30, 0
      %p93 = por %p91, %p92
      %p94 = scmp.ne.s32.totalorder %s82, %s83
      %p95 = scmp.eq.s32.totalorder %s31, 3
      %p96 = por %p94, %p95
      %p98 = scmp.ne.s32.totalorder %s83, %s97
      %p99 = scmp.eq.s32.totalorder %s31, 0
      %p100 = por %p98, %p99
      %s102 = sadd.s32 %s101, 1
      %p105 = scmp.eq.s32.totalorder %s25, 3
      %p106 = scmp.ne.s32.totalorder %s101, %s103
      %p107 = scmp.eq.s32.totalorder %s25, 0
      %p108 = por %p106, %p107
      %p109 = scmp.ne.s32.totalorder %s101, %s103
      %p110 = scmp.eq.s32.totalorder %s30, 3
      %p111 = por %p109, %p110
      %p112 = scmp.ne.s32.totalorder %s103, %s104
      %p113 = scmp.eq.s32.totalorder %s30, 0
      %p114 = por %p112, %p113
      %p115 = scmp.ne.s32.totalorder %s103, %s104
      %p116 = scmp.eq.s32.totalorder %s31, 3
      %p117 = por %p115, %p116
      %p119 = scmp.ne.s32.totalorder %s104, %s118
      %p120 = scmp.eq.s32.totalorder %s31, 0
      %p121 = por %p119, %p120
      %s123 = sadd.s32 %s122, 1
      %p126 = scmp.eq.s32.totalorder %s25, 3
      %p127 = scmp.ne.s32.totalorder %s122, %s124
      %p128 = scmp.eq.s32.totalorder %s25, 0
      %p129 = por %p127, %p128
      %p130 = scmp.ne.s32.totalorder %s122, %s124
      %p131 = scmp.eq.s32.totalorder %s30, 3
      %p132 = por %p130, %p131
      %p133 = scmp.ne.s32.totalorder %s124, %s125
      %p134 = scmp.eq.s32.totalorder %s30, 0
      %p135 = por %p133, %p134
      %p136 = scmp.ne.s32.totalorder %s124, %s125
      %p137 = scmp.eq.s32.totalorder %s31, 3
      %p138 = por %p136, %p137
      %p140 = scmp.ne.s32.totalorder %s125, %s139
      %p141 = scmp.eq.s32.totalorder %s31, 0
      %p142 = por %p140, %p141
      %s144 = sadd.s32 %s143, 1
      %p147 = scmp.eq.s32.totalorder %s25, 3
      %p148 = scmp.ne.s32.totalorder %s143, %s145
      %p149 = scmp.eq.s32.totalorder %s25, 0
      %p150 = por %p148, %p149
      %p151 = scmp.ne.s32.totalorder %s143, %s145
      %p152 = scmp.eq.s32.totalorder %s30, 3
      %p153 = por %p151, %p152
      %p154 = scmp.ne.s32.totalorder %s145, %s146
      %p155 = scmp.eq.s32.totalorder %s30, 0
      %p156 = por %p154, %p155
      %p157 = scmp.ne.s32.totalorder %s145, %s146
      %p158 = scmp.eq.s32.totalorder %s31, 3
      %p159 = por %p157, %p158
      %p161 = scmp.ne.s32.totalorder %s146, %s160
      %p162 = scmp.eq.s32.totalorder %s31, 0
      %p163 = por %p161, %p162
      %s165 = sadd.s32 %s164, 1
      %p168 = scmp.eq.s32.totalorder %s25, 3
      %p169 = scmp.ne.s32.totalorder %s164, %s166
      %p170 = scmp.eq.s32.totalorder %s25, 0
      %p171 = por %p169, %p170
      %p172 = scmp.ne.s32.totalorder %s164, %s166
      %p173 = scmp.eq.s32.totalorder %s30, 3
      %p174 = por %p172, %p173
      %p175 = scmp.ne.s32.totalorder %s166, %s167
      %p176 = scmp.eq.s32.totalorder %s30, 0
      %p177 = por %p175, %p176
      %p178 = scmp.ne.s32.totalorder %s166, %s167
      %p179 = scmp.eq.s32.totalorder %s31, 3
      %p180 = por %p178, %p179
      %p182 = scmp.ne.s32.totalorder %s167, %s181
      %p183 = scmp.eq.s32.totalorder %s31, 0
      %p184 = por %p182, %p183
      %s186 = sadd.s32 %s185, 1
      %p189 = scmp.eq.s32.totalorder %s25, 3
      %p190 = scmp.ne.s32.totalorder %s185, %s187
      %p191 = scmp.eq.s32.totalorder %s25, 0
      %p192 = por %p190, %p191
      %p193 = scmp.ne.s32.totalorder %s185, %s187
      %p194 = scmp.eq.s32.totalorder %s30, 3
      %p195 = por %p193, %p194
      %p196 = scmp.ne.s32.totalorder %s187, %s188
      %p197 = scmp.eq.s32.totalorder %s30, 0
      %p198 = por %p196, %p197
      %p199 = scmp.ne.s32.totalorder %s187, %s188
      %p200 = scmp.eq.s32.totalorder %s31, 3
      %p201 = por %p199, %p200
      %p203 = scmp.ne.s32.totalorder %s188, %s202
      %p204 = scmp.eq.s32.totalorder %s31, 0
      %p205 = por %p203, %p204
      %s207 = sadd.s32 %s206, 1
      %p210 = scmp.eq.s32.totalorder %s25, 3
      %p211 = scmp.ne.s32.totalorder %s206, %s208
      %p212 = scmp.eq.s32.totalorder %s25, 0
      %p213 = por %p211, %p212
      %p214 = scmp.ne.s32.totalorder %s206, %s208
      %p215 = scmp.eq.s32.totalorder %s30, 3
      %p216 = por %p214, %p215
      %p217 = scmp.ne.s32.totalorder %s208, %s209
      %p218 = scmp.eq.s32.totalorder %s30, 0
      %p219 = por %p217, %p218
      %p220 = scmp.ne.s32.totalorder %s208, %s209
      %p221 = scmp.eq.s32.totalorder %s31, 3
      %p222 = por %p220, %p221
      %p224 = scmp.ne.s32.totalorder %s209, %s223
      %p225 = scmp.eq.s32.totalorder %s31, 0
      %p226 = por %p224, %p225
      %s227 = ssub.s32 %s25, %s32
      %p228 = scmp.eq.s32.totalorder %s227, 0
      %s230 = sadd.s32 %s229, 1
      %s231 = scalar_select %p228, %s229, %s230
      %p234 = pneg %p228
      %p235 = scmp.eq.s32.totalorder %s25, 3
      %p236 = por %p234, %p235
      %p237 = scmp.ne.s32.totalorder %s229, %s232
      %p238 = scmp.eq.s32.totalorder %s25, 0
      %p239 = por %p237, %p238
      %p240 = scmp.ne.s32.totalorder %s229, %s232
      %p241 = scmp.eq.s32.totalorder %s30, 3
      %p242 = por %p240, %p241
      %p243 = scmp.ne.s32.totalorder %s232, %s233
      %p244 = scmp.eq.s32.totalorder %s30, 0
      %p245 = por %p243, %p244
      %p246 = scmp.ne.s32.totalorder %s232, %s233
      %p247 = scmp.eq.s32.totalorder %s31, 3
      %p248 = por %p246, %p247
      %p250 = scmp.ne.s32.totalorder %s233, %s249
      %p251 = scmp.eq.s32.totalorder %s31, 0
      %p252 = por %p250, %p251
      %p253 = scmp.le.s32.totalorder 1, %s25
      %p254 = scmp.lt.s32.totalorder %s25, 5
      %p255 = pnand %p253, %p254
      %p256 = pneg %p255
      // Predicated region
      $region9: #{tpu_custom_call.1} parent=5 // pred_check
        _
      $region10: #{tpu_custom_call.1} parent=5 // pred_check_branch
        %258 = sbr.rel (%p255) target = $region12
      $region11: #{tpu_custom_call.1} parent=5 // pred_region
        %s259 = ssub.s32 %s25, 1
        // Predicated region
        $region13: #{tpu_custom_call.1} parent=11 // pred_check
          %p260 = pneg %p72
        $region14: #{tpu_custom_call.1} parent=11 // pred_check_branch
          %262 = sbr.rel (%p260) target = $region16
        $region15: #{tpu_custom_call.1} parent=11 // pred_region
          %s264 = ssub.s32 2048, 2048
          %265 = vsyncadd [#allocation6], %s264
          %s266 = sshll.u32 [#allocation5], 4
          %s267 = int_to_ptr.vmem [resolvable:$true] %s266
          %272 = dma.hbm_to_vmem [thread:$0]  %s1, 2048, %s267, [#allocation6], 64, 64, 4
        $region16: #{tpu_custom_call.1} parent=11 // pred_fallthru
          _
        // Predicated region
        $region17: #{tpu_custom_call.1} parent=11 // pred_check
          %p273 = pneg %p93
        $region18: #{tpu_custom_call.1} parent=11 // pred_check_branch
          %275 = sbr.rel (%p273) target = $region20
        $region19: #{tpu_custom_call.1} parent=11 // pred_region
          %s277 = ssub.s32 16, 16
          %278 = vsyncadd [#allocation6], %s277
          %s280 = sshll.u32 [#allocation7], 4
          %s281 = int_to_ptr.vmem [resolvable:$true] %s280
          %283 = dma.hbm_to_vmem [thread:$0]  %s2, 16, %s281, [#allocation6]
        $region20: #{tpu_custom_call.1} parent=11 // pred_fallthru
          _
        // Predicated region
        $region21: #{tpu_custom_call.1} parent=11 // pred_check
          %p284 = pneg %p114
        $region22: #{tpu_custom_call.1} parent=11 // pred_check_branch
          %286 = sbr.rel (%p284) target = $region24
        $region23: #{tpu_custom_call.1} parent=11 // pred_region
          %s288 = ssub.s32 3072, 3072
          %289 = vsyncadd [#allocation9], %s288
          %s290 = sshll.u32 [#allocation8], 4
          %s291 = int_to_ptr.vmem [resolvable:$true] %s290
          %296 = dma.hbm_to_vmem [thread:$0]  %s3, 3072, %s291, [#allocation9], 64, 64, 4
        $region24: #{tpu_custom_call.1} parent=11 // pred_fallthru
          _
        // Predicated region
        $region25: #{tpu_custom_call.1} parent=11 // pred_check
          %p297 = pneg %p135
        $region26: #{tpu_custom_call.1} parent=11 // pred_check_branch
          %299 = sbr.rel (%p297) target = $region28
        $region27: #{tpu_custom_call.1} parent=11 // pred_region
          %s301 = ssub.s32 3072, 3072
          %302 = vsyncadd [#allocation9], %s301
          %s303 = sshll.u32 [#allocation10], 4
          %s304 = int_to_ptr.vmem [resolvable:$true] %s303
          %309 = dma.hbm_to_vmem [thread:$0]  %s4, 3072, %s304, [#allocation9], 64, 64, 4
        $region28: #{tpu_custom_call.1} parent=11 // pred_fallthru
          _
        // Predicated region
        $region29: #{tpu_custom_call.1} parent=11 // pred_check
          %p310 = pneg %p156
        $region30: #{tpu_custom_call.1} parent=11 // pred_check_branch
          %312 = sbr.rel (%p310) target = $region32
        $region31: #{tpu_custom_call.1} parent=11 // pred_region
          %s314 = ssub.s32 3072, 3072
          %315 = vsyncadd [#allocation12], %s314
          %s316 = sshll.u32 [#allocation11], 4
          %s317 = int_to_ptr.vmem [resolvable:$true] %s316
          %322 = dma.hbm_to_vmem [thread:$0]  %s5, 3072, %s317, [#allocation12], 64, 64, 4
        $region32: #{tpu_custom_call.1} parent=11 // pred_fallthru
          _
        // Predicated region
        $region33: #{tpu_custom_call.1} parent=11 // pred_check
          %p323 = pneg %p177
        $region34: #{tpu_custom_call.1} parent=11 // pred_check_branch
          %325 = sbr.rel (%p323) target = $region36
        $region35: #{tpu_custom_call.1} parent=11 // pred_region
          %s327 = ssub.s32 16, 16
          %328 = vsyncadd [#allocation12], %s327
          %s330 = sshll.u32 [#allocation13], 4
          %s331 = int_to_ptr.vmem [resolvable:$true] %s330
          %333 = dma.hbm_to_vmem [thread:$0]  %s6, 16, %s331, [#allocation12]
        $region36: #{tpu_custom_call.1} parent=11 // pred_fallthru
          _
        // Predicated region
        $region37: #{tpu_custom_call.1} parent=11 // pred_check
          %p334 = pneg %p198
        $region38: #{tpu_custom_call.1} parent=11 // pred_check_branch
          %336 = sbr.rel (%p334) target = $region40
        $region39: #{tpu_custom_call.1} parent=11 // pred_region
          %s338 = ssub.s32 2048, 2048
          %339 = vsyncadd [#allocation15], %s338
          %s340 = sshll.u32 [#allocation14], 4
          %s341 = int_to_ptr.vmem [resolvable:$true] %s340
          %346 = dma.hbm_to_vmem [thread:$0]  %s7, 2048, %s341, [#allocation15], 128, 128, 8
        $region40: #{tpu_custom_call.1} parent=11 // pred_fallthru
          _
        // Predicated region
        $region41: #{tpu_custom_call.1} parent=11 // pred_check
          %p347 = pneg %p219
        $region42: #{tpu_custom_call.1} parent=11 // pred_check_branch
          %349 = sbr.rel (%p347) target = $region44
        $region43: #{tpu_custom_call.1} parent=11 // pred_region
          %s351 = ssub.s32 32, 32
          %352 = vsyncadd [#allocation15], %s351
          %s354 = sshll.u32 [#allocation16], 4
          %s355 = int_to_ptr.vmem [resolvable:$true] %s354
          %357 = dma.hbm_to_vmem [thread:$0]  %s8, 32, %s355, [#allocation15]
        $region44: #{tpu_custom_call.1} parent=11 // pred_fallthru
          _
      $region12: #{tpu_custom_call.1} parent=5 // pred_fallthru
        _
      %p358 = scmp.lt.s32.totalorder %s25, 4
      // Predicated region
      $region45: #{tpu_custom_call.1} parent=5 // pred_check
        %p359 = pneg %p358
      $region46: #{tpu_custom_call.1} parent=5 // pred_check_branch
        %361 = sbr.rel (%p359) target = $region48
      $region47: #{tpu_custom_call.1} parent=5 // pred_region
        // Predicated region
        $region49: #{tpu_custom_call.1} parent=47 // pred_check
          %p362 = pneg %p45
        $region50: #{tpu_custom_call.1} parent=47 // pred_check_branch
          %364 = sbr.rel (%p362) target = $region52
        $region51: #{tpu_custom_call.1} parent=47 // pred_region
          %s365 = sand.u32 %s35, 1
          %s366 = scalar_lea.sflag [#allocation3], %s365
          %s367 = sand.u32 %s35, 1
          %s368 = smul.addr %s367, 1024
          %s369 = scalar_lea.vmem [#allocation2], %s368
          %s370 = smul.u32 2, %s25
          %s372 = ssub.s32 16384, 16384
          %373 = vsyncadd %s366, %s372
          %s374 = smul.addr %s370, 64
          %s375 = smul.addr %s374, 128
          %s376 = scalar_lea.hbm %s0, %s375
          %s377 = sshll.u32 %s369, 4
          %s378 = int_to_ptr.vmem [resolvable:$true] %s377
          %383 = dma.hbm_to_vmem [thread:$0]  %s376, 16384, %s378, %s366, 256, 256, 16
        $region52: #{tpu_custom_call.1} parent=47 // pred_fallthru
          _
      $region48: #{tpu_custom_call.1} parent=5 // pred_fallthru
        _
      %p384 = scmp.le.s32.totalorder 1, %s25
      %p385 = scmp.lt.s32.totalorder %s25, 5
      %p386 = pnand %p384, %p385
      %p387 = pneg %p386
      // Predicated region
      $region53: #{tpu_custom_call.1} parent=5 // pred_check
        _
      $region54: #{tpu_custom_call.1} parent=5 // pred_check_branch
        %389 = sbr.rel (%p386) target = $region56
      $region55: #{tpu_custom_call.1} parent=5 // pred_region
        %s390 = ssub.s32 %s25, 1
        %s391 = sand.u32 %s38, 1
        %s392 = scalar_lea.sflag [#allocation3], %s391
        %s393 = sand.u32 %s38, 1
        %s394 = smul.addr %s393, 1024
        %s395 = scalar_lea.vmem [#allocation2], %s394
        // Predicated region
        $region57: #{tpu_custom_call.1} parent=55 // pred_check
          %p396 = pneg %p51
        $region58: #{tpu_custom_call.1} parent=55 // pred_check_branch
          %398 = sbr.rel (%p396) target = $region60
        $region59: #{tpu_custom_call.1} parent=55 // pred_region
          %399 = dma.done %s392, 16384
        $region60: #{tpu_custom_call.1} parent=55 // pred_fallthru
          _
        // Predicated region
        $region61: #{tpu_custom_call.1} parent=55 // pred_check
          %p400 = pneg %p72
        $region62: #{tpu_custom_call.1} parent=55 // pred_check_branch
          %402 = sbr.rel (%p400) target = $region64
        $region63: #{tpu_custom_call.1} parent=55 // pred_region
          %403 = dma.done [#allocation6], 2048
        $region64: #{tpu_custom_call.1} parent=55 // pred_fallthru
          _
        // Predicated region
        $region65: #{tpu_custom_call.1} parent=55 // pred_check
          %p404 = pneg %p93
        $region66: #{tpu_custom_call.1} parent=55 // pred_check_branch
          %406 = sbr.rel (%p404) target = $region68
        $region67: #{tpu_custom_call.1} parent=55 // pred_region
          %407 = dma.done [#allocation6], 16
        $region68: #{tpu_custom_call.1} parent=55 // pred_fallthru
          _
        // Predicated region
        $region69: #{tpu_custom_call.1} parent=55 // pred_check
          %p408 = pneg %p114
        $region70: #{tpu_custom_call.1} parent=55 // pred_check_branch
          %410 = sbr.rel (%p408) target = $region72
        $region71: #{tpu_custom_call.1} parent=55 // pred_region
          %411 = dma.done [#allocation9], 3072
        $region72: #{tpu_custom_call.1} parent=55 // pred_fallthru
          _
        // Predicated region
        $region73: #{tpu_custom_call.1} parent=55 // pred_check
          %p412 = pneg %p135
        $region74: #{tpu_custom_call.1} parent=55 // pred_check_branch
          %414 = sbr.rel (%p412) target = $region76
        $region75: #{tpu_custom_call.1} parent=55 // pred_region
          %415 = dma.done [#allocation9], 3072
        $region76: #{tpu_custom_call.1} parent=55 // pred_fallthru
          _
        // Predicated region
        $region77: #{tpu_custom_call.1} parent=55 // pred_check
          %p416 = pneg %p156
        $region78: #{tpu_custom_call.1} parent=55 // pred_check_branch
          %418 = sbr.rel (%p416) target = $region80
        $region79: #{tpu_custom_call.1} parent=55 // pred_region
          %419 = dma.done [#allocation12], 3072
        $region80: #{tpu_custom_call.1} parent=55 // pred_fallthru
          _
        // Predicated region
        $region81: #{tpu_custom_call.1} parent=55 // pred_check
          %p420 = pneg %p177
        $region82: #{tpu_custom_call.1} parent=55 // pred_check_branch
          %422 = sbr.rel (%p420) target = $region84
        $region83: #{tpu_custom_call.1} parent=55 // pred_region
          %423 = dma.done [#allocation12], 16
        $region84: #{tpu_custom_call.1} parent=55 // pred_fallthru
          _
        // Predicated region
        $region85: #{tpu_custom_call.1} parent=55 // pred_check
          %p424 = pneg %p198
        $region86: #{tpu_custom_call.1} parent=55 // pred_check_branch
          %426 = sbr.rel (%p424) target = $region88
        $region87: #{tpu_custom_call.1} parent=55 // pred_region
          %427 = dma.done [#allocation15], 2048
        $region88: #{tpu_custom_call.1} parent=55 // pred_fallthru
          _
        // Predicated region
        $region89: #{tpu_custom_call.1} parent=55 // pred_check
          %p428 = pneg %p219
        $region90: #{tpu_custom_call.1} parent=55 // pred_check_branch
          %430 = sbr.rel (%p428) target = $region92
        $region91: #{tpu_custom_call.1} parent=55 // pred_region
          %431 = dma.done [#allocation15], 32
        $region92: #{tpu_custom_call.1} parent=55 // pred_fallthru
          _
        %s432 = sand.u32 %s38, 1
        %s433 = scalar_lea.sflag [#allocation3], %s432
        %s434 = sand.u32 %s38, 1
        %s435 = smul.addr %s434, 1024
        %s436 = scalar_lea.vmem [#allocation2], %s435
        %p437 = pneg %p51
        %p438 = pneg %p48
        %p439 = pneg %p72
        %p440 = pneg %p69
        %p441 = pneg %p93
        %p442 = pneg %p90
        %p443 = pneg %p114
        %p444 = pneg %p111
        %p445 = pneg %p135
        %p446 = pneg %p132
        %p447 = pneg %p156
        %p448 = pneg %p153
        %p449 = pneg %p177
        %p450 = pneg %p174
        %p451 = pneg %p198
        %p452 = pneg %p195
        %p453 = pneg %p219
        %p454 = pneg %p216
        %p455 = pneg %p245
        %p456 = pneg %p242
        %s457 = sand.u32 %s232, 1
        %s458 = scalar_lea.sflag [#allocation4], %s457
        %s459 = sand.u32 %s232, 1
        %s460 = smul.addr %s459, 1024
        %s461 = scalar_lea.vmem [#allocation17], %s460
        %s462 = smul.u32 2, %s30
        %s463 = smul.u32 2, %s30
        %v465 = vld [vmem:[%s395] sm:$0xff]
        %v466 = vld [vmem:[%s395 + $0x8] sm:$0xff]
        %v467 = vld [vmem:[%s395 + $0x10] sm:$0xff]
        %v468 = vld [vmem:[%s395 + $0x18] sm:$0xff]
        %v469 = vld [vmem:[%s395 + $0x20] sm:$0xff]
        %v470 = vld [vmem:[%s395 + $0x28] sm:$0xff]
        %v471 = vld [vmem:[%s395 + $0x30] sm:$0xff]
        %v472 = vld [vmem:[%s395 + $0x38] sm:$0xff]
        %v473 = vld [vmem:[%s395 + $0x40] sm:$0xff]
        %v474 = vld [vmem:[%s395 + $0x48] sm:$0xff]
        %v475 = vld [vmem:[%s395 + $0x50] sm:$0xff]
        %v476 = vld [vmem:[%s395 + $0x58] sm:$0xff]
        %v477 = vld [vmem:[%s395 + $0x60] sm:$0xff]
        %v478 = vld [vmem:[%s395 + $0x68] sm:$0xff]
        %v479 = vld [vmem:[%s395 + $0x70] sm:$0xff]
        %v480 = vld [vmem:[%s395 + $0x78] sm:$0xff]
        %v481 = vld [vmem:[%s395 + $0x80] sm:$0xff]
        %v482 = vld [vmem:[%s395 + $0x88] sm:$0xff]
        %v483 = vld [vmem:[%s395 + $0x90] sm:$0xff]
        %v484 = vld [vmem:[%s395 + $0x98] sm:$0xff]
        %v485 = vld [vmem:[%s395 + $0xa0] sm:$0xff]
        %v486 = vld [vmem:[%s395 + $0xa8] sm:$0xff]
        %v487 = vld [vmem:[%s395 + $0xb0] sm:$0xff]
        %v488 = vld [vmem:[%s395 + $0xb8] sm:$0xff]
        %v489 = vld [vmem:[%s395 + $0xc0] sm:$0xff]
        %v490 = vld [vmem:[%s395 + $0xc8] sm:$0xff]
        %v491 = vld [vmem:[%s395 + $0xd0] sm:$0xff]
        %v492 = vld [vmem:[%s395 + $0xd8] sm:$0xff]
        %v493 = vld [vmem:[%s395 + $0xe0] sm:$0xff]
        %v494 = vld [vmem:[%s395 + $0xe8] sm:$0xff]
        %v495 = vld [vmem:[%s395 + $0xf0] sm:$0xff]
        %v496 = vld [vmem:[%s395 + $0xf8] sm:$0xff]
        %v497 = vld [vmem:[%s395 + $0x100] sm:$0xff]
        %v498 = vld [vmem:[%s395 + $0x108] sm:$0xff]
        %v499 = vld [vmem:[%s395 + $0x110] sm:$0xff]
        %v500 = vld [vmem:[%s395 + $0x118] sm:$0xff]
        %v501 = vld [vmem:[%s395 + $0x120] sm:$0xff]
        %v502 = vld [vmem:[%s395 + $0x128] sm:$0xff]
        %v503 = vld [vmem:[%s395 + $0x130] sm:$0xff]
        %v504 = vld [vmem:[%s395 + $0x138] sm:$0xff]
        %v505 = vld [vmem:[%s395 + $0x140] sm:$0xff]
        %v506 = vld [vmem:[%s395 + $0x148] sm:$0xff]
        %v507 = vld [vmem:[%s395 + $0x150] sm:$0xff]
        %v508 = vld [vmem:[%s395 + $0x158] sm:$0xff]
        %v509 = vld [vmem:[%s395 + $0x160] sm:$0xff]
        %v510 = vld [vmem:[%s395 + $0x168] sm:$0xff]
        %v511 = vld [vmem:[%s395 + $0x170] sm:$0xff]
        %v512 = vld [vmem:[%s395 + $0x178] sm:$0xff]
        %v513 = vld [vmem:[%s395 + $0x180] sm:$0xff]
        %v514 = vld [vmem:[%s395 + $0x188] sm:$0xff]
        %v515 = vld [vmem:[%s395 + $0x190] sm:$0xff]
        %v516 = vld [vmem:[%s395 + $0x198] sm:$0xff]
        %v517 = vld [vmem:[%s395 + $0x1a0] sm:$0xff]
        %v518 = vld [vmem:[%s395 + $0x1a8] sm:$0xff]
        %v519 = vld [vmem:[%s395 + $0x1b0] sm:$0xff]
        %v520 = vld [vmem:[%s395 + $0x1b8] sm:$0xff]
        %v521 = vld [vmem:[%s395 + $0x1c0] sm:$0xff]
        %v522 = vld [vmem:[%s395 + $0x1c8] sm:$0xff]
        %v523 = vld [vmem:[%s395 + $0x1d0] sm:$0xff]
        %v524 = vld [vmem:[%s395 + $0x1d8] sm:$0xff]
        %v525 = vld [vmem:[%s395 + $0x1e0] sm:$0xff]
        %v526 = vld [vmem:[%s395 + $0x1e8] sm:$0xff]
        %v527 = vld [vmem:[%s395 + $0x1f0] sm:$0xff]
        %v528 = vld [vmem:[%s395 + $0x1f8] sm:$0xff]
        %v529 = vld [vmem:[%s395 + $0x200] sm:$0xff]
        %v530 = vld [vmem:[%s395 + $0x208] sm:$0xff]
        %v531 = vld [vmem:[%s395 + $0x210] sm:$0xff]
        %v532 = vld [vmem:[%s395 + $0x218] sm:$0xff]
        %v533 = vld [vmem:[%s395 + $0x220] sm:$0xff]
        %v534 = vld [vmem:[%s395 + $0x228] sm:$0xff]
        %v535 = vld [vmem:[%s395 + $0x230] sm:$0xff]
        %v536 = vld [vmem:[%s395 + $0x238] sm:$0xff]
        %v537 = vld [vmem:[%s395 + $0x240] sm:$0xff]
        %v538 = vld [vmem:[%s395 + $0x248] sm:$0xff]
        %v539 = vld [vmem:[%s395 + $0x250] sm:$0xff]
        %v540 = vld [vmem:[%s395 + $0x258] sm:$0xff]
        %v541 = vld [vmem:[%s395 + $0x260] sm:$0xff]
        %v542 = vld [vmem:[%s395 + $0x268] sm:$0xff]
        %v543 = vld [vmem:[%s395 + $0x270] sm:$0xff]
        %v544 = vld [vmem:[%s395 + $0x278] sm:$0xff]
        %v545 = vld [vmem:[%s395 + $0x280] sm:$0xff]
        %v546 = vld [vmem:[%s395 + $0x288] sm:$0xff]
        %v547 = vld [vmem:[%s395 + $0x290] sm:$0xff]
        %v548 = vld [vmem:[%s395 + $0x298] sm:$0xff]
        %v549 = vld [vmem:[%s395 + $0x2a0] sm:$0xff]
        %v550 = vld [vmem:[%s395 + $0x2a8] sm:$0xff]
        %v551 = vld [vmem:[%s395 + $0x2b0] sm:$0xff]
        %v552 = vld [vmem:[%s395 + $0x2b8] sm:$0xff]
        %v553 = vld [vmem:[%s395 + $0x2c0] sm:$0xff]
        %v554 = vld [vmem:[%s395 + $0x2c8] sm:$0xff]
        %v555 = vld [vmem:[%s395 + $0x2d0] sm:$0xff]
        %v556 = vld [vmem:[%s395 + $0x2d8] sm:$0xff]
        %v557 = vld [vmem:[%s395 + $0x2e0] sm:$0xff]
        %v558 = vld [vmem:[%s395 + $0x2e8] sm:$0xff]
        %v559 = vld [vmem:[%s395 + $0x2f0] sm:$0xff]
        %v560 = vld [vmem:[%s395 + $0x2f8] sm:$0xff]
        %v561 = vld [vmem:[%s395 + $0x300] sm:$0xff]
        %v562 = vld [vmem:[%s395 + $0x308] sm:$0xff]
        %v563 = vld [vmem:[%s395 + $0x310] sm:$0xff]
        %v564 = vld [vmem:[%s395 + $0x318] sm:$0xff]
        %v565 = vld [vmem:[%s395 + $0x320] sm:$0xff]
        %v566 = vld [vmem:[%s395 + $0x328] sm:$0xff]
        %v567 = vld [vmem:[%s395 + $0x330] sm:$0xff]
        %v568 = vld [vmem:[%s395 + $0x338] sm:$0xff]
        %v569 = vld [vmem:[%s395 + $0x340] sm:$0xff]
        %v570 = vld [vmem:[%s395 + $0x348] sm:$0xff]
        %v571 = vld [vmem:[%s395 + $0x350] sm:$0xff]
        %v572 = vld [vmem:[%s395 + $0x358] sm:$0xff]
        %v573 = vld [vmem:[%s395 + $0x360] sm:$0xff]
        %v574 = vld [vmem:[%s395 + $0x368] sm:$0xff]
        %v575 = vld [vmem:[%s395 + $0x370] sm:$0xff]
        %v576 = vld [vmem:[%s395 + $0x378] sm:$0xff]
        %v577 = vld [vmem:[%s395 + $0x380] sm:$0xff]
        %v578 = vld [vmem:[%s395 + $0x388] sm:$0xff]
        %v579 = vld [vmem:[%s395 + $0x390] sm:$0xff]
        %v580 = vld [vmem:[%s395 + $0x398] sm:$0xff]
        %v581 = vld [vmem:[%s395 + $0x3a0] sm:$0xff]
        %v582 = vld [vmem:[%s395 + $0x3a8] sm:$0xff]
        %v583 = vld [vmem:[%s395 + $0x3b0] sm:$0xff]
        %v584 = vld [vmem:[%s395 + $0x3b8] sm:$0xff]
        %v585 = vld [vmem:[%s395 + $0x3c0] sm:$0xff]
        %v586 = vld [vmem:[%s395 + $0x3c8] sm:$0xff]
        %v587 = vld [vmem:[%s395 + $0x3d0] sm:$0xff]
        %v588 = vld [vmem:[%s395 + $0x3d8] sm:$0xff]
        %v589 = vld [vmem:[%s395 + $0x3e0] sm:$0xff]
        %v590 = vld [vmem:[%s395 + $0x3e8] sm:$0xff]
        %v591 = vld [vmem:[%s395 + $0x3f0] sm:$0xff]
        %v592 = vld [vmem:[%s395 + $0x3f8] sm:$0xff]
        %v593 = vpack.c.bf16 %v467, %v465
        %v594 = vpack.c.bf16 %v468, %v466
        %v595 = vpack.c.bf16 %v471, %v469
        %v596 = vpack.c.bf16 %v472, %v470
        %v597 = vpack.c.bf16 %v475, %v473
        %v598 = vpack.c.bf16 %v476, %v474
        %v599 = vpack.c.bf16 %v479, %v477
        %v600 = vpack.c.bf16 %v480, %v478
        %v601 = vpack.c.bf16 %v483, %v481
        %v602 = vpack.c.bf16 %v484, %v482
        %v603 = vpack.c.bf16 %v487, %v485
        %v604 = vpack.c.bf16 %v488, %v486
        %v605 = vpack.c.bf16 %v491, %v489
        %v606 = vpack.c.bf16 %v492, %v490
        %v607 = vpack.c.bf16 %v495, %v493
        %v608 = vpack.c.bf16 %v496, %v494
        %v609 = vpack.c.bf16 %v499, %v497
        %v610 = vpack.c.bf16 %v500, %v498
        %v611 = vpack.c.bf16 %v503, %v501
        %v612 = vpack.c.bf16 %v504, %v502
        %v613 = vpack.c.bf16 %v507, %v505
        %v614 = vpack.c.bf16 %v508, %v506
        %v615 = vpack.c.bf16 %v511, %v509
        %v616 = vpack.c.bf16 %v512, %v510
        %v617 = vpack.c.bf16 %v515, %v513
        %v618 = vpack.c.bf16 %v516, %v514
        %v619 = vpack.c.bf16 %v519, %v517
        %v620 = vpack.c.bf16 %v520, %v518
        %v621 = vpack.c.bf16 %v523, %v521
        %v622 = vpack.c.bf16 %v524, %v522
        %v623 = vpack.c.bf16 %v527, %v525
        %v624 = vpack.c.bf16 %v528, %v526
        %v625 = vpack.c.bf16 %v531, %v529
        %v626 = vpack.c.bf16 %v532, %v530
        %v627 = vpack.c.bf16 %v535, %v533
        %v628 = vpack.c.bf16 %v536, %v534
        %v629 = vpack.c.bf16 %v539, %v537
        %v630 = vpack.c.bf16 %v540, %v538
        %v631 = vpack.c.bf16 %v543, %v541
        %v632 = vpack.c.bf16 %v544, %v542
        %v633 = vpack.c.bf16 %v547, %v545
        %v634 = vpack.c.bf16 %v548, %v546
        %v635 = vpack.c.bf16 %v551, %v549
        %v636 = vpack.c.bf16 %v552, %v550
        %v637 = vpack.c.bf16 %v555, %v553
        %v638 = vpack.c.bf16 %v556, %v554
        %v639 = vpack.c.bf16 %v559, %v557
        %v640 = vpack.c.bf16 %v560, %v558
        %v641 = vpack.c.bf16 %v563, %v561
        %v642 = vpack.c.bf16 %v564, %v562
        %v643 = vpack.c.bf16 %v567, %v565
        %v644 = vpack.c.bf16 %v568, %v566
        %v645 = vpack.c.bf16 %v571, %v569
        %v646 = vpack.c.bf16 %v572, %v570
        %v647 = vpack.c.bf16 %v575, %v573
        %v648 = vpack.c.bf16 %v576, %v574
        %v649 = vpack.c.bf16 %v579, %v577
        %v650 = vpack.c.bf16 %v580, %v578
        %v651 = vpack.c.bf16 %v583, %v581
        %v652 = vpack.c.bf16 %v584, %v582
        %v653 = vpack.c.bf16 %v587, %v585
        %v654 = vpack.c.bf16 %v588, %v586
        %v655 = vpack.c.bf16 %v591, %v589
        %v656 = vpack.c.bf16 %v592, %v590
        %v657 = vld [vmem:[#allocation5] sm:$0xf]
        %v658 = vld [vmem:[#allocation5 + $0x4] sm:$0xf]
        %v659 = vld [vmem:[#allocation5 + $0x8] sm:$0xf]
        %v660 = vld [vmem:[#allocation5 + $0xc] sm:$0xf]
        %v661 = vld [vmem:[#allocation5 + $0x10] sm:$0xf]
        %v662 = vld [vmem:[#allocation5 + $0x14] sm:$0xf]
        %v663 = vld [vmem:[#allocation5 + $0x18] sm:$0xf]
        %v664 = vld [vmem:[#allocation5 + $0x1c] sm:$0xf]
        %v665 = vld [vmem:[#allocation5 + $0x20] sm:$0xf]
        %v666 = vld [vmem:[#allocation5 + $0x24] sm:$0xf]
        %v667 = vld [vmem:[#allocation5 + $0x28] sm:$0xf]
        %v668 = vld [vmem:[#allocation5 + $0x2c] sm:$0xf]
        %v669 = vld [vmem:[#allocation5 + $0x30] sm:$0xf]
        %v670 = vld [vmem:[#allocation5 + $0x34] sm:$0xf]
        %v671 = vld [vmem:[#allocation5 + $0x38] sm:$0xf]
        %v672 = vld [vmem:[#allocation5 + $0x3c] sm:$0xf]
        %v673 = vld [vmem:[#allocation5 + $0x40] sm:$0xf]
        %v674 = vld [vmem:[#allocation5 + $0x44] sm:$0xf]
        %v675 = vld [vmem:[#allocation5 + $0x48] sm:$0xf]
        %v676 = vld [vmem:[#allocation5 + $0x4c] sm:$0xf]
        %v677 = vld [vmem:[#allocation5 + $0x50] sm:$0xf]
        %v678 = vld [vmem:[#allocation5 + $0x54] sm:$0xf]
        %v679 = vld [vmem:[#allocation5 + $0x58] sm:$0xf]
        %v680 = vld [vmem:[#allocation5 + $0x5c] sm:$0xf]
        %v681 = vld [vmem:[#allocation5 + $0x60] sm:$0xf]
        %v682 = vld [vmem:[#allocation5 + $0x64] sm:$0xf]
        %v683 = vld [vmem:[#allocation5 + $0x68] sm:$0xf]
        %v684 = vld [vmem:[#allocation5 + $0x6c] sm:$0xf]
        %v685 = vld [vmem:[#allocation5 + $0x70] sm:$0xf]
        %v686 = vld [vmem:[#allocation5 + $0x74] sm:$0xf]
        %v687 = vld [vmem:[#allocation5 + $0x78] sm:$0xf]
        %v688 = vld [vmem:[#allocation5 + $0x7c] sm:$0xf]
        %v689 = vld [vmem:[#allocation7] sm:$0x1]
        %v691 = vlaneseq
        %v692 = vshrl.u32 %v691, 7
        %v693 = vsub.s32 0, %v692
        %v694 = vrot.slane %v689, %v693
        %v728 = vunpack.c.l.b16 %v657
        %v729 = vunpack.c.l.b16 %v658
        %v730 = vunpack.c.l.b16 %v659
        %v731 = vunpack.c.l.b16 %v660
        %v732 = vunpack.c.l.b16 %v661
        %v733 = vunpack.c.l.b16 %v662
        %v734 = vunpack.c.l.b16 %v663
        %v735 = vunpack.c.l.b16 %v664
        %v736 = vunpack.c.l.b16 %v665
        %v737 = vunpack.c.l.b16 %v666
        %v738 = vunpack.c.l.b16 %v667
        %v739 = vunpack.c.l.b16 %v668
        %v740 = vunpack.c.l.b16 %v669
        %v741 = vunpack.c.l.b16 %v670
        %v742 = vunpack.c.l.b16 %v671
        %v743 = vunpack.c.l.b16 %v672
        %v744 = vunpack.c.l.b16 %v673
        %v745 = vunpack.c.l.b16 %v674
        %v746 = vunpack.c.l.b16 %v675
        %v747 = vunpack.c.l.b16 %v676
        %v748 = vunpack.c.l.b16 %v677
        %v749 = vunpack.c.l.b16 %v678
        %v750 = vunpack.c.l.b16 %v679
        %v751 = vunpack.c.l.b16 %v680
        %v752 = vunpack.c.l.b16 %v681
        %v753 = vunpack.c.l.b16 %v682
        %v754 = vunpack.c.l.b16 %v683
        %v755 = vunpack.c.l.b16 %v684
        %v756 = vunpack.c.l.b16 %v685
        %v757 = vunpack.c.l.b16 %v686
        %v758 = vunpack.c.l.b16 %v687
        %v759 = vunpack.c.l.b16 %v688
        %v760 = vpack.c.b16 %v729, %v728
        %v761 = vpack.c.b16 %v731, %v730
        %v762 = vpack.c.b16 %v733, %v732
        %v763 = vpack.c.b16 %v735, %v734
        %v764 = vpack.c.b16 %v737, %v736
        %v765 = vpack.c.b16 %v739, %v738
        %v766 = vpack.c.b16 %v741, %v740
        %v767 = vpack.c.b16 %v743, %v742
        %v768 = vpack.c.b16 %v745, %v744
        %v769 = vpack.c.b16 %v747, %v746
        %v770 = vpack.c.b16 %v749, %v748
        %v771 = vpack.c.b16 %v751, %v750
        %v772 = vpack.c.b16 %v753, %v752
        %v773 = vpack.c.b16 %v755, %v754
        %v774 = vpack.c.b16 %v757, %v756
        %v775 = vpack.c.b16 %v759, %v758
        %792 = vmatprep.subr.bf16.mxu0 0
        %793 = vmatpush1.bf16.msra.mxu0 %v760
        %794 = vmatprep.subr.bf16.mxu0 0
        %795 = vmatpush1.bf16.msra.mxu0 %v761
        %796 = vmatprep.subr.bf16.mxu0 0
        %797 = vmatpush1.bf16.msra.mxu0 %v762
        %798 = vmatprep.subr.bf16.mxu0 0
        %799 = vmatpush1.bf16.msra.mxu0 %v763
        %800 = vmatprep.subr.bf16.mxu0 0
        %801 = vmatpush1.bf16.msra.mxu0 %v764
        %802 = vmatprep.subr.bf16.mxu0 0
        %803 = vmatpush1.bf16.msra.mxu0 %v765
        %804 = vmatprep.subr.bf16.mxu0 0
        %805 = vmatpush1.bf16.msra.mxu0 %v766
        %806 = vmatprep.subr.bf16.mxu0 0
        %807 = vmatpush1.bf16.msra.mxu0 %v767
        %808 = vmatprep.subr.bf16.mxu0 0
        %809 = vmatpush1.bf16.msra.mxu0 %v768
        %810 = vmatprep.subr.bf16.mxu0 0
        %811 = vmatpush1.bf16.msra.mxu0 %v769
        %812 = vmatprep.subr.bf16.mxu0 0
        %813 = vmatpush1.bf16.msra.mxu0 %v770
        %814 = vmatprep.subr.bf16.mxu0 0
        %815 = vmatpush1.bf16.msra.mxu0 %v771
        %816 = vmatprep.subr.bf16.mxu0 0
        %817 = vmatpush1.bf16.msra.mxu0 %v772
        %818 = vmatprep.subr.bf16.mxu0 0
        %819 = vmatpush1.bf16.msra.mxu0 %v773
        %820 = vmatprep.subr.bf16.mxu0 0
        %821 = vmatpush1.bf16.msra.mxu0 %v774
        %822 = vmatprep.subr.bf16.mxu0 0
        %823 = vmatpush1.bf16.msra.mxu0 %v775
        %824 = vmatprep.mubr.bf16.mxu0 %v594
        %825 = vmatmul.mubr.bf16.gmra.mrb[0].mxu0 %v593
        %v826 = vpop.f32.mrb[0].mxu0
        %v827 = vadd.f32 %v694, %v826
        %v828 = vpop.f32.mrb[0].mxu0
        %v829 = vpop.f32.mrb[0].mxu0
        %v830 = vadd.f32 %v694, %v829
        %v831 = vpop.f32.mrb[0].mxu0
        %832 = vmatprep.mubr.bf16.mxu0 %v596
        %833 = vmatmul.mubr.bf16.gmra.mrb[0].mxu0 %v595
        %v834 = vpop.f32.mrb[0].mxu0
        %v835 = vadd.f32 %v694, %v834
        %v836 = vpop.f32.mrb[0].mxu0
        %v837 = vpop.f32.mrb[0].mxu0
        %v838 = vadd.f32 %v694, %v837
        %v839 = vpop.f32.mrb[0].mxu0
        %840 = vmatprep.mubr.bf16.mxu0 %v598
        %841 = vmatmul.mubr.bf16.gmra.mrb[0].mxu0 %v597
        %v842 = vpop.f32.mrb[0].mxu0
        %v843 = vadd.f32 %v694, %v842
        %v844 = vpop.f32.mrb[0].mxu0
        %v845 = vpop.f32.mrb[0].mxu0
        %v846 = vadd.f32 %v694, %v845
        %v847 = vpop.f32.mrb[0].mxu0
        %848 = vmatprep.mubr.bf16.mxu0 %v600
        %849 = vmatmul.mubr.bf16.gmra.mrb[0].mxu0 %v599
        %v850 = vpop.f32.mrb[0].mxu0
        %v851 = vadd.f32 %v694, %v850
        %v852 = vpop.f32.mrb[0].mxu0
        %v853 = vpop.f32.mrb[0].mxu0
        %v854 = vadd.f32 %v694, %v853
        %v855 = vpop.f32.mrb[0].mxu0
        %856 = vmatprep.mubr.bf16.mxu0 %v602
        %857 = vmatmul.mubr.bf16.gmra.mrb[0].mxu0 %v601
        %v858 = vpop.f32.mrb[0].mxu0
        %v859 = vadd.f32 %v694, %v858
        %v860 = vpop.f32.mrb[0].mxu0
        %v861 = vpop.f32.mrb[0].mxu0
        %v862 = vadd.f32 %v694, %v861
        %v863 = vpop.f32.mrb[0].mxu0
        %864 = vmatprep.mubr.bf16.mxu0 %v604
        %865 = vmatmul.mubr.bf16.gmra.mrb[0].mxu0 %v603
        %v866 = vpop.f32.mrb[0].mxu0
        %v867 = vadd.f32 %v694, %v866
        %v868 = vpop.f32.mrb[0].mxu0
        %v869 = vpop.f32.mrb[0].mxu0
        %v870 = vadd.f32 %v694, %v869
        %v871 = vpop.f32.mrb[0].mxu0
        %872 = vmatprep.mubr.bf16.mxu0 %v606
        %873 = vmatmul.mubr.bf16.gmra.mrb[0].mxu0 %v605
        %v874 = vpop.f32.mrb[0].mxu0
        %v875 = vadd.f32 %v694, %v874
        %v876 = vpop.f32.mrb[0].mxu0
        %v877 = vpop.f32.mrb[0].mxu0
        %v878 = vadd.f32 %v694, %v877
        %v879 = vpop.f32.mrb[0].mxu0
        %880 = vmatprep.mubr.bf16.mxu0 %v608
        %881 = vmatmul.mubr.bf16.gmra.mrb[0].mxu0 %v607
        %v882 = vpop.f32.mrb[0].mxu0
        %v883 = vadd.f32 %v694, %v882
        %v884 = vpop.f32.mrb[0].mxu0
        %v885 = vpop.f32.mrb[0].mxu0
        %v886 = vadd.f32 %v694, %v885
        %v887 = vpop.f32.mrb[0].mxu0
        %888 = vmatprep.mubr.bf16.mxu0 %v610
        %889 = vmatmul.mubr.bf16.gmra.mrb[0].mxu0 %v609
        %v890 = vpop.f32.mrb[0].mxu0
        %v891 = vadd.f32 %v694, %v890
        %v892 = vpop.f32.mrb[0].mxu0
        %v893 = vpop.f32.mrb[0].mxu0
        %v894 = vadd.f32 %v694, %v893
        %v895 = vpop.f32.mrb[0].mxu0
        %896 = vmatprep.mubr.bf16.mxu0 %v612
        %897 = vmatmul.mubr.bf16.gmra.mrb[0].mxu0 %v611
        %v898 = vpop.f32.mrb[0].mxu0
        %v899 = vadd.f32 %v694, %v898
        %v900 = vpop.f32.mrb[0].mxu0
        %v901 = vpop.f32.mrb[0].mxu0
        %v902 = vadd.f32 %v694, %v901
        %v903 = vpop.f32.mrb[0].mxu0
        %904 = vmatprep.mubr.bf16.mxu0 %v614
        %905 = vmatmul.mubr.bf16.gmra.mrb[0].mxu0 %v613
        %v906 = vpop.f32.mrb[0].mxu0
        %v907 = vadd.f32 %v694, %v906
        %v908 = vpop.f32.mrb[0].mxu0
        %v909 = vpop.f32.mrb[0].mxu0
        %v910 = vadd.f32 %v694, %v909
        %v911 = vpop.f32.mrb[0].mxu0
        %912 = vmatprep.mubr.bf16.mxu0 %v616
        %913 = vmatmul.mubr.bf16.gmra.mrb[0].mxu0 %v615
        %v914 = vpop.f32.mrb[0].mxu0
        %v915 = vadd.f32 %v694, %v914
        %v916 = vpop.f32.mrb[0].mxu0
        %v917 = vpop.f32.mrb[0].mxu0
        %v918 = vadd.f32 %v694, %v917
        %v919 = vpop.f32.mrb[0].mxu0
        %920 = vmatprep.mubr.bf16.mxu0 %v618
        %921 = vmatmul.mubr.bf16.gmra.mrb[0].mxu0 %v617
        %v922 = vpop.f32.mrb[0].mxu0
        %v923 = vadd.f32 %v694, %v922
        %v924 = vpop.f32.mrb[0].mxu0
        %v925 = vpop.f32.mrb[0].mxu0
        %v926 = vadd.f32 %v694, %v925
        %v927 = vpop.f32.mrb[0].mxu0
        %928 = vmatprep.mubr.bf16.mxu0 %v620
        %929 = vmatmul.mubr.bf16.gmra.mrb[0].mxu0 %v619
        %v930 = vpop.f32.mrb[0].mxu0
        %v931 = vadd.f32 %v694, %v930
        %v932 = vpop.f32.mrb[0].mxu0
        %v933 = vpop.f32.mrb[0].mxu0
        %v934 = vadd.f32 %v694, %v933
        %v935 = vpop.f32.mrb[0].mxu0
        %936 = vmatprep.mubr.bf16.mxu0 %v622
        %937 = vmatmul.mubr.bf16.gmra.mrb[0].mxu0 %v621
        %v938 = vpop.f32.mrb[0].mxu0
        %v939 = vadd.f32 %v694, %v938
        %v940 = vpop.f32.mrb[0].mxu0
        %v941 = vpop.f32.mrb[0].mxu0
        %v942 = vadd.f32 %v694, %v941
        %v943 = vpop.f32.mrb[0].mxu0
        %944 = vmatprep.mubr.bf16.mxu0 %v624
        %945 = vmatmul.mubr.bf16.gmra.mrb[0].mxu0 %v623
        %v946 = vpop.f32.mrb[0].mxu0
        %v947 = vadd.f32 %v694, %v946
        %v948 = vpop.f32.mrb[0].mxu0
        %v949 = vpop.f32.mrb[0].mxu0
        %v950 = vadd.f32 %v694, %v949
        %v951 = vpop.f32.mrb[0].mxu0
        %952 = vmatprep.mubr.bf16.mxu0 %v626
        %953 = vmatmul.mubr.bf16.gmra.mrb[0].mxu0 %v625
        %v954 = vpop.f32.mrb[0].mxu0
        %v955 = vadd.f32 %v694, %v954
        %v956 = vpop.f32.mrb[0].mxu0
        %v957 = vpop.f32.mrb[0].mxu0
        %v958 = vadd.f32 %v694, %v957
        %v959 = vpop.f32.mrb[0].mxu0
        %960 = vmatprep.mubr.bf16.mxu0 %v628
        %961 = vmatmul.mubr.bf16.gmra.mrb[0].mxu0 %v627
        %v962 = vpop.f32.mrb[0].mxu0
        %v963 = vadd.f32 %v694, %v962
        %v964 = vpop.f32.mrb[0].mxu0
        %v965 = vpop.f32.mrb[0].mxu0
        %v966 = vadd.f32 %v694, %v965
        %v967 = vpop.f32.mrb[0].mxu0
        %968 = vmatprep.mubr.bf16.mxu0 %v630
        %969 = vmatmul.mubr.bf16.gmra.mrb[0].mxu0 %v629
        %v970 = vpop.f32.mrb[0].mxu0
        %v971 = vadd.f32 %v694, %v970
        %v972 = vpop.f32.mrb[0].mxu0
        %v973 = vpop.f32.mrb[0].mxu0
        %v974 = vadd.f32 %v694, %v973
        %v975 = vpop.f32.mrb[0].mxu0
        %976 = vmatprep.mubr.bf16.mxu0 %v632
        %977 = vmatmul.mubr.bf16.gmra.mrb[0].mxu0 %v631
        %v978 = vpop.f32.mrb[0].mxu0
        %v979 = vadd.f32 %v694, %v978
        %v980 = vpop.f32.mrb[0].mxu0
        %v981 = vpop.f32.mrb[0].mxu0
        %v982 = vadd.f32 %v694, %v981
        %v983 = vpop.f32.mrb[0].mxu0
        %984 = vmatprep.mubr.bf16.mxu0 %v634
        %985 = vmatmul.mubr.bf16.gmra.mrb[0].mxu0 %v633
        %v986 = vpop.f32.mrb[0].mxu0
        %v987 = vadd.f32 %v694, %v986
        %v988 = vpop.f32.mrb[0].mxu0
        %v989 = vpop.f32.mrb[0].mxu0
        %v990 = vadd.f32 %v694, %v989
        %v991 = vpop.f32.mrb[0].mxu0
        %992 = vmatprep.mubr.bf16.mxu0 %v636
        %993 = vmatmul.mubr.bf16.gmra.mrb[0].mxu0 %v635
        %v994 = vpop.f32.mrb[0].mxu0
        %v995 = vadd.f32 %v694, %v994
        %v996 = vpop.f32.mrb[0].mxu0
        %v997 = vpop.f32.mrb[0].mxu0
        %v998 = vadd.f32 %v694, %v997
        %v999 = vpop.f32.mrb[0].mxu0
        %1000 = vmatprep.mubr.bf16.mxu0 %v638
        %1001 = vmatmul.mubr.bf16.gmra.mrb[0].mxu0 %v637
        %v1002 = vpop.f32.mrb[0].mxu0
        %v1003 = vadd.f32 %v694, %v1002
        %v1004 = vpop.f32.mrb[0].mxu0
        %v1005 = vpop.f32.mrb[0].mxu0
        %v1006 = vadd.f32 %v694, %v1005
        %v1007 = vpop.f32.mrb[0].mxu0
        %1008 = vmatprep.mubr.bf16.mxu0 %v640
        %1009 = vmatmul.mubr.bf16.gmra.mrb[0].mxu0 %v639
        %v1010 = vpop.f32.mrb[0].mxu0
        %v1011 = vadd.f32 %v694, %v1010
        %v1012 = vpop.f32.mrb[0].mxu0
        %v1013 = vpop.f32.mrb[0].mxu0
        %v1014 = vadd.f32 %v694, %v1013
        %v1015 = vpop.f32.mrb[0].mxu0
        %1016 = vmatprep.mubr.bf16.mxu0 %v642
        %1017 = vmatmul.mubr.bf16.gmra.mrb[0].mxu0 %v641
        %v1018 = vpop.f32.mrb[0].mxu0
        %v1019 = vadd.f32 %v694, %v1018
        %v1020 = vpop.f32.mrb[0].mxu0
        %v1021 = vpop.f32.mrb[0].mxu0
        %v1022 = vadd.f32 %v694, %v1021
        %v1023 = vpop.f32.mrb[0].mxu0
        %1024 = vmatprep.mubr.bf16.mxu0 %v644
        %1025 = vmatmul.mubr.bf16.gmra.mrb[0].mxu0 %v643
        %v1026 = vpop.f32.mrb[0].mxu0
        %v1027 = vadd.f32 %v694, %v1026
        %v1028 = vpop.f32.mrb[0].mxu0
        %v1029 = vpop.f32.mrb[0].mxu0
        %v1030 = vadd.f32 %v694, %v1029
        %v1031 = vpop.f32.mrb[0].mxu0
        %1032 = vmatprep.mubr.bf16.mxu0 %v646
        %1033 = vmatmul.mubr.bf16.gmra.mrb[0].mxu0 %v645
        %v1034 = vpop.f32.mrb[0].mxu0
        %v1035 = vadd.f32 %v694, %v1034
        %v1036 = vpop.f32.mrb[0].mxu0
        %v1037 = vpop.f32.mrb[0].mxu0
        %v1038 = vadd.f32 %v694, %v1037
        %v1039 = vpop.f32.mrb[0].mxu0
        %1040 = vmatprep.mubr.bf16.mxu0 %v648
        %1041 = vmatmul.mubr.bf16.gmra.mrb[0].mxu0 %v647
        %v1042 = vpop.f32.mrb[0].mxu0
        %v1043 = vadd.f32 %v694, %v1042
        %v1044 = vpop.f32.mrb[0].mxu0
        %v1045 = vpop.f32.mrb[0].mxu0
        %v1046 = vadd.f32 %v694, %v1045
        %v1047 = vpop.f32.mrb[0].mxu0
        %1048 = vmatprep.mubr.bf16.mxu0 %v650
        %1049 = vmatmul.mubr.bf16.gmra.mrb[0].mxu0 %v649
        %v1050 = vpop.f32.mrb[0].mxu0
        %v1051 = vadd.f32 %v694, %v1050
        %v1052 = vpop.f32.mrb[0].mxu0
        %v1053 = vpop.f32.mrb[0].mxu0
        %v1054 = vadd.f32 %v694, %v1053
        %v1055 = vpop.f32.mrb[0].mxu0
        %1056 = vmatprep.mubr.bf16.mxu0 %v652
        %1057 = vmatmul.mubr.bf16.gmra.mrb[0].mxu0 %v651
        %v1058 = vpop.f32.mrb[0].mxu0
        %v1059 = vadd.f32 %v694, %v1058
        %v1060 = vpop.f32.mrb[0].mxu0
        %v1061 = vpop.f32.mrb[0].mxu0
        %v1062 = vadd.f32 %v694, %v1061
        %v1063 = vpop.f32.mrb[0].mxu0
        %1064 = vmatprep.mubr.bf16.mxu0 %v654
        %1065 = vmatmul.mubr.bf16.gmra.mrb[0].mxu0 %v653
        %v1066 = vpop.f32.mrb[0].mxu0
        %v1067 = vadd.f32 %v694, %v1066
        %v1068 = vpop.f32.mrb[0].mxu0
        %v1069 = vpop.f32.mrb[0].mxu0
        %v1070 = vadd.f32 %v694, %v1069
        %v1071 = vpop.f32.mrb[0].mxu0
        %1072 = vmatprep.mubr.bf16.mxu0 %v656
        %1073 = vmatmul.mubr.bf16.gmra.mrb[0].mxu0 %v655
        %v1074 = vpop.f32.mrb[0].mxu0
        %v1075 = vadd.f32 %v694, %v1074
        %v1076 = vpop.f32.mrb[0].mxu0
        %v1077 = vpop.f32.mrb[0].mxu0
        %v1078 = vadd.f32 %v694, %v1077
        %v1079 = vpop.f32.mrb[0].mxu0
        %1080 = vdwg.mxu0
        %v1081 = vmax.f32 %v827, 0.0
        %v1082 = vmax.f32 %v830, 0.0
        %v1083 = vmax.f32 %v835, 0.0
        %v1084 = vmax.f32 %v838, 0.0
        %v1085 = vmax.f32 %v843, 0.0
        %v1086 = vmax.f32 %v846, 0.0
        %v1087 = vmax.f32 %v851, 0.0
        %v1088 = vmax.f32 %v854, 0.0
        %v1089 = vmax.f32 %v859, 0.0
        %v1090 = vmax.f32 %v862, 0.0
        %v1091 = vmax.f32 %v867, 0.0
        %v1092 = vmax.f32 %v870, 0.0
        %v1093 = vmax.f32 %v875, 0.0
        %v1094 = vmax.f32 %v878, 0.0
        %v1095 = vmax.f32 %v883, 0.0
        %v1096 = vmax.f32 %v886, 0.0
        %v1097 = vmax.f32 %v891, 0.0
        %v1098 = vmax.f32 %v894, 0.0
        %v1099 = vmax.f32 %v899, 0.0
        %v1100 = vmax.f32 %v902, 0.0
        %v1101 = vmax.f32 %v907, 0.0
        %v1102 = vmax.f32 %v910, 0.0
        %v1103 = vmax.f32 %v915, 0.0
        %v1104 = vmax.f32 %v918, 0.0
        %v1105 = vmax.f32 %v923, 0.0
        %v1106 = vmax.f32 %v926, 0.0
        %v1107 = vmax.f32 %v931, 0.0
        %v1108 = vmax.f32 %v934, 0.0
        %v1109 = vmax.f32 %v939, 0.0
        %v1110 = vmax.f32 %v942, 0.0
        %v1111 = vmax.f32 %v947, 0.0
        %v1112 = vmax.f32 %v950, 0.0
        %v1113 = vmax.f32 %v955, 0.0
        %v1114 = vmax.f32 %v958, 0.0
        %v1115 = vmax.f32 %v963, 0.0
        %v1116 = vmax.f32 %v966, 0.0
        %v1117 = vmax.f32 %v971, 0.0
        %v1118 = vmax.f32 %v974, 0.0
        %v1119 = vmax.f32 %v979, 0.0
        %v1120 = vmax.f32 %v982, 0.0
        %v1121 = vmax.f32 %v987, 0.0
        %v1122 = vmax.f32 %v990, 0.0
        %v1123 = vmax.f32 %v995, 0.0
        %v1124 = vmax.f32 %v998, 0.0
        %v1125 = vmax.f32 %v1003, 0.0
        %v1126 = vmax.f32 %v1006, 0.0
        %v1127 = vmax.f32 %v1011, 0.0
        %v1128 = vmax.f32 %v1014, 0.0
        %v1129 = vmax.f32 %v1019, 0.0
        %v1130 = vmax.f32 %v1022, 0.0
        %v1131 = vmax.f32 %v1027, 0.0
        %v1132 = vmax.f32 %v1030, 0.0
        %v1133 = vmax.f32 %v1035, 0.0
        %v1134 = vmax.f32 %v1038, 0.0
        %v1135 = vmax.f32 %v1043, 0.0
        %v1136 = vmax.f32 %v1046, 0.0
        %v1137 = vmax.f32 %v1051, 0.0
        %v1138 = vmax.f32 %v1054, 0.0
        %v1139 = vmax.f32 %v1059, 0.0
        %v1140 = vmax.f32 %v1062, 0.0
        %v1141 = vmax.f32 %v1067, 0.0
        %v1142 = vmax.f32 %v1070, 0.0
        %v1143 = vmax.f32 %v1075, 0.0
        %v1144 = vmax.f32 %v1078, 0.0
        %v1145 = vlaneseq
        %v1146 = vshrl.u32 %v1145, 7
        %v1147 = vadd.s32 %v1146, 8
        %v1148 = vadd.s32 %v1146, 16
        %v1149 = vadd.s32 %v1146, 24
        %v1150 = vadd.s32 %v1146, 32
        %v1151 = vadd.s32 %v1146, 40
        %v1152 = vadd.s32 %v1146, 48
        %v1153 = vadd.s32 %v1146, 56
        %v1154 = vadd.s32 %v1146, 64
        %v1155 = vadd.s32 %v1146, 72
        %v1156 = vadd.s32 %v1146, 80
        %v1157 = vadd.s32 %v1146, 88
        %v1158 = vadd.s32 %v1146, 96
        %v1159 = vadd.s32 %v1146, 104
        %v1160 = vadd.s32 %v1146, 112
        %v1161 = vadd.s32 %v1146, 120
        %v1162 = vadd.s32 %v1146, 128
        %v1163 = vadd.s32 %v1146, 136
        %v1164 = vadd.s32 %v1146, 144
        %v1165 = vadd.s32 %v1146, 152
        %v1166 = vadd.s32 %v1146, 160
        %v1167 = vadd.s32 %v1146, 168
        %v1168 = vadd.s32 %v1146, 176
        %v1169 = vadd.s32 %v1146, 184
        %v1170 = vadd.s32 %v1146, 192
        %v1171 = vadd.s32 %v1146, 200
        %v1172 = vadd.s32 %v1146, 208
        %v1173 = vadd.s32 %v1146, 216
        %v1174 = vadd.s32 %v1146, 224
        %v1175 = vadd.s32 %v1146, 232
        %v1176 = vadd.s32 %v1146, 240
        %v1177 = vadd.s32 %v1146, 248
        %v1178 = vadd.s32 %v1146, 256
        %v1179 = vadd.s32 %v1146, 264
        %v1180 = vadd.s32 %v1146, 272
        %v1181 = vadd.s32 %v1146, 280
        %v1182 = vadd.s32 %v1146, 288
        %v1183 = vadd.s32 %v1146, 296
        %v1184 = vadd.s32 %v1146, 304
        %v1185 = vadd.s32 %v1146, 312
        %v1186 = vadd.s32 %v1146, 320
        %v1187 = vadd.s32 %v1146, 328
        %v1188 = vadd.s32 %v1146, 336
        %v1189 = vadd.s32 %v1146, 344
        %v1190 = vadd.s32 %v1146, 352
        %v1191 = vadd.s32 %v1146, 360
        %v1192 = vadd.s32 %v1146, 368
        %v1193 = vadd.s32 %v1146, 376
        %v1194 = vadd.s32 %v1146, 384
        %v1195 = vadd.s32 %v1146, 392
        %v1196 = vadd.s32 %v1146, 400
        %v1197 = vadd.s32 %v1146, 408
        %v1198 = vadd.s32 %v1146, 416
        %v1199 = vadd.s32 %v1146, 424
        %v1200 = vadd.s32 %v1146, 432
        %v1201 = vadd.s32 %v1146, 440
        %v1202 = vadd.s32 %v1146, 448
        %v1203 = vadd.s32 %v1146, 456
        %v1204 = vadd.s32 %v1146, 464
        %v1205 = vadd.s32 %v1146, 472
        %v1206 = vadd.s32 %v1146, 480
        %v1207 = vadd.s32 %v1146, 488
        %v1208 = vadd.s32 %v1146, 496
        %v1209 = vadd.s32 %v1146, 504
        %vm1210 = vcmp.lt.s32.totalorder %v1146, 0
        %v1211 = vsub.s32 0, %v1146
        %v1212 = vsel %vm1210, %v1211, %v1146
        %v1213 = vshrl.u32 %v1212, 4
        %v1214 = vand.u32 %v1212, 15
        %v1215 = vsub.s32 0, %v1214
        %v1216 = vsel %vm1210, %v1215, %v1214
        %vm1217 = vcmp.lt.s32.totalorder %v1147, 0
        %v1218 = vsub.s32 0, %v1147
        %v1219 = vsel %vm1217, %v1218, %v1147
        %v1220 = vshrl.u32 %v1219, 4
        %v1221 = vand.u32 %v1219, 15
        %v1222 = vsub.s32 0, %v1221
        %v1223 = vsel %vm1217, %v1222, %v1221
        %vm1224 = vcmp.lt.s32.totalorder %v1148, 0
        %v1225 = vsub.s32 0, %v1148
        %v1226 = vsel %vm1224, %v1225, %v1148
        %v1227 = vshrl.u32 %v1226, 4
        %v1228 = vand.u32 %v1226, 15
        %v1229 = vsub.s32 0, %v1228
        %v1230 = vsel %vm1224, %v1229, %v1228
        %vm1231 = vcmp.lt.s32.totalorder %v1149, 0
        %v1232 = vsub.s32 0, %v1149
        %v1233 = vsel %vm1231, %v1232, %v1149
        %v1234 = vshrl.u32 %v1233, 4
        %v1235 = vand.u32 %v1233, 15
        %v1236 = vsub.s32 0, %v1235
        %v1237 = vsel %vm1231, %v1236, %v1235
        %vm1238 = vcmp.lt.s32.totalorder %v1150, 0
        %v1239 = vsub.s32 0, %v1150
        %v1240 = vsel %vm1238, %v1239, %v1150
        %v1241 = vshrl.u32 %v1240, 4
        %v1242 = vand.u32 %v1240, 15
        %v1243 = vsub.s32 0, %v1242
        %v1244 = vsel %vm1238, %v1243, %v1242
        %vm1245 = vcmp.lt.s32.totalorder %v1151, 0
        %v1246 = vsub.s32 0, %v1151
        %v1247 = vsel %vm1245, %v1246, %v1151
        %v1248 = vshrl.u32 %v1247, 4
        %v1249 = vand.u32 %v1247, 15
        %v1250 = vsub.s32 0, %v1249
        %v1251 = vsel %vm1245, %v1250, %v1249
        %vm1252 = vcmp.lt.s32.totalorder %v1152, 0
        %v1253 = vsub.s32 0, %v1152
        %v1254 = vsel %vm1252, %v1253, %v1152
        %v1255 = vshrl.u32 %v1254, 4
        %v1256 = vand.u32 %v1254, 15
        %v1257 = vsub.s32 0, %v1256
        %v1258 = vsel %vm1252, %v1257, %v1256
        %vm1259 = vcmp.lt.s32.totalorder %v1153, 0
        %v1260 = vsub.s32 0, %v1153
        %v1261 = vsel %vm1259, %v1260, %v1153
        %v1262 = vshrl.u32 %v1261, 4
        %v1263 = vand.u32 %v1261, 15
        %v1264 = vsub.s32 0, %v1263
        %v1265 = vsel %vm1259, %v1264, %v1263
        %vm1266 = vcmp.lt.s32.totalorder %v1154, 0
        %v1267 = vsub.s32 0, %v1154
        %v1268 = vsel %vm1266, %v1267, %v1154
        %v1269 = vshrl.u32 %v1268, 4
        %v1270 = vand.u32 %v1268, 15
        %v1271 = vsub.s32 0, %v1270
        %v1272 = vsel %vm1266, %v1271, %v1270
        %vm1273 = vcmp.lt.s32.totalorder %v1155, 0
        %v1274 = vsub.s32 0, %v1155
        %v1275 = vsel %vm1273, %v1274, %v1155
        %v1276 = vshrl.u32 %v1275, 4
        %v1277 = vand.u32 %v1275, 15
        %v1278 = vsub.s32 0, %v1277
        %v1279 = vsel %vm1273, %v1278, %v1277
        %vm1280 = vcmp.lt.s32.totalorder %v1156, 0
        %v1281 = vsub.s32 0, %v1156
        %v1282 = vsel %vm1280, %v1281, %v1156
        %v1283 = vshrl.u32 %v1282, 4
        %v1284 = vand.u32 %v1282, 15
        %v1285 = vsub.s32 0, %v1284
        %v1286 = vsel %vm1280, %v1285, %v1284
        %vm1287 = vcmp.lt.s32.totalorder %v1157, 0
        %v1288 = vsub.s32 0, %v1157
        %v1289 = vsel %vm1287, %v1288, %v1157
        %v1290 = vshrl.u32 %v1289, 4
        %v1291 = vand.u32 %v1289, 15
        %v1292 = vsub.s32 0, %v1291
        %v1293 = vsel %vm1287, %v1292, %v1291
        %vm1294 = vcmp.lt.s32.totalorder %v1158, 0
        %v1295 = vsub.s32 0, %v1158
        %v1296 = vsel %vm1294, %v1295, %v1158
        %v1297 = vshrl.u32 %v1296, 4
        %v1298 = vand.u32 %v1296, 15
        %v1299 = vsub.s32 0, %v1298
        %v1300 = vsel %vm1294, %v1299, %v1298
        %vm1301 = vcmp.lt.s32.totalorder %v1159, 0
        %v1302 = vsub.s32 0, %v1159
        %v1303 = vsel %vm1301, %v1302, %v1159
        %v1304 = vshrl.u32 %v1303, 4
        %v1305 = vand.u32 %v1303, 15
        %v1306 = vsub.s32 0, %v1305
        %v1307 = vsel %vm1301, %v1306, %v1305
        %vm1308 = vcmp.lt.s32.totalorder %v1160, 0
        %v1309 = vsub.s32 0, %v1160
        %v1310 = vsel %vm1308, %v1309, %v1160
        %v1311 = vshrl.u32 %v1310, 4
        %v1312 = vand.u32 %v1310, 15
        %v1313 = vsub.s32 0, %v1312
        %v1314 = vsel %vm1308, %v1313, %v1312
        %vm1315 = vcmp.lt.s32.totalorder %v1161, 0
        %v1316 = vsub.s32 0, %v1161
        %v1317 = vsel %vm1315, %v1316, %v1161
        %v1318 = vshrl.u32 %v1317, 4
        %v1319 = vand.u32 %v1317, 15
        %v1320 = vsub.s32 0, %v1319
        %v1321 = vsel %vm1315, %v1320, %v1319
        %vm1322 = vcmp.lt.s32.totalorder %v1162, 0
        %v1323 = vsub.s32 0, %v1162
        %v1324 = vsel %vm1322, %v1323, %v1162
        %v1325 = vshrl.u32 %v1324, 4
        %v1326 = vand.u32 %v1324, 15
        %v1327 = vsub.s32 0, %v1326
        %v1328 = vsel %vm1322, %v1327, %v1326
        %vm1329 = vcmp.lt.s32.totalorder %v1163, 0
        %v1330 = vsub.s32 0, %v1163
        %v1331 = vsel %vm1329, %v1330, %v1163
        %v1332 = vshrl.u32 %v1331, 4
        %v1333 = vand.u32 %v1331, 15
        %v1334 = vsub.s32 0, %v1333
        %v1335 = vsel %vm1329, %v1334, %v1333
        %vm1336 = vcmp.lt.s32.totalorder %v1164, 0
        %v1337 = vsub.s32 0, %v1164
        %v1338 = vsel %vm1336, %v1337, %v1164
        %v1339 = vshrl.u32 %v1338, 4
        %v1340 = vand.u32 %v1338, 15
        %v1341 = vsub.s32 0, %v1340
        %v1342 = vsel %vm1336, %v1341, %v1340
        %vm1343 = vcmp.lt.s32.totalorder %v1165, 0
        %v1344 = vsub.s32 0, %v1165
        %v1345 = vsel %vm1343, %v1344, %v1165
        %v1346 = vshrl.u32 %v1345, 4
        %v1347 = vand.u32 %v1345, 15
        %v1348 = vsub.s32 0, %v1347
        %v1349 = vsel %vm1343, %v1348, %v1347
        %vm1350 = vcmp.lt.s32.totalorder %v1166, 0
        %v1351 = vsub.s32 0, %v1166
        %v1352 = vsel %vm1350, %v1351, %v1166
        %v1353 = vshrl.u32 %v1352, 4
        %v1354 = vand.u32 %v1352, 15
        %v1355 = vsub.s32 0, %v1354
        %v1356 = vsel %vm1350, %v1355, %v1354
        %vm1357 = vcmp.lt.s32.totalorder %v1167, 0
        %v1358 = vsub.s32 0, %v1167
        %v1359 = vsel %vm1357, %v1358, %v1167
        %v1360 = vshrl.u32 %v1359, 4
        %v1361 = vand.u32 %v1359, 15
        %v1362 = vsub.s32 0, %v1361
        %v1363 = vsel %vm1357, %v1362, %v1361
        %vm1364 = vcmp.lt.s32.totalorder %v1168, 0
        %v1365 = vsub.s32 0, %v1168
        %v1366 = vsel %vm1364, %v1365, %v1168
        %v1367 = vshrl.u32 %v1366, 4
        %v1368 = vand.u32 %v1366, 15
        %v1369 = vsub.s32 0, %v1368
        %v1370 = vsel %vm1364, %v1369, %v1368
        %vm1371 = vcmp.lt.s32.totalorder %v1169, 0
        %v1372 = vsub.s32 0, %v1169
        %v1373 = vsel %vm1371, %v1372, %v1169
        %v1374 = vshrl.u32 %v1373, 4
        %v1375 = vand.u32 %v1373, 15
        %v1376 = vsub.s32 0, %v1375
        %v1377 = vsel %vm1371, %v1376, %v1375
        %vm1378 = vcmp.lt.s32.totalorder %v1170, 0
        %v1379 = vsub.s32 0, %v1170
        %v1380 = vsel %vm1378, %v1379, %v1170
        %v1381 = vshrl.u32 %v1380, 4
        %v1382 = vand.u32 %v1380, 15
        %v1383 = vsub.s32 0, %v1382
        %v1384 = vsel %vm1378, %v1383, %v1382
        %vm1385 = vcmp.lt.s32.totalorder %v1171, 0
        %v1386 = vsub.s32 0, %v1171
        %v1387 = vsel %vm1385, %v1386, %v1171
        %v1388 = vshrl.u32 %v1387, 4
        %v1389 = vand.u32 %v1387, 15
        %v1390 = vsub.s32 0, %v1389
        %v1391 = vsel %vm1385, %v1390, %v1389
        %vm1392 = vcmp.lt.s32.totalorder %v1172, 0
        %v1393 = vsub.s32 0, %v1172
        %v1394 = vsel %vm1392, %v1393, %v1172
        %v1395 = vshrl.u32 %v1394, 4
        %v1396 = vand.u32 %v1394, 15
        %v1397 = vsub.s32 0, %v1396
        %v1398 = vsel %vm1392, %v1397, %v1396
        %vm1399 = vcmp.lt.s32.totalorder %v1173, 0
        %v1400 = vsub.s32 0, %v1173
        %v1401 = vsel %vm1399, %v1400, %v1173
        %v1402 = vshrl.u32 %v1401, 4
        %v1403 = vand.u32 %v1401, 15
        %v1404 = vsub.s32 0, %v1403
        %v1405 = vsel %vm1399, %v1404, %v1403
        %vm1406 = vcmp.lt.s32.totalorder %v1174, 0
        %v1407 = vsub.s32 0, %v1174
        %v1408 = vsel %vm1406, %v1407, %v1174
        %v1409 = vshrl.u32 %v1408, 4
        %v1410 = vand.u32 %v1408, 15
        %v1411 = vsub.s32 0, %v1410
        %v1412 = vsel %vm1406, %v1411, %v1410
        %vm1413 = vcmp.lt.s32.totalorder %v1175, 0
        %v1414 = vsub.s32 0, %v1175
        %v1415 = vsel %vm1413, %v1414, %v1175
        %v1416 = vshrl.u32 %v1415, 4
        %v1417 = vand.u32 %v1415, 15
        %v1418 = vsub.s32 0, %v1417
        %v1419 = vsel %vm1413, %v1418, %v1417
        %vm1420 = vcmp.lt.s32.totalorder %v1176, 0
        %v1421 = vsub.s32 0, %v1176
        %v1422 = vsel %vm1420, %v1421, %v1176
        %v1423 = vshrl.u32 %v1422, 4
        %v1424 = vand.u32 %v1422, 15
        %v1425 = vsub.s32 0, %v1424
        %v1426 = vsel %vm1420, %v1425, %v1424
        %vm1427 = vcmp.lt.s32.totalorder %v1177, 0
        %v1428 = vsub.s32 0, %v1177
        %v1429 = vsel %vm1427, %v1428, %v1177
        %v1430 = vshrl.u32 %v1429, 4
        %v1431 = vand.u32 %v1429, 15
        %v1432 = vsub.s32 0, %v1431
        %v1433 = vsel %vm1427, %v1432, %v1431
        %vm1434 = vcmp.lt.s32.totalorder %v1178, 0
        %v1435 = vsub.s32 0, %v1178
        %v1436 = vsel %vm1434, %v1435, %v1178
        %v1437 = vshrl.u32 %v1436, 4
        %v1438 = vand.u32 %v1436, 15
        %v1439 = vsub.s32 0, %v1438
        %v1440 = vsel %vm1434, %v1439, %v1438
        %vm1441 = vcmp.lt.s32.totalorder %v1179, 0
        %v1442 = vsub.s32 0, %v1179
        %v1443 = vsel %vm1441, %v1442, %v1179
        %v1444 = vshrl.u32 %v1443, 4
        %v1445 = vand.u32 %v1443, 15
        %v1446 = vsub.s32 0, %v1445
        %v1447 = vsel %vm1441, %v1446, %v1445
        %vm1448 = vcmp.lt.s32.totalorder %v1180, 0
        %v1449 = vsub.s32 0, %v1180
        %v1450 = vsel %vm1448, %v1449, %v1180
        %v1451 = vshrl.u32 %v1450, 4
        %v1452 = vand.u32 %v1450, 15
        %v1453 = vsub.s32 0, %v1452
        %v1454 = vsel %vm1448, %v1453, %v1452
        %vm1455 = vcmp.lt.s32.totalorder %v1181, 0
        %v1456 = vsub.s32 0, %v1181
        %v1457 = vsel %vm1455, %v1456, %v1181
        %v1458 = vshrl.u32 %v1457, 4
        %v1459 = vand.u32 %v1457, 15
        %v1460 = vsub.s32 0, %v1459
        %v1461 = vsel %vm1455, %v1460, %v1459
        %vm1462 = vcmp.lt.s32.totalorder %v1182, 0
        %v1463 = vsub.s32 0, %v1182
        %v1464 = vsel %vm1462, %v1463, %v1182
        %v1465 = vshrl.u32 %v1464, 4
        %v1466 = vand.u32 %v1464, 15
        %v1467 = vsub.s32 0, %v1466
        %v1468 = vsel %vm1462, %v1467, %v1466
        %vm1469 = vcmp.lt.s32.totalorder %v1183, 0
        %v1470 = vsub.s32 0, %v1183
        %v1471 = vsel %vm1469, %v1470, %v1183
        %v1472 = vshrl.u32 %v1471, 4
        %v1473 = vand.u32 %v1471, 15
        %v1474 = vsub.s32 0, %v1473
        %v1475 = vsel %vm1469, %v1474, %v1473
        %vm1476 = vcmp.lt.s32.totalorder %v1184, 0
        %v1477 = vsub.s32 0, %v1184
        %v1478 = vsel %vm1476, %v1477, %v1184
        %v1479 = vshrl.u32 %v1478, 4
        %v1480 = vand.u32 %v1478, 15
        %v1481 = vsub.s32 0, %v1480
        %v1482 = vsel %vm1476, %v1481, %v1480
        %vm1483 = vcmp.lt.s32.totalorder %v1185, 0
        %v1484 = vsub.s32 0, %v1185
        %v1485 = vsel %vm1483, %v1484, %v1185
        %v1486 = vshrl.u32 %v1485, 4
        %v1487 = vand.u32 %v1485, 15
        %v1488 = vsub.s32 0, %v1487
        %v1489 = vsel %vm1483, %v1488, %v1487
        %vm1490 = vcmp.lt.s32.totalorder %v1186, 0
        %v1491 = vsub.s32 0, %v1186
        %v1492 = vsel %vm1490, %v1491, %v1186
        %v1493 = vshrl.u32 %v1492, 4
        %v1494 = vand.u32 %v1492, 15
        %v1495 = vsub.s32 0, %v1494
        %v1496 = vsel %vm1490, %v1495, %v1494
        %vm1497 = vcmp.lt.s32.totalorder %v1187, 0
        %v1498 = vsub.s32 0, %v1187
        %v1499 = vsel %vm1497, %v1498, %v1187
        %v1500 = vshrl.u32 %v1499, 4
        %v1501 = vand.u32 %v1499, 15
        %v1502 = vsub.s32 0, %v1501
        %v1503 = vsel %vm1497, %v1502, %v1501
        %vm1504 = vcmp.lt.s32.totalorder %v1188, 0
        %v1505 = vsub.s32 0, %v1188
        %v1506 = vsel %vm1504, %v1505, %v1188
        %v1507 = vshrl.u32 %v1506, 4
        %v1508 = vand.u32 %v1506, 15
        %v1509 = vsub.s32 0, %v1508
        %v1510 = vsel %vm1504, %v1509, %v1508
        %vm1511 = vcmp.lt.s32.totalorder %v1189, 0
        %v1512 = vsub.s32 0, %v1189
        %v1513 = vsel %vm1511, %v1512, %v1189
        %v1514 = vshrl.u32 %v1513, 4
        %v1515 = vand.u32 %v1513, 15
        %v1516 = vsub.s32 0, %v1515
        %v1517 = vsel %vm1511, %v1516, %v1515
        %vm1518 = vcmp.lt.s32.totalorder %v1190, 0
        %v1519 = vsub.s32 0, %v1190
        %v1520 = vsel %vm1518, %v1519, %v1190
        %v1521 = vshrl.u32 %v1520, 4
        %v1522 = vand.u32 %v1520, 15
        %v1523 = vsub.s32 0, %v1522
        %v1524 = vsel %vm1518, %v1523, %v1522
        %vm1525 = vcmp.lt.s32.totalorder %v1191, 0
        %v1526 = vsub.s32 0, %v1191
        %v1527 = vsel %vm1525, %v1526, %v1191
        %v1528 = vshrl.u32 %v1527, 4
        %v1529 = vand.u32 %v1527, 15
        %v1530 = vsub.s32 0, %v1529
        %v1531 = vsel %vm1525, %v1530, %v1529
        %vm1532 = vcmp.lt.s32.totalorder %v1192, 0
        %v1533 = vsub.s32 0, %v1192
        %v1534 = vsel %vm1532, %v1533, %v1192
        %v1535 = vshrl.u32 %v1534, 4
        %v1536 = vand.u32 %v1534, 15
        %v1537 = vsub.s32 0, %v1536
        %v1538 = vsel %vm1532, %v1537, %v1536
        %vm1539 = vcmp.lt.s32.totalorder %v1193, 0
        %v1540 = vsub.s32 0, %v1193
        %v1541 = vsel %vm1539, %v1540, %v1193
        %v1542 = vshrl.u32 %v1541, 4
        %v1543 = vand.u32 %v1541, 15
        %v1544 = vsub.s32 0, %v1543
        %v1545 = vsel %vm1539, %v1544, %v1543
        %vm1546 = vcmp.lt.s32.totalorder %v1194, 0
        %v1547 = vsub.s32 0, %v1194
        %v1548 = vsel %vm1546, %v1547, %v1194
        %v1549 = vshrl.u32 %v1548, 4
        %v1550 = vand.u32 %v1548, 15
        %v1551 = vsub.s32 0, %v1550
        %v1552 = vsel %vm1546, %v1551, %v1550
        %vm1553 = vcmp.lt.s32.totalorder %v1195, 0
        %v1554 = vsub.s32 0, %v1195
        %v1555 = vsel %vm1553, %v1554, %v1195
        %v1556 = vshrl.u32 %v1555, 4
        %v1557 = vand.u32 %v1555, 15
        %v1558 = vsub.s32 0, %v1557
        %v1559 = vsel %vm1553, %v1558, %v1557
        %vm1560 = vcmp.lt.s32.totalorder %v1196, 0
        %v1561 = vsub.s32 0, %v1196
        %v1562 = vsel %vm1560, %v1561, %v1196
        %v1563 = vshrl.u32 %v1562, 4
        %v1564 = vand.u32 %v1562, 15
        %v1565 = vsub.s32 0, %v1564
        %v1566 = vsel %vm1560, %v1565, %v1564
        %vm1567 = vcmp.lt.s32.totalorder %v1197, 0
        %v1568 = vsub.s32 0, %v1197
        %v1569 = vsel %vm1567, %v1568, %v1197
        %v1570 = vshrl.u32 %v1569, 4
        %v1571 = vand.u32 %v1569, 15
        %v1572 = vsub.s32 0, %v1571
        %v1573 = vsel %vm1567, %v1572, %v1571
        %vm1574 = vcmp.lt.s32.totalorder %v1198, 0
        %v1575 = vsub.s32 0, %v1198
        %v1576 = vsel %vm1574, %v1575, %v1198
        %v1577 = vshrl.u32 %v1576, 4
        %v1578 = vand.u32 %v1576, 15
        %v1579 = vsub.s32 0, %v1578
        %v1580 = vsel %vm1574, %v1579, %v1578
        %vm1581 = vcmp.lt.s32.totalorder %v1199, 0
        %v1582 = vsub.s32 0, %v1199
        %v1583 = vsel %vm1581, %v1582, %v1199
        %v1584 = vshrl.u32 %v1583, 4
        %v1585 = vand.u32 %v1583, 15
        %v1586 = vsub.s32 0, %v1585
        %v1587 = vsel %vm1581, %v1586, %v1585
        %vm1588 = vcmp.lt.s32.totalorder %v1200, 0
        %v1589 = vsub.s32 0, %v1200
        %v1590 = vsel %vm1588, %v1589, %v1200
        %v1591 = vshrl.u32 %v1590, 4
        %v1592 = vand.u32 %v1590, 15
        %v1593 = vsub.s32 0, %v1592
        %v1594 = vsel %vm1588, %v1593, %v1592
        %vm1595 = vcmp.lt.s32.totalorder %v1201, 0
        %v1596 = vsub.s32 0, %v1201
        %v1597 = vsel %vm1595, %v1596, %v1201
        %v1598 = vshrl.u32 %v1597, 4
        %v1599 = vand.u32 %v1597, 15
        %v1600 = vsub.s32 0, %v1599
        %v1601 = vsel %vm1595, %v1600, %v1599
        %vm1602 = vcmp.lt.s32.totalorder %v1202, 0
        %v1603 = vsub.s32 0, %v1202
        %v1604 = vsel %vm1602, %v1603, %v1202
        %v1605 = vshrl.u32 %v1604, 4
        %v1606 = vand.u32 %v1604, 15
        %v1607 = vsub.s32 0, %v1606
        %v1608 = vsel %vm1602, %v1607, %v1606
        %vm1609 = vcmp.lt.s32.totalorder %v1203, 0
        %v1610 = vsub.s32 0, %v1203
        %v1611 = vsel %vm1609, %v1610, %v1203
        %v1612 = vshrl.u32 %v1611, 4
        %v1613 = vand.u32 %v1611, 15
        %v1614 = vsub.s32 0, %v1613
        %v1615 = vsel %vm1609, %v1614, %v1613
        %vm1616 = vcmp.lt.s32.totalorder %v1204, 0
        %v1617 = vsub.s32 0, %v1204
        %v1618 = vsel %vm1616, %v1617, %v1204
        %v1619 = vshrl.u32 %v1618, 4
        %v1620 = vand.u32 %v1618, 15
        %v1621 = vsub.s32 0, %v1620
        %v1622 = vsel %vm1616, %v1621, %v1620
        %vm1623 = vcmp.lt.s32.totalorder %v1205, 0
        %v1624 = vsub.s32 0, %v1205
        %v1625 = vsel %vm1623, %v1624, %v1205
        %v1626 = vshrl.u32 %v1625, 4
        %v1627 = vand.u32 %v1625, 15
        %v1628 = vsub.s32 0, %v1627
        %v1629 = vsel %vm1623, %v1628, %v1627
        %vm1630 = vcmp.lt.s32.totalorder %v1206, 0
        %v1631 = vsub.s32 0, %v1206
        %v1632 = vsel %vm1630, %v1631, %v1206
        %v1633 = vshrl.u32 %v1632, 4
        %v1634 = vand.u32 %v1632, 15
        %v1635 = vsub.s32 0, %v1634
        %v1636 = vsel %vm1630, %v1635, %v1634
        %vm1637 = vcmp.lt.s32.totalorder %v1207, 0
        %v1638 = vsub.s32 0, %v1207
        %v1639 = vsel %vm1637, %v1638, %v1207
        %v1640 = vshrl.u32 %v1639, 4
        %v1641 = vand.u32 %v1639, 15
        %v1642 = vsub.s32 0, %v1641
        %v1643 = vsel %vm1637, %v1642, %v1641
        %vm1644 = vcmp.lt.s32.totalorder %v1208, 0
        %v1645 = vsub.s32 0, %v1208
        %v1646 = vsel %vm1644, %v1645, %v1208
        %v1647 = vshrl.u32 %v1646, 4
        %v1648 = vand.u32 %v1646, 15
        %v1649 = vsub.s32 0, %v1648
        %v1650 = vsel %vm1644, %v1649, %v1648
        %vm1651 = vcmp.lt.s32.totalorder %v1209, 0
        %v1652 = vsub.s32 0, %v1209
        %v1653 = vsel %vm1651, %v1652, %v1209
        %v1654 = vshrl.u32 %v1653, 4
        %v1655 = vand.u32 %v1653, 15
        %v1656 = vsub.s32 0, %v1655
        %v1657 = vsel %vm1651, %v1656, %v1655
        %vm1658 = vcmp.ne.s32.totalorder %v1216, 0
        %vm1659 = vcmp.ne.s32.totalorder %v1223, 0
        %vm1660 = vcmp.ne.s32.totalorder %v1230, 0
        %vm1661 = vcmp.ne.s32.totalorder %v1237, 0
        %vm1662 = vcmp.ne.s32.totalorder %v1244, 0
        %vm1663 = vcmp.ne.s32.totalorder %v1251, 0
        %vm1664 = vcmp.ne.s32.totalorder %v1258, 0
        %vm1665 = vcmp.ne.s32.totalorder %v1265, 0
        %vm1666 = vcmp.ne.s32.totalorder %v1272, 0
        %vm1667 = vcmp.ne.s32.totalorder %v1279, 0
        %vm1668 = vcmp.ne.s32.totalorder %v1286, 0
        %vm1669 = vcmp.ne.s32.totalorder %v1293, 0
        %vm1670 = vcmp.ne.s32.totalorder %v1300, 0
        %vm1671 = vcmp.ne.s32.totalorder %v1307, 0
        %vm1672 = vcmp.ne.s32.totalorder %v1314, 0
        %vm1673 = vcmp.ne.s32.totalorder %v1321, 0
        %vm1674 = vcmp.ne.s32.totalorder %v1328, 0
        %vm1675 = vcmp.ne.s32.totalorder %v1335, 0
        %vm1676 = vcmp.ne.s32.totalorder %v1342, 0
        %vm1677 = vcmp.ne.s32.totalorder %v1349, 0
        %vm1678 = vcmp.ne.s32.totalorder %v1356, 0
        %vm1679 = vcmp.ne.s32.totalorder %v1363, 0
        %vm1680 = vcmp.ne.s32.totalorder %v1370, 0
        %vm1681 = vcmp.ne.s32.totalorder %v1377, 0
        %vm1682 = vcmp.ne.s32.totalorder %v1384, 0
        %vm1683 = vcmp.ne.s32.totalorder %v1391, 0
        %vm1684 = vcmp.ne.s32.totalorder %v1398, 0
        %vm1685 = vcmp.ne.s32.totalorder %v1405, 0
        %vm1686 = vcmp.ne.s32.totalorder %v1412, 0
        %vm1687 = vcmp.ne.s32.totalorder %v1419, 0
        %vm1688 = vcmp.ne.s32.totalorder %v1426, 0
        %vm1689 = vcmp.ne.s32.totalorder %v1433, 0
        %vm1690 = vcmp.ne.s32.totalorder %v1440, 0
        %vm1691 = vcmp.ne.s32.totalorder %v1447, 0
        %vm1692 = vcmp.ne.s32.totalorder %v1454, 0
        %vm1693 = vcmp.ne.s32.totalorder %v1461, 0
        %vm1694 = vcmp.ne.s32.totalorder %v1468, 0
        %vm1695 = vcmp.ne.s32.totalorder %v1475, 0
        %vm1696 = vcmp.ne.s32.totalorder %v1482, 0
        %vm1697 = vcmp.ne.s32.totalorder %v1489, 0
        %vm1698 = vcmp.ne.s32.totalorder %v1496, 0
        %vm1699 = vcmp.ne.s32.totalorder %v1503, 0
        %vm1700 = vcmp.ne.s32.totalorder %v1510, 0
        %vm1701 = vcmp.ne.s32.totalorder %v1517, 0
        %vm1702 = vcmp.ne.s32.totalorder %v1524, 0
        %vm1703 = vcmp.ne.s32.totalorder %v1531, 0
        %vm1704 = vcmp.ne.s32.totalorder %v1538, 0
        %vm1705 = vcmp.ne.s32.totalorder %v1545, 0
        %vm1706 = vcmp.ne.s32.totalorder %v1552, 0
        %vm1707 = vcmp.ne.s32.totalorder %v1559, 0
        %vm1708 = vcmp.ne.s32.totalorder %v1566, 0
        %vm1709 = vcmp.ne.s32.totalorder %v1573, 0
        %vm1710 = vcmp.ne.s32.totalorder %v1580, 0
        %vm1711 = vcmp.ne.s32.totalorder %v1587, 0
        %vm1712 = vcmp.ne.s32.totalorder %v1594, 0
        %vm1713 = vcmp.ne.s32.totalorder %v1601, 0
        %vm1714 = vcmp.ne.s32.totalorder %v1608, 0
        %vm1715 = vcmp.ne.s32.totalorder %v1615, 0
        %vm1716 = vcmp.ne.s32.totalorder %v1622, 0
        %vm1717 = vcmp.ne.s32.totalorder %v1629, 0
        %vm1718 = vcmp.ne.s32.totalorder %v1636, 0
        %vm1719 = vcmp.ne.s32.totalorder %v1643, 0
        %vm1720 = vcmp.ne.s32.totalorder %v1650, 0
        %vm1721 = vcmp.ne.s32.totalorder %v1657, 0
        %vm1722 = vcmp.lt.s32.totalorder %v1216, 0
        %vm1723 = vcmp.lt.s32.totalorder %v1223, 0
        %vm1724 = vcmp.lt.s32.totalorder %v1230, 0
        %vm1725 = vcmp.lt.s32.totalorder %v1237, 0
        %vm1726 = vcmp.lt.s32.totalorder %v1244, 0
        %vm1727 = vcmp.lt.s32.totalorder %v1251, 0
        %vm1728 = vcmp.lt.s32.totalorder %v1258, 0
        %vm1729 = vcmp.lt.s32.totalorder %v1265, 0
        %vm1730 = vcmp.lt.s32.totalorder %v1272, 0
        %vm1731 = vcmp.lt.s32.totalorder %v1279, 0
        %vm1732 = vcmp.lt.s32.totalorder %v1286, 0
        %vm1733 = vcmp.lt.s32.totalorder %v1293, 0
        %vm1734 = vcmp.lt.s32.totalorder %v1300, 0
        %vm1735 = vcmp.lt.s32.totalorder %v1307, 0
        %vm1736 = vcmp.lt.s32.totalorder %v1314, 0
        %vm1737 = vcmp.lt.s32.totalorder %v1321, 0
        %vm1738 = vcmp.lt.s32.totalorder %v1328, 0
        %vm1739 = vcmp.lt.s32.totalorder %v1335, 0
        %vm1740 = vcmp.lt.s32.totalorder %v1342, 0
        %vm1741 = vcmp.lt.s32.totalorder %v1349, 0
        %vm1742 = vcmp.lt.s32.totalorder %v1356, 0
        %vm1743 = vcmp.lt.s32.totalorder %v1363, 0
        %vm1744 = vcmp.lt.s32.totalorder %v1370, 0
        %vm1745 = vcmp.lt.s32.totalorder %v1377, 0
        %vm1746 = vcmp.lt.s32.totalorder %v1384, 0
        %vm1747 = vcmp.lt.s32.totalorder %v1391, 0
        %vm1748 = vcmp.lt.s32.totalorder %v1398, 0
        %vm1749 = vcmp.lt.s32.totalorder %v1405, 0
        %vm1750 = vcmp.lt.s32.totalorder %v1412, 0
        %vm1751 = vcmp.lt.s32.totalorder %v1419, 0
        %vm1752 = vcmp.lt.s32.totalorder %v1426, 0
        %vm1753 = vcmp.lt.s32.totalorder %v1433, 0
        %vm1754 = vcmp.lt.s32.totalorder %v1440, 0
        %vm1755 = vcmp.lt.s32.totalorder %v1447, 0
        %vm1756 = vcmp.lt.s32.totalorder %v1454, 0
        %vm1757 = vcmp.lt.s32.totalorder %v1461, 0
        %vm1758 = vcmp.lt.s32.totalorder %v1468, 0
        %vm1759 = vcmp.lt.s32.totalorder %v1475, 0
        %vm1760 = vcmp.lt.s32.totalorder %v1482, 0
        %vm1761 = vcmp.lt.s32.totalorder %v1489, 0
        %vm1762 = vcmp.lt.s32.totalorder %v1496, 0
        %vm1763 = vcmp.lt.s32.totalorder %v1503, 0
        %vm1764 = vcmp.lt.s32.totalorder %v1510, 0
        %vm1765 = vcmp.lt.s32.totalorder %v1517, 0
        %vm1766 = vcmp.lt.s32.totalorder %v1524, 0
        %vm1767 = vcmp.lt.s32.totalorder %v1531, 0
        %vm1768 = vcmp.lt.s32.totalorder %v1538, 0
        %vm1769 = vcmp.lt.s32.totalorder %v1545, 0
        %vm1770 = vcmp.lt.s32.totalorder %v1552, 0
        %vm1771 = vcmp.lt.s32.totalorder %v1559, 0
        %vm1772 = vcmp.lt.s32.totalorder %v1566, 0
        %vm1773 = vcmp.lt.s32.totalorder %v1573, 0
        %vm1774 = vcmp.lt.s32.totalorder %v1580, 0
        %vm1775 = vcmp.lt.s32.totalorder %v1587, 0
        %vm1776 = vcmp.lt.s32.totalorder %v1594, 0
        %vm1777 = vcmp.lt.s32.totalorder %v1601, 0
        %vm1778 = vcmp.lt.s32.totalorder %v1608, 0
        %vm1779 = vcmp.lt.s32.totalorder %v1615, 0
        %vm1780 = vcmp.lt.s32.totalorder %v1622, 0
        %vm1781 = vcmp.lt.s32.totalorder %v1629, 0
        %vm1782 = vcmp.lt.s32.totalorder %v1636, 0
        %vm1783 = vcmp.lt.s32.totalorder %v1643, 0
        %vm1784 = vcmp.lt.s32.totalorder %v1650, 0
        %vm1785 = vcmp.lt.s32.totalorder %v1657, 0
        %vm1786 = vmand %vm1722, %vm1658
        %vm1787 = vmand %vm1723, %vm1659
        %vm1788 = vmand %vm1724, %vm1660
        %vm1789 = vmand %vm1725, %vm1661
        %vm1790 = vmand %vm1726, %vm1662
        %vm1791 = vmand %vm1727, %vm1663
        %vm1792 = vmand %vm1728, %vm1664
        %vm1793 = vmand %vm1729, %vm1665
        %vm1794 = vmand %vm1730, %vm1666
        %vm1795 = vmand %vm1731, %vm1667
        %vm1796 = vmand %vm1732, %vm1668
        %vm1797 = vmand %vm1733, %vm1669
        %vm1798 = vmand %vm1734, %vm1670
        %vm1799 = vmand %vm1735, %vm1671
        %vm1800 = vmand %vm1736, %vm1672
        %vm1801 = vmand %vm1737, %vm1673
        %vm1802 = vmand %vm1738, %vm1674
        %vm1803 = vmand %vm1739, %vm1675
        %vm1804 = vmand %vm1740, %vm1676
        %vm1805 = vmand %vm1741, %vm1677
        %vm1806 = vmand %vm1742, %vm1678
        %vm1807 = vmand %vm1743, %vm1679
        %vm1808 = vmand %vm1744, %vm1680
        %vm1809 = vmand %vm1745, %vm1681
        %vm1810 = vmand %vm1746, %vm1682
        %vm1811 = vmand %vm1747, %vm1683
        %vm1812 = vmand %vm1748, %vm1684
        %vm1813 = vmand %vm1749, %vm1685
        %vm1814 = vmand %vm1750, %vm1686
        %vm1815 = vmand %vm1751, %vm1687
        %vm1816 = vmand %vm1752, %vm1688
        %vm1817 = vmand %vm1753, %vm1689
        %vm1818 = vmand %vm1754, %vm1690
        %vm1819 = vmand %vm1755, %vm1691
        %vm1820 = vmand %vm1756, %vm1692
        %vm1821 = vmand %vm1757, %vm1693
        %vm1822 = vmand %vm1758, %vm1694
        %vm1823 = vmand %vm1759, %vm1695
        %vm1824 = vmand %vm1760, %vm1696
        %vm1825 = vmand %vm1761, %vm1697
        %vm1826 = vmand %vm1762, %vm1698
        %vm1827 = vmand %vm1763, %vm1699
        %vm1828 = vmand %vm1764, %vm1700
        %vm1829 = vmand %vm1765, %vm1701
        %vm1830 = vmand %vm1766, %vm1702
        %vm1831 = vmand %vm1767, %vm1703
        %vm1832 = vmand %vm1768, %vm1704
        %vm1833 = vmand %vm1769, %vm1705
        %vm1834 = vmand %vm1770, %vm1706
        %vm1835 = vmand %vm1771, %vm1707
        %vm1836 = vmand %vm1772, %vm1708
        %vm1837 = vmand %vm1773, %vm1709
        %vm1838 = vmand %vm1774, %vm1710
        %vm1839 = vmand %vm1775, %vm1711
        %vm1840 = vmand %vm1776, %vm1712
        %vm1841 = vmand %vm1777, %vm1713
        %vm1842 = vmand %vm1778, %vm1714
        %vm1843 = vmand %vm1779, %vm1715
        %vm1844 = vmand %vm1780, %vm1716
        %vm1845 = vmand %vm1781, %vm1717
        %vm1846 = vmand %vm1782, %vm1718
        %vm1847 = vmand %vm1783, %vm1719
        %vm1848 = vmand %vm1784, %vm1720
        %vm1849 = vmand %vm1785, %vm1721
        %v1850 = vadd.s32 %v1216, 16
        %v1851 = vadd.s32 %v1223, 16
        %v1852 = vadd.s32 %v1230, 16
        %v1853 = vadd.s32 %v1237, 16
        %v1854 = vadd.s32 %v1244, 16
        %v1855 = vadd.s32 %v1251, 16
        %v1856 = vadd.s32 %v1258, 16
        %v1857 = vadd.s32 %v1265, 16
        %v1858 = vadd.s32 %v1272, 16
        %v1859 = vadd.s32 %v1279, 16
        %v1860 = vadd.s32 %v1286, 16
        %v1861 = vadd.s32 %v1293, 16
        %v1862 = vadd.s32 %v1300, 16
        %v1863 = vadd.s32 %v1307, 16
        %v1864 = vadd.s32 %v1314, 16
        %v1865 = vadd.s32 %v1321, 16
        %v1866 = vadd.s32 %v1328, 16
        %v1867 = vadd.s32 %v1335, 16
        %v1868 = vadd.s32 %v1342, 16
        %v1869 = vadd.s32 %v1349, 16
        %v1870 = vadd.s32 %v1356, 16
        %v1871 = vadd.s32 %v1363, 16
        %v1872 = vadd.s32 %v1370, 16
        %v1873 = vadd.s32 %v1377, 16
        %v1874 = vadd.s32 %v1384, 16
        %v1875 = vadd.s32 %v1391, 16
        %v1876 = vadd.s32 %v1398, 16
        %v1877 = vadd.s32 %v1405, 16
        %v1878 = vadd.s32 %v1412, 16
        %v1879 = vadd.s32 %v1419, 16
        %v1880 = vadd.s32 %v1426, 16
        %v1881 = vadd.s32 %v1433, 16
        %v1882 = vadd.s32 %v1440, 16
        %v1883 = vadd.s32 %v1447, 16
        %v1884 = vadd.s32 %v1454, 16
        %v1885 = vadd.s32 %v1461, 16
        %v1886 = vadd.s32 %v1468, 16
        %v1887 = vadd.s32 %v1475, 16
        %v1888 = vadd.s32 %v1482, 16
        %v1889 = vadd.s32 %v1489, 16
        %v1890 = vadd.s32 %v1496, 16
        %v1891 = vadd.s32 %v1503, 16
        %v1892 = vadd.s32 %v1510, 16
        %v1893 = vadd.s32 %v1517, 16
        %v1894 = vadd.s32 %v1524, 16
        %v1895 = vadd.s32 %v1531, 16
        %v1896 = vadd.s32 %v1538, 16
        %v1897 = vadd.s32 %v1545, 16
        %v1898 = vadd.s32 %v1552, 16
        %v1899 = vadd.s32 %v1559, 16
        %v1900 = vadd.s32 %v1566, 16
        %v1901 = vadd.s32 %v1573, 16
        %v1902 = vadd.s32 %v1580, 16
        %v1903 = vadd.s32 %v1587, 16
        %v1904 = vadd.s32 %v1594, 16
        %v1905 = vadd.s32 %v1601, 16
        %v1906 = vadd.s32 %v1608, 16
        %v1907 = vadd.s32 %v1615, 16
        %v1908 = vadd.s32 %v1622, 16
        %v1909 = vadd.s32 %v1629, 16
        %v1910 = vadd.s32 %v1636, 16
        %v1911 = vadd.s32 %v1643, 16
        %v1912 = vadd.s32 %v1650, 16
        %v1913 = vadd.s32 %v1657, 16
        %v1914 = vsel %vm1786, %v1850, %v1216
        %v1915 = vsel %vm1787, %v1851, %v1223
        %v1916 = vsel %vm1788, %v1852, %v1230
        %v1917 = vsel %vm1789, %v1853, %v1237
        %v1918 = vsel %vm1790, %v1854, %v1244
        %v1919 = vsel %vm1791, %v1855, %v1251
        %v1920 = vsel %vm1792, %v1856, %v1258
        %v1921 = vsel %vm1793, %v1857, %v1265
        %v1922 = vsel %vm1794, %v1858, %v1272
        %v1923 = vsel %vm1795, %v1859, %v1279
        %v1924 = vsel %vm1796, %v1860, %v1286
        %v1925 = vsel %vm1797, %v1861, %v1293
        %v1926 = vsel %vm1798, %v1862, %v1300
        %v1927 = vsel %vm1799, %v1863, %v1307
        %v1928 = vsel %vm1800, %v1864, %v1314
        %v1929 = vsel %vm1801, %v1865, %v1321
        %v1930 = vsel %vm1802, %v1866, %v1328
        %v1931 = vsel %vm1803, %v1867, %v1335
        %v1932 = vsel %vm1804, %v1868, %v1342
        %v1933 = vsel %vm1805, %v1869, %v1349
        %v1934 = vsel %vm1806, %v1870, %v1356
        %v1935 = vsel %vm1807, %v1871, %v1363
        %v1936 = vsel %vm1808, %v1872, %v1370
        %v1937 = vsel %vm1809, %v1873, %v1377
        %v1938 = vsel %vm1810, %v1874, %v1384
        %v1939 = vsel %vm1811, %v1875, %v1391
        %v1940 = vsel %vm1812, %v1876, %v1398
        %v1941 = vsel %vm1813, %v1877, %v1405
        %v1942 = vsel %vm1814, %v1878, %v1412
        %v1943 = vsel %vm1815, %v1879, %v1419
        %v1944 = vsel %vm1816, %v1880, %v1426
        %v1945 = vsel %vm1817, %v1881, %v1433
        %v1946 = vsel %vm1818, %v1882, %v1440
        %v1947 = vsel %vm1819, %v1883, %v1447
        %v1948 = vsel %vm1820, %v1884, %v1454
        %v1949 = vsel %vm1821, %v1885, %v1461
        %v1950 = vsel %vm1822, %v1886, %v1468
        %v1951 = vsel %vm1823, %v1887, %v1475
        %v1952 = vsel %vm1824, %v1888, %v1482
        %v1953 = vsel %vm1825, %v1889, %v1489
        %v1954 = vsel %vm1826, %v1890, %v1496
        %v1955 = vsel %vm1827, %v1891, %v1503
        %v1956 = vsel %vm1828, %v1892, %v1510
        %v1957 = vsel %vm1829, %v1893, %v1517
        %v1958 = vsel %vm1830, %v1894, %v1524
        %v1959 = vsel %vm1831, %v1895, %v1531
        %v1960 = vsel %vm1832, %v1896, %v1538
        %v1961 = vsel %vm1833, %v1897, %v1545
        %v1962 = vsel %vm1834, %v1898, %v1552
        %v1963 = vsel %vm1835, %v1899, %v1559
        %v1964 = vsel %vm1836, %v1900, %v1566
        %v1965 = vsel %vm1837, %v1901, %v1573
        %v1966 = vsel %vm1838, %v1902, %v1580
        %v1967 = vsel %vm1839, %v1903, %v1587
        %v1968 = vsel %vm1840, %v1904, %v1594
        %v1969 = vsel %vm1841, %v1905, %v1601
        %v1970 = vsel %vm1842, %v1906, %v1608
        %v1971 = vsel %vm1843, %v1907, %v1615
        %v1972 = vsel %vm1844, %v1908, %v1622
        %v1973 = vsel %vm1845, %v1909, %v1629
        %v1974 = vsel %vm1846, %v1910, %v1636
        %v1975 = vsel %vm1847, %v1911, %v1643
        %v1976 = vsel %vm1848, %v1912, %v1650
        %v1977 = vsel %vm1849, %v1913, %v1657
        %v1978 = vrot.slane %v1081, 7
        %v1979 = vrot.slane %v1082, 7
        %v1980 = vrot.slane %v1083, 7
        %v1981 = vrot.slane %v1084, 7
        %v1982 = vrot.slane %v1085, 7
        %v1983 = vrot.slane %v1086, 7
        %v1984 = vrot.slane %v1087, 7
        %v1985 = vrot.slane %v1088, 7
        %v1986 = vrot.slane %v1089, 7
        %v1987 = vrot.slane %v1090, 7
        %v1988 = vrot.slane %v1091, 7
        %v1989 = vrot.slane %v1092, 7
        %v1990 = vrot.slane %v1093, 7
        %v1991 = vrot.slane %v1094, 7
        %v1992 = vrot.slane %v1095, 7
        %v1993 = vrot.slane %v1096, 7
        %v1994 = vrot.slane %v1097, 7
        %v1995 = vrot.slane %v1098, 7
        %v1996 = vrot.slane %v1099, 7
        %v1997 = vrot.slane %v1100, 7
        %v1998 = vrot.slane %v1101, 7
        %v1999 = vrot.slane %v1102, 7
        %v2000 = vrot.slane %v1103, 7
        %v2001 = vrot.slane %v1104, 7
        %v2002 = vrot.slane %v1105, 7
        %v2003 = vrot.slane %v1106, 7
        %v2004 = vrot.slane %v1107, 7
        %v2005 = vrot.slane %v1108, 7
        %v2006 = vrot.slane %v1109, 7
        %v2007 = vrot.slane %v1110, 7
        %v2008 = vrot.slane %v1111, 7
        %v2009 = vrot.slane %v1112, 7
        %v2010 = vrot.slane %v1113, 7
        %v2011 = vrot.slane %v1114, 7
        %v2012 = vrot.slane %v1115, 7
        %v2013 = vrot.slane %v1116, 7
        %v2014 = vrot.slane %v1117, 7
        %v2015 = vrot.slane %v1118, 7
        %v2016 = vrot.slane %v1119, 7
        %v2017 = vrot.slane %v1120, 7
        %v2018 = vrot.slane %v1121, 7
        %v2019 = vrot.slane %v1122, 7
        %v2020 = vrot.slane %v1123, 7
        %v2021 = vrot.slane %v1124, 7
        %v2022 = vrot.slane %v1125, 7
        %v2023 = vrot.slane %v1126, 7
        %v2024 = vrot.slane %v1127, 7
        %v2025 = vrot.slane %v1128, 7
        %v2026 = vrot.slane %v1129, 7
        %v2027 = vrot.slane %v1130, 7
        %v2028 = vrot.slane %v1131, 7
        %v2029 = vrot.slane %v1132, 7
        %v2030 = vrot.slane %v1133, 7
        %v2031 = vrot.slane %v1134, 7
        %v2032 = vrot.slane %v1135, 7
        %v2033 = vrot.slane %v1136, 7
        %v2034 = vrot.slane %v1137, 7
        %v2035 = vrot.slane %v1138, 7
        %v2036 = vrot.slane %v1139, 7
        %v2037 = vrot.slane %v1140, 7
        %v2038 = vrot.slane %v1141, 7
        %v2039 = vrot.slane %v1142, 7
        %v2040 = vrot.slane %v1143, 7
        %v2041 = vrot.slane %v1144, 7
        %vm2042 = vcmp.lt.s32.totalorder %v1146, 1
        %v2043 = vsel %vm2042, %v2040, %v2041
        %v2044 = vsel %vm2042, %v2039, %v2040
        %v2045 = vsel %vm2042, %v2038, %v2039
        %v2046 = vsel %vm2042, %v2037, %v2038
        %v2047 = vsel %vm2042, %v2036, %v2037
        %v2048 = vsel %vm2042, %v2035, %v2036
        %v2049 = vsel %vm2042, %v2034, %v2035
        %v2050 = vsel %vm2042, %v2033, %v2034
        %v2051 = vsel %vm2042, %v2032, %v2033
        %v2052 = vsel %vm2042, %v2031, %v2032
        %v2053 = vsel %vm2042, %v2030, %v2031
        %v2054 = vsel %vm2042, %v2029, %v2030
        %v2055 = vsel %vm2042, %v2028, %v2029
        %v2056 = vsel %vm2042, %v2027, %v2028
        %v2057 = vsel %vm2042, %v2026, %v2027
        %v2058 = vsel %vm2042, %v2025, %v2026
        %v2059 = vsel %vm2042, %v2024, %v2025
        %v2060 = vsel %vm2042, %v2023, %v2024
        %v2061 = vsel %vm2042, %v2022, %v2023
        %v2062 = vsel %vm2042, %v2021, %v2022
        %v2063 = vsel %vm2042, %v2020, %v2021
        %v2064 = vsel %vm2042, %v2019, %v2020
        %v2065 = vsel %vm2042, %v2018, %v2019
        %v2066 = vsel %vm2042, %v2017, %v2018
        %v2067 = vsel %vm2042, %v2016, %v2017
        %v2068 = vsel %vm2042, %v2015, %v2016
        %v2069 = vsel %vm2042, %v2014, %v2015
        %v2070 = vsel %vm2042, %v2013, %v2014
        %v2071 = vsel %vm2042, %v2012, %v2013
        %v2072 = vsel %vm2042, %v2011, %v2012
        %v2073 = vsel %vm2042, %v2010, %v2011
        %v2074 = vsel %vm2042, %v2009, %v2010
        %v2075 = vsel %vm2042, %v2008, %v2009
        %v2076 = vsel %vm2042, %v2007, %v2008
        %v2077 = vsel %vm2042, %v2006, %v2007
        %v2078 = vsel %vm2042, %v2005, %v2006
        %v2079 = vsel %vm2042, %v2004, %v2005
        %v2080 = vsel %vm2042, %v2003, %v2004
        %v2081 = vsel %vm2042, %v2002, %v2003
        %v2082 = vsel %vm2042, %v2001, %v2002
        %v2083 = vsel %vm2042, %v2000, %v2001
        %v2084 = vsel %vm2042, %v1999, %v2000
        %v2085 = vsel %vm2042, %v1998, %v1999
        %v2086 = vsel %vm2042, %v1997, %v1998
        %v2087 = vsel %vm2042, %v1996, %v1997
        %v2088 = vsel %vm2042, %v1995, %v1996
        %v2089 = vsel %vm2042, %v1994, %v1995
        %v2090 = vsel %vm2042, %v1993, %v1994
        %v2091 = vsel %vm2042, %v1992, %v1993
        %v2092 = vsel %vm2042, %v1991, %v1992
        %v2093 = vsel %vm2042, %v1990, %v1991
        %v2094 = vsel %vm2042, %v1989, %v1990
        %v2095 = vsel %vm2042, %v1988, %v1989
        %v2096 = vsel %vm2042, %v1987, %v1988
        %v2097 = vsel %vm2042, %v1986, %v1987
        %v2098 = vsel %vm2042, %v1985, %v1986
        %v2099 = vsel %vm2042, %v1984, %v1985
        %v2100 = vsel %vm2042, %v1983, %v1984
        %v2101 = vsel %vm2042, %v1982, %v1983
        %v2102 = vsel %vm2042, %v1981, %v1982
        %v2103 = vsel %vm2042, %v1980, %v1981
        %v2104 = vsel %vm2042, %v1979, %v1980
        %v2105 = vsel %vm2042, %v1978, %v1979
        %v2106 = vsel %vm2042, %v2041, %v1978
        %vm2107 = vcmp.gt.s32.totalorder %v1914, 0
        %vm2108 = vcmp.gt.s32.totalorder %v1915, 0
        %vm2109 = vcmp.gt.s32.totalorder %v1916, 0
        %vm2110 = vcmp.gt.s32.totalorder %v1917, 0
        %vm2111 = vcmp.gt.s32.totalorder %v1918, 0
        %vm2112 = vcmp.gt.s32.totalorder %v1919, 0
        %vm2113 = vcmp.gt.s32.totalorder %v1920, 0
        %vm2114 = vcmp.gt.s32.totalorder %v1921, 0
        %vm2115 = vcmp.gt.s32.totalorder %v1922, 0
        %vm2116 = vcmp.gt.s32.totalorder %v1923, 0
        %vm2117 = vcmp.gt.s32.totalorder %v1924, 0
        %vm2118 = vcmp.gt.s32.totalorder %v1925, 0
        %vm2119 = vcmp.gt.s32.totalorder %v1926, 0
        %vm2120 = vcmp.gt.s32.totalorder %v1927, 0
        %vm2121 = vcmp.gt.s32.totalorder %v1928, 0
        %vm2122 = vcmp.gt.s32.totalorder %v1929, 0
        %vm2123 = vcmp.gt.s32.totalorder %v1930, 0
        %vm2124 = vcmp.gt.s32.totalorder %v1931, 0
        %vm2125 = vcmp.gt.s32.totalorder %v1932, 0
        %vm2126 = vcmp.gt.s32.totalorder %v1933, 0
        %vm2127 = vcmp.gt.s32.totalorder %v1934, 0
        %vm2128 = vcmp.gt.s32.totalorder %v1935, 0
        %vm2129 = vcmp.gt.s32.totalorder %v1936, 0
        %vm2130 = vcmp.gt.s32.totalorder %v1937, 0
        %vm2131 = vcmp.gt.s32.totalorder %v1938, 0
        %vm2132 = vcmp.gt.s32.totalorder %v1939, 0
        %vm2133 = vcmp.gt.s32.totalorder %v1940, 0
        %vm2134 = vcmp.gt.s32.totalorder %v1941, 0
        %vm2135 = vcmp.gt.s32.totalorder %v1942, 0
        %vm2136 = vcmp.gt.s32.totalorder %v1943, 0
        %vm2137 = vcmp.gt.s32.totalorder %v1944, 0
        %vm2138 = vcmp.gt.s32.totalorder %v1945, 0
        %vm2139 = vcmp.gt.s32.totalorder %v1946, 0
        %vm2140 = vcmp.gt.s32.totalorder %v1947, 0
        %vm2141 = vcmp.gt.s32.totalorder %v1948, 0
        %vm2142 = vcmp.gt.s32.totalorder %v1949, 0
        %vm2143 = vcmp.gt.s32.totalorder %v1950, 0
        %vm2144 = vcmp.gt.s32.totalorder %v1951, 0
        %vm2145 = vcmp.gt.s32.totalorder %v1952, 0
        %vm2146 = vcmp.gt.s32.totalorder %v1953, 0
        %vm2147 = vcmp.gt.s32.totalorder %v1954, 0
        %vm2148 = vcmp.gt.s32.totalorder %v1955, 0
        %vm2149 = vcmp.gt.s32.totalorder %v1956, 0
        %vm2150 = vcmp.gt.s32.totalorder %v1957, 0
        %vm2151 = vcmp.gt.s32.totalorder %v1958, 0
        %vm2152 = vcmp.gt.s32.totalorder %v1959, 0
        %vm2153 = vcmp.gt.s32.totalorder %v1960, 0
        %vm2154 = vcmp.gt.s32.totalorder %v1961, 0
        %vm2155 = vcmp.gt.s32.totalorder %v1962, 0
        %vm2156 = vcmp.gt.s32.totalorder %v1963, 0
        %vm2157 = vcmp.gt.s32.totalorder %v1964, 0
        %vm2158 = vcmp.gt.s32.totalorder %v1965, 0
        %vm2159 = vcmp.gt.s32.totalorder %v1966, 0
        %vm2160 = vcmp.gt.s32.totalorder %v1967, 0
        %vm2161 = vcmp.gt.s32.totalorder %v1968, 0
        %vm2162 = vcmp.gt.s32.totalorder %v1969, 0
        %vm2163 = vcmp.gt.s32.totalorder %v1970, 0
        %vm2164 = vcmp.gt.s32.totalorder %v1971, 0
        %vm2165 = vcmp.gt.s32.totalorder %v1972, 0
        %vm2166 = vcmp.gt.s32.totalorder %v1973, 0
        %vm2167 = vcmp.gt.s32.totalorder %v1974, 0
        %vm2168 = vcmp.gt.s32.totalorder %v1975, 0
        %vm2169 = vcmp.gt.s32.totalorder %v1976, 0
        %vm2170 = vcmp.gt.s32.totalorder %v1977, 0
        %v2171 = vsel %vm2107, 1, 0
        %v2172 = vsel %vm2108, 1, 0
        %v2173 = vsel %vm2109, 1, 0
        %v2174 = vsel %vm2110, 1, 0
        %v2175 = vsel %vm2111, 1, 0
        %v2176 = vsel %vm2112, 1, 0
        %v2177 = vsel %vm2113, 1, 0
        %v2178 = vsel %vm2114, 1, 0
        %v2179 = vsel %vm2115, 1, 0
        %v2180 = vsel %vm2116, 1, 0
        %v2181 = vsel %vm2117, 1, 0
        %v2182 = vsel %vm2118, 1, 0
        %v2183 = vsel %vm2119, 1, 0
        %v2184 = vsel %vm2120, 1, 0
        %v2185 = vsel %vm2121, 1, 0
        %v2186 = vsel %vm2122, 1, 0
        %v2187 = vsel %vm2123, 1, 0
        %v2188 = vsel %vm2124, 1, 0
        %v2189 = vsel %vm2125, 1, 0
        %v2190 = vsel %vm2126, 1, 0
        %v2191 = vsel %vm2127, 1, 0
        %v2192 = vsel %vm2128, 1, 0
        %v2193 = vsel %vm2129, 1, 0
        %v2194 = vsel %vm2130, 1, 0
        %v2195 = vsel %vm2131, 1, 0
        %v2196 = vsel %vm2132, 1, 0
        %v2197 = vsel %vm2133, 1, 0
        %v2198 = vsel %vm2134, 1, 0
        %v2199 = vsel %vm2135, 1, 0
        %v2200 = vsel %vm2136, 1, 0
        %v2201 = vsel %vm2137, 1, 0
        %v2202 = vsel %vm2138, 1, 0
        %v2203 = vsel %vm2139, 1, 0
        %v2204 = vsel %vm2140, 1, 0
        %v2205 = vsel %vm2141, 1, 0
        %v2206 = vsel %vm2142, 1, 0
        %v2207 = vsel %vm2143, 1, 0
        %v2208 = vsel %vm2144, 1, 0
        %v2209 = vsel %vm2145, 1, 0
        %v2210 = vsel %vm2146, 1, 0
        %v2211 = vsel %vm2147, 1, 0
        %v2212 = vsel %vm2148, 1, 0
        %v2213 = vsel %vm2149, 1, 0
        %v2214 = vsel %vm2150, 1, 0
        %v2215 = vsel %vm2151, 1, 0
        %v2216 = vsel %vm2152, 1, 0
        %v2217 = vsel %vm2153, 1, 0
        %v2218 = vsel %vm2154, 1, 0
        %v2219 = vsel %vm2155, 1, 0
        %v2220 = vsel %vm2156, 1, 0
        %v2221 = vsel %vm2157, 1, 0
        %v2222 = vsel %vm2158, 1, 0
        %v2223 = vsel %vm2159, 1, 0
        %v2224 = vsel %vm2160, 1, 0
        %v2225 = vsel %vm2161, 1, 0
        %v2226 = vsel %vm2162, 1, 0
        %v2227 = vsel %vm2163, 1, 0
        %v2228 = vsel %vm2164, 1, 0
        %v2229 = vsel %vm2165, 1, 0
        %v2230 = vsel %vm2166, 1, 0
        %v2231 = vsel %vm2167, 1, 0
        %v2232 = vsel %vm2168, 1, 0
        %v2233 = vsel %vm2169, 1, 0
        %v2234 = vsel %vm2170, 1, 0
        %v2235 = vcvt.s32.f32 %v2171
        %v2236 = vcvt.s32.f32 %v2172
        %v2237 = vcvt.s32.f32 %v2173
        %v2238 = vcvt.s32.f32 %v2174
        %v2239 = vcvt.s32.f32 %v2175
        %v2240 = vcvt.s32.f32 %v2176
        %v2241 = vcvt.s32.f32 %v2177
        %v2242 = vcvt.s32.f32 %v2178
        %v2243 = vcvt.s32.f32 %v2179
        %v2244 = vcvt.s32.f32 %v2180
        %v2245 = vcvt.s32.f32 %v2181
        %v2246 = vcvt.s32.f32 %v2182
        %v2247 = vcvt.s32.f32 %v2183
        %v2248 = vcvt.s32.f32 %v2184
        %v2249 = vcvt.s32.f32 %v2185
        %v2250 = vcvt.s32.f32 %v2186
        %v2251 = vcvt.s32.f32 %v2187
        %v2252 = vcvt.s32.f32 %v2188
        %v2253 = vcvt.s32.f32 %v2189
        %v2254 = vcvt.s32.f32 %v2190
        %v2255 = vcvt.s32.f32 %v2191
        %v2256 = vcvt.s32.f32 %v2192
        %v2257 = vcvt.s32.f32 %v2193
        %v2258 = vcvt.s32.f32 %v2194
        %v2259 = vcvt.s32.f32 %v2195
        %v2260 = vcvt.s32.f32 %v2196
        %v2261 = vcvt.s32.f32 %v2197
        %v2262 = vcvt.s32.f32 %v2198
        %v2263 = vcvt.s32.f32 %v2199
        %v2264 = vcvt.s32.f32 %v2200
        %v2265 = vcvt.s32.f32 %v2201
        %v2266 = vcvt.s32.f32 %v2202
        %v2267 = vcvt.s32.f32 %v2203
        %v2268 = vcvt.s32.f32 %v2204
        %v2269 = vcvt.s32.f32 %v2205
        %v2270 = vcvt.s32.f32 %v2206
        %v2271 = vcvt.s32.f32 %v2207
        %v2272 = vcvt.s32.f32 %v2208
        %v2273 = vcvt.s32.f32 %v2209
        %v2274 = vcvt.s32.f32 %v2210
        %v2275 = vcvt.s32.f32 %v2211
        %v2276 = vcvt.s32.f32 %v2212
        %v2277 = vcvt.s32.f32 %v2213
        %v2278 = vcvt.s32.f32 %v2214
        %v2279 = vcvt.s32.f32 %v2215
        %v2280 = vcvt.s32.f32 %v2216
        %v2281 = vcvt.s32.f32 %v2217
        %v2282 = vcvt.s32.f32 %v2218
        %v2283 = vcvt.s32.f32 %v2219
        %v2284 = vcvt.s32.f32 %v2220
        %v2285 = vcvt.s32.f32 %v2221
        %v2286 = vcvt.s32.f32 %v2222
        %v2287 = vcvt.s32.f32 %v2223
        %v2288 = vcvt.s32.f32 %v2224
        %v2289 = vcvt.s32.f32 %v2225
        %v2290 = vcvt.s32.f32 %v2226
        %v2291 = vcvt.s32.f32 %v2227
        %v2292 = vcvt.s32.f32 %v2228
        %v2293 = vcvt.s32.f32 %v2229
        %v2294 = vcvt.s32.f32 %v2230
        %v2295 = vcvt.s32.f32 %v2231
        %v2296 = vcvt.s32.f32 %v2232
        %v2297 = vcvt.s32.f32 %v2233
        %v2298 = vcvt.s32.f32 %v2234
        %v2299 = vmul.f32 %v2106, %v2235
        %v2300 = vmul.f32 %v2105, %v2236
        %v2301 = vmul.f32 %v2104, %v2237
        %v2302 = vmul.f32 %v2103, %v2238
        %v2303 = vmul.f32 %v2102, %v2239
        %v2304 = vmul.f32 %v2101, %v2240
        %v2305 = vmul.f32 %v2100, %v2241
        %v2306 = vmul.f32 %v2099, %v2242
        %v2307 = vmul.f32 %v2098, %v2243
        %v2308 = vmul.f32 %v2097, %v2244
        %v2309 = vmul.f32 %v2096, %v2245
        %v2310 = vmul.f32 %v2095, %v2246
        %v2311 = vmul.f32 %v2094, %v2247
        %v2312 = vmul.f32 %v2093, %v2248
        %v2313 = vmul.f32 %v2092, %v2249
        %v2314 = vmul.f32 %v2091, %v2250
        %v2315 = vmul.f32 %v2090, %v2251
        %v2316 = vmul.f32 %v2089, %v2252
        %v2317 = vmul.f32 %v2088, %v2253
        %v2318 = vmul.f32 %v2087, %v2254
        %v2319 = vmul.f32 %v2086, %v2255
        %v2320 = vmul.f32 %v2085, %v2256
        %v2321 = vmul.f32 %v2084, %v2257
        %v2322 = vmul.f32 %v2083, %v2258
        %v2323 = vmul.f32 %v2082, %v2259
        %v2324 = vmul.f32 %v2081, %v2260
        %v2325 = vmul.f32 %v2080, %v2261
        %v2326 = vmul.f32 %v2079, %v2262
        %v2327 = vmul.f32 %v2078, %v2263
        %v2328 = vmul.f32 %v2077, %v2264
        %v2329 = vmul.f32 %v2076, %v2265
        %v2330 = vmul.f32 %v2075, %v2266
        %v2331 = vmul.f32 %v2074, %v2267
        %v2332 = vmul.f32 %v2073, %v2268
        %v2333 = vmul.f32 %v2072, %v2269
        %v2334 = vmul.f32 %v2071, %v2270
        %v2335 = vmul.f32 %v2070, %v2271
        %v2336 = vmul.f32 %v2069, %v2272
        %v2337 = vmul.f32 %v2068, %v2273
        %v2338 = vmul.f32 %v2067, %v2274
        %v2339 = vmul.f32 %v2066, %v2275
        %v2340 = vmul.f32 %v2065, %v2276
        %v2341 = vmul.f32 %v2064, %v2277
        %v2342 = vmul.f32 %v2063, %v2278
        %v2343 = vmul.f32 %v2062, %v2279
        %v2344 = vmul.f32 %v2061, %v2280
        %v2345 = vmul.f32 %v2060, %v2281
        %v2346 = vmul.f32 %v2059, %v2282
        %v2347 = vmul.f32 %v2058, %v2283
        %v2348 = vmul.f32 %v2057, %v2284
        %v2349 = vmul.f32 %v2056, %v2285
        %v2350 = vmul.f32 %v2055, %v2286
        %v2351 = vmul.f32 %v2054, %v2287
        %v2352 = vmul.f32 %v2053, %v2288
        %v2353 = vmul.f32 %v2052, %v2289
        %v2354 = vmul.f32 %v2051, %v2290
        %v2355 = vmul.f32 %v2050, %v2291
        %v2356 = vmul.f32 %v2049, %v2292
        %v2357 = vmul.f32 %v2048, %v2293
        %v2358 = vmul.f32 %v2047, %v2294
        %v2359 = vmul.f32 %v2046, %v2295
        %v2360 = vmul.f32 %v2045, %v2296
        %v2361 = vmul.f32 %v2044, %v2297
        %v2362 = vmul.f32 %v2043, %v2298
        %v2363 = vrot.slane %v1081, 1
        %v2364 = vrot.slane %v1082, 1
        %v2365 = vrot.slane %v1083, 1
        %v2366 = vrot.slane %v1084, 1
        %v2367 = vrot.slane %v1085, 1
        %v2368 = vrot.slane %v1086, 1
        %v2369 = vrot.slane %v1087, 1
        %v2370 = vrot.slane %v1088, 1
        %v2371 = vrot.slane %v1089, 1
        %v2372 = vrot.slane %v1090, 1
        %v2373 = vrot.slane %v1091, 1
        %v2374 = vrot.slane %v1092, 1
        %v2375 = vrot.slane %v1093, 1
        %v2376 = vrot.slane %v1094, 1
        %v2377 = vrot.slane %v1095, 1
        %v2378 = vrot.slane %v1096, 1
        %v2379 = vrot.slane %v1097, 1
        %v2380 = vrot.slane %v1098, 1
        %v2381 = vrot.slane %v1099, 1
        %v2382 = vrot.slane %v1100, 1
        %v2383 = vrot.slane %v1101, 1
        %v2384 = vrot.slane %v1102, 1
        %v2385 = vrot.slane %v1103, 1
        %v2386 = vrot.slane %v1104, 1
        %v2387 = vrot.slane %v1105, 1
        %v2388 = vrot.slane %v1106, 1
        %v2389 = vrot.slane %v1107, 1
        %v2390 = vrot.slane %v1108, 1
        %v2391 = vrot.slane %v1109, 1
        %v2392 = vrot.slane %v1110, 1
        %v2393 = vrot.slane %v1111, 1
        %v2394 = vrot.slane %v1112, 1
        %v2395 = vrot.slane %v1113, 1
        %v2396 = vrot.slane %v1114, 1
        %v2397 = vrot.slane %v1115, 1
        %v2398 = vrot.slane %v1116, 1
        %v2399 = vrot.slane %v1117, 1
        %v2400 = vrot.slane %v1118, 1
        %v2401 = vrot.slane %v1119, 1
        %v2402 = vrot.slane %v1120, 1
        %v2403 = vrot.slane %v1121, 1
        %v2404 = vrot.slane %v1122, 1
        %v2405 = vrot.slane %v1123, 1
        %v2406 = vrot.slane %v1124, 1
        %v2407 = vrot.slane %v1125, 1
        %v2408 = vrot.slane %v1126, 1
        %v2409 = vrot.slane %v1127, 1
        %v2410 = vrot.slane %v1128, 1
        %v2411 = vrot.slane %v1129, 1
        %v2412 = vrot.slane %v1130, 1
        %v2413 = vrot.slane %v1131, 1
        %v2414 = vrot.slane %v1132, 1
        %v2415 = vrot.slane %v1133, 1
        %v2416 = vrot.slane %v1134, 1
        %v2417 = vrot.slane %v1135, 1
        %v2418 = vrot.slane %v1136, 1
        %v2419 = vrot.slane %v1137, 1
        %v2420 = vrot.slane %v1138, 1
        %v2421 = vrot.slane %v1139, 1
        %v2422 = vrot.slane %v1140, 1
        %v2423 = vrot.slane %v1141, 1
        %v2424 = vrot.slane %v1142, 1
        %v2425 = vrot.slane %v1143, 1
        %v2426 = vrot.slane %v1144, 1
        %vm2427 = vcmp.lt.s32.totalorder %v1146, 7
        %v2428 = vsel %vm2427, %v2425, %v2426
        %v2429 = vsel %vm2427, %v2424, %v2425
        %v2430 = vsel %vm2427, %v2423, %v2424
        %v2431 = vsel %vm2427, %v2422, %v2423
        %v2432 = vsel %vm2427, %v2421, %v2422
        %v2433 = vsel %vm2427, %v2420, %v2421
        %v2434 = vsel %vm2427, %v2419, %v2420
        %v2435 = vsel %vm2427, %v2418, %v2419
        %v2436 = vsel %vm2427, %v2417, %v2418
        %v2437 = vsel %vm2427, %v2416, %v2417
        %v2438 = vsel %vm2427, %v2415, %v2416
        %v2439 = vsel %vm2427, %v2414, %v2415
        %v2440 = vsel %vm2427, %v2413, %v2414
        %v2441 = vsel %vm2427, %v2412, %v2413
        %v2442 = vsel %vm2427, %v2411, %v2412
        %v2443 = vsel %vm2427, %v2410, %v2411
        %v2444 = vsel %vm2427, %v2409, %v2410
        %v2445 = vsel %vm2427, %v2408, %v2409
        %v2446 = vsel %vm2427, %v2407, %v2408
        %v2447 = vsel %vm2427, %v2406, %v2407
        %v2448 = vsel %vm2427, %v2405, %v2406
        %v2449 = vsel %vm2427, %v2404, %v2405
        %v2450 = vsel %vm2427, %v2403, %v2404
        %v2451 = vsel %vm2427, %v2402, %v2403
        %v2452 = vsel %vm2427, %v2401, %v2402
        %v2453 = vsel %vm2427, %v2400, %v2401
        %v2454 = vsel %vm2427, %v2399, %v2400
        %v2455 = vsel %vm2427, %v2398, %v2399
        %v2456 = vsel %vm2427, %v2397, %v2398
        %v2457 = vsel %vm2427, %v2396, %v2397
        %v2458 = vsel %vm2427, %v2395, %v2396
        %v2459 = vsel %vm2427, %v2394, %v2395
        %v2460 = vsel %vm2427, %v2393, %v2394
        %v2461 = vsel %vm2427, %v2392, %v2393
        %v2462 = vsel %vm2427, %v2391, %v2392
        %v2463 = vsel %vm2427, %v2390, %v2391
        %v2464 = vsel %vm2427, %v2389, %v2390
        %v2465 = vsel %vm2427, %v2388, %v2389
        %v2466 = vsel %vm2427, %v2387, %v2388
        %v2467 = vsel %vm2427, %v2386, %v2387
        %v2468 = vsel %vm2427, %v2385, %v2386
        %v2469 = vsel %vm2427, %v2384, %v2385
        %v2470 = vsel %vm2427, %v2383, %v2384
        %v2471 = vsel %vm2427, %v2382, %v2383
        %v2472 = vsel %vm2427, %v2381, %v2382
        %v2473 = vsel %vm2427, %v2380, %v2381
        %v2474 = vsel %vm2427, %v2379, %v2380
        %v2475 = vsel %vm2427, %v2378, %v2379
        %v2476 = vsel %vm2427, %v2377, %v2378
        %v2477 = vsel %vm2427, %v2376, %v2377
        %v2478 = vsel %vm2427, %v2375, %v2376
        %v2479 = vsel %vm2427, %v2374, %v2375
        %v2480 = vsel %vm2427, %v2373, %v2374
        %v2481 = vsel %vm2427, %v2372, %v2373
        %v2482 = vsel %vm2427, %v2371, %v2372
        %v2483 = vsel %vm2427, %v2370, %v2371
        %v2484 = vsel %vm2427, %v2369, %v2370
        %v2485 = vsel %vm2427, %v2368, %v2369
        %v2486 = vsel %vm2427, %v2367, %v2368
        %v2487 = vsel %vm2427, %v2366, %v2367
        %v2488 = vsel %vm2427, %v2365, %v2366
        %v2489 = vsel %vm2427, %v2364, %v2365
        %v2490 = vsel %vm2427, %v2363, %v2364
        %v2491 = vsel %vm2427, %v2426, %v2363
        %vm2492 = vcmp.lt.s32.totalorder %v1914, 15
        %vm2493 = vcmp.lt.s32.totalorder %v1915, 15
        %vm2494 = vcmp.lt.s32.totalorder %v1916, 15
        %vm2495 = vcmp.lt.s32.totalorder %v1917, 15
        %vm2496 = vcmp.lt.s32.totalorder %v1918, 15
        %vm2497 = vcmp.lt.s32.totalorder %v1919, 15
        %vm2498 = vcmp.lt.s32.totalorder %v1920, 15
        %vm2499 = vcmp.lt.s32.totalorder %v1921, 15
        %vm2500 = vcmp.lt.s32.totalorder %v1922, 15
        %vm2501 = vcmp.lt.s32.totalorder %v1923, 15
        %vm2502 = vcmp.lt.s32.totalorder %v1924, 15
        %vm2503 = vcmp.lt.s32.totalorder %v1925, 15
        %vm2504 = vcmp.lt.s32.totalorder %v1926, 15
        %vm2505 = vcmp.lt.s32.totalorder %v1927, 15
        %vm2506 = vcmp.lt.s32.totalorder %v1928, 15
        %vm2507 = vcmp.lt.s32.totalorder %v1929, 15
        %vm2508 = vcmp.lt.s32.totalorder %v1930, 15
        %vm2509 = vcmp.lt.s32.totalorder %v1931, 15
        %vm2510 = vcmp.lt.s32.totalorder %v1932, 15
        %vm2511 = vcmp.lt.s32.totalorder %v1933, 15
        %vm2512 = vcmp.lt.s32.totalorder %v1934, 15
        %vm2513 = vcmp.lt.s32.totalorder %v1935, 15
        %vm2514 = vcmp.lt.s32.totalorder %v1936, 15
        %vm2515 = vcmp.lt.s32.totalorder %v1937, 15
        %vm2516 = vcmp.lt.s32.totalorder %v1938, 15
        %vm2517 = vcmp.lt.s32.totalorder %v1939, 15
        %vm2518 = vcmp.lt.s32.totalorder %v1940, 15
        %vm2519 = vcmp.lt.s32.totalorder %v1941, 15
        %vm2520 = vcmp.lt.s32.totalorder %v1942, 15
        %vm2521 = vcmp.lt.s32.totalorder %v1943, 15
        %vm2522 = vcmp.lt.s32.totalorder %v1944, 15
        %vm2523 = vcmp.lt.s32.totalorder %v1945, 15
        %vm2524 = vcmp.lt.s32.totalorder %v1946, 15
        %vm2525 = vcmp.lt.s32.totalorder %v1947, 15
        %vm2526 = vcmp.lt.s32.totalorder %v1948, 15
        %vm2527 = vcmp.lt.s32.totalorder %v1949, 15
        %vm2528 = vcmp.lt.s32.totalorder %v1950, 15
        %vm2529 = vcmp.lt.s32.totalorder %v1951, 15
        %vm2530 = vcmp.lt.s32.totalorder %v1952, 15
        %vm2531 = vcmp.lt.s32.totalorder %v1953, 15
        %vm2532 = vcmp.lt.s32.totalorder %v1954, 15
        %vm2533 = vcmp.lt.s32.totalorder %v1955, 15
        %vm2534 = vcmp.lt.s32.totalorder %v1956, 15
        %vm2535 = vcmp.lt.s32.totalorder %v1957, 15
        %vm2536 = vcmp.lt.s32.totalorder %v1958, 15
        %vm2537 = vcmp.lt.s32.totalorder %v1959, 15
        %vm2538 = vcmp.lt.s32.totalorder %v1960, 15
        %vm2539 = vcmp.lt.s32.totalorder %v1961, 15
        %vm2540 = vcmp.lt.s32.totalorder %v1962, 15
        %vm2541 = vcmp.lt.s32.totalorder %v1963, 15
        %vm2542 = vcmp.lt.s32.totalorder %v1964, 15
        %vm2543 = vcmp.lt.s32.totalorder %v1965, 15
        %vm2544 = vcmp.lt.s32.totalorder %v1966, 15
        %vm2545 = vcmp.lt.s32.totalorder %v1967, 15
        %vm2546 = vcmp.lt.s32.totalorder %v1968, 15
        %vm2547 = vcmp.lt.s32.totalorder %v1969, 15
        %vm2548 = vcmp.lt.s32.totalorder %v1970, 15
        %vm2549 = vcmp.lt.s32.totalorder %v1971, 15
        %vm2550 = vcmp.lt.s32.totalorder %v1972, 15
        %vm2551 = vcmp.lt.s32.totalorder %v1973, 15
        %vm2552 = vcmp.lt.s32.totalorder %v1974, 15
        %vm2553 = vcmp.lt.s32.totalorder %v1975, 15
        %vm2554 = vcmp.lt.s32.totalorder %v1976, 15
        %vm2555 = vcmp.lt.s32.totalorder %v1977, 15
        %v2556 = vsel %vm2492, 1, 0
        %v2557 = vsel %vm2493, 1, 0
        %v2558 = vsel %vm2494, 1, 0
        %v2559 = vsel %vm2495, 1, 0
        %v2560 = vsel %vm2496, 1, 0
        %v2561 = vsel %vm2497, 1, 0
        %v2562 = vsel %vm2498, 1, 0
        %v2563 = vsel %vm2499, 1, 0
        %v2564 = vsel %vm2500, 1, 0
        %v2565 = vsel %vm2501, 1, 0
        %v2566 = vsel %vm2502, 1, 0
        %v2567 = vsel %vm2503, 1, 0
        %v2568 = vsel %vm2504, 1, 0
        %v2569 = vsel %vm2505, 1, 0
        %v2570 = vsel %vm2506, 1, 0
        %v2571 = vsel %vm2507, 1, 0
        %v2572 = vsel %vm2508, 1, 0
        %v2573 = vsel %vm2509, 1, 0
        %v2574 = vsel %vm2510, 1, 0
        %v2575 = vsel %vm2511, 1, 0
        %v2576 = vsel %vm2512, 1, 0
        %v2577 = vsel %vm2513, 1, 0
        %v2578 = vsel %vm2514, 1, 0
        %v2579 = vsel %vm2515, 1, 0
        %v2580 = vsel %vm2516, 1, 0
        %v2581 = vsel %vm2517, 1, 0
        %v2582 = vsel %vm2518, 1, 0
        %v2583 = vsel %vm2519, 1, 0
        %v2584 = vsel %vm2520, 1, 0
        %v2585 = vsel %vm2521, 1, 0
        %v2586 = vsel %vm2522, 1, 0
        %v2587 = vsel %vm2523, 1, 0
        %v2588 = vsel %vm2524, 1, 0
        %v2589 = vsel %vm2525, 1, 0
        %v2590 = vsel %vm2526, 1, 0
        %v2591 = vsel %vm2527, 1, 0
        %v2592 = vsel %vm2528, 1, 0
        %v2593 = vsel %vm2529, 1, 0
        %v2594 = vsel %vm2530, 1, 0
        %v2595 = vsel %vm2531, 1, 0
        %v2596 = vsel %vm2532, 1, 0
        %v2597 = vsel %vm2533, 1, 0
        %v2598 = vsel %vm2534, 1, 0
        %v2599 = vsel %vm2535, 1, 0
        %v2600 = vsel %vm2536, 1, 0
        %v2601 = vsel %vm2537, 1, 0
        %v2602 = vsel %vm2538, 1, 0
        %v2603 = vsel %vm2539, 1, 0
        %v2604 = vsel %vm2540, 1, 0
        %v2605 = vsel %vm2541, 1, 0
        %v2606 = vsel %vm2542, 1, 0
        %v2607 = vsel %vm2543, 1, 0
        %v2608 = vsel %vm2544, 1, 0
        %v2609 = vsel %vm2545, 1, 0
        %v2610 = vsel %vm2546, 1, 0
        %v2611 = vsel %vm2547, 1, 0
        %v2612 = vsel %vm2548, 1, 0
        %v2613 = vsel %vm2549, 1, 0
        %v2614 = vsel %vm2550, 1, 0
        %v2615 = vsel %vm2551, 1, 0
        %v2616 = vsel %vm2552, 1, 0
        %v2617 = vsel %vm2553, 1, 0
        %v2618 = vsel %vm2554, 1, 0
        %v2619 = vsel %vm2555, 1, 0
        %v2620 = vcvt.s32.f32 %v2556
        %v2621 = vcvt.s32.f32 %v2557
        %v2622 = vcvt.s32.f32 %v2558
        %v2623 = vcvt.s32.f32 %v2559
        %v2624 = vcvt.s32.f32 %v2560
        %v2625 = vcvt.s32.f32 %v2561
        %v2626 = vcvt.s32.f32 %v2562
        %v2627 = vcvt.s32.f32 %v2563
        %v2628 = vcvt.s32.f32 %v2564
        %v2629 = vcvt.s32.f32 %v2565
        %v2630 = vcvt.s32.f32 %v2566
        %v2631 = vcvt.s32.f32 %v2567
        %v2632 = vcvt.s32.f32 %v2568
        %v2633 = vcvt.s32.f32 %v2569
        %v2634 = vcvt.s32.f32 %v2570
        %v2635 = vcvt.s32.f32 %v2571
        %v2636 = vcvt.s32.f32 %v2572
        %v2637 = vcvt.s32.f32 %v2573
        %v2638 = vcvt.s32.f32 %v2574
        %v2639 = vcvt.s32.f32 %v2575
        %v2640 = vcvt.s32.f32 %v2576
        %v2641 = vcvt.s32.f32 %v2577
        %v2642 = vcvt.s32.f32 %v2578
        %v2643 = vcvt.s32.f32 %v2579
        %v2644 = vcvt.s32.f32 %v2580
        %v2645 = vcvt.s32.f32 %v2581
        %v2646 = vcvt.s32.f32 %v2582
        %v2647 = vcvt.s32.f32 %v2583
        %v2648 = vcvt.s32.f32 %v2584
        %v2649 = vcvt.s32.f32 %v2585
        %v2650 = vcvt.s32.f32 %v2586
        %v2651 = vcvt.s32.f32 %v2587
        %v2652 = vcvt.s32.f32 %v2588
        %v2653 = vcvt.s32.f32 %v2589
        %v2654 = vcvt.s32.f32 %v2590
        %v2655 = vcvt.s32.f32 %v2591
        %v2656 = vcvt.s32.f32 %v2592
        %v2657 = vcvt.s32.f32 %v2593
        %v2658 = vcvt.s32.f32 %v2594
        %v2659 = vcvt.s32.f32 %v2595
        %v2660 = vcvt.s32.f32 %v2596
        %v2661 = vcvt.s32.f32 %v2597
        %v2662 = vcvt.s32.f32 %v2598
        %v2663 = vcvt.s32.f32 %v2599
        %v2664 = vcvt.s32.f32 %v2600
        %v2665 = vcvt.s32.f32 %v2601
        %v2666 = vcvt.s32.f32 %v2602
        %v2667 = vcvt.s32.f32 %v2603
        %v2668 = vcvt.s32.f32 %v2604
        %v2669 = vcvt.s32.f32 %v2605
        %v2670 = vcvt.s32.f32 %v2606
        %v2671 = vcvt.s32.f32 %v2607
        %v2672 = vcvt.s32.f32 %v2608
        %v2673 = vcvt.s32.f32 %v2609
        %v2674 = vcvt.s32.f32 %v2610
        %v2675 = vcvt.s32.f32 %v2611
        %v2676 = vcvt.s32.f32 %v2612
        %v2677 = vcvt.s32.f32 %v2613
        %v2678 = vcvt.s32.f32 %v2614
        %v2679 = vcvt.s32.f32 %v2615
        %v2680 = vcvt.s32.f32 %v2616
        %v2681 = vcvt.s32.f32 %v2617
        %v2682 = vcvt.s32.f32 %v2618
        %v2683 = vcvt.s32.f32 %v2619
        %v2684 = vmul.f32 %v2490, %v2620
        %v2685 = vmul.f32 %v2489, %v2621
        %v2686 = vmul.f32 %v2488, %v2622
        %v2687 = vmul.f32 %v2487, %v2623
        %v2688 = vmul.f32 %v2486, %v2624
        %v2689 = vmul.f32 %v2485, %v2625
        %v2690 = vmul.f32 %v2484, %v2626
        %v2691 = vmul.f32 %v2483, %v2627
        %v2692 = vmul.f32 %v2482, %v2628
        %v2693 = vmul.f32 %v2481, %v2629
        %v2694 = vmul.f32 %v2480, %v2630
        %v2695 = vmul.f32 %v2479, %v2631
        %v2696 = vmul.f32 %v2478, %v2632
        %v2697 = vmul.f32 %v2477, %v2633
        %v2698 = vmul.f32 %v2476, %v2634
        %v2699 = vmul.f32 %v2475, %v2635
        %v2700 = vmul.f32 %v2474, %v2636
        %v2701 = vmul.f32 %v2473, %v2637
        %v2702 = vmul.f32 %v2472, %v2638
        %v2703 = vmul.f32 %v2471, %v2639
        %v2704 = vmul.f32 %v2470, %v2640
        %v2705 = vmul.f32 %v2469, %v2641
        %v2706 = vmul.f32 %v2468, %v2642
        %v2707 = vmul.f32 %v2467, %v2643
        %v2708 = vmul.f32 %v2466, %v2644
        %v2709 = vmul.f32 %v2465, %v2645
        %v2710 = vmul.f32 %v2464, %v2646
        %v2711 = vmul.f32 %v2463, %v2647
        %v2712 = vmul.f32 %v2462, %v2648
        %v2713 = vmul.f32 %v2461, %v2649
        %v2714 = vmul.f32 %v2460, %v2650
        %v2715 = vmul.f32 %v2459, %v2651
        %v2716 = vmul.f32 %v2458, %v2652
        %v2717 = vmul.f32 %v2457, %v2653
        %v2718 = vmul.f32 %v2456, %v2654
        %v2719 = vmul.f32 %v2455, %v2655
        %v2720 = vmul.f32 %v2454, %v2656
        %v2721 = vmul.f32 %v2453, %v2657
        %v2722 = vmul.f32 %v2452, %v2658
        %v2723 = vmul.f32 %v2451, %v2659
        %v2724 = vmul.f32 %v2450, %v2660
        %v2725 = vmul.f32 %v2449, %v2661
        %v2726 = vmul.f32 %v2448, %v2662
        %v2727 = vmul.f32 %v2447, %v2663
        %v2728 = vmul.f32 %v2446, %v2664
        %v2729 = vmul.f32 %v2445, %v2665
        %v2730 = vmul.f32 %v2444, %v2666
        %v2731 = vmul.f32 %v2443, %v2667
        %v2732 = vmul.f32 %v2442, %v2668
        %v2733 = vmul.f32 %v2441, %v2669
        %v2734 = vmul.f32 %v2440, %v2670
        %v2735 = vmul.f32 %v2439, %v2671
        %v2736 = vmul.f32 %v2438, %v2672
        %v2737 = vmul.f32 %v2437, %v2673
        %v2738 = vmul.f32 %v2436, %v2674
        %v2739 = vmul.f32 %v2435, %v2675
        %v2740 = vmul.f32 %v2434, %v2676
        %v2741 = vmul.f32 %v2433, %v2677
        %v2742 = vmul.f32 %v2432, %v2678
        %v2743 = vmul.f32 %v2431, %v2679
        %v2744 = vmul.f32 %v2430, %v2680
        %v2745 = vmul.f32 %v2429, %v2681
        %v2746 = vmul.f32 %v2428, %v2682
        %v2747 = vmul.f32 %v2491, %v2683
        %v2748 = vpack.c.bf16 %v2300, %v2299
        %v2749 = vpack.c.bf16 %v2302, %v2301
        %v2750 = vpack.c.bf16 %v2304, %v2303
        %v2751 = vpack.c.bf16 %v2306, %v2305
        %v2752 = vpack.c.bf16 %v2308, %v2307
        %v2753 = vpack.c.bf16 %v2310, %v2309
        %v2754 = vpack.c.bf16 %v2312, %v2311
        %v2755 = vpack.c.bf16 %v2314, %v2313
        %v2756 = vpack.c.bf16 %v2316, %v2315
        %v2757 = vpack.c.bf16 %v2318, %v2317
        %v2758 = vpack.c.bf16 %v2320, %v2319
        %v2759 = vpack.c.bf16 %v2322, %v2321
        %v2760 = vpack.c.bf16 %v2324, %v2323
        %v2761 = vpack.c.bf16 %v2326, %v2325
        %v2762 = vpack.c.bf16 %v2328, %v2327
        %v2763 = vpack.c.bf16 %v2330, %v2329
        %v2764 = vpack.c.bf16 %v2332, %v2331
        %v2765 = vpack.c.bf16 %v2334, %v2333
        %v2766 = vpack.c.bf16 %v2336, %v2335
        %v2767 = vpack.c.bf16 %v2338, %v2337
        %v2768 = vpack.c.bf16 %v2340, %v2339
        %v2769 = vpack.c.bf16 %v2342, %v2341
        %v2770 = vpack.c.bf16 %v2344, %v2343
        %v2771 = vpack.c.bf16 %v2346, %v2345
        %v2772 = vpack.c.bf16 %v2348, %v2347
        %v2773 = vpack.c.bf16 %v2350, %v2349
        %v2774 = vpack.c.bf16 %v2352, %v2351
        %v2775 = vpack.c.bf16 %v2354, %v2353
        %v2776 = vpack.c.bf16 %v2356, %v2355
        %v2777 = vpack.c.bf16 %v2358, %v2357
        %v2778 = vpack.c.bf16 %v2360, %v2359
        %v2779 = vpack.c.bf16 %v2362, %v2361
        %v2780 = vpack.c.bf16 %v1082, %v1081
        %v2781 = vpack.c.bf16 %v1084, %v1083
        %v2782 = vpack.c.bf16 %v1086, %v1085
        %v2783 = vpack.c.bf16 %v1088, %v1087
        %v2784 = vpack.c.bf16 %v1090, %v1089
        %v2785 = vpack.c.bf16 %v1092, %v1091
        %v2786 = vpack.c.bf16 %v1094, %v1093
        %v2787 = vpack.c.bf16 %v1096, %v1095
        %v2788 = vpack.c.bf16 %v1098, %v1097
        %v2789 = vpack.c.bf16 %v1100, %v1099
        %v2790 = vpack.c.bf16 %v1102, %v1101
        %v2791 = vpack.c.bf16 %v1104, %v1103
        %v2792 = vpack.c.bf16 %v1106, %v1105
        %v2793 = vpack.c.bf16 %v1108, %v1107
        %v2794 = vpack.c.bf16 %v1110, %v1109
        %v2795 = vpack.c.bf16 %v1112, %v1111
        %v2796 = vpack.c.bf16 %v1114, %v1113
        %v2797 = vpack.c.bf16 %v1116, %v1115
        %v2798 = vpack.c.bf16 %v1118, %v1117
        %v2799 = vpack.c.bf16 %v1120, %v1119
        %v2800 = vpack.c.bf16 %v1122, %v1121
        %v2801 = vpack.c.bf16 %v1124, %v1123
        %v2802 = vpack.c.bf16 %v1126, %v1125
        %v2803 = vpack.c.bf16 %v1128, %v1127
        %v2804 = vpack.c.bf16 %v1130, %v1129
        %v2805 = vpack.c.bf16 %v1132, %v1131
        %v2806 = vpack.c.bf16 %v1134, %v1133
        %v2807 = vpack.c.bf16 %v1136, %v1135
        %v2808 = vpack.c.bf16 %v1138, %v1137
        %v2809 = vpack.c.bf16 %v1140, %v1139
        %v2810 = vpack.c.bf16 %v1142, %v1141
        %v2811 = vpack.c.bf16 %v1144, %v1143
        %v2812 = vpack.c.bf16 %v2685, %v2684
        %v2813 = vpack.c.bf16 %v2687, %v2686
        %v2814 = vpack.c.bf16 %v2689, %v2688
        %v2815 = vpack.c.bf16 %v2691, %v2690
        %v2816 = vpack.c.bf16 %v2693, %v2692
        %v2817 = vpack.c.bf16 %v2695, %v2694
        %v2818 = vpack.c.bf16 %v2697, %v2696
        %v2819 = vpack.c.bf16 %v2699, %v2698
        %v2820 = vpack.c.bf16 %v2701, %v2700
        %v2821 = vpack.c.bf16 %v2703, %v2702
        %v2822 = vpack.c.bf16 %v2705, %v2704
        %v2823 = vpack.c.bf16 %v2707, %v2706
        %v2824 = vpack.c.bf16 %v2709, %v2708
        %v2825 = vpack.c.bf16 %v2711, %v2710
        %v2826 = vpack.c.bf16 %v2713, %v2712
        %v2827 = vpack.c.bf16 %v2715, %v2714
        %v2828 = vpack.c.bf16 %v2717, %v2716
        %v2829 = vpack.c.bf16 %v2719, %v2718
        %v2830 = vpack.c.bf16 %v2721, %v2720
        %v2831 = vpack.c.bf16 %v2723, %v2722
        %v2832 = vpack.c.bf16 %v2725, %v2724
        %v2833 = vpack.c.bf16 %v2727, %v2726
        %v2834 = vpack.c.bf16 %v2729, %v2728
        %v2835 = vpack.c.bf16 %v2731, %v2730
        %v2836 = vpack.c.bf16 %v2733, %v2732
        %v2837 = vpack.c.bf16 %v2735, %v2734
        %v2838 = vpack.c.bf16 %v2737, %v2736
        %v2839 = vpack.c.bf16 %v2739, %v2738
        %v2840 = vpack.c.bf16 %v2741, %v2740
        %v2841 = vpack.c.bf16 %v2743, %v2742
        %v2842 = vpack.c.bf16 %v2745, %v2744
        %v2843 = vpack.c.bf16 %v2747, %v2746
        %v2844 = vld [vmem:[#allocation8] sm:$0xf]
        %v2845 = vld [vmem:[#allocation8 + $0x4] sm:$0xf]
        %v2846 = vld [vmem:[#allocation8 + $0x8] sm:$0xf]
        %v2847 = vld [vmem:[#allocation8 + $0xc] sm:$0xf]
        %v2848 = vld [vmem:[#allocation8 + $0x10] sm:$0xf]
        %v2849 = vld [vmem:[#allocation8 + $0x14] sm:$0xf]
        %v2850 = vld [vmem:[#allocation8 + $0x18] sm:$0xf]
        %v2851 = vld [vmem:[#allocation8 + $0x1c] sm:$0xf]
        %v2852 = vld [vmem:[#allocation8 + $0x20] sm:$0xf]
        %v2853 = vld [vmem:[#allocation8 + $0x24] sm:$0xf]
        %v2854 = vld [vmem:[#allocation8 + $0x28] sm:$0xf]
        %v2855 = vld [vmem:[#allocation8 + $0x2c] sm:$0xf]
        %v2856 = vld [vmem:[#allocation8 + $0x30] sm:$0xf]
        %v2857 = vld [vmem:[#allocation8 + $0x34] sm:$0xf]
        %v2858 = vld [vmem:[#allocation8 + $0x38] sm:$0xf]
        %v2859 = vld [vmem:[#allocation8 + $0x3c] sm:$0xf]
        %v2860 = vld [vmem:[#allocation8 + $0x40] sm:$0xf]
        %v2861 = vld [vmem:[#allocation8 + $0x44] sm:$0xf]
        %v2862 = vld [vmem:[#allocation8 + $0x48] sm:$0xf]
        %v2863 = vld [vmem:[#allocation8 + $0x4c] sm:$0xf]
        %v2864 = vld [vmem:[#allocation8 + $0x50] sm:$0xf]
        %v2865 = vld [vmem:[#allocation8 + $0x54] sm:$0xf]
        %v2866 = vld [vmem:[#allocation8 + $0x58] sm:$0xf]
        %v2867 = vld [vmem:[#allocation8 + $0x5c] sm:$0xf]
        %v2868 = vld [vmem:[#allocation8 + $0x60] sm:$0xf]
        %v2869 = vld [vmem:[#allocation8 + $0x64] sm:$0xf]
        %v2870 = vld [vmem:[#allocation8 + $0x68] sm:$0xf]
        %v2871 = vld [vmem:[#allocation8 + $0x6c] sm:$0xf]
        %v2872 = vld [vmem:[#allocation8 + $0x70] sm:$0xf]
        %v2873 = vld [vmem:[#allocation8 + $0x74] sm:$0xf]
        %v2874 = vld [vmem:[#allocation8 + $0x78] sm:$0xf]
        %v2875 = vld [vmem:[#allocation8 + $0x7c] sm:$0xf]
        %v2876 = vld [vmem:[#allocation8 + $0x80] sm:$0xf]
        %v2877 = vld [vmem:[#allocation8 + $0x84] sm:$0xf]
        %v2878 = vld [vmem:[#allocation8 + $0x88] sm:$0xf]
        %v2879 = vld [vmem:[#allocation8 + $0x8c] sm:$0xf]
        %v2880 = vld [vmem:[#allocation8 + $0x90] sm:$0xf]
        %v2881 = vld [vmem:[#allocation8 + $0x94] sm:$0xf]
        %v2882 = vld [vmem:[#allocation8 + $0x98] sm:$0xf]
        %v2883 = vld [vmem:[#allocation8 + $0x9c] sm:$0xf]
        %v2884 = vld [vmem:[#allocation8 + $0xa0] sm:$0xf]
        %v2885 = vld [vmem:[#allocation8 + $0xa4] sm:$0xf]
        %v2886 = vld [vmem:[#allocation8 + $0xa8] sm:$0xf]
        %v2887 = vld [vmem:[#allocation8 + $0xac] sm:$0xf]
        %v2888 = vld [vmem:[#allocation8 + $0xb0] sm:$0xf]
        %v2889 = vld [vmem:[#allocation8 + $0xb4] sm:$0xf]
        %v2890 = vld [vmem:[#allocation8 + $0xb8] sm:$0xf]
        %v2891 = vld [vmem:[#allocation8 + $0xbc] sm:$0xf]
        %v2940 = vunpack.c.l.b16 %v2844
        %v2941 = vunpack.c.l.b16 %v2845
        %v2942 = vunpack.c.l.b16 %v2846
        %v2943 = vunpack.c.l.b16 %v2847
        %v2944 = vunpack.c.l.b16 %v2848
        %v2945 = vunpack.c.l.b16 %v2849
        %v2946 = vunpack.c.l.b16 %v2850
        %v2947 = vunpack.c.l.b16 %v2851
        %v2948 = vunpack.c.l.b16 %v2852
        %v2949 = vunpack.c.l.b16 %v2853
        %v2950 = vunpack.c.l.b16 %v2854
        %v2951 = vunpack.c.l.b16 %v2855
        %v2952 = vunpack.c.l.b16 %v2856
        %v2953 = vunpack.c.l.b16 %v2857
        %v2954 = vunpack.c.l.b16 %v2858
        %v2955 = vunpack.c.l.b16 %v2859
        %v2956 = vunpack.c.l.b16 %v2860
        %v2957 = vunpack.c.l.b16 %v2861
        %v2958 = vunpack.c.l.b16 %v2862
        %v2959 = vunpack.c.l.b16 %v2863
        %v2960 = vunpack.c.l.b16 %v2864
        %v2961 = vunpack.c.l.b16 %v2865
        %v2962 = vunpack.c.l.b16 %v2866
        %v2963 = vunpack.c.l.b16 %v2867
        %v2964 = vunpack.c.l.b16 %v2868
        %v2965 = vunpack.c.l.b16 %v2869
        %v2966 = vunpack.c.l.b16 %v2870
        %v2967 = vunpack.c.l.b16 %v2871
        %v2968 = vunpack.c.l.b16 %v2872
        %v2969 = vunpack.c.l.b16 %v2873
        %v2970 = vunpack.c.l.b16 %v2874
        %v2971 = vunpack.c.l.b16 %v2875
        %v2972 = vunpack.c.l.b16 %v2876
        %v2973 = vunpack.c.l.b16 %v2877
        %v2974 = vunpack.c.l.b16 %v2878
        %v2975 = vunpack.c.l.b16 %v2879
        %v2976 = vunpack.c.l.b16 %v2880
        %v2977 = vunpack.c.l.b16 %v2881
        %v2978 = vunpack.c.l.b16 %v2882
        %v2979 = vunpack.c.l.b16 %v2883
        %v2980 = vunpack.c.l.b16 %v2884
        %v2981 = vunpack.c.l.b16 %v2885
        %v2982 = vunpack.c.l.b16 %v2886
        %v2983 = vunpack.c.l.b16 %v2887
        %v2984 = vunpack.c.l.b16 %v2888
        %v2985 = vunpack.c.l.b16 %v2889
        %v2986 = vunpack.c.l.b16 %v2890
        %v2987 = vunpack.c.l.b16 %v2891
        %v2988 = vpack.c.b16 %v2941, %v2940
        %v2989 = vpack.c.b16 %v2943, %v2942
        %v2990 = vpack.c.b16 %v2945, %v2944
        %v2991 = vpack.c.b16 %v2947, %v2946
        %v2992 = vpack.c.b16 %v2949, %v2948
        %v2993 = vpack.c.b16 %v2951, %v2950
        %v2994 = vpack.c.b16 %v2953, %v2952
        %v2995 = vpack.c.b16 %v2955, %v2954
        %v2996 = vpack.c.b16 %v2957, %v2956
        %v2997 = vpack.c.b16 %v2959, %v2958
        %v2998 = vpack.c.b16 %v2961, %v2960
        %v2999 = vpack.c.b16 %v2963, %v2962
        %v3000 = vpack.c.b16 %v2965, %v2964
        %v3001 = vpack.c.b16 %v2967, %v2966
        %v3002 = vpack.c.b16 %v2969, %v2968
        %v3003 = vpack.c.b16 %v2971, %v2970
        %v3004 = vpack.c.b16 %v2973, %v2972
        %v3005 = vpack.c.b16 %v2975, %v2974
        %v3006 = vpack.c.b16 %v2977, %v2976
        %v3007 = vpack.c.b16 %v2979, %v2978
        %v3008 = vpack.c.b16 %v2981, %v2980
        %v3009 = vpack.c.b16 %v2983, %v2982
        %v3010 = vpack.c.b16 %v2985, %v2984
        %v3011 = vpack.c.b16 %v2987, %v2986
        %3036 = vmatprep.subr.bf16.mxu0 0
        %3037 = vmatpush1.bf16.msra.mxu0 %v2988
        %3038 = vmatprep.subr.bf16.mxu0 0
        %3039 = vmatpush1.bf16.msra.mxu0 %v2989
        %3040 = vmatprep.subr.bf16.mxu0 0
        %3041 = vmatpush1.bf16.msra.mxu0 %v2990
        %3042 = vmatprep.subr.bf16.mxu0 0
        %3043 = vmatpush1.bf16.msra.mxu0 %v2991
        %3044 = vmatprep.subr.bf16.mxu0 0
        %3045 = vmatpush1.bf16.msra.mxu0 %v2992
        %3046 = vmatprep.subr.bf16.mxu0 0
        %3047 = vmatpush1.bf16.msra.mxu0 %v2993
        %3048 = vmatprep.subr.bf16.mxu0 0
        %3049 = vmatpush1.bf16.msra.mxu0 %v2994
        %3050 = vmatprep.subr.bf16.mxu0 0
        %3051 = vmatpush1.bf16.msra.mxu0 %v2995
        %3052 = vmatprep.subr.bf16.mxu0 0
        %3053 = vmatpush1.bf16.msra.mxu0 %v2996
        %3054 = vmatprep.subr.bf16.mxu0 0
        %3055 = vmatpush1.bf16.msra.mxu0 %v2997
        %3056 = vmatprep.subr.bf16.mxu0 0
        %3057 = vmatpush1.bf16.msra.mxu0 %v2998
        %3058 = vmatprep.subr.bf16.mxu0 0
        %3059 = vmatpush1.bf16.msra.mxu0 %v2999
        %3060 = vmatprep.subr.bf16.mxu0 0
        %3061 = vmatpush1.bf16.msra.mxu0 %v3000
        %3062 = vmatprep.subr.bf16.mxu0 0
        %3063 = vmatpush1.bf16.msra.mxu0 %v3001
        %3064 = vmatprep.subr.bf16.mxu0 0
        %3065 = vmatpush1.bf16.msra.mxu0 %v3002
        %3066 = vmatprep.subr.bf16.mxu0 0
        %3067 = vmatpush1.bf16.msra.mxu0 %v3003
        %3068 = vmatprep.mubr.bf16.mxu0 %v2780
        %3069 = vmatmul.mubr.bf16.gmra.mrb[0].mxu0 %v2748
        %v3070 = vpop.f32.mrb[0].mxu0
        %v3071 = vadd.f32 0.0, %v3070
        %v3072 = vpop.f32.mrb[0].mxu0
        %v3073 = vpop.f32.mrb[0].mxu0
        %v3074 = vadd.f32 0.0, %v3073
        %v3075 = vpop.f32.mrb[0].mxu0
        %3076 = vmatprep.mubr.bf16.mxu0 %v2781
        %3077 = vmatmul.mubr.bf16.gmra.mrb[0].mxu0 %v2749
        %v3078 = vpop.f32.mrb[0].mxu0
        %v3079 = vadd.f32 0.0, %v3078
        %v3080 = vpop.f32.mrb[0].mxu0
        %v3081 = vpop.f32.mrb[0].mxu0
        %v3082 = vadd.f32 0.0, %v3081
        %v3083 = vpop.f32.mrb[0].mxu0
        %3084 = vmatprep.mubr.bf16.mxu0 %v2782
        %3085 = vmatmul.mubr.bf16.gmra.mrb[0].mxu0 %v2750
        %v3086 = vpop.f32.mrb[0].mxu0
        %v3087 = vadd.f32 0.0, %v3086
        %v3088 = vpop.f32.mrb[0].mxu0
        %v3089 = vpop.f32.mrb[0].mxu0
        %v3090 = vadd.f32 0.0, %v3089
        %v3091 = vpop.f32.mrb[0].mxu0
        %3092 = vmatprep.mubr.bf16.mxu0 %v2783
        %3093 = vmatmul.mubr.bf16.gmra.mrb[0].mxu0 %v2751
        %v3094 = vpop.f32.mrb[0].mxu0
        %v3095 = vadd.f32 0.0, %v3094
        %v3096 = vpop.f32.mrb[0].mxu0
        %v3097 = vpop.f32.mrb[0].mxu0
        %v3098 = vadd.f32 0.0, %v3097
        %v3099 = vpop.f32.mrb[0].mxu0
        %3100 = vmatprep.mubr.bf16.mxu0 %v2784
        %3101 = vmatmul.mubr.bf16.gmra.mrb[0].mxu0 %v2752
        %v3102 = vpop.f32.mrb[0].mxu0
        %v3103 = vadd.f32 0.0, %v3102
        %v3104 = vpop.f32.mrb[0].mxu0
        %v3105 = vpop.f32.mrb[0].mxu0
        %v3106 = vadd.f32 0.0, %v3105
        %v3107 = vpop.f32.mrb[0].mxu0
        %3108 = vmatprep.mubr.bf16.mxu0 %v2785
        %3109 = vmatmul.mubr.bf16.gmra.mrb[0].mxu0 %v2753
        %v3110 = vpop.f32.mrb[0].mxu0
        %v3111 = vadd.f32 0.0, %v3110
        %v3112 = vpop.f32.mrb[0].mxu0
        %v3113 = vpop.f32.mrb[0].mxu0
        %v3114 = vadd.f32 0.0, %v3113
        %v3115 = vpop.f32.mrb[0].mxu0
        %3116 = vmatprep.mubr.bf16.mxu0 %v2786
        %3117 = vmatmul.mubr.bf16.gmra.mrb[0].mxu0 %v2754
        %v3118 = vpop.f32.mrb[0].mxu0
        %v3119 = vadd.f32 0.0, %v3118
        %v3120 = vpop.f32.mrb[0].mxu0
        %v3121 = vpop.f32.mrb[0].mxu0
        %v3122 = vadd.f32 0.0, %v3121
        %v3123 = vpop.f32.mrb[0].mxu0
        %3124 = vmatprep.mubr.bf16.mxu0 %v2787
        %3125 = vmatmul.mubr.bf16.gmra.mrb[0].mxu0 %v2755
        %v3126 = vpop.f32.mrb[0].mxu0
        %v3127 = vadd.f32 0.0, %v3126
        %v3128 = vpop.f32.mrb[0].mxu0
        %v3129 = vpop.f32.mrb[0].mxu0
        %v3130 = vadd.f32 0.0, %v3129
        %v3131 = vpop.f32.mrb[0].mxu0
        %3132 = vmatprep.mubr.bf16.mxu0 %v2788
        %3133 = vmatmul.mubr.bf16.gmra.mrb[0].mxu0 %v2756
        %v3134 = vpop.f32.mrb[0].mxu0
        %v3135 = vadd.f32 0.0, %v3134
        %v3136 = vpop.f32.mrb[0].mxu0
        %v3137 = vpop.f32.mrb[0].mxu0
        %v3138 = vadd.f32 0.0, %v3137
        %v3139 = vpop.f32.mrb[0].mxu0
        %3140 = vmatprep.mubr.bf16.mxu0 %v2789
        %3141 = vmatmul.mubr.bf16.gmra.mrb[0].mxu0 %v2757
        %v3142 = vpop.f32.mrb[0].mxu0
        %v3143 = vadd.f32 0.0, %v3142
        %v3144 = vpop.f32.mrb[0].mxu0
        %v3145 = vpop.f32.mrb[0].mxu0
        %v3146 = vadd.f32 0.0, %v3145
        %v3147 = vpop.f32.mrb[0].mxu0
        %3148 = vmatprep.mubr.bf16.mxu0 %v2790
        %3149 = vmatmul.mubr.bf16.gmra.mrb[0].mxu0 %v2758
        %v3150 = vpop.f32.mrb[0].mxu0
        %v3151 = vadd.f32 0.0, %v3150
        %v3152 = vpop.f32.mrb[0].mxu0
        %v3153 = vpop.f32.mrb[0].mxu0
        %v3154 = vadd.f32 0.0, %v3153
        %v3155 = vpop.f32.mrb[0].mxu0
        %3156 = vmatprep.mubr.bf16.mxu0 %v2791
        %3157 = vmatmul.mubr.bf16.gmra.mrb[0].mxu0 %v2759
        %v3158 = vpop.f32.mrb[0].mxu0
        %v3159 = vadd.f32 0.0, %v3158
        %v3160 = vpop.f32.mrb[0].mxu0
        %v3161 = vpop.f32.mrb[0].mxu0
        %v3162 = vadd.f32 0.0, %v3161
        %v3163 = vpop.f32.mrb[0].mxu0
        %3164 = vmatprep.mubr.bf16.mxu0 %v2792
        %3165 = vmatmul.mubr.bf16.gmra.mrb[0].mxu0 %v2760
        %v3166 = vpop.f32.mrb[0].mxu0
        %v3167 = vadd.f32 0.0, %v3166
        %v3168 = vpop.f32.mrb[0].mxu0
        %v3169 = vpop.f32.mrb[0].mxu0
        %v3170 = vadd.f32 0.0, %v3169
        %v3171 = vpop.f32.mrb[0].mxu0
        %3172 = vmatprep.mubr.bf16.mxu0 %v2793
        %3173 = vmatmul.mubr.bf16.gmra.mrb[0].mxu0 %v2761
        %v3174 = vpop.f32.mrb[0].mxu0
        %v3175 = vadd.f32 0.0, %v3174
        %v3176 = vpop.f32.mrb[0].mxu0
        %v3177 = vpop.f32.mrb[0].mxu0
        %v3178 = vadd.f32 0.0, %v3177
        %v3179 = vpop.f32.mrb[0].mxu0
        %3180 = vmatprep.mubr.bf16.mxu0 %v2794
        %3181 = vmatmul.mubr.bf16.gmra.mrb[0].mxu0 %v2762
        %v3182 = vpop.f32.mrb[0].mxu0
        %v3183 = vadd.f32 0.0, %v3182
        %v3184 = vpop.f32.mrb[0].mxu0
        %v3185 = vpop.f32.mrb[0].mxu0
        %v3186 = vadd.f32 0.0, %v3185
        %v3187 = vpop.f32.mrb[0].mxu0
        %3188 = vmatprep.mubr.bf16.mxu0 %v2795
        %3189 = vmatmul.mubr.bf16.gmra.mrb[0].mxu0 %v2763
        %v3190 = vpop.f32.mrb[0].mxu0
        %v3191 = vadd.f32 0.0, %v3190
        %v3192 = vpop.f32.mrb[0].mxu0
        %v3193 = vpop.f32.mrb[0].mxu0
        %v3194 = vadd.f32 0.0, %v3193
        %v3195 = vpop.f32.mrb[0].mxu0
        %3196 = vmatprep.mubr.bf16.mxu0 %v2796
        %3197 = vmatmul.mubr.bf16.gmra.mrb[0].mxu0 %v2764
        %v3198 = vpop.f32.mrb[0].mxu0
        %v3199 = vadd.f32 0.0, %v3198
        %v3200 = vpop.f32.mrb[0].mxu0
        %v3201 = vpop.f32.mrb[0].mxu0
        %v3202 = vadd.f32 0.0, %v3201
        %v3203 = vpop.f32.mrb[0].mxu0
        %3204 = vmatprep.mubr.bf16.mxu0 %v2797
        %3205 = vmatmul.mubr.bf16.gmra.mrb[0].mxu0 %v2765
        %v3206 = vpop.f32.mrb[0].mxu0
        %v3207 = vadd.f32 0.0, %v3206
        %v3208 = vpop.f32.mrb[0].mxu0
        %v3209 = vpop.f32.mrb[0].mxu0
        %v3210 = vadd.f32 0.0, %v3209
        %v3211 = vpop.f32.mrb[0].mxu0
        %3212 = vmatprep.mubr.bf16.mxu0 %v2798
        %3213 = vmatmul.mubr.bf16.gmra.mrb[0].mxu0 %v2766
        %v3214 = vpop.f32.mrb[0].mxu0
        %v3215 = vadd.f32 0.0, %v3214
        %v3216 = vpop.f32.mrb[0].mxu0
        %v3217 = vpop.f32.mrb[0].mxu0
        %v3218 = vadd.f32 0.0, %v3217
        %v3219 = vpop.f32.mrb[0].mxu0
        %3220 = vmatprep.mubr.bf16.mxu0 %v2799
        %3221 = vmatmul.mubr.bf16.gmra.mrb[0].mxu0 %v2767
        %v3222 = vpop.f32.mrb[0].mxu0
        %v3223 = vadd.f32 0.0, %v3222
        %v3224 = vpop.f32.mrb[0].mxu0
        %v3225 = vpop.f32.mrb[0].mxu0
        %v3226 = vadd.f32 0.0, %v3225
        %v3227 = vpop.f32.mrb[0].mxu0
        %3228 = vmatprep.mubr.bf16.mxu0 %v2800
        %3229 = vmatmul.mubr.bf16.gmra.mrb[0].mxu0 %v2768
        %v3230 = vpop.f32.mrb[0].mxu0
        %v3231 = vadd.f32 0.0, %v3230
        %v3232 = vpop.f32.mrb[0].mxu0
        %v3233 = vpop.f32.mrb[0].mxu0
        %v3234 = vadd.f32 0.0, %v3233
        %v3235 = vpop.f32.mrb[0].mxu0
        %3236 = vmatprep.mubr.bf16.mxu0 %v2801
        %3237 = vmatmul.mubr.bf16.gmra.mrb[0].mxu0 %v2769
        %v3238 = vpop.f32.mrb[0].mxu0
        %v3239 = vadd.f32 0.0, %v3238
        %v3240 = vpop.f32.mrb[0].mxu0
        %v3241 = vpop.f32.mrb[0].mxu0
        %v3242 = vadd.f32 0.0, %v3241
        %v3243 = vpop.f32.mrb[0].mxu0
        %3244 = vmatprep.mubr.bf16.mxu0 %v2802
        %3245 = vmatmul.mubr.bf16.gmra.mrb[0].mxu0 %v2770
        %v3246 = vpop.f32.mrb[0].mxu0
        %v3247 = vadd.f32 0.0, %v3246
        %v3248 = vpop.f32.mrb[0].mxu0
        %v3249 = vpop.f32.mrb[0].mxu0
        %v3250 = vadd.f32 0.0, %v3249
        %v3251 = vpop.f32.mrb[0].mxu0
        %3252 = vmatprep.mubr.bf16.mxu0 %v2803
        %3253 = vmatmul.mubr.bf16.gmra.mrb[0].mxu0 %v2771
        %v3254 = vpop.f32.mrb[0].mxu0
        %v3255 = vadd.f32 0.0, %v3254
        %v3256 = vpop.f32.mrb[0].mxu0
        %v3257 = vpop.f32.mrb[0].mxu0
        %v3258 = vadd.f32 0.0, %v3257
        %v3259 = vpop.f32.mrb[0].mxu0
        %3260 = vmatprep.mubr.bf16.mxu0 %v2804
        %3261 = vmatmul.mubr.bf16.gmra.mrb[0].mxu0 %v2772
        %v3262 = vpop.f32.mrb[0].mxu0
        %v3263 = vadd.f32 0.0, %v3262
        %v3264 = vpop.f32.mrb[0].mxu0
        %v3265 = vpop.f32.mrb[0].mxu0
        %v3266 = vadd.f32 0.0, %v3265
        %v3267 = vpop.f32.mrb[0].mxu0
        %3268 = vmatprep.mubr.bf16.mxu0 %v2805
        %3269 = vmatmul.mubr.bf16.gmra.mrb[0].mxu0 %v2773
        %v3270 = vpop.f32.mrb[0].mxu0
        %v3271 = vadd.f32 0.0, %v3270
        %v3272 = vpop.f32.mrb[0].mxu0
        %v3273 = vpop.f32.mrb[0].mxu0
        %v3274 = vadd.f32 0.0, %v3273
        %v3275 = vpop.f32.mrb[0].mxu0
        %3276 = vmatprep.mubr.bf16.mxu0 %v2806
        %3277 = vmatmul.mubr.bf16.gmra.mrb[0].mxu0 %v2774
        %v3278 = vpop.f32.mrb[0].mxu0
        %v3279 = vadd.f32 0.0, %v3278
        %v3280 = vpop.f32.mrb[0].mxu0
        %v3281 = vpop.f32.mrb[0].mxu0
        %v3282 = vadd.f32 0.0, %v3281
        %v3283 = vpop.f32.mrb[0].mxu0
        %3284 = vmatprep.mubr.bf16.mxu0 %v2807
        %3285 = vmatmul.mubr.bf16.gmra.mrb[0].mxu0 %v2775
        %v3286 = vpop.f32.mrb[0].mxu0
        %v3287 = vadd.f32 0.0, %v3286
        %v3288 = vpop.f32.mrb[0].mxu0
        %v3289 = vpop.f32.mrb[0].mxu0
        %v3290 = vadd.f32 0.0, %v3289
        %v3291 = vpop.f32.mrb[0].mxu0
        %3292 = vmatprep.mubr.bf16.mxu0 %v2808
        %3293 = vmatmul.mubr.bf16.gmra.mrb[0].mxu0 %v2776
        %v3294 = vpop.f32.mrb[0].mxu0
        %v3295 = vadd.f32 0.0, %v3294
        %v3296 = vpop.f32.mrb[0].mxu0
        %v3297 = vpop.f32.mrb[0].mxu0
        %v3298 = vadd.f32 0.0, %v3297
        %v3299 = vpop.f32.mrb[0].mxu0
        %3300 = vmatprep.mubr.bf16.mxu0 %v2809
        %3301 = vmatmul.mubr.bf16.gmra.mrb[0].mxu0 %v2777
        %v3302 = vpop.f32.mrb[0].mxu0
        %v3303 = vadd.f32 0.0, %v3302
        %v3304 = vpop.f32.mrb[0].mxu0
        %v3305 = vpop.f32.mrb[0].mxu0
        %v3306 = vadd.f32 0.0, %v3305
        %v3307 = vpop.f32.mrb[0].mxu0
        %3308 = vmatprep.mubr.bf16.mxu0 %v2810
        %3309 = vmatmul.mubr.bf16.gmra.mrb[0].mxu0 %v2778
        %v3310 = vpop.f32.mrb[0].mxu0
        %v3311 = vadd.f32 0.0, %v3310
        %v3312 = vpop.f32.mrb[0].mxu0
        %v3313 = vpop.f32.mrb[0].mxu0
        %v3314 = vadd.f32 0.0, %v3313
        %v3315 = vpop.f32.mrb[0].mxu0
        %3316 = vmatprep.mubr.bf16.mxu0 %v2811
        %3317 = vmatmul.mubr.bf16.gmra.mrb[0].mxu0 %v2779
        %v3318 = vpop.f32.mrb[0].mxu0
        %v3319 = vadd.f32 0.0, %v3318
        %v3320 = vpop.f32.mrb[0].mxu0
        %v3321 = vpop.f32.mrb[0].mxu0
        %v3322 = vadd.f32 0.0, %v3321
        %v3323 = vpop.f32.mrb[0].mxu0
        %3324 = vdwg.mxu0
        %3325 = vmatprep.subr.bf16.mxu0 0
        %3326 = vmatpush1.bf16.msra.mxu0 %v3004
        %3327 = vmatprep.subr.bf16.mxu0 0
        %3328 = vmatpush1.bf16.msra.mxu0 %v3005
        %3329 = vmatprep.subr.bf16.mxu0 0
        %3330 = vmatpush1.bf16.msra.mxu0 %v3006
        %3331 = vmatprep.subr.bf16.mxu0 0
        %3332 = vmatpush1.bf16.msra.mxu0 %v3007
        %3333 = vmatprep.subr.bf16.mxu0 0
        %3334 = vmatpush1.bf16.msra.mxu0 %v3008
        %3335 = vmatprep.subr.bf16.mxu0 0
        %3336 = vmatpush1.bf16.msra.mxu0 %v3009
        %3337 = vmatprep.subr.bf16.mxu0 0
        %3338 = vmatpush1.bf16.msra.mxu0 %v3010
        %3339 = vmatprep.subr.bf16.mxu0 0
        %3340 = vmatpush1.bf16.msra.mxu0 %v3011
        %3341 = vmatprep.subr.bf16.mxu0 0
        %3342 = vmatpush1.bf16.msra.mxu0 0
        %3343 = vmatprep.subr.bf16.mxu0 0
        %3344 = vmatpush1.bf16.msra.mxu0 0
        %3345 = vmatprep.subr.bf16.mxu0 0
        %3346 = vmatpush1.bf16.msra.mxu0 0
        %3347 = vmatprep.subr.bf16.mxu0 0
        %3348 = vmatpush1.bf16.msra.mxu0 0
        %3349 = vmatprep.subr.bf16.mxu0 0
        %3350 = vmatpush1.bf16.msra.mxu0 0
        %3351 = vmatprep.subr.bf16.mxu0 0
        %3352 = vmatpush1.bf16.msra.mxu0 0
        %3353 = vmatprep.subr.bf16.mxu0 0
        %3354 = vmatpush1.bf16.msra.mxu0 0
        %3355 = vmatprep.subr.bf16.mxu0 0
        %3356 = vmatpush1.bf16.msra.mxu0 0
        %3357 = vmatprep.mubr.bf16.mxu0 0
        %3358 = vmatmul.mubr.bf16.gmra.mrb[0].mxu0 %v2812
        %v3359 = vpop.f32.mrb[0].mxu0
        %v3360 = vadd.f32 %v3071, %v3359
        %v3361 = vpop.f32.mrb[0].mxu0
        %v3362 = vpop.f32.mrb[0].mxu0
        %v3363 = vadd.f32 %v3074, %v3362
        %v3364 = vpop.f32.mrb[0].mxu0
        %3365 = vmatprep.mubr.bf16.mxu0 0
        %3366 = vmatmul.mubr.bf16.gmra.mrb[0].mxu0 %v2813
        %v3367 = vpop.f32.mrb[0].mxu0
        %v3368 = vadd.f32 %v3079, %v3367
        %v3369 = vpop.f32.mrb[0].mxu0
        %v3370 = vpop.f32.mrb[0].mxu0
        %v3371 = vadd.f32 %v3082, %v3370
        %v3372 = vpop.f32.mrb[0].mxu0
        %3373 = vmatprep.mubr.bf16.mxu0 0
        %3374 = vmatmul.mubr.bf16.gmra.mrb[0].mxu0 %v2814
        %v3375 = vpop.f32.mrb[0].mxu0
        %v3376 = vadd.f32 %v3087, %v3375
        %v3377 = vpop.f32.mrb[0].mxu0
        %v3378 = vpop.f32.mrb[0].mxu0
        %v3379 = vadd.f32 %v3090, %v3378
        %v3380 = vpop.f32.mrb[0].mxu0
        %3381 = vmatprep.mubr.bf16.mxu0 0
        %3382 = vmatmul.mubr.bf16.gmra.mrb[0].mxu0 %v2815
        %v3383 = vpop.f32.mrb[0].mxu0
        %v3384 = vadd.f32 %v3095, %v3383
        %v3385 = vpop.f32.mrb[0].mxu0
        %v3386 = vpop.f32.mrb[0].mxu0
        %v3387 = vadd.f32 %v3098, %v3386
        %v3388 = vpop.f32.mrb[0].mxu0
        %3389 = vmatprep.mubr.bf16.mxu0 0
        %3390 = vmatmul.mubr.bf16.gmra.mrb[0].mxu0 %v2816
        %v3391 = vpop.f32.mrb[0].mxu0
        %v3392 = vadd.f32 %v3103, %v3391
        %v3393 = vpop.f32.mrb[0].mxu0
        %v3394 = vpop.f32.mrb[0].mxu0
        %v3395 = vadd.f32 %v3106, %v3394
        %v3396 = vpop.f32.mrb[0].mxu0
        %3397 = vmatprep.mubr.bf16.mxu0 0
        %3398 = vmatmul.mubr.bf16.gmra.mrb[0].mxu0 %v2817
        %v3399 = vpop.f32.mrb[0].mxu0
        %v3400 = vadd.f32 %v3111, %v3399
        %v3401 = vpop.f32.mrb[0].mxu0
        %v3402 = vpop.f32.mrb[0].mxu0
        %v3403 = vadd.f32 %v3114, %v3402
        %v3404 = vpop.f32.mrb[0].mxu0
        %3405 = vmatprep.mubr.bf16.mxu0 0
        %3406 = vmatmul.mubr.bf16.gmra.mrb[0].mxu0 %v2818
        %v3407 = vpop.f32.mrb[0].mxu0
        %v3408 = vadd.f32 %v3119, %v3407
        %v3409 = vpop.f32.mrb[0].mxu0
        %v3410 = vpop.f32.mrb[0].mxu0
        %v3411 = vadd.f32 %v3122, %v3410
        %v3412 = vpop.f32.mrb[0].mxu0
        %3413 = vmatprep.mubr.bf16.mxu0 0
        %3414 = vmatmul.mubr.bf16.gmra.mrb[0].mxu0 %v2819
        %v3415 = vpop.f32.mrb[0].mxu0
        %v3416 = vadd.f32 %v3127, %v3415
        %v3417 = vpop.f32.mrb[0].mxu0
        %v3418 = vpop.f32.mrb[0].mxu0
        %v3419 = vadd.f32 %v3130, %v3418
        %v3420 = vpop.f32.mrb[0].mxu0
        %3421 = vmatprep.mubr.bf16.mxu0 0
        %3422 = vmatmul.mubr.bf16.gmra.mrb[0].mxu0 %v2820
        %v3423 = vpop.f32.mrb[0].mxu0
        %v3424 = vadd.f32 %v3135, %v3423
        %v3425 = vpop.f32.mrb[0].mxu0
        %v3426 = vpop.f32.mrb[0].mxu0
        %v3427 = vadd.f32 %v3138, %v3426
        %v3428 = vpop.f32.mrb[0].mxu0
        %3429 = vmatprep.mubr.bf16.mxu0 0
        %3430 = vmatmul.mubr.bf16.gmra.mrb[0].mxu0 %v2821
        %v3431 = vpop.f32.mrb[0].mxu0
        %v3432 = vadd.f32 %v3143, %v3431
        %v3433 = vpop.f32.mrb[0].mxu0
        %v3434 = vpop.f32.mrb[0].mxu0
        %v3435 = vadd.f32 %v3146, %v3434
        %v3436 = vpop.f32.mrb[0].mxu0
        %3437 = vmatprep.mubr.bf16.mxu0 0
        %3438 = vmatmul.mubr.bf16.gmra.mrb[0].mxu0 %v2822
        %v3439 = vpop.f32.mrb[0].mxu0
        %v3440 = vadd.f32 %v3151, %v3439
        %v3441 = vpop.f32.mrb[0].mxu0
        %v3442 = vpop.f32.mrb[0].mxu0
        %v3443 = vadd.f32 %v3154, %v3442
        %v3444 = vpop.f32.mrb[0].mxu0
        %3445 = vmatprep.mubr.bf16.mxu0 0
        %3446 = vmatmul.mubr.bf16.gmra.mrb[0].mxu0 %v2823
        %v3447 = vpop.f32.mrb[0].mxu0
        %v3448 = vadd.f32 %v3159, %v3447
        %v3449 = vpop.f32.mrb[0].mxu0
        %v3450 = vpop.f32.mrb[0].mxu0
        %v3451 = vadd.f32 %v3162, %v3450
        %v3452 = vpop.f32.mrb[0].mxu0
        %3453 = vmatprep.mubr.bf16.mxu0 0
        %3454 = vmatmul.mubr.bf16.gmra.mrb[0].mxu0 %v2824
        %v3455 = vpop.f32.mrb[0].mxu0
        %v3456 = vadd.f32 %v3167, %v3455
        %v3457 = vpop.f32.mrb[0].mxu0
        %v3458 = vpop.f32.mrb[0].mxu0
        %v3459 = vadd.f32 %v3170, %v3458
        %v3460 = vpop.f32.mrb[0].mxu0
        %3461 = vmatprep.mubr.bf16.mxu0 0
        %3462 = vmatmul.mubr.bf16.gmra.mrb[0].mxu0 %v2825
        %v3463 = vpop.f32.mrb[0].mxu0
        %v3464 = vadd.f32 %v3175, %v3463
        %v3465 = vpop.f32.mrb[0].mxu0
        %v3466 = vpop.f32.mrb[0].mxu0
        %v3467 = vadd.f32 %v3178, %v3466
        %v3468 = vpop.f32.mrb[0].mxu0
        %3469 = vmatprep.mubr.bf16.mxu0 0
        %3470 = vmatmul.mubr.bf16.gmra.mrb[0].mxu0 %v2826
        %v3471 = vpop.f32.mrb[0].mxu0
        %v3472 = vadd.f32 %v3183, %v3471
        %v3473 = vpop.f32.mrb[0].mxu0
        %v3474 = vpop.f32.mrb[0].mxu0
        %v3475 = vadd.f32 %v3186, %v3474
        %v3476 = vpop.f32.mrb[0].mxu0
        %3477 = vmatprep.mubr.bf16.mxu0 0
        %3478 = vmatmul.mubr.bf16.gmra.mrb[0].mxu0 %v2827
        %v3479 = vpop.f32.mrb[0].mxu0
        %v3480 = vadd.f32 %v3191, %v3479
        %v3481 = vpop.f32.mrb[0].mxu0
        %v3482 = vpop.f32.mrb[0].mxu0
        %v3483 = vadd.f32 %v3194, %v3482
        %v3484 = vpop.f32.mrb[0].mxu0
        %3485 = vmatprep.mubr.bf16.mxu0 0
        %3486 = vmatmul.mubr.bf16.gmra.mrb[0].mxu0 %v2828
        %v3487 = vpop.f32.mrb[0].mxu0
        %v3488 = vadd.f32 %v3199, %v3487
        %v3489 = vpop.f32.mrb[0].mxu0
        %v3490 = vpop.f32.mrb[0].mxu0
        %v3491 = vadd.f32 %v3202, %v3490
        %v3492 = vpop.f32.mrb[0].mxu0
        %3493 = vmatprep.mubr.bf16.mxu0 0
        %3494 = vmatmul.mubr.bf16.gmra.mrb[0].mxu0 %v2829
        %v3495 = vpop.f32.mrb[0].mxu0
        %v3496 = vadd.f32 %v3207, %v3495
        %v3497 = vpop.f32.mrb[0].mxu0
        %v3498 = vpop.f32.mrb[0].mxu0
        %v3499 = vadd.f32 %v3210, %v3498
        %v3500 = vpop.f32.mrb[0].mxu0
        %3501 = vmatprep.mubr.bf16.mxu0 0
        %3502 = vmatmul.mubr.bf16.gmra.mrb[0].mxu0 %v2830
        %v3503 = vpop.f32.mrb[0].mxu0
        %v3504 = vadd.f32 %v3215, %v3503
        %v3505 = vpop.f32.mrb[0].mxu0
        %v3506 = vpop.f32.mrb[0].mxu0
        %v3507 = vadd.f32 %v3218, %v3506
        %v3508 = vpop.f32.mrb[0].mxu0
        %3509 = vmatprep.mubr.bf16.mxu0 0
        %3510 = vmatmul.mubr.bf16.gmra.mrb[0].mxu0 %v2831
        %v3511 = vpop.f32.mrb[0].mxu0
        %v3512 = vadd.f32 %v3223, %v3511
        %v3513 = vpop.f32.mrb[0].mxu0
        %v3514 = vpop.f32.mrb[0].mxu0
        %v3515 = vadd.f32 %v3226, %v3514
        %v3516 = vpop.f32.mrb[0].mxu0
        %3517 = vmatprep.mubr.bf16.mxu0 0
        %3518 = vmatmul.mubr.bf16.gmra.mrb[0].mxu0 %v2832
        %v3519 = vpop.f32.mrb[0].mxu0
        %v3520 = vadd.f32 %v3231, %v3519
        %v3521 = vpop.f32.mrb[0].mxu0
        %v3522 = vpop.f32.mrb[0].mxu0
        %v3523 = vadd.f32 %v3234, %v3522
        %v3524 = vpop.f32.mrb[0].mxu0
        %3525 = vmatprep.mubr.bf16.mxu0 0
        %3526 = vmatmul.mubr.bf16.gmra.mrb[0].mxu0 %v2833
        %v3527 = vpop.f32.mrb[0].mxu0
        %v3528 = vadd.f32 %v3239, %v3527
        %v3529 = vpop.f32.mrb[0].mxu0
        %v3530 = vpop.f32.mrb[0].mxu0
        %v3531 = vadd.f32 %v3242, %v3530
        %v3532 = vpop.f32.mrb[0].mxu0
        %3533 = vmatprep.mubr.bf16.mxu0 0
        %3534 = vmatmul.mubr.bf16.gmra.mrb[0].mxu0 %v2834
        %v3535 = vpop.f32.mrb[0].mxu0
        %v3536 = vadd.f32 %v3247, %v3535
        %v3537 = vpop.f32.mrb[0].mxu0
        %v3538 = vpop.f32.mrb[0].mxu0
        %v3539 = vadd.f32 %v3250, %v3538
        %v3540 = vpop.f32.mrb[0].mxu0
        %3541 = vmatprep.mubr.bf16.mxu0 0
        %3542 = vmatmul.mubr.bf16.gmra.mrb[0].mxu0 %v2835
        %v3543 = vpop.f32.mrb[0].mxu0
        %v3544 = vadd.f32 %v3255, %v3543
        %v3545 = vpop.f32.mrb[0].mxu0
        %v3546 = vpop.f32.mrb[0].mxu0
        %v3547 = vadd.f32 %v3258, %v3546
        %v3548 = vpop.f32.mrb[0].mxu0
        %3549 = vmatprep.mubr.bf16.mxu0 0
        %3550 = vmatmul.mubr.bf16.gmra.mrb[0].mxu0 %v2836
        %v3551 = vpop.f32.mrb[0].mxu0
        %v3552 = vadd.f32 %v3263, %v3551
        %v3553 = vpop.f32.mrb[0].mxu0
        %v3554 = vpop.f32.mrb[0].mxu0
        %v3555 = vadd.f32 %v3266, %v3554
        %v3556 = vpop.f32.mrb[0].mxu0
        %3557 = vmatprep.mubr.bf16.mxu0 0
        %3558 = vmatmul.mubr.bf16.gmra.mrb[0].mxu0 %v2837
        %v3559 = vpop.f32.mrb[0].mxu0
        %v3560 = vadd.f32 %v3271, %v3559
        %v3561 = vpop.f32.mrb[0].mxu0
        %v3562 = vpop.f32.mrb[0].mxu0
        %v3563 = vadd.f32 %v3274, %v3562
        %v3564 = vpop.f32.mrb[0].mxu0
        %3565 = vmatprep.mubr.bf16.mxu0 0
        %3566 = vmatmul.mubr.bf16.gmra.mrb[0].mxu0 %v2838
        %v3567 = vpop.f32.mrb[0].mxu0
        %v3568 = vadd.f32 %v3279, %v3567
        %v3569 = vpop.f32.mrb[0].mxu0
        %v3570 = vpop.f32.mrb[0].mxu0
        %v3571 = vadd.f32 %v3282, %v3570
        %v3572 = vpop.f32.mrb[0].mxu0
        %3573 = vmatprep.mubr.bf16.mxu0 0
        %3574 = vmatmul.mubr.bf16.gmra.mrb[0].mxu0 %v2839
        %v3575 = vpop.f32.mrb[0].mxu0
        %v3576 = vadd.f32 %v3287, %v3575
        %v3577 = vpop.f32.mrb[0].mxu0
        %v3578 = vpop.f32.mrb[0].mxu0
        %v3579 = vadd.f32 %v3290, %v3578
        %v3580 = vpop.f32.mrb[0].mxu0
        %3581 = vmatprep.mubr.bf16.mxu0 0
        %3582 = vmatmul.mubr.bf16.gmra.mrb[0].mxu0 %v2840
        %v3583 = vpop.f32.mrb[0].mxu0
        %v3584 = vadd.f32 %v3295, %v3583
        %v3585 = vpop.f32.mrb[0].mxu0
        %v3586 = vpop.f32.mrb[0].mxu0
        %v3587 = vadd.f32 %v3298, %v3586
        %v3588 = vpop.f32.mrb[0].mxu0
        %3589 = vmatprep.mubr.bf16.mxu0 0
        %3590 = vmatmul.mubr.bf16.gmra.mrb[0].mxu0 %v2841
        %v3591 = vpop.f32.mrb[0].mxu0
        %v3592 = vadd.f32 %v3303, %v3591
        %v3593 = vpop.f32.mrb[0].mxu0
        %v3594 = vpop.f32.mrb[0].mxu0
        %v3595 = vadd.f32 %v3306, %v3594
        %v3596 = vpop.f32.mrb[0].mxu0
        %3597 = vmatprep.mubr.bf16.mxu0 0
        %3598 = vmatmul.mubr.bf16.gmra.mrb[0].mxu0 %v2842
        %v3599 = vpop.f32.mrb[0].mxu0
        %v3600 = vadd.f32 %v3311, %v3599
        %v3601 = vpop.f32.mrb[0].mxu0
        %v3602 = vpop.f32.mrb[0].mxu0
        %v3603 = vadd.f32 %v3314, %v3602
        %v3604 = vpop.f32.mrb[0].mxu0
        %3605 = vmatprep.mubr.bf16.mxu0 0
        %3606 = vmatmul.mubr.bf16.gmra.mrb[0].mxu0 %v2843
        %v3607 = vpop.f32.mrb[0].mxu0
        %v3608 = vadd.f32 %v3319, %v3607
        %v3609 = vpop.f32.mrb[0].mxu0
        %v3610 = vpop.f32.mrb[0].mxu0
        %v3611 = vadd.f32 %v3322, %v3610
        %v3612 = vpop.f32.mrb[0].mxu0
        %3613 = vdwg.mxu0
        %v3614 = vld [vmem:[#allocation10] sm:$0xf]
        %v3615 = vld [vmem:[#allocation10 + $0x4] sm:$0xf]
        %v3616 = vld [vmem:[#allocation10 + $0x8] sm:$0xf]
        %v3617 = vld [vmem:[#allocation10 + $0xc] sm:$0xf]
        %v3618 = vld [vmem:[#allocation10 + $0x10] sm:$0xf]
        %v3619 = vld [vmem:[#allocation10 + $0x14] sm:$0xf]
        %v3620 = vld [vmem:[#allocation10 + $0x18] sm:$0xf]
        %v3621 = vld [vmem:[#allocation10 + $0x1c] sm:$0xf]
        %v3622 = vld [vmem:[#allocation10 + $0x20] sm:$0xf]
        %v3623 = vld [vmem:[#allocation10 + $0x24] sm:$0xf]
        %v3624 = vld [vmem:[#allocation10 + $0x28] sm:$0xf]
        %v3625 = vld [vmem:[#allocation10 + $0x2c] sm:$0xf]
        %v3626 = vld [vmem:[#allocation10 + $0x30] sm:$0xf]
        %v3627 = vld [vmem:[#allocation10 + $0x34] sm:$0xf]
        %v3628 = vld [vmem:[#allocation10 + $0x38] sm:$0xf]
        %v3629 = vld [vmem:[#allocation10 + $0x3c] sm:$0xf]
        %v3630 = vld [vmem:[#allocation10 + $0x40] sm:$0xf]
        %v3631 = vld [vmem:[#allocation10 + $0x44] sm:$0xf]
        %v3632 = vld [vmem:[#allocation10 + $0x48] sm:$0xf]
        %v3633 = vld [vmem:[#allocation10 + $0x4c] sm:$0xf]
        %v3634 = vld [vmem:[#allocation10 + $0x50] sm:$0xf]
        %v3635 = vld [vmem:[#allocation10 + $0x54] sm:$0xf]
        %v3636 = vld [vmem:[#allocation10 + $0x58] sm:$0xf]
        %v3637 = vld [vmem:[#allocation10 + $0x5c] sm:$0xf]
        %v3638 = vld [vmem:[#allocation10 + $0x60] sm:$0xf]
        %v3639 = vld [vmem:[#allocation10 + $0x64] sm:$0xf]
        %v3640 = vld [vmem:[#allocation10 + $0x68] sm:$0xf]
        %v3641 = vld [vmem:[#allocation10 + $0x6c] sm:$0xf]
        %v3642 = vld [vmem:[#allocation10 + $0x70] sm:$0xf]
        %v3643 = vld [vmem:[#allocation10 + $0x74] sm:$0xf]
        %v3644 = vld [vmem:[#allocation10 + $0x78] sm:$0xf]
        %v3645 = vld [vmem:[#allocation10 + $0x7c] sm:$0xf]
        %v3646 = vld [vmem:[#allocation10 + $0x80] sm:$0xf]
        %v3647 = vld [vmem:[#allocation10 + $0x84] sm:$0xf]
        %v3648 = vld [vmem:[#allocation10 + $0x88] sm:$0xf]
        %v3649 = vld [vmem:[#allocation10 + $0x8c] sm:$0xf]
        %v3650 = vld [vmem:[#allocation10 + $0x90] sm:$0xf]
        %v3651 = vld [vmem:[#allocation10 + $0x94] sm:$0xf]
        %v3652 = vld [vmem:[#allocation10 + $0x98] sm:$0xf]
        %v3653 = vld [vmem:[#allocation10 + $0x9c] sm:$0xf]
        %v3654 = vld [vmem:[#allocation10 + $0xa0] sm:$0xf]
        %v3655 = vld [vmem:[#allocation10 + $0xa4] sm:$0xf]
        %v3656 = vld [vmem:[#allocation10 + $0xa8] sm:$0xf]
        %v3657 = vld [vmem:[#allocation10 + $0xac] sm:$0xf]
        %v3658 = vld [vmem:[#allocation10 + $0xb0] sm:$0xf]
        %v3659 = vld [vmem:[#allocation10 + $0xb4] sm:$0xf]
        %v3660 = vld [vmem:[#allocation10 + $0xb8] sm:$0xf]
        %v3661 = vld [vmem:[#allocation10 + $0xbc] sm:$0xf]
        %v3662 = vld [vmem:[#allocation11] sm:$0xf]
        %v3663 = vld [vmem:[#allocation11 + $0x4] sm:$0xf]
        %v3664 = vld [vmem:[#allocation11 + $0x8] sm:$0xf]
        %v3665 = vld [vmem:[#allocation11 + $0xc] sm:$0xf]
        %v3666 = vld [vmem:[#allocation11 + $0x10] sm:$0xf]
        %v3667 = vld [vmem:[#allocation11 + $0x14] sm:$0xf]
        %v3668 = vld [vmem:[#allocation11 + $0x18] sm:$0xf]
        %v3669 = vld [vmem:[#allocation11 + $0x1c] sm:$0xf]
        %v3670 = vld [vmem:[#allocation11 + $0x20] sm:$0xf]
        %v3671 = vld [vmem:[#allocation11 + $0x24] sm:$0xf]
        %v3672 = vld [vmem:[#allocation11 + $0x28] sm:$0xf]
        %v3673 = vld [vmem:[#allocation11 + $0x2c] sm:$0xf]
        %v3674 = vld [vmem:[#allocation11 + $0x30] sm:$0xf]
        %v3675 = vld [vmem:[#allocation11 + $0x34] sm:$0xf]
        %v3676 = vld [vmem:[#allocation11 + $0x38] sm:$0xf]
        %v3677 = vld [vmem:[#allocation11 + $0x3c] sm:$0xf]
        %v3678 = vld [vmem:[#allocation11 + $0x40] sm:$0xf]
        %v3679 = vld [vmem:[#allocation11 + $0x44] sm:$0xf]
        %v3680 = vld [vmem:[#allocation11 + $0x48] sm:$0xf]
        %v3681 = vld [vmem:[#allocation11 + $0x4c] sm:$0xf]
        %v3682 = vld [vmem:[#allocation11 + $0x50] sm:$0xf]
        %v3683 = vld [vmem:[#allocation11 + $0x54] sm:$0xf]
        %v3684 = vld [vmem:[#allocation11 + $0x58] sm:$0xf]
        %v3685 = vld [vmem:[#allocation11 + $0x5c] sm:$0xf]
        %v3686 = vld [vmem:[#allocation11 + $0x60] sm:$0xf]
        %v3687 = vld [vmem:[#allocation11 + $0x64] sm:$0xf]
        %v3688 = vld [vmem:[#allocation11 + $0x68] sm:$0xf]
        %v3689 = vld [vmem:[#allocation11 + $0x6c] sm:$0xf]
        %v3690 = vld [vmem:[#allocation11 + $0x70] sm:$0xf]
        %v3691 = vld [vmem:[#allocation11 + $0x74] sm:$0xf]
        %v3692 = vld [vmem:[#allocation11 + $0x78] sm:$0xf]
        %v3693 = vld [vmem:[#allocation11 + $0x7c] sm:$0xf]
        %v3694 = vld [vmem:[#allocation11 + $0x80] sm:$0xf]
        %v3695 = vld [vmem:[#allocation11 + $0x84] sm:$0xf]
        %v3696 = vld [vmem:[#allocation11 + $0x88] sm:$0xf]
        %v3697 = vld [vmem:[#allocation11 + $0x8c] sm:$0xf]
        %v3698 = vld [vmem:[#allocation11 + $0x90] sm:$0xf]
        %v3699 = vld [vmem:[#allocation11 + $0x94] sm:$0xf]
        %v3700 = vld [vmem:[#allocation11 + $0x98] sm:$0xf]
        %v3701 = vld [vmem:[#allocation11 + $0x9c] sm:$0xf]
        %v3702 = vld [vmem:[#allocation11 + $0xa0] sm:$0xf]
        %v3703 = vld [vmem:[#allocation11 + $0xa4] sm:$0xf]
        %v3704 = vld [vmem:[#allocation11 + $0xa8] sm:$0xf]
        %v3705 = vld [vmem:[#allocation11 + $0xac] sm:$0xf]
        %v3706 = vld [vmem:[#allocation11 + $0xb0] sm:$0xf]
        %v3707 = vld [vmem:[#allocation11 + $0xb4] sm:$0xf]
        %v3708 = vld [vmem:[#allocation11 + $0xb8] sm:$0xf]
        %v3709 = vld [vmem:[#allocation11 + $0xbc] sm:$0xf]
        %v3758 = vunpack.c.l.b16 %v3662
        %v3759 = vunpack.c.l.b16 %v3663
        %v3760 = vunpack.c.l.b16 %v3664
        %v3761 = vunpack.c.l.b16 %v3665
        %v3762 = vunpack.c.l.b16 %v3666
        %v3763 = vunpack.c.l.b16 %v3667
        %v3764 = vunpack.c.l.b16 %v3668
        %v3765 = vunpack.c.l.b16 %v3669
        %v3766 = vunpack.c.l.b16 %v3670
        %v3767 = vunpack.c.l.b16 %v3671
        %v3768 = vunpack.c.l.b16 %v3672
        %v3769 = vunpack.c.l.b16 %v3673
        %v3770 = vunpack.c.l.b16 %v3674
        %v3771 = vunpack.c.l.b16 %v3675
        %v3772 = vunpack.c.l.b16 %v3676
        %v3773 = vunpack.c.l.b16 %v3677
        %v3774 = vunpack.c.l.b16 %v3678
        %v3775 = vunpack.c.l.b16 %v3679
        %v3776 = vunpack.c.l.b16 %v3680
        %v3777 = vunpack.c.l.b16 %v3681
        %v3778 = vunpack.c.l.b16 %v3682
        %v3779 = vunpack.c.l.b16 %v3683
        %v3780 = vunpack.c.l.b16 %v3684
        %v3781 = vunpack.c.l.b16 %v3685
        %v3782 = vunpack.c.l.b16 %v3686
        %v3783 = vunpack.c.l.b16 %v3687
        %v3784 = vunpack.c.l.b16 %v3688
        %v3785 = vunpack.c.l.b16 %v3689
        %v3786 = vunpack.c.l.b16 %v3690
        %v3787 = vunpack.c.l.b16 %v3691
        %v3788 = vunpack.c.l.b16 %v3692
        %v3789 = vunpack.c.l.b16 %v3693
        %v3790 = vunpack.c.l.b16 %v3694
        %v3791 = vunpack.c.l.b16 %v3695
        %v3792 = vunpack.c.l.b16 %v3696
        %v3793 = vunpack.c.l.b16 %v3697
        %v3794 = vunpack.c.l.b16 %v3698
        %v3795 = vunpack.c.l.b16 %v3699
        %v3796 = vunpack.c.l.b16 %v3700
        %v3797 = vunpack.c.l.b16 %v3701
        %v3798 = vunpack.c.l.b16 %v3702
        %v3799 = vunpack.c.l.b16 %v3703
        %v3800 = vunpack.c.l.b16 %v3704
        %v3801 = vunpack.c.l.b16 %v3705
        %v3802 = vunpack.c.l.b16 %v3706
        %v3803 = vunpack.c.l.b16 %v3707
        %v3804 = vunpack.c.l.b16 %v3708
        %v3805 = vunpack.c.l.b16 %v3709
        %v3806 = vpack.c.b16 %v3759, %v3758
        %v3807 = vpack.c.b16 %v3761, %v3760
        %v3808 = vpack.c.b16 %v3763, %v3762
        %v3809 = vpack.c.b16 %v3765, %v3764
        %v3810 = vpack.c.b16 %v3767, %v3766
        %v3811 = vpack.c.b16 %v3769, %v3768
        %v3812 = vpack.c.b16 %v3771, %v3770
        %v3813 = vpack.c.b16 %v3773, %v3772
        %v3814 = vpack.c.b16 %v3775, %v3774
        %v3815 = vpack.c.b16 %v3777, %v3776
        %v3816 = vpack.c.b16 %v3779, %v3778
        %v3817 = vpack.c.b16 %v3781, %v3780
        %v3818 = vpack.c.b16 %v3783, %v3782
        %v3819 = vpack.c.b16 %v3785, %v3784
        %v3820 = vpack.c.b16 %v3787, %v3786
        %v3821 = vpack.c.b16 %v3789, %v3788
        %v3822 = vpack.c.b16 %v3791, %v3790
        %v3823 = vpack.c.b16 %v3793, %v3792
        %v3824 = vpack.c.b16 %v3795, %v3794
        %v3825 = vpack.c.b16 %v3797, %v3796
        %v3826 = vpack.c.b16 %v3799, %v3798
        %v3827 = vpack.c.b16 %v3801, %v3800
        %v3828 = vpack.c.b16 %v3803, %v3802
        %v3829 = vpack.c.b16 %v3805, %v3804
        %3854 = vmatprep.subr.bf16.mxu0 0
        %3855 = vmatpush1.bf16.msra.mxu0 %v3806
        %3856 = vmatprep.subr.bf16.mxu0 0
        %3857 = vmatpush1.bf16.msra.mxu0 %v3807
        %3858 = vmatprep.subr.bf16.mxu0 0
        %3859 = vmatpush1.bf16.msra.mxu0 %v3808
        %3860 = vmatprep.subr.bf16.mxu0 0
        %3861 = vmatpush1.bf16.msra.mxu0 %v3809
        %3862 = vmatprep.subr.bf16.mxu0 0
        %3863 = vmatpush1.bf16.msra.mxu0 %v3810
        %3864 = vmatprep.subr.bf16.mxu0 0
        %3865 = vmatpush1.bf16.msra.mxu0 %v3811
        %3866 = vmatprep.subr.bf16.mxu0 0
        %3867 = vmatpush1.bf16.msra.mxu0 %v3812
        %3868 = vmatprep.subr.bf16.mxu0 0
        %3869 = vmatpush1.bf16.msra.mxu0 %v3813
        %3870 = vmatprep.subr.bf16.mxu0 0
        %3871 = vmatpush1.bf16.msra.mxu0 %v3814
        %3872 = vmatprep.subr.bf16.mxu0 0
        %3873 = vmatpush1.bf16.msra.mxu0 %v3815
        %3874 = vmatprep.subr.bf16.mxu0 0
        %3875 = vmatpush1.bf16.msra.mxu0 %v3816
        %3876 = vmatprep.subr.bf16.mxu0 0
        %3877 = vmatpush1.bf16.msra.mxu0 %v3817
        %3878 = vmatprep.subr.bf16.mxu0 0
        %3879 = vmatpush1.bf16.msra.mxu0 %v3818
        %3880 = vmatprep.subr.bf16.mxu0 0
        %3881 = vmatpush1.bf16.msra.mxu0 %v3819
        %3882 = vmatprep.subr.bf16.mxu0 0
        %3883 = vmatpush1.bf16.msra.mxu0 %v3820
        %3884 = vmatprep.subr.bf16.mxu0 0
        %3885 = vmatpush1.bf16.msra.mxu0 %v3821
        %3886 = vmatprep.mubr.bf16.mxu0 %v2780
        %3887 = vmatmul.mubr.bf16.gmra.mrb[0].mxu0 %v2748
        %v3888 = vpop.f32.mrb[0].mxu0
        %v3889 = vadd.f32 0.0, %v3888
        %v3890 = vpop.f32.mrb[0].mxu0
        %v3891 = vpop.f32.mrb[0].mxu0
        %v3892 = vadd.f32 0.0, %v3891
        %v3893 = vpop.f32.mrb[0].mxu0
        %3894 = vmatprep.mubr.bf16.mxu0 %v2781
        %3895 = vmatmul.mubr.bf16.gmra.mrb[0].mxu0 %v2749
        %v3896 = vpop.f32.mrb[0].mxu0
        %v3897 = vadd.f32 0.0, %v3896
        %v3898 = vpop.f32.mrb[0].mxu0
        %v3899 = vpop.f32.mrb[0].mxu0
        %v3900 = vadd.f32 0.0, %v3899
        %v3901 = vpop.f32.mrb[0].mxu0
        %3902 = vmatprep.mubr.bf16.mxu0 %v2782
        %3903 = vmatmul.mubr.bf16.gmra.mrb[0].mxu0 %v2750
        %v3904 = vpop.f32.mrb[0].mxu0
        %v3905 = vadd.f32 0.0, %v3904
        %v3906 = vpop.f32.mrb[0].mxu0
        %v3907 = vpop.f32.mrb[0].mxu0
        %v3908 = vadd.f32 0.0, %v3907
        %v3909 = vpop.f32.mrb[0].mxu0
        %3910 = vmatprep.mubr.bf16.mxu0 %v2783
        %3911 = vmatmul.mubr.bf16.gmra.mrb[0].mxu0 %v2751
        %v3912 = vpop.f32.mrb[0].mxu0
        %v3913 = vadd.f32 0.0, %v3912
        %v3914 = vpop.f32.mrb[0].mxu0
        %v3915 = vpop.f32.mrb[0].mxu0
        %v3916 = vadd.f32 0.0, %v3915
        %v3917 = vpop.f32.mrb[0].mxu0
        %3918 = vmatprep.mubr.bf16.mxu0 %v2784
        %3919 = vmatmul.mubr.bf16.gmra.mrb[0].mxu0 %v2752
        %v3920 = vpop.f32.mrb[0].mxu0
        %v3921 = vadd.f32 0.0, %v3920
        %v3922 = vpop.f32.mrb[0].mxu0
        %v3923 = vpop.f32.mrb[0].mxu0
        %v3924 = vadd.f32 0.0, %v3923
        %v3925 = vpop.f32.mrb[0].mxu0
        %3926 = vmatprep.mubr.bf16.mxu0 %v2785
        %3927 = vmatmul.mubr.bf16.gmra.mrb[0].mxu0 %v2753
        %v3928 = vpop.f32.mrb[0].mxu0
        %v3929 = vadd.f32 0.0, %v3928
        %v3930 = vpop.f32.mrb[0].mxu0
        %v3931 = vpop.f32.mrb[0].mxu0
        %v3932 = vadd.f32 0.0, %v3931
        %v3933 = vpop.f32.mrb[0].mxu0
        %3934 = vmatprep.mubr.bf16.mxu0 %v2786
        %3935 = vmatmul.mubr.bf16.gmra.mrb[0].mxu0 %v2754
        %v3936 = vpop.f32.mrb[0].mxu0
        %v3937 = vadd.f32 0.0, %v3936
        %v3938 = vpop.f32.mrb[0].mxu0
        %v3939 = vpop.f32.mrb[0].mxu0
        %v3940 = vadd.f32 0.0, %v3939
        %v3941 = vpop.f32.mrb[0].mxu0
        %3942 = vmatprep.mubr.bf16.mxu0 %v2787
        %3943 = vmatmul.mubr.bf16.gmra.mrb[0].mxu0 %v2755
        %v3944 = vpop.f32.mrb[0].mxu0
        %v3945 = vadd.f32 0.0, %v3944
        %v3946 = vpop.f32.mrb[0].mxu0
        %v3947 = vpop.f32.mrb[0].mxu0
        %v3948 = vadd.f32 0.0, %v3947
        %v3949 = vpop.f32.mrb[0].mxu0
        %3950 = vmatprep.mubr.bf16.mxu0 %v2788
        %3951 = vmatmul.mubr.bf16.gmra.mrb[0].mxu0 %v2756
        %v3952 = vpop.f32.mrb[0].mxu0
        %v3953 = vadd.f32 0.0, %v3952
        %v3954 = vpop.f32.mrb[0].mxu0
        %v3955 = vpop.f32.mrb[0].mxu0
        %v3956 = vadd.f32 0.0, %v3955
        %v3957 = vpop.f32.mrb[0].mxu0
        %3958 = vmatprep.mubr.bf16.mxu0 %v2789
        %3959 = vmatmul.mubr.bf16.gmra.mrb[0].mxu0 %v2757
        %v3960 = vpop.f32.mrb[0].mxu0
        %v3961 = vadd.f32 0.0, %v3960
        %v3962 = vpop.f32.mrb[0].mxu0
        %v3963 = vpop.f32.mrb[0].mxu0
        %v3964 = vadd.f32 0.0, %v3963
        %v3965 = vpop.f32.mrb[0].mxu0
        %3966 = vmatprep.mubr.bf16.mxu0 %v2790
        %3967 = vmatmul.mubr.bf16.gmra.mrb[0].mxu0 %v2758
        %v3968 = vpop.f32.mrb[0].mxu0
        %v3969 = vadd.f32 0.0, %v3968
        %v3970 = vpop.f32.mrb[0].mxu0
        %v3971 = vpop.f32.mrb[0].mxu0
        %v3972 = vadd.f32 0.0, %v3971
        %v3973 = vpop.f32.mrb[0].mxu0
        %3974 = vmatprep.mubr.bf16.mxu0 %v2791
        %3975 = vmatmul.mubr.bf16.gmra.mrb[0].mxu0 %v2759
        %v3976 = vpop.f32.mrb[0].mxu0
        %v3977 = vadd.f32 0.0, %v3976
        %v3978 = vpop.f32.mrb[0].mxu0
        %v3979 = vpop.f32.mrb[0].mxu0
        %v3980 = vadd.f32 0.0, %v3979
        %v3981 = vpop.f32.mrb[0].mxu0
        %3982 = vmatprep.mubr.bf16.mxu0 %v2792
        %3983 = vmatmul.mubr.bf16.gmra.mrb[0].mxu0 %v2760
        %v3984 = vpop.f32.mrb[0].mxu0
        %v3985 = vadd.f32 0.0, %v3984
        %v3986 = vpop.f32.mrb[0].mxu0
        %v3987 = vpop.f32.mrb[0].mxu0
        %v3988 = vadd.f32 0.0, %v3987
        %v3989 = vpop.f32.mrb[0].mxu0
        %3990 = vmatprep.mubr.bf16.mxu0 %v2793
        %3991 = vmatmul.mubr.bf16.gmra.mrb[0].mxu0 %v2761
        %v3992 = vpop.f32.mrb[0].mxu0
        %v3993 = vadd.f32 0.0, %v3992
        %v3994 = vpop.f32.mrb[0].mxu0
        %v3995 = vpop.f32.mrb[0].mxu0
        %v3996 = vadd.f32 0.0, %v3995
        %v3997 = vpop.f32.mrb[0].mxu0
        %3998 = vmatprep.mubr.bf16.mxu0 %v2794
        %3999 = vmatmul.mubr.bf16.gmra.mrb[0].mxu0 %v2762
        %v4000 = vpop.f32.mrb[0].mxu0
        %v4001 = vadd.f32 0.0, %v4000
        %v4002 = vpop.f32.mrb[0].mxu0
        %v4003 = vpop.f32.mrb[0].mxu0
        %v4004 = vadd.f32 0.0, %v4003
        %v4005 = vpop.f32.mrb[0].mxu0
        %4006 = vmatprep.mubr.bf16.mxu0 %v2795
        %4007 = vmatmul.mubr.bf16.gmra.mrb[0].mxu0 %v2763
        %v4008 = vpop.f32.mrb[0].mxu0
        %v4009 = vadd.f32 0.0, %v4008
        %v4010 = vpop.f32.mrb[0].mxu0
        %v4011 = vpop.f32.mrb[0].mxu0
        %v4012 = vadd.f32 0.0, %v4011
        %v4013 = vpop.f32.mrb[0].mxu0
        %4014 = vmatprep.mubr.bf16.mxu0 %v2796
        %4015 = vmatmul.mubr.bf16.gmra.mrb[0].mxu0 %v2764
        %v4016 = vpop.f32.mrb[0].mxu0
        %v4017 = vadd.f32 0.0, %v4016
        %v4018 = vpop.f32.mrb[0].mxu0
        %v4019 = vpop.f32.mrb[0].mxu0
        %v4020 = vadd.f32 0.0, %v4019
        %v4021 = vpop.f32.mrb[0].mxu0
        %4022 = vmatprep.mubr.bf16.mxu0 %v2797
        %4023 = vmatmul.mubr.bf16.gmra.mrb[0].mxu0 %v2765
        %v4024 = vpop.f32.mrb[0].mxu0
        %v4025 = vadd.f32 0.0, %v4024
        %v4026 = vpop.f32.mrb[0].mxu0
        %v4027 = vpop.f32.mrb[0].mxu0
        %v4028 = vadd.f32 0.0, %v4027
        %v4029 = vpop.f32.mrb[0].mxu0
        %4030 = vmatprep.mubr.bf16.mxu0 %v2798
        %4031 = vmatmul.mubr.bf16.gmra.mrb[0].mxu0 %v2766
        %v4032 = vpop.f32.mrb[0].mxu0
        %v4033 = vadd.f32 0.0, %v4032
        %v4034 = vpop.f32.mrb[0].mxu0
        %v4035 = vpop.f32.mrb[0].mxu0
        %v4036 = vadd.f32 0.0, %v4035
        %v4037 = vpop.f32.mrb[0].mxu0
        %4038 = vmatprep.mubr.bf16.mxu0 %v2799
        %4039 = vmatmul.mubr.bf16.gmra.mrb[0].mxu0 %v2767
        %v4040 = vpop.f32.mrb[0].mxu0
        %v4041 = vadd.f32 0.0, %v4040
        %v4042 = vpop.f32.mrb[0].mxu0
        %v4043 = vpop.f32.mrb[0].mxu0
        %v4044 = vadd.f32 0.0, %v4043
        %v4045 = vpop.f32.mrb[0].mxu0
        %4046 = vmatprep.mubr.bf16.mxu0 %v2800
        %4047 = vmatmul.mubr.bf16.gmra.mrb[0].mxu0 %v2768
        %v4048 = vpop.f32.mrb[0].mxu0
        %v4049 = vadd.f32 0.0, %v4048
        %v4050 = vpop.f32.mrb[0].mxu0
        %v4051 = vpop.f32.mrb[0].mxu0
        %v4052 = vadd.f32 0.0, %v4051
        %v4053 = vpop.f32.mrb[0].mxu0
        %4054 = vmatprep.mubr.bf16.mxu0 %v2801
        %4055 = vmatmul.mubr.bf16.gmra.mrb[0].mxu0 %v2769
        %v4056 = vpop.f32.mrb[0].mxu0
        %v4057 = vadd.f32 0.0, %v4056
        %v4058 = vpop.f32.mrb[0].mxu0
        %v4059 = vpop.f32.mrb[0].mxu0
        %v4060 = vadd.f32 0.0, %v4059
        %v4061 = vpop.f32.mrb[0].mxu0
        %4062 = vmatprep.mubr.bf16.mxu0 %v2802
        %4063 = vmatmul.mubr.bf16.gmra.mrb[0].mxu0 %v2770
        %v4064 = vpop.f32.mrb[0].mxu0
        %v4065 = vadd.f32 0.0, %v4064
        %v4066 = vpop.f32.mrb[0].mxu0
        %v4067 = vpop.f32.mrb[0].mxu0
        %v4068 = vadd.f32 0.0, %v4067
        %v4069 = vpop.f32.mrb[0].mxu0
        %4070 = vmatprep.mubr.bf16.mxu0 %v2803
        %4071 = vmatmul.mubr.bf16.gmra.mrb[0].mxu0 %v2771
        %v4072 = vpop.f32.mrb[0].mxu0
        %v4073 = vadd.f32 0.0, %v4072
        %v4074 = vpop.f32.mrb[0].mxu0
        %v4075 = vpop.f32.mrb[0].mxu0
        %v4076 = vadd.f32 0.0, %v4075
        %v4077 = vpop.f32.mrb[0].mxu0
        %4078 = vmatprep.mubr.bf16.mxu0 %v2804
        %4079 = vmatmul.mubr.bf16.gmra.mrb[0].mxu0 %v2772
        %v4080 = vpop.f32.mrb[0].mxu0
        %v4081 = vadd.f32 0.0, %v4080
        %v4082 = vpop.f32.mrb[0].mxu0
        %v4083 = vpop.f32.mrb[0].mxu0
        %v4084 = vadd.f32 0.0, %v4083
        %v4085 = vpop.f32.mrb[0].mxu0
        %4086 = vmatprep.mubr.bf16.mxu0 %v2805
        %4087 = vmatmul.mubr.bf16.gmra.mrb[0].mxu0 %v2773
        %v4088 = vpop.f32.mrb[0].mxu0
        %v4089 = vadd.f32 0.0, %v4088
        %v4090 = vpop.f32.mrb[0].mxu0
        %v4091 = vpop.f32.mrb[0].mxu0
        %v4092 = vadd.f32 0.0, %v4091
        %v4093 = vpop.f32.mrb[0].mxu0
        %4094 = vmatprep.mubr.bf16.mxu0 %v2806
        %4095 = vmatmul.mubr.bf16.gmra.mrb[0].mxu0 %v2774
        %v4096 = vpop.f32.mrb[0].mxu0
        %v4097 = vadd.f32 0.0, %v4096
        %v4098 = vpop.f32.mrb[0].mxu0
        %v4099 = vpop.f32.mrb[0].mxu0
        %v4100 = vadd.f32 0.0, %v4099
        %v4101 = vpop.f32.mrb[0].mxu0
        %4102 = vmatprep.mubr.bf16.mxu0 %v2807
        %4103 = vmatmul.mubr.bf16.gmra.mrb[0].mxu0 %v2775
        %v4104 = vpop.f32.mrb[0].mxu0
        %v4105 = vadd.f32 0.0, %v4104
        %v4106 = vpop.f32.mrb[0].mxu0
        %v4107 = vpop.f32.mrb[0].mxu0
        %v4108 = vadd.f32 0.0, %v4107
        %v4109 = vpop.f32.mrb[0].mxu0
        %4110 = vmatprep.mubr.bf16.mxu0 %v2808
        %4111 = vmatmul.mubr.bf16.gmra.mrb[0].mxu0 %v2776
        %v4112 = vpop.f32.mrb[0].mxu0
        %v4113 = vadd.f32 0.0, %v4112
        %v4114 = vpop.f32.mrb[0].mxu0
        %v4115 = vpop.f32.mrb[0].mxu0
        %v4116 = vadd.f32 0.0, %v4115
        %v4117 = vpop.f32.mrb[0].mxu0
        %4118 = vmatprep.mubr.bf16.mxu0 %v2809
        %4119 = vmatmul.mubr.bf16.gmra.mrb[0].mxu0 %v2777
        %v4120 = vpop.f32.mrb[0].mxu0
        %v4121 = vadd.f32 0.0, %v4120
        %v4122 = vpop.f32.mrb[0].mxu0
        %v4123 = vpop.f32.mrb[0].mxu0
        %v4124 = vadd.f32 0.0, %v4123
        %v4125 = vpop.f32.mrb[0].mxu0
        %4126 = vmatprep.mubr.bf16.mxu0 %v2810
        %4127 = vmatmul.mubr.bf16.gmra.mrb[0].mxu0 %v2778
        %v4128 = vpop.f32.mrb[0].mxu0
        %v4129 = vadd.f32 0.0, %v4128
        %v4130 = vpop.f32.mrb[0].mxu0
        %v4131 = vpop.f32.mrb[0].mxu0
        %v4132 = vadd.f32 0.0, %v4131
        %v4133 = vpop.f32.mrb[0].mxu0
        %4134 = vmatprep.mubr.bf16.mxu0 %v2811
        %4135 = vmatmul.mubr.bf16.gmra.mrb[0].mxu0 %v2779
        %v4136 = vpop.f32.mrb[0].mxu0
        %v4137 = vadd.f32 0.0, %v4136
        %v4138 = vpop.f32.mrb[0].mxu0
        %v4139 = vpop.f32.mrb[0].mxu0
        %v4140 = vadd.f32 0.0, %v4139
        %v4141 = vpop.f32.mrb[0].mxu0
        %4142 = vdwg.mxu0
        %4143 = vmatprep.subr.bf16.mxu0 0
        %4144 = vmatpush1.bf16.msra.mxu0 %v3822
        %4145 = vmatprep.subr.bf16.mxu0 0
        %4146 = vmatpush1.bf16.msra.mxu0 %v3823
        %4147 = vmatprep.subr.bf16.mxu0 0
        %4148 = vmatpush1.bf16.msra.mxu0 %v3824
        %4149 = vmatprep.subr.bf16.mxu0 0
        %4150 = vmatpush1.bf16.msra.mxu0 %v3825
        %4151 = vmatprep.subr.bf16.mxu0 0
        %4152 = vmatpush1.bf16.msra.mxu0 %v3826
        %4153 = vmatprep.subr.bf16.mxu0 0
        %4154 = vmatpush1.bf16.msra.mxu0 %v3827
        %4155 = vmatprep.subr.bf16.mxu0 0
        %4156 = vmatpush1.bf16.msra.mxu0 %v3828
        %4157 = vmatprep.subr.bf16.mxu0 0
        %4158 = vmatpush1.bf16.msra.mxu0 %v3829
        %4159 = vmatprep.subr.bf16.mxu0 0
        %4160 = vmatpush1.bf16.msra.mxu0 0
        %4161 = vmatprep.subr.bf16.mxu0 0
        %4162 = vmatpush1.bf16.msra.mxu0 0
        %4163 = vmatprep.subr.bf16.mxu0 0
        %4164 = vmatpush1.bf16.msra.mxu0 0
        %4165 = vmatprep.subr.bf16.mxu0 0
        %4166 = vmatpush1.bf16.msra.mxu0 0
        %4167 = vmatprep.subr.bf16.mxu0 0
        %4168 = vmatpush1.bf16.msra.mxu0 0
        %4169 = vmatprep.subr.bf16.mxu0 0
        %4170 = vmatpush1.bf16.msra.mxu0 0
        %4171 = vmatprep.subr.bf16.mxu0 0
        %4172 = vmatpush1.bf16.msra.mxu0 0
        %4173 = vmatprep.subr.bf16.mxu0 0
        %4174 = vmatpush1.bf16.msra.mxu0 0
        %4175 = vmatprep.mubr.bf16.mxu0 0
        %4176 = vmatmul.mubr.bf16.gmra.mrb[0].mxu0 %v2812
        %v4177 = vpop.f32.mrb[0].mxu0
        %v4178 = vadd.f32 %v3889, %v4177
        %v4179 = vpop.f32.mrb[0].mxu0
        %v4180 = vpop.f32.mrb[0].mxu0
        %v4181 = vadd.f32 %v3892, %v4180
        %v4182 = vpop.f32.mrb[0].mxu0
        %4183 = vmatprep.mubr.bf16.mxu0 0
        %4184 = vmatmul.mubr.bf16.gmra.mrb[0].mxu0 %v2813
        %v4185 = vpop.f32.mrb[0].mxu0
        %v4186 = vadd.f32 %v3897, %v4185
        %v4187 = vpop.f32.mrb[0].mxu0
        %v4188 = vpop.f32.mrb[0].mxu0
        %v4189 = vadd.f32 %v3900, %v4188
        %v4190 = vpop.f32.mrb[0].mxu0
        %4191 = vmatprep.mubr.bf16.mxu0 0
        %4192 = vmatmul.mubr.bf16.gmra.mrb[0].mxu0 %v2814
        %v4193 = vpop.f32.mrb[0].mxu0
        %v4194 = vadd.f32 %v3905, %v4193
        %v4195 = vpop.f32.mrb[0].mxu0
        %v4196 = vpop.f32.mrb[0].mxu0
        %v4197 = vadd.f32 %v3908, %v4196
        %v4198 = vpop.f32.mrb[0].mxu0
        %4199 = vmatprep.mubr.bf16.mxu0 0
        %4200 = vmatmul.mubr.bf16.gmra.mrb[0].mxu0 %v2815
        %v4201 = vpop.f32.mrb[0].mxu0
        %v4202 = vadd.f32 %v3913, %v4201
        %v4203 = vpop.f32.mrb[0].mxu0
        %v4204 = vpop.f32.mrb[0].mxu0
        %v4205 = vadd.f32 %v3916, %v4204
        %v4206 = vpop.f32.mrb[0].mxu0
        %4207 = vmatprep.mubr.bf16.mxu0 0
        %4208 = vmatmul.mubr.bf16.gmra.mrb[0].mxu0 %v2816
        %v4209 = vpop.f32.mrb[0].mxu0
        %v4210 = vadd.f32 %v3921, %v4209
        %v4211 = vpop.f32.mrb[0].mxu0
        %v4212 = vpop.f32.mrb[0].mxu0
        %v4213 = vadd.f32 %v3924, %v4212
        %v4214 = vpop.f32.mrb[0].mxu0
        %4215 = vmatprep.mubr.bf16.mxu0 0
        %4216 = vmatmul.mubr.bf16.gmra.mrb[0].mxu0 %v2817
        %v4217 = vpop.f32.mrb[0].mxu0
        %v4218 = vadd.f32 %v3929, %v4217
        %v4219 = vpop.f32.mrb[0].mxu0
        %v4220 = vpop.f32.mrb[0].mxu0
        %v4221 = vadd.f32 %v3932, %v4220
        %v4222 = vpop.f32.mrb[0].mxu0
        %4223 = vmatprep.mubr.bf16.mxu0 0
        %4224 = vmatmul.mubr.bf16.gmra.mrb[0].mxu0 %v2818
        %v4225 = vpop.f32.mrb[0].mxu0
        %v4226 = vadd.f32 %v3937, %v4225
        %v4227 = vpop.f32.mrb[0].mxu0
        %v4228 = vpop.f32.mrb[0].mxu0
        %v4229 = vadd.f32 %v3940, %v4228
        %v4230 = vpop.f32.mrb[0].mxu0
        %4231 = vmatprep.mubr.bf16.mxu0 0
        %4232 = vmatmul.mubr.bf16.gmra.mrb[0].mxu0 %v2819
        %v4233 = vpop.f32.mrb[0].mxu0
        %v4234 = vadd.f32 %v3945, %v4233
        %v4235 = vpop.f32.mrb[0].mxu0
        %v4236 = vpop.f32.mrb[0].mxu0
        %v4237 = vadd.f32 %v3948, %v4236
        %v4238 = vpop.f32.mrb[0].mxu0
        %4239 = vmatprep.mubr.bf16.mxu0 0
        %4240 = vmatmul.mubr.bf16.gmra.mrb[0].mxu0 %v2820
        %v4241 = vpop.f32.mrb[0].mxu0
        %v4242 = vadd.f32 %v3953, %v4241
        %v4243 = vpop.f32.mrb[0].mxu0
        %v4244 = vpop.f32.mrb[0].mxu0
        %v4245 = vadd.f32 %v3956, %v4244
        %v4246 = vpop.f32.mrb[0].mxu0
        %4247 = vmatprep.mubr.bf16.mxu0 0
        %4248 = vmatmul.mubr.bf16.gmra.mrb[0].mxu0 %v2821
        %v4249 = vpop.f32.mrb[0].mxu0
        %v4250 = vadd.f32 %v3961, %v4249
        %v4251 = vpop.f32.mrb[0].mxu0
        %v4252 = vpop.f32.mrb[0].mxu0
        %v4253 = vadd.f32 %v3964, %v4252
        %v4254 = vpop.f32.mrb[0].mxu0
        %4255 = vmatprep.mubr.bf16.mxu0 0
        %4256 = vmatmul.mubr.bf16.gmra.mrb[0].mxu0 %v2822
        %v4257 = vpop.f32.mrb[0].mxu0
        %v4258 = vadd.f32 %v3969, %v4257
        %v4259 = vpop.f32.mrb[0].mxu0
        %v4260 = vpop.f32.mrb[0].mxu0
        %v4261 = vadd.f32 %v3972, %v4260
        %v4262 = vpop.f32.mrb[0].mxu0
        %4263 = vmatprep.mubr.bf16.mxu0 0
        %4264 = vmatmul.mubr.bf16.gmra.mrb[0].mxu0 %v2823
        %v4265 = vpop.f32.mrb[0].mxu0
        %v4266 = vadd.f32 %v3977, %v4265
        %v4267 = vpop.f32.mrb[0].mxu0
        %v4268 = vpop.f32.mrb[0].mxu0
        %v4269 = vadd.f32 %v3980, %v4268
        %v4270 = vpop.f32.mrb[0].mxu0
        %4271 = vmatprep.mubr.bf16.mxu0 0
        %4272 = vmatmul.mubr.bf16.gmra.mrb[0].mxu0 %v2824
        %v4273 = vpop.f32.mrb[0].mxu0
        %v4274 = vadd.f32 %v3985, %v4273
        %v4275 = vpop.f32.mrb[0].mxu0
        %v4276 = vpop.f32.mrb[0].mxu0
        %v4277 = vadd.f32 %v3988, %v4276
        %v4278 = vpop.f32.mrb[0].mxu0
        %4279 = vmatprep.mubr.bf16.mxu0 0
        %4280 = vmatmul.mubr.bf16.gmra.mrb[0].mxu0 %v2825
        %v4281 = vpop.f32.mrb[0].mxu0
        %v4282 = vadd.f32 %v3993, %v4281
        %v4283 = vpop.f32.mrb[0].mxu0
        %v4284 = vpop.f32.mrb[0].mxu0
        %v4285 = vadd.f32 %v3996, %v4284
        %v4286 = vpop.f32.mrb[0].mxu0
        %4287 = vmatprep.mubr.bf16.mxu0 0
        %4288 = vmatmul.mubr.bf16.gmra.mrb[0].mxu0 %v2826
        %v4289 = vpop.f32.mrb[0].mxu0
        %v4290 = vadd.f32 %v4001, %v4289
        %v4291 = vpop.f32.mrb[0].mxu0
        %v4292 = vpop.f32.mrb[0].mxu0
        %v4293 = vadd.f32 %v4004, %v4292
        %v4294 = vpop.f32.mrb[0].mxu0
        %4295 = vmatprep.mubr.bf16.mxu0 0
        %4296 = vmatmul.mubr.bf16.gmra.mrb[0].mxu0 %v2827
        %v4297 = vpop.f32.mrb[0].mxu0
        %v4298 = vadd.f32 %v4009, %v4297
        %v4299 = vpop.f32.mrb[0].mxu0
        %v4300 = vpop.f32.mrb[0].mxu0
        %v4301 = vadd.f32 %v4012, %v4300
        %v4302 = vpop.f32.mrb[0].mxu0
        %4303 = vmatprep.mubr.bf16.mxu0 0
        %4304 = vmatmul.mubr.bf16.gmra.mrb[0].mxu0 %v2828
        %v4305 = vpop.f32.mrb[0].mxu0
        %v4306 = vadd.f32 %v4017, %v4305
        %v4307 = vpop.f32.mrb[0].mxu0
        %v4308 = vpop.f32.mrb[0].mxu0
        %v4309 = vadd.f32 %v4020, %v4308
        %v4310 = vpop.f32.mrb[0].mxu0
        %4311 = vmatprep.mubr.bf16.mxu0 0
        %4312 = vmatmul.mubr.bf16.gmra.mrb[0].mxu0 %v2829
        %v4313 = vpop.f32.mrb[0].mxu0
        %v4314 = vadd.f32 %v4025, %v4313
        %v4315 = vpop.f32.mrb[0].mxu0
        %v4316 = vpop.f32.mrb[0].mxu0
        %v4317 = vadd.f32 %v4028, %v4316
        %v4318 = vpop.f32.mrb[0].mxu0
        %4319 = vmatprep.mubr.bf16.mxu0 0
        %4320 = vmatmul.mubr.bf16.gmra.mrb[0].mxu0 %v2830
        %v4321 = vpop.f32.mrb[0].mxu0
        %v4322 = vadd.f32 %v4033, %v4321
        %v4323 = vpop.f32.mrb[0].mxu0
        %v4324 = vpop.f32.mrb[0].mxu0
        %v4325 = vadd.f32 %v4036, %v4324
        %v4326 = vpop.f32.mrb[0].mxu0
        %4327 = vmatprep.mubr.bf16.mxu0 0
        %4328 = vmatmul.mubr.bf16.gmra.mrb[0].mxu0 %v2831
        %v4329 = vpop.f32.mrb[0].mxu0
        %v4330 = vadd.f32 %v4041, %v4329
        %v4331 = vpop.f32.mrb[0].mxu0
        %v4332 = vpop.f32.mrb[0].mxu0
        %v4333 = vadd.f32 %v4044, %v4332
        %v4334 = vpop.f32.mrb[0].mxu0
        %4335 = vmatprep.mubr.bf16.mxu0 0
        %4336 = vmatmul.mubr.bf16.gmra.mrb[0].mxu0 %v2832
        %v4337 = vpop.f32.mrb[0].mxu0
        %v4338 = vadd.f32 %v4049, %v4337
        %v4339 = vpop.f32.mrb[0].mxu0
        %v4340 = vpop.f32.mrb[0].mxu0
        %v4341 = vadd.f32 %v4052, %v4340
        %v4342 = vpop.f32.mrb[0].mxu0
        %4343 = vmatprep.mubr.bf16.mxu0 0
        %4344 = vmatmul.mubr.bf16.gmra.mrb[0].mxu0 %v2833
        %v4345 = vpop.f32.mrb[0].mxu0
        %v4346 = vadd.f32 %v4057, %v4345
        %v4347 = vpop.f32.mrb[0].mxu0
        %v4348 = vpop.f32.mrb[0].mxu0
        %v4349 = vadd.f32 %v4060, %v4348
        %v4350 = vpop.f32.mrb[0].mxu0
        %4351 = vmatprep.mubr.bf16.mxu0 0
        %4352 = vmatmul.mubr.bf16.gmra.mrb[0].mxu0 %v2834
        %v4353 = vpop.f32.mrb[0].mxu0
        %v4354 = vadd.f32 %v4065, %v4353
        %v4355 = vpop.f32.mrb[0].mxu0
        %v4356 = vpop.f32.mrb[0].mxu0
        %v4357 = vadd.f32 %v4068, %v4356
        %v4358 = vpop.f32.mrb[0].mxu0
        %4359 = vmatprep.mubr.bf16.mxu0 0
        %4360 = vmatmul.mubr.bf16.gmra.mrb[0].mxu0 %v2835
        %v4361 = vpop.f32.mrb[0].mxu0
        %v4362 = vadd.f32 %v4073, %v4361
        %v4363 = vpop.f32.mrb[0].mxu0
        %v4364 = vpop.f32.mrb[0].mxu0
        %v4365 = vadd.f32 %v4076, %v4364
        %v4366 = vpop.f32.mrb[0].mxu0
        %4367 = vmatprep.mubr.bf16.mxu0 0
        %4368 = vmatmul.mubr.bf16.gmra.mrb[0].mxu0 %v2836
        %v4369 = vpop.f32.mrb[0].mxu0
        %v4370 = vadd.f32 %v4081, %v4369
        %v4371 = vpop.f32.mrb[0].mxu0
        %v4372 = vpop.f32.mrb[0].mxu0
        %v4373 = vadd.f32 %v4084, %v4372
        %v4374 = vpop.f32.mrb[0].mxu0
        %4375 = vmatprep.mubr.bf16.mxu0 0
        %4376 = vmatmul.mubr.bf16.gmra.mrb[0].mxu0 %v2837
        %v4377 = vpop.f32.mrb[0].mxu0
        %v4378 = vadd.f32 %v4089, %v4377
        %v4379 = vpop.f32.mrb[0].mxu0
        %v4380 = vpop.f32.mrb[0].mxu0
        %v4381 = vadd.f32 %v4092, %v4380
        %v4382 = vpop.f32.mrb[0].mxu0
        %4383 = vmatprep.mubr.bf16.mxu0 0
        %4384 = vmatmul.mubr.bf16.gmra.mrb[0].mxu0 %v2838
        %v4385 = vpop.f32.mrb[0].mxu0
        %v4386 = vadd.f32 %v4097, %v4385
        %v4387 = vpop.f32.mrb[0].mxu0
        %v4388 = vpop.f32.mrb[0].mxu0
        %v4389 = vadd.f32 %v4100, %v4388
        %v4390 = vpop.f32.mrb[0].mxu0
        %4391 = vmatprep.mubr.bf16.mxu0 0
        %4392 = vmatmul.mubr.bf16.gmra.mrb[0].mxu0 %v2839
        %v4393 = vpop.f32.mrb[0].mxu0
        %v4394 = vadd.f32 %v4105, %v4393
        %v4395 = vpop.f32.mrb[0].mxu0
        %v4396 = vpop.f32.mrb[0].mxu0
        %v4397 = vadd.f32 %v4108, %v4396
        %v4398 = vpop.f32.mrb[0].mxu0
        %4399 = vmatprep.mubr.bf16.mxu0 0
        %4400 = vmatmul.mubr.bf16.gmra.mrb[0].mxu0 %v2840
        %v4401 = vpop.f32.mrb[0].mxu0
        %v4402 = vadd.f32 %v4113, %v4401
        %v4403 = vpop.f32.mrb[0].mxu0
        %v4404 = vpop.f32.mrb[0].mxu0
        %v4405 = vadd.f32 %v4116, %v4404
        %v4406 = vpop.f32.mrb[0].mxu0
        %4407 = vmatprep.mubr.bf16.mxu0 0
        %4408 = vmatmul.mubr.bf16.gmra.mrb[0].mxu0 %v2841
        %v4409 = vpop.f32.mrb[0].mxu0
        %v4410 = vadd.f32 %v4121, %v4409
        %v4411 = vpop.f32.mrb[0].mxu0
        %v4412 = vpop.f32.mrb[0].mxu0
        %v4413 = vadd.f32 %v4124, %v4412
        %v4414 = vpop.f32.mrb[0].mxu0
        %4415 = vmatprep.mubr.bf16.mxu0 0
        %4416 = vmatmul.mubr.bf16.gmra.mrb[0].mxu0 %v2842
        %v4417 = vpop.f32.mrb[0].mxu0
        %v4418 = vadd.f32 %v4129, %v4417
        %v4419 = vpop.f32.mrb[0].mxu0
        %v4420 = vpop.f32.mrb[0].mxu0
        %v4421 = vadd.f32 %v4132, %v4420
        %v4422 = vpop.f32.mrb[0].mxu0
        %4423 = vmatprep.mubr.bf16.mxu0 0
        %4424 = vmatmul.mubr.bf16.gmra.mrb[0].mxu0 %v2843
        %v4425 = vpop.f32.mrb[0].mxu0
        %v4426 = vadd.f32 %v4137, %v4425
        %v4427 = vpop.f32.mrb[0].mxu0
        %v4428 = vpop.f32.mrb[0].mxu0
        %v4429 = vadd.f32 %v4140, %v4428
        %v4430 = vpop.f32.mrb[0].mxu0
        %4431 = vdwg.mxu0
        %vm4432 = vcmp.lt.s32.totalorder %v1146, 0
        %v4433 = vsub.s32 0, %v1146
        %v4434 = vsel %vm4432, %v4433, %v1146
        %v4435 = vshrl.u32 %v4434, 8
        %v4436 = vand.u32 %v4434, 255
        %v4437 = vsub.s32 0, %v4436
        %v4438 = vsel %vm4432, %v4437, %v4436
        %vm4439 = vcmp.lt.s32.totalorder %v1147, 0
        %v4440 = vsub.s32 0, %v1147
        %v4441 = vsel %vm4439, %v4440, %v1147
        %v4442 = vshrl.u32 %v4441, 8
        %v4443 = vand.u32 %v4441, 255
        %v4444 = vsub.s32 0, %v4443
        %v4445 = vsel %vm4439, %v4444, %v4443
        %vm4446 = vcmp.lt.s32.totalorder %v1148, 0
        %v4447 = vsub.s32 0, %v1148
        %v4448 = vsel %vm4446, %v4447, %v1148
        %v4449 = vshrl.u32 %v4448, 8
        %v4450 = vand.u32 %v4448, 255
        %v4451 = vsub.s32 0, %v4450
        %v4452 = vsel %vm4446, %v4451, %v4450
        %vm4453 = vcmp.lt.s32.totalorder %v1149, 0
        %v4454 = vsub.s32 0, %v1149
        %v4455 = vsel %vm4453, %v4454, %v1149
        %v4456 = vshrl.u32 %v4455, 8
        %v4457 = vand.u32 %v4455, 255
        %v4458 = vsub.s32 0, %v4457
        %v4459 = vsel %vm4453, %v4458, %v4457
        %vm4460 = vcmp.lt.s32.totalorder %v1150, 0
        %v4461 = vsub.s32 0, %v1150
        %v4462 = vsel %vm4460, %v4461, %v1150
        %v4463 = vshrl.u32 %v4462, 8
        %v4464 = vand.u32 %v4462, 255
        %v4465 = vsub.s32 0, %v4464
        %v4466 = vsel %vm4460, %v4465, %v4464
        %vm4467 = vcmp.lt.s32.totalorder %v1151, 0
        %v4468 = vsub.s32 0, %v1151
        %v4469 = vsel %vm4467, %v4468, %v1151
        %v4470 = vshrl.u32 %v4469, 8
        %v4471 = vand.u32 %v4469, 255
        %v4472 = vsub.s32 0, %v4471
        %v4473 = vsel %vm4467, %v4472, %v4471
        %vm4474 = vcmp.lt.s32.totalorder %v1152, 0
        %v4475 = vsub.s32 0, %v1152
        %v4476 = vsel %vm4474, %v4475, %v1152
        %v4477 = vshrl.u32 %v4476, 8
        %v4478 = vand.u32 %v4476, 255
        %v4479 = vsub.s32 0, %v4478
        %v4480 = vsel %vm4474, %v4479, %v4478
        %vm4481 = vcmp.lt.s32.totalorder %v1153, 0
        %v4482 = vsub.s32 0, %v1153
        %v4483 = vsel %vm4481, %v4482, %v1153
        %v4484 = vshrl.u32 %v4483, 8
        %v4485 = vand.u32 %v4483, 255
        %v4486 = vsub.s32 0, %v4485
        %v4487 = vsel %vm4481, %v4486, %v4485
        %vm4488 = vcmp.lt.s32.totalorder %v1154, 0
        %v4489 = vsub.s32 0, %v1154
        %v4490 = vsel %vm4488, %v4489, %v1154
        %v4491 = vshrl.u32 %v4490, 8
        %v4492 = vand.u32 %v4490, 255
        %v4493 = vsub.s32 0, %v4492
        %v4494 = vsel %vm4488, %v4493, %v4492
        %vm4495 = vcmp.lt.s32.totalorder %v1155, 0
        %v4496 = vsub.s32 0, %v1155
        %v4497 = vsel %vm4495, %v4496, %v1155
        %v4498 = vshrl.u32 %v4497, 8
        %v4499 = vand.u32 %v4497, 255
        %v4500 = vsub.s32 0, %v4499
        %v4501 = vsel %vm4495, %v4500, %v4499
        %vm4502 = vcmp.lt.s32.totalorder %v1156, 0
        %v4503 = vsub.s32 0, %v1156
        %v4504 = vsel %vm4502, %v4503, %v1156
        %v4505 = vshrl.u32 %v4504, 8
        %v4506 = vand.u32 %v4504, 255
        %v4507 = vsub.s32 0, %v4506
        %v4508 = vsel %vm4502, %v4507, %v4506
        %vm4509 = vcmp.lt.s32.totalorder %v1157, 0
        %v4510 = vsub.s32 0, %v1157
        %v4511 = vsel %vm4509, %v4510, %v1157
        %v4512 = vshrl.u32 %v4511, 8
        %v4513 = vand.u32 %v4511, 255
        %v4514 = vsub.s32 0, %v4513
        %v4515 = vsel %vm4509, %v4514, %v4513
        %vm4516 = vcmp.lt.s32.totalorder %v1158, 0
        %v4517 = vsub.s32 0, %v1158
        %v4518 = vsel %vm4516, %v4517, %v1158
        %v4519 = vshrl.u32 %v4518, 8
        %v4520 = vand.u32 %v4518, 255
        %v4521 = vsub.s32 0, %v4520
        %v4522 = vsel %vm4516, %v4521, %v4520
        %vm4523 = vcmp.lt.s32.totalorder %v1159, 0
        %v4524 = vsub.s32 0, %v1159
        %v4525 = vsel %vm4523, %v4524, %v1159
        %v4526 = vshrl.u32 %v4525, 8
        %v4527 = vand.u32 %v4525, 255
        %v4528 = vsub.s32 0, %v4527
        %v4529 = vsel %vm4523, %v4528, %v4527
        %vm4530 = vcmp.lt.s32.totalorder %v1160, 0
        %v4531 = vsub.s32 0, %v1160
        %v4532 = vsel %vm4530, %v4531, %v1160
        %v4533 = vshrl.u32 %v4532, 8
        %v4534 = vand.u32 %v4532, 255
        %v4535 = vsub.s32 0, %v4534
        %v4536 = vsel %vm4530, %v4535, %v4534
        %vm4537 = vcmp.lt.s32.totalorder %v1161, 0
        %v4538 = vsub.s32 0, %v1161
        %v4539 = vsel %vm4537, %v4538, %v1161
        %v4540 = vshrl.u32 %v4539, 8
        %v4541 = vand.u32 %v4539, 255
        %v4542 = vsub.s32 0, %v4541
        %v4543 = vsel %vm4537, %v4542, %v4541
        %vm4544 = vcmp.lt.s32.totalorder %v1162, 0
        %v4545 = vsub.s32 0, %v1162
        %v4546 = vsel %vm4544, %v4545, %v1162
        %v4547 = vshrl.u32 %v4546, 8
        %v4548 = vand.u32 %v4546, 255
        %v4549 = vsub.s32 0, %v4548
        %v4550 = vsel %vm4544, %v4549, %v4548
        %vm4551 = vcmp.lt.s32.totalorder %v1163, 0
        %v4552 = vsub.s32 0, %v1163
        %v4553 = vsel %vm4551, %v4552, %v1163
        %v4554 = vshrl.u32 %v4553, 8
        %v4555 = vand.u32 %v4553, 255
        %v4556 = vsub.s32 0, %v4555
        %v4557 = vsel %vm4551, %v4556, %v4555
        %vm4558 = vcmp.lt.s32.totalorder %v1164, 0
        %v4559 = vsub.s32 0, %v1164
        %v4560 = vsel %vm4558, %v4559, %v1164
        %v4561 = vshrl.u32 %v4560, 8
        %v4562 = vand.u32 %v4560, 255
        %v4563 = vsub.s32 0, %v4562
        %v4564 = vsel %vm4558, %v4563, %v4562
        %vm4565 = vcmp.lt.s32.totalorder %v1165, 0
        %v4566 = vsub.s32 0, %v1165
        %v4567 = vsel %vm4565, %v4566, %v1165
        %v4568 = vshrl.u32 %v4567, 8
        %v4569 = vand.u32 %v4567, 255
        %v4570 = vsub.s32 0, %v4569
        %v4571 = vsel %vm4565, %v4570, %v4569
        %vm4572 = vcmp.lt.s32.totalorder %v1166, 0
        %v4573 = vsub.s32 0, %v1166
        %v4574 = vsel %vm4572, %v4573, %v1166
        %v4575 = vshrl.u32 %v4574, 8
        %v4576 = vand.u32 %v4574, 255
        %v4577 = vsub.s32 0, %v4576
        %v4578 = vsel %vm4572, %v4577, %v4576
        %vm4579 = vcmp.lt.s32.totalorder %v1167, 0
        %v4580 = vsub.s32 0, %v1167
        %v4581 = vsel %vm4579, %v4580, %v1167
        %v4582 = vshrl.u32 %v4581, 8
        %v4583 = vand.u32 %v4581, 255
        %v4584 = vsub.s32 0, %v4583
        %v4585 = vsel %vm4579, %v4584, %v4583
        %vm4586 = vcmp.lt.s32.totalorder %v1168, 0
        %v4587 = vsub.s32 0, %v1168
        %v4588 = vsel %vm4586, %v4587, %v1168
        %v4589 = vshrl.u32 %v4588, 8
        %v4590 = vand.u32 %v4588, 255
        %v4591 = vsub.s32 0, %v4590
        %v4592 = vsel %vm4586, %v4591, %v4590
        %vm4593 = vcmp.lt.s32.totalorder %v1169, 0
        %v4594 = vsub.s32 0, %v1169
        %v4595 = vsel %vm4593, %v4594, %v1169
        %v4596 = vshrl.u32 %v4595, 8
        %v4597 = vand.u32 %v4595, 255
        %v4598 = vsub.s32 0, %v4597
        %v4599 = vsel %vm4593, %v4598, %v4597
        %vm4600 = vcmp.lt.s32.totalorder %v1170, 0
        %v4601 = vsub.s32 0, %v1170
        %v4602 = vsel %vm4600, %v4601, %v1170
        %v4603 = vshrl.u32 %v4602, 8
        %v4604 = vand.u32 %v4602, 255
        %v4605 = vsub.s32 0, %v4604
        %v4606 = vsel %vm4600, %v4605, %v4604
        %vm4607 = vcmp.lt.s32.totalorder %v1171, 0
        %v4608 = vsub.s32 0, %v1171
        %v4609 = vsel %vm4607, %v4608, %v1171
        %v4610 = vshrl.u32 %v4609, 8
        %v4611 = vand.u32 %v4609, 255
        %v4612 = vsub.s32 0, %v4611
        %v4613 = vsel %vm4607, %v4612, %v4611
        %vm4614 = vcmp.lt.s32.totalorder %v1172, 0
        %v4615 = vsub.s32 0, %v1172
        %v4616 = vsel %vm4614, %v4615, %v1172
        %v4617 = vshrl.u32 %v4616, 8
        %v4618 = vand.u32 %v4616, 255
        %v4619 = vsub.s32 0, %v4618
        %v4620 = vsel %vm4614, %v4619, %v4618
        %vm4621 = vcmp.lt.s32.totalorder %v1173, 0
        %v4622 = vsub.s32 0, %v1173
        %v4623 = vsel %vm4621, %v4622, %v1173
        %v4624 = vshrl.u32 %v4623, 8
        %v4625 = vand.u32 %v4623, 255
        %v4626 = vsub.s32 0, %v4625
        %v4627 = vsel %vm4621, %v4626, %v4625
        %vm4628 = vcmp.lt.s32.totalorder %v1174, 0
        %v4629 = vsub.s32 0, %v1174
        %v4630 = vsel %vm4628, %v4629, %v1174
        %v4631 = vshrl.u32 %v4630, 8
        %v4632 = vand.u32 %v4630, 255
        %v4633 = vsub.s32 0, %v4632
        %v4634 = vsel %vm4628, %v4633, %v4632
        %vm4635 = vcmp.lt.s32.totalorder %v1175, 0
        %v4636 = vsub.s32 0, %v1175
        %v4637 = vsel %vm4635, %v4636, %v1175
        %v4638 = vshrl.u32 %v4637, 8
        %v4639 = vand.u32 %v4637, 255
        %v4640 = vsub.s32 0, %v4639
        %v4641 = vsel %vm4635, %v4640, %v4639
        %vm4642 = vcmp.lt.s32.totalorder %v1176, 0
        %v4643 = vsub.s32 0, %v1176
        %v4644 = vsel %vm4642, %v4643, %v1176
        %v4645 = vshrl.u32 %v4644, 8
        %v4646 = vand.u32 %v4644, 255
        %v4647 = vsub.s32 0, %v4646
        %v4648 = vsel %vm4642, %v4647, %v4646
        %vm4649 = vcmp.lt.s32.totalorder %v1177, 0
        %v4650 = vsub.s32 0, %v1177
        %v4651 = vsel %vm4649, %v4650, %v1177
        %v4652 = vshrl.u32 %v4651, 8
        %v4653 = vand.u32 %v4651, 255
        %v4654 = vsub.s32 0, %v4653
        %v4655 = vsel %vm4649, %v4654, %v4653
        %vm4656 = vcmp.lt.s32.totalorder %v1178, 0
        %v4657 = vsub.s32 0, %v1178
        %v4658 = vsel %vm4656, %v4657, %v1178
        %v4659 = vshrl.u32 %v4658, 8
        %v4660 = vand.u32 %v4658, 255
        %v4661 = vsub.s32 0, %v4660
        %v4662 = vsel %vm4656, %v4661, %v4660
        %vm4663 = vcmp.lt.s32.totalorder %v1179, 0
        %v4664 = vsub.s32 0, %v1179
        %v4665 = vsel %vm4663, %v4664, %v1179
        %v4666 = vshrl.u32 %v4665, 8
        %v4667 = vand.u32 %v4665, 255
        %v4668 = vsub.s32 0, %v4667
        %v4669 = vsel %vm4663, %v4668, %v4667
        %vm4670 = vcmp.lt.s32.totalorder %v1180, 0
        %v4671 = vsub.s32 0, %v1180
        %v4672 = vsel %vm4670, %v4671, %v1180
        %v4673 = vshrl.u32 %v4672, 8
        %v4674 = vand.u32 %v4672, 255
        %v4675 = vsub.s32 0, %v4674
        %v4676 = vsel %vm4670, %v4675, %v4674
        %vm4677 = vcmp.lt.s32.totalorder %v1181, 0
        %v4678 = vsub.s32 0, %v1181
        %v4679 = vsel %vm4677, %v4678, %v1181
        %v4680 = vshrl.u32 %v4679, 8
        %v4681 = vand.u32 %v4679, 255
        %v4682 = vsub.s32 0, %v4681
        %v4683 = vsel %vm4677, %v4682, %v4681
        %vm4684 = vcmp.lt.s32.totalorder %v1182, 0
        %v4685 = vsub.s32 0, %v1182
        %v4686 = vsel %vm4684, %v4685, %v1182
        %v4687 = vshrl.u32 %v4686, 8
        %v4688 = vand.u32 %v4686, 255
        %v4689 = vsub.s32 0, %v4688
        %v4690 = vsel %vm4684, %v4689, %v4688
        %vm4691 = vcmp.lt.s32.totalorder %v1183, 0
        %v4692 = vsub.s32 0, %v1183
        %v4693 = vsel %vm4691, %v4692, %v1183
        %v4694 = vshrl.u32 %v4693, 8
        %v4695 = vand.u32 %v4693, 255
        %v4696 = vsub.s32 0, %v4695
        %v4697 = vsel %vm4691, %v4696, %v4695
        %vm4698 = vcmp.lt.s32.totalorder %v1184, 0
        %v4699 = vsub.s32 0, %v1184
        %v4700 = vsel %vm4698, %v4699, %v1184
        %v4701 = vshrl.u32 %v4700, 8
        %v4702 = vand.u32 %v4700, 255
        %v4703 = vsub.s32 0, %v4702
        %v4704 = vsel %vm4698, %v4703, %v4702
        %vm4705 = vcmp.lt.s32.totalorder %v1185, 0
        %v4706 = vsub.s32 0, %v1185
        %v4707 = vsel %vm4705, %v4706, %v1185
        %v4708 = vshrl.u32 %v4707, 8
        %v4709 = vand.u32 %v4707, 255
        %v4710 = vsub.s32 0, %v4709
        %v4711 = vsel %vm4705, %v4710, %v4709
        %vm4712 = vcmp.lt.s32.totalorder %v1186, 0
        %v4713 = vsub.s32 0, %v1186
        %v4714 = vsel %vm4712, %v4713, %v1186
        %v4715 = vshrl.u32 %v4714, 8
        %v4716 = vand.u32 %v4714, 255
        %v4717 = vsub.s32 0, %v4716
        %v4718 = vsel %vm4712, %v4717, %v4716
        %vm4719 = vcmp.lt.s32.totalorder %v1187, 0
        %v4720 = vsub.s32 0, %v1187
        %v4721 = vsel %vm4719, %v4720, %v1187
        %v4722 = vshrl.u32 %v4721, 8
        %v4723 = vand.u32 %v4721, 255
        %v4724 = vsub.s32 0, %v4723
        %v4725 = vsel %vm4719, %v4724, %v4723
        %vm4726 = vcmp.lt.s32.totalorder %v1188, 0
        %v4727 = vsub.s32 0, %v1188
        %v4728 = vsel %vm4726, %v4727, %v1188
        %v4729 = vshrl.u32 %v4728, 8
        %v4730 = vand.u32 %v4728, 255
        %v4731 = vsub.s32 0, %v4730
        %v4732 = vsel %vm4726, %v4731, %v4730
        %vm4733 = vcmp.lt.s32.totalorder %v1189, 0
        %v4734 = vsub.s32 0, %v1189
        %v4735 = vsel %vm4733, %v4734, %v1189
        %v4736 = vshrl.u32 %v4735, 8
        %v4737 = vand.u32 %v4735, 255
        %v4738 = vsub.s32 0, %v4737
        %v4739 = vsel %vm4733, %v4738, %v4737
        %vm4740 = vcmp.lt.s32.totalorder %v1190, 0
        %v4741 = vsub.s32 0, %v1190
        %v4742 = vsel %vm4740, %v4741, %v1190
        %v4743 = vshrl.u32 %v4742, 8
        %v4744 = vand.u32 %v4742, 255
        %v4745 = vsub.s32 0, %v4744
        %v4746 = vsel %vm4740, %v4745, %v4744
        %vm4747 = vcmp.lt.s32.totalorder %v1191, 0
        %v4748 = vsub.s32 0, %v1191
        %v4749 = vsel %vm4747, %v4748, %v1191
        %v4750 = vshrl.u32 %v4749, 8
        %v4751 = vand.u32 %v4749, 255
        %v4752 = vsub.s32 0, %v4751
        %v4753 = vsel %vm4747, %v4752, %v4751
        %vm4754 = vcmp.lt.s32.totalorder %v1192, 0
        %v4755 = vsub.s32 0, %v1192
        %v4756 = vsel %vm4754, %v4755, %v1192
        %v4757 = vshrl.u32 %v4756, 8
        %v4758 = vand.u32 %v4756, 255
        %v4759 = vsub.s32 0, %v4758
        %v4760 = vsel %vm4754, %v4759, %v4758
        %vm4761 = vcmp.lt.s32.totalorder %v1193, 0
        %v4762 = vsub.s32 0, %v1193
        %v4763 = vsel %vm4761, %v4762, %v1193
        %v4764 = vshrl.u32 %v4763, 8
        %v4765 = vand.u32 %v4763, 255
        %v4766 = vsub.s32 0, %v4765
        %v4767 = vsel %vm4761, %v4766, %v4765
        %vm4768 = vcmp.lt.s32.totalorder %v1194, 0
        %v4769 = vsub.s32 0, %v1194
        %v4770 = vsel %vm4768, %v4769, %v1194
        %v4771 = vshrl.u32 %v4770, 8
        %v4772 = vand.u32 %v4770, 255
        %v4773 = vsub.s32 0, %v4772
        %v4774 = vsel %vm4768, %v4773, %v4772
        %vm4775 = vcmp.lt.s32.totalorder %v1195, 0
        %v4776 = vsub.s32 0, %v1195
        %v4777 = vsel %vm4775, %v4776, %v1195
        %v4778 = vshrl.u32 %v4777, 8
        %v4779 = vand.u32 %v4777, 255
        %v4780 = vsub.s32 0, %v4779
        %v4781 = vsel %vm4775, %v4780, %v4779
        %vm4782 = vcmp.lt.s32.totalorder %v1196, 0
        %v4783 = vsub.s32 0, %v1196
        %v4784 = vsel %vm4782, %v4783, %v1196
        %v4785 = vshrl.u32 %v4784, 8
        %v4786 = vand.u32 %v4784, 255
        %v4787 = vsub.s32 0, %v4786
        %v4788 = vsel %vm4782, %v4787, %v4786
        %vm4789 = vcmp.lt.s32.totalorder %v1197, 0
        %v4790 = vsub.s32 0, %v1197
        %v4791 = vsel %vm4789, %v4790, %v1197
        %v4792 = vshrl.u32 %v4791, 8
        %v4793 = vand.u32 %v4791, 255
        %v4794 = vsub.s32 0, %v4793
        %v4795 = vsel %vm4789, %v4794, %v4793
        %vm4796 = vcmp.lt.s32.totalorder %v1198, 0
        %v4797 = vsub.s32 0, %v1198
        %v4798 = vsel %vm4796, %v4797, %v1198
        %v4799 = vshrl.u32 %v4798, 8
        %v4800 = vand.u32 %v4798, 255
        %v4801 = vsub.s32 0, %v4800
        %v4802 = vsel %vm4796, %v4801, %v4800
        %vm4803 = vcmp.lt.s32.totalorder %v1199, 0
        %v4804 = vsub.s32 0, %v1199
        %v4805 = vsel %vm4803, %v4804, %v1199
        %v4806 = vshrl.u32 %v4805, 8
        %v4807 = vand.u32 %v4805, 255
        %v4808 = vsub.s32 0, %v4807
        %v4809 = vsel %vm4803, %v4808, %v4807
        %vm4810 = vcmp.lt.s32.totalorder %v1200, 0
        %v4811 = vsub.s32 0, %v1200
        %v4812 = vsel %vm4810, %v4811, %v1200
        %v4813 = vshrl.u32 %v4812, 8
        %v4814 = vand.u32 %v4812, 255
        %v4815 = vsub.s32 0, %v4814
        %v4816 = vsel %vm4810, %v4815, %v4814
        %vm4817 = vcmp.lt.s32.totalorder %v1201, 0
        %v4818 = vsub.s32 0, %v1201
        %v4819 = vsel %vm4817, %v4818, %v1201
        %v4820 = vshrl.u32 %v4819, 8
        %v4821 = vand.u32 %v4819, 255
        %v4822 = vsub.s32 0, %v4821
        %v4823 = vsel %vm4817, %v4822, %v4821
        %vm4824 = vcmp.lt.s32.totalorder %v1202, 0
        %v4825 = vsub.s32 0, %v1202
        %v4826 = vsel %vm4824, %v4825, %v1202
        %v4827 = vshrl.u32 %v4826, 8
        %v4828 = vand.u32 %v4826, 255
        %v4829 = vsub.s32 0, %v4828
        %v4830 = vsel %vm4824, %v4829, %v4828
        %vm4831 = vcmp.lt.s32.totalorder %v1203, 0
        %v4832 = vsub.s32 0, %v1203
        %v4833 = vsel %vm4831, %v4832, %v1203
        %v4834 = vshrl.u32 %v4833, 8
        %v4835 = vand.u32 %v4833, 255
        %v4836 = vsub.s32 0, %v4835
        %v4837 = vsel %vm4831, %v4836, %v4835
        %vm4838 = vcmp.lt.s32.totalorder %v1204, 0
        %v4839 = vsub.s32 0, %v1204
        %v4840 = vsel %vm4838, %v4839, %v1204
        %v4841 = vshrl.u32 %v4840, 8
        %v4842 = vand.u32 %v4840, 255
        %v4843 = vsub.s32 0, %v4842
        %v4844 = vsel %vm4838, %v4843, %v4842
        %vm4845 = vcmp.lt.s32.totalorder %v1205, 0
        %v4846 = vsub.s32 0, %v1205
        %v4847 = vsel %vm4845, %v4846, %v1205
        %v4848 = vshrl.u32 %v4847, 8
        %v4849 = vand.u32 %v4847, 255
        %v4850 = vsub.s32 0, %v4849
        %v4851 = vsel %vm4845, %v4850, %v4849
        %vm4852 = vcmp.lt.s32.totalorder %v1206, 0
        %v4853 = vsub.s32 0, %v1206
        %v4854 = vsel %vm4852, %v4853, %v1206
        %v4855 = vshrl.u32 %v4854, 8
        %v4856 = vand.u32 %v4854, 255
        %v4857 = vsub.s32 0, %v4856
        %v4858 = vsel %vm4852, %v4857, %v4856
        %vm4859 = vcmp.lt.s32.totalorder %v1207, 0
        %v4860 = vsub.s32 0, %v1207
        %v4861 = vsel %vm4859, %v4860, %v1207
        %v4862 = vshrl.u32 %v4861, 8
        %v4863 = vand.u32 %v4861, 255
        %v4864 = vsub.s32 0, %v4863
        %v4865 = vsel %vm4859, %v4864, %v4863
        %vm4866 = vcmp.lt.s32.totalorder %v1208, 0
        %v4867 = vsub.s32 0, %v1208
        %v4868 = vsel %vm4866, %v4867, %v1208
        %v4869 = vshrl.u32 %v4868, 8
        %v4870 = vand.u32 %v4868, 255
        %v4871 = vsub.s32 0, %v4870
        %v4872 = vsel %vm4866, %v4871, %v4870
        %vm4873 = vcmp.lt.s32.totalorder %v1209, 0
        %v4874 = vsub.s32 0, %v1209
        %v4875 = vsel %vm4873, %v4874, %v1209
        %v4876 = vshrl.u32 %v4875, 8
        %v4877 = vand.u32 %v4875, 255
        %v4878 = vsub.s32 0, %v4877
        %v4879 = vsel %vm4873, %v4878, %v4877
        %vm4880 = vcmp.ne.s32.totalorder %v4438, 0
        %vm4881 = vcmp.ne.s32.totalorder %v4445, 0
        %vm4882 = vcmp.ne.s32.totalorder %v4452, 0
        %vm4883 = vcmp.ne.s32.totalorder %v4459, 0
        %vm4884 = vcmp.ne.s32.totalorder %v4466, 0
        %vm4885 = vcmp.ne.s32.totalorder %v4473, 0
        %vm4886 = vcmp.ne.s32.totalorder %v4480, 0
        %vm4887 = vcmp.ne.s32.totalorder %v4487, 0
        %vm4888 = vcmp.ne.s32.totalorder %v4494, 0
        %vm4889 = vcmp.ne.s32.totalorder %v4501, 0
        %vm4890 = vcmp.ne.s32.totalorder %v4508, 0
        %vm4891 = vcmp.ne.s32.totalorder %v4515, 0
        %vm4892 = vcmp.ne.s32.totalorder %v4522, 0
        %vm4893 = vcmp.ne.s32.totalorder %v4529, 0
        %vm4894 = vcmp.ne.s32.totalorder %v4536, 0
        %vm4895 = vcmp.ne.s32.totalorder %v4543, 0
        %vm4896 = vcmp.ne.s32.totalorder %v4550, 0
        %vm4897 = vcmp.ne.s32.totalorder %v4557, 0
        %vm4898 = vcmp.ne.s32.totalorder %v4564, 0
        %vm4899 = vcmp.ne.s32.totalorder %v4571, 0
        %vm4900 = vcmp.ne.s32.totalorder %v4578, 0
        %vm4901 = vcmp.ne.s32.totalorder %v4585, 0
        %vm4902 = vcmp.ne.s32.totalorder %v4592, 0
        %vm4903 = vcmp.ne.s32.totalorder %v4599, 0
        %vm4904 = vcmp.ne.s32.totalorder %v4606, 0
        %vm4905 = vcmp.ne.s32.totalorder %v4613, 0
        %vm4906 = vcmp.ne.s32.totalorder %v4620, 0
        %vm4907 = vcmp.ne.s32.totalorder %v4627, 0
        %vm4908 = vcmp.ne.s32.totalorder %v4634, 0
        %vm4909 = vcmp.ne.s32.totalorder %v4641, 0
        %vm4910 = vcmp.ne.s32.totalorder %v4648, 0
        %vm4911 = vcmp.ne.s32.totalorder %v4655, 0
        %vm4912 = vcmp.ne.s32.totalorder %v4662, 0
        %vm4913 = vcmp.ne.s32.totalorder %v4669, 0
        %vm4914 = vcmp.ne.s32.totalorder %v4676, 0
        %vm4915 = vcmp.ne.s32.totalorder %v4683, 0
        %vm4916 = vcmp.ne.s32.totalorder %v4690, 0
        %vm4917 = vcmp.ne.s32.totalorder %v4697, 0
        %vm4918 = vcmp.ne.s32.totalorder %v4704, 0
        %vm4919 = vcmp.ne.s32.totalorder %v4711, 0
        %vm4920 = vcmp.ne.s32.totalorder %v4718, 0
        %vm4921 = vcmp.ne.s32.totalorder %v4725, 0
        %vm4922 = vcmp.ne.s32.totalorder %v4732, 0
        %vm4923 = vcmp.ne.s32.totalorder %v4739, 0
        %vm4924 = vcmp.ne.s32.totalorder %v4746, 0
        %vm4925 = vcmp.ne.s32.totalorder %v4753, 0
        %vm4926 = vcmp.ne.s32.totalorder %v4760, 0
        %vm4927 = vcmp.ne.s32.totalorder %v4767, 0
        %vm4928 = vcmp.ne.s32.totalorder %v4774, 0
        %vm4929 = vcmp.ne.s32.totalorder %v4781, 0
        %vm4930 = vcmp.ne.s32.totalorder %v4788, 0
        %vm4931 = vcmp.ne.s32.totalorder %v4795, 0
        %vm4932 = vcmp.ne.s32.totalorder %v4802, 0
        %vm4933 = vcmp.ne.s32.totalorder %v4809, 0
        %vm4934 = vcmp.ne.s32.totalorder %v4816, 0
        %vm4935 = vcmp.ne.s32.totalorder %v4823, 0
        %vm4936 = vcmp.ne.s32.totalorder %v4830, 0
        %vm4937 = vcmp.ne.s32.totalorder %v4837, 0
        %vm4938 = vcmp.ne.s32.totalorder %v4844, 0
        %vm4939 = vcmp.ne.s32.totalorder %v4851, 0
        %vm4940 = vcmp.ne.s32.totalorder %v4858, 0
        %vm4941 = vcmp.ne.s32.totalorder %v4865, 0
        %vm4942 = vcmp.ne.s32.totalorder %v4872, 0
        %vm4943 = vcmp.ne.s32.totalorder %v4879, 0
        %vm4944 = vcmp.lt.s32.totalorder %v4438, 0
        %vm4945 = vcmp.lt.s32.totalorder %v4445, 0
        %vm4946 = vcmp.lt.s32.totalorder %v4452, 0
        %vm4947 = vcmp.lt.s32.totalorder %v4459, 0
        %vm4948 = vcmp.lt.s32.totalorder %v4466, 0
        %vm4949 = vcmp.lt.s32.totalorder %v4473, 0
        %vm4950 = vcmp.lt.s32.totalorder %v4480, 0
        %vm4951 = vcmp.lt.s32.totalorder %v4487, 0
        %vm4952 = vcmp.lt.s32.totalorder %v4494, 0
        %vm4953 = vcmp.lt.s32.totalorder %v4501, 0
        %vm4954 = vcmp.lt.s32.totalorder %v4508, 0
        %vm4955 = vcmp.lt.s32.totalorder %v4515, 0
        %vm4956 = vcmp.lt.s32.totalorder %v4522, 0
        %vm4957 = vcmp.lt.s32.totalorder %v4529, 0
        %vm4958 = vcmp.lt.s32.totalorder %v4536, 0
        %vm4959 = vcmp.lt.s32.totalorder %v4543, 0
        %vm4960 = vcmp.lt.s32.totalorder %v4550, 0
        %vm4961 = vcmp.lt.s32.totalorder %v4557, 0
        %vm4962 = vcmp.lt.s32.totalorder %v4564, 0
        %vm4963 = vcmp.lt.s32.totalorder %v4571, 0
        %vm4964 = vcmp.lt.s32.totalorder %v4578, 0
        %vm4965 = vcmp.lt.s32.totalorder %v4585, 0
        %vm4966 = vcmp.lt.s32.totalorder %v4592, 0
        %vm4967 = vcmp.lt.s32.totalorder %v4599, 0
        %vm4968 = vcmp.lt.s32.totalorder %v4606, 0
        %vm4969 = vcmp.lt.s32.totalorder %v4613, 0
        %vm4970 = vcmp.lt.s32.totalorder %v4620, 0
        %vm4971 = vcmp.lt.s32.totalorder %v4627, 0
        %vm4972 = vcmp.lt.s32.totalorder %v4634, 0
        %vm4973 = vcmp.lt.s32.totalorder %v4641, 0
        %vm4974 = vcmp.lt.s32.totalorder %v4648, 0
        %vm4975 = vcmp.lt.s32.totalorder %v4655, 0
        %vm4976 = vcmp.lt.s32.totalorder %v4662, 0
        %vm4977 = vcmp.lt.s32.totalorder %v4669, 0
        %vm4978 = vcmp.lt.s32.totalorder %v4676, 0
        %vm4979 = vcmp.lt.s32.totalorder %v4683, 0
        %vm4980 = vcmp.lt.s32.totalorder %v4690, 0
        %vm4981 = vcmp.lt.s32.totalorder %v4697, 0
        %vm4982 = vcmp.lt.s32.totalorder %v4704, 0
        %vm4983 = vcmp.lt.s32.totalorder %v4711, 0
        %vm4984 = vcmp.lt.s32.totalorder %v4718, 0
        %vm4985 = vcmp.lt.s32.totalorder %v4725, 0
        %vm4986 = vcmp.lt.s32.totalorder %v4732, 0
        %vm4987 = vcmp.lt.s32.totalorder %v4739, 0
        %vm4988 = vcmp.lt.s32.totalorder %v4746, 0
        %vm4989 = vcmp.lt.s32.totalorder %v4753, 0
        %vm4990 = vcmp.lt.s32.totalorder %v4760, 0
        %vm4991 = vcmp.lt.s32.totalorder %v4767, 0
        %vm4992 = vcmp.lt.s32.totalorder %v4774, 0
        %vm4993 = vcmp.lt.s32.totalorder %v4781, 0
        %vm4994 = vcmp.lt.s32.totalorder %v4788, 0
        %vm4995 = vcmp.lt.s32.totalorder %v4795, 0
        %vm4996 = vcmp.lt.s32.totalorder %v4802, 0
        %vm4997 = vcmp.lt.s32.totalorder %v4809, 0
        %vm4998 = vcmp.lt.s32.totalorder %v4816, 0
        %vm4999 = vcmp.lt.s32.totalorder %v4823, 0
        %vm5000 = vcmp.lt.s32.totalorder %v4830, 0
        %vm5001 = vcmp.lt.s32.totalorder %v4837, 0
        %vm5002 = vcmp.lt.s32.totalorder %v4844, 0
        %vm5003 = vcmp.lt.s32.totalorder %v4851, 0
        %vm5004 = vcmp.lt.s32.totalorder %v4858, 0
        %vm5005 = vcmp.lt.s32.totalorder %v4865, 0
        %vm5006 = vcmp.lt.s32.totalorder %v4872, 0
        %vm5007 = vcmp.lt.s32.totalorder %v4879, 0
        %vm5008 = vmand %vm4944, %vm4880
        %vm5009 = vmand %vm4945, %vm4881
        %vm5010 = vmand %vm4946, %vm4882
        %vm5011 = vmand %vm4947, %vm4883
        %vm5012 = vmand %vm4948, %vm4884
        %vm5013 = vmand %vm4949, %vm4885
        %vm5014 = vmand %vm4950, %vm4886
        %vm5015 = vmand %vm4951, %vm4887
        %vm5016 = vmand %vm4952, %vm4888
        %vm5017 = vmand %vm4953, %vm4889
        %vm5018 = vmand %vm4954, %vm4890
        %vm5019 = vmand %vm4955, %vm4891
        %vm5020 = vmand %vm4956, %vm4892
        %vm5021 = vmand %vm4957, %vm4893
        %vm5022 = vmand %vm4958, %vm4894
        %vm5023 = vmand %vm4959, %vm4895
        %vm5024 = vmand %vm4960, %vm4896
        %vm5025 = vmand %vm4961, %vm4897
        %vm5026 = vmand %vm4962, %vm4898
        %vm5027 = vmand %vm4963, %vm4899
        %vm5028 = vmand %vm4964, %vm4900
        %vm5029 = vmand %vm4965, %vm4901
        %vm5030 = vmand %vm4966, %vm4902
        %vm5031 = vmand %vm4967, %vm4903
        %vm5032 = vmand %vm4968, %vm4904
        %vm5033 = vmand %vm4969, %vm4905
        %vm5034 = vmand %vm4970, %vm4906
        %vm5035 = vmand %vm4971, %vm4907
        %vm5036 = vmand %vm4972, %vm4908
        %vm5037 = vmand %vm4973, %vm4909
        %vm5038 = vmand %vm4974, %vm4910
        %vm5039 = vmand %vm4975, %vm4911
        %vm5040 = vmand %vm4976, %vm4912
        %vm5041 = vmand %vm4977, %vm4913
        %vm5042 = vmand %vm4978, %vm4914
        %vm5043 = vmand %vm4979, %vm4915
        %vm5044 = vmand %vm4980, %vm4916
        %vm5045 = vmand %vm4981, %vm4917
        %vm5046 = vmand %vm4982, %vm4918
        %vm5047 = vmand %vm4983, %vm4919
        %vm5048 = vmand %vm4984, %vm4920
        %vm5049 = vmand %vm4985, %vm4921
        %vm5050 = vmand %vm4986, %vm4922
        %vm5051 = vmand %vm4987, %vm4923
        %vm5052 = vmand %vm4988, %vm4924
        %vm5053 = vmand %vm4989, %vm4925
        %vm5054 = vmand %vm4990, %vm4926
        %vm5055 = vmand %vm4991, %vm4927
        %vm5056 = vmand %vm4992, %vm4928
        %vm5057 = vmand %vm4993, %vm4929
        %vm5058 = vmand %vm4994, %vm4930
        %vm5059 = vmand %vm4995, %vm4931
        %vm5060 = vmand %vm4996, %vm4932
        %vm5061 = vmand %vm4997, %vm4933
        %vm5062 = vmand %vm4998, %vm4934
        %vm5063 = vmand %vm4999, %vm4935
        %vm5064 = vmand %vm5000, %vm4936
        %vm5065 = vmand %vm5001, %vm4937
        %vm5066 = vmand %vm5002, %vm4938
        %vm5067 = vmand %vm5003, %vm4939
        %vm5068 = vmand %vm5004, %vm4940
        %vm5069 = vmand %vm5005, %vm4941
        %vm5070 = vmand %vm5006, %vm4942
        %vm5071 = vmand %vm5007, %vm4943
        %v5072 = vadd.s32 %v4438, 256
        %v5073 = vadd.s32 %v4445, 256
        %v5074 = vadd.s32 %v4452, 256
        %v5075 = vadd.s32 %v4459, 256
        %v5076 = vadd.s32 %v4466, 256
        %v5077 = vadd.s32 %v4473, 256
        %v5078 = vadd.s32 %v4480, 256
        %v5079 = vadd.s32 %v4487, 256
        %v5080 = vadd.s32 %v4494, 256
        %v5081 = vadd.s32 %v4501, 256
        %v5082 = vadd.s32 %v4508, 256
        %v5083 = vadd.s32 %v4515, 256
        %v5084 = vadd.s32 %v4522, 256
        %v5085 = vadd.s32 %v4529, 256
        %v5086 = vadd.s32 %v4536, 256
        %v5087 = vadd.s32 %v4543, 256
        %v5088 = vadd.s32 %v4550, 256
        %v5089 = vadd.s32 %v4557, 256
        %v5090 = vadd.s32 %v4564, 256
        %v5091 = vadd.s32 %v4571, 256
        %v5092 = vadd.s32 %v4578, 256
        %v5093 = vadd.s32 %v4585, 256
        %v5094 = vadd.s32 %v4592, 256
        %v5095 = vadd.s32 %v4599, 256
        %v5096 = vadd.s32 %v4606, 256
        %v5097 = vadd.s32 %v4613, 256
        %v5098 = vadd.s32 %v4620, 256
        %v5099 = vadd.s32 %v4627, 256
        %v5100 = vadd.s32 %v4634, 256
        %v5101 = vadd.s32 %v4641, 256
        %v5102 = vadd.s32 %v4648, 256
        %v5103 = vadd.s32 %v4655, 256
        %v5104 = vadd.s32 %v4662, 256
        %v5105 = vadd.s32 %v4669, 256
        %v5106 = vadd.s32 %v4676, 256
        %v5107 = vadd.s32 %v4683, 256
        %v5108 = vadd.s32 %v4690, 256
        %v5109 = vadd.s32 %v4697, 256
        %v5110 = vadd.s32 %v4704, 256
        %v5111 = vadd.s32 %v4711, 256
        %v5112 = vadd.s32 %v4718, 256
        %v5113 = vadd.s32 %v4725, 256
        %v5114 = vadd.s32 %v4732, 256
        %v5115 = vadd.s32 %v4739, 256
        %v5116 = vadd.s32 %v4746, 256
        %v5117 = vadd.s32 %v4753, 256
        %v5118 = vadd.s32 %v4760, 256
        %v5119 = vadd.s32 %v4767, 256
        %v5120 = vadd.s32 %v4774, 256
        %v5121 = vadd.s32 %v4781, 256
        %v5122 = vadd.s32 %v4788, 256
        %v5123 = vadd.s32 %v4795, 256
        %v5124 = vadd.s32 %v4802, 256
        %v5125 = vadd.s32 %v4809, 256
        %v5126 = vadd.s32 %v4816, 256
        %v5127 = vadd.s32 %v4823, 256
        %v5128 = vadd.s32 %v4830, 256
        %v5129 = vadd.s32 %v4837, 256
        %v5130 = vadd.s32 %v4844, 256
        %v5131 = vadd.s32 %v4851, 256
        %v5132 = vadd.s32 %v4858, 256
        %v5133 = vadd.s32 %v4865, 256
        %v5134 = vadd.s32 %v4872, 256
        %v5135 = vadd.s32 %v4879, 256
        %v5136 = vsel %vm5008, %v5072, %v4438
        %v5137 = vsel %vm5009, %v5073, %v4445
        %v5138 = vsel %vm5010, %v5074, %v4452
        %v5139 = vsel %vm5011, %v5075, %v4459
        %v5140 = vsel %vm5012, %v5076, %v4466
        %v5141 = vsel %vm5013, %v5077, %v4473
        %v5142 = vsel %vm5014, %v5078, %v4480
        %v5143 = vsel %vm5015, %v5079, %v4487
        %v5144 = vsel %vm5016, %v5080, %v4494
        %v5145 = vsel %vm5017, %v5081, %v4501
        %v5146 = vsel %vm5018, %v5082, %v4508
        %v5147 = vsel %vm5019, %v5083, %v4515
        %v5148 = vsel %vm5020, %v5084, %v4522
        %v5149 = vsel %vm5021, %v5085, %v4529
        %v5150 = vsel %vm5022, %v5086, %v4536
        %v5151 = vsel %vm5023, %v5087, %v4543
        %v5152 = vsel %vm5024, %v5088, %v4550
        %v5153 = vsel %vm5025, %v5089, %v4557
        %v5154 = vsel %vm5026, %v5090, %v4564
        %v5155 = vsel %vm5027, %v5091, %v4571
        %v5156 = vsel %vm5028, %v5092, %v4578
        %v5157 = vsel %vm5029, %v5093, %v4585
        %v5158 = vsel %vm5030, %v5094, %v4592
        %v5159 = vsel %vm5031, %v5095, %v4599
        %v5160 = vsel %vm5032, %v5096, %v4606
        %v5161 = vsel %vm5033, %v5097, %v4613
        %v5162 = vsel %vm5034, %v5098, %v4620
        %v5163 = vsel %vm5035, %v5099, %v4627
        %v5164 = vsel %vm5036, %v5100, %v4634
        %v5165 = vsel %vm5037, %v5101, %v4641
        %v5166 = vsel %vm5038, %v5102, %v4648
        %v5167 = vsel %vm5039, %v5103, %v4655
        %v5168 = vsel %vm5040, %v5104, %v4662
        %v5169 = vsel %vm5041, %v5105, %v4669
        %v5170 = vsel %vm5042, %v5106, %v4676
        %v5171 = vsel %vm5043, %v5107, %v4683
        %v5172 = vsel %vm5044, %v5108, %v4690
        %v5173 = vsel %vm5045, %v5109, %v4697
        %v5174 = vsel %vm5046, %v5110, %v4704
        %v5175 = vsel %vm5047, %v5111, %v4711
        %v5176 = vsel %vm5048, %v5112, %v4718
        %v5177 = vsel %vm5049, %v5113, %v4725
        %v5178 = vsel %vm5050, %v5114, %v4732
        %v5179 = vsel %vm5051, %v5115, %v4739
        %v5180 = vsel %vm5052, %v5116, %v4746
        %v5181 = vsel %vm5053, %v5117, %v4753
        %v5182 = vsel %vm5054, %v5118, %v4760
        %v5183 = vsel %vm5055, %v5119, %v4767
        %v5184 = vsel %vm5056, %v5120, %v4774
        %v5185 = vsel %vm5057, %v5121, %v4781
        %v5186 = vsel %vm5058, %v5122, %v4788
        %v5187 = vsel %vm5059, %v5123, %v4795
        %v5188 = vsel %vm5060, %v5124, %v4802
        %v5189 = vsel %vm5061, %v5125, %v4809
        %v5190 = vsel %vm5062, %v5126, %v4816
        %v5191 = vsel %vm5063, %v5127, %v4823
        %v5192 = vsel %vm5064, %v5128, %v4830
        %v5193 = vsel %vm5065, %v5129, %v4837
        %v5194 = vsel %vm5066, %v5130, %v4844
        %v5195 = vsel %vm5067, %v5131, %v4851
        %v5196 = vsel %vm5068, %v5132, %v4858
        %v5197 = vsel %vm5069, %v5133, %v4865
        %v5198 = vsel %vm5070, %v5134, %v4872
        %v5199 = vsel %vm5071, %v5135, %v4879
        %vm5200 = vcmp.ge.s32.totalorder %v5136, 16
        %vm5201 = vcmp.ge.s32.totalorder %v5137, 16
        %vm5202 = vcmp.ge.s32.totalorder %v5138, 16
        %vm5203 = vcmp.ge.s32.totalorder %v5139, 16
        %vm5204 = vcmp.ge.s32.totalorder %v5140, 16
        %vm5205 = vcmp.ge.s32.totalorder %v5141, 16
        %vm5206 = vcmp.ge.s32.totalorder %v5142, 16
        %vm5207 = vcmp.ge.s32.totalorder %v5143, 16
        %vm5208 = vcmp.ge.s32.totalorder %v5144, 16
        %vm5209 = vcmp.ge.s32.totalorder %v5145, 16
        %vm5210 = vcmp.ge.s32.totalorder %v5146, 16
        %vm5211 = vcmp.ge.s32.totalorder %v5147, 16
        %vm5212 = vcmp.ge.s32.totalorder %v5148, 16
        %vm5213 = vcmp.ge.s32.totalorder %v5149, 16
        %vm5214 = vcmp.ge.s32.totalorder %v5150, 16
        %vm5215 = vcmp.ge.s32.totalorder %v5151, 16
        %vm5216 = vcmp.ge.s32.totalorder %v5152, 16
        %vm5217 = vcmp.ge.s32.totalorder %v5153, 16
        %vm5218 = vcmp.ge.s32.totalorder %v5154, 16
        %vm5219 = vcmp.ge.s32.totalorder %v5155, 16
        %vm5220 = vcmp.ge.s32.totalorder %v5156, 16
        %vm5221 = vcmp.ge.s32.totalorder %v5157, 16
        %vm5222 = vcmp.ge.s32.totalorder %v5158, 16
        %vm5223 = vcmp.ge.s32.totalorder %v5159, 16
        %vm5224 = vcmp.ge.s32.totalorder %v5160, 16
        %vm5225 = vcmp.ge.s32.totalorder %v5161, 16
        %vm5226 = vcmp.ge.s32.totalorder %v5162, 16
        %vm5227 = vcmp.ge.s32.totalorder %v5163, 16
        %vm5228 = vcmp.ge.s32.totalorder %v5164, 16
        %vm5229 = vcmp.ge.s32.totalorder %v5165, 16
        %vm5230 = vcmp.ge.s32.totalorder %v5166, 16
        %vm5231 = vcmp.ge.s32.totalorder %v5167, 16
        %vm5232 = vcmp.ge.s32.totalorder %v5168, 16
        %vm5233 = vcmp.ge.s32.totalorder %v5169, 16
        %vm5234 = vcmp.ge.s32.totalorder %v5170, 16
        %vm5235 = vcmp.ge.s32.totalorder %v5171, 16
        %vm5236 = vcmp.ge.s32.totalorder %v5172, 16
        %vm5237 = vcmp.ge.s32.totalorder %v5173, 16
        %vm5238 = vcmp.ge.s32.totalorder %v5174, 16
        %vm5239 = vcmp.ge.s32.totalorder %v5175, 16
        %vm5240 = vcmp.ge.s32.totalorder %v5176, 16
        %vm5241 = vcmp.ge.s32.totalorder %v5177, 16
        %vm5242 = vcmp.ge.s32.totalorder %v5178, 16
        %vm5243 = vcmp.ge.s32.totalorder %v5179, 16
        %vm5244 = vcmp.ge.s32.totalorder %v5180, 16
        %vm5245 = vcmp.ge.s32.totalorder %v5181, 16
        %vm5246 = vcmp.ge.s32.totalorder %v5182, 16
        %vm5247 = vcmp.ge.s32.totalorder %v5183, 16
        %vm5248 = vcmp.ge.s32.totalorder %v5184, 16
        %vm5249 = vcmp.ge.s32.totalorder %v5185, 16
        %vm5250 = vcmp.ge.s32.totalorder %v5186, 16
        %vm5251 = vcmp.ge.s32.totalorder %v5187, 16
        %vm5252 = vcmp.ge.s32.totalorder %v5188, 16
        %vm5253 = vcmp.ge.s32.totalorder %v5189, 16
        %vm5254 = vcmp.ge.s32.totalorder %v5190, 16
        %vm5255 = vcmp.ge.s32.totalorder %v5191, 16
        %vm5256 = vcmp.ge.s32.totalorder %v5192, 16
        %vm5257 = vcmp.ge.s32.totalorder %v5193, 16
        %vm5258 = vcmp.ge.s32.totalorder %v5194, 16
        %vm5259 = vcmp.ge.s32.totalorder %v5195, 16
        %vm5260 = vcmp.ge.s32.totalorder %v5196, 16
        %vm5261 = vcmp.ge.s32.totalorder %v5197, 16
        %vm5262 = vcmp.ge.s32.totalorder %v5198, 16
        %vm5263 = vcmp.ge.s32.totalorder %v5199, 16
        %v5264 = vsel %vm5200, 1, 0
        %v5265 = vsel %vm5201, 1, 0
        %v5266 = vsel %vm5202, 1, 0
        %v5267 = vsel %vm5203, 1, 0
        %v5268 = vsel %vm5204, 1, 0
        %v5269 = vsel %vm5205, 1, 0
        %v5270 = vsel %vm5206, 1, 0
        %v5271 = vsel %vm5207, 1, 0
        %v5272 = vsel %vm5208, 1, 0
        %v5273 = vsel %vm5209, 1, 0
        %v5274 = vsel %vm5210, 1, 0
        %v5275 = vsel %vm5211, 1, 0
        %v5276 = vsel %vm5212, 1, 0
        %v5277 = vsel %vm5213, 1, 0
        %v5278 = vsel %vm5214, 1, 0
        %v5279 = vsel %vm5215, 1, 0
        %v5280 = vsel %vm5216, 1, 0
        %v5281 = vsel %vm5217, 1, 0
        %v5282 = vsel %vm5218, 1, 0
        %v5283 = vsel %vm5219, 1, 0
        %v5284 = vsel %vm5220, 1, 0
        %v5285 = vsel %vm5221, 1, 0
        %v5286 = vsel %vm5222, 1, 0
        %v5287 = vsel %vm5223, 1, 0
        %v5288 = vsel %vm5224, 1, 0
        %v5289 = vsel %vm5225, 1, 0
        %v5290 = vsel %vm5226, 1, 0
        %v5291 = vsel %vm5227, 1, 0
        %v5292 = vsel %vm5228, 1, 0
        %v5293 = vsel %vm5229, 1, 0
        %v5294 = vsel %vm5230, 1, 0
        %v5295 = vsel %vm5231, 1, 0
        %v5296 = vsel %vm5232, 1, 0
        %v5297 = vsel %vm5233, 1, 0
        %v5298 = vsel %vm5234, 1, 0
        %v5299 = vsel %vm5235, 1, 0
        %v5300 = vsel %vm5236, 1, 0
        %v5301 = vsel %vm5237, 1, 0
        %v5302 = vsel %vm5238, 1, 0
        %v5303 = vsel %vm5239, 1, 0
        %v5304 = vsel %vm5240, 1, 0
        %v5305 = vsel %vm5241, 1, 0
        %v5306 = vsel %vm5242, 1, 0
        %v5307 = vsel %vm5243, 1, 0
        %v5308 = vsel %vm5244, 1, 0
        %v5309 = vsel %vm5245, 1, 0
        %v5310 = vsel %vm5246, 1, 0
        %v5311 = vsel %vm5247, 1, 0
        %v5312 = vsel %vm5248, 1, 0
        %v5313 = vsel %vm5249, 1, 0
        %v5314 = vsel %vm5250, 1, 0
        %v5315 = vsel %vm5251, 1, 0
        %v5316 = vsel %vm5252, 1, 0
        %v5317 = vsel %vm5253, 1, 0
        %v5318 = vsel %vm5254, 1, 0
        %v5319 = vsel %vm5255, 1, 0
        %v5320 = vsel %vm5256, 1, 0
        %v5321 = vsel %vm5257, 1, 0
        %v5322 = vsel %vm5258, 1, 0
        %v5323 = vsel %vm5259, 1, 0
        %v5324 = vsel %vm5260, 1, 0
        %v5325 = vsel %vm5261, 1, 0
        %v5326 = vsel %vm5262, 1, 0
        %v5327 = vsel %vm5263, 1, 0
        %v5328 = vcvt.s32.f32 %v5264
        %v5329 = vcvt.s32.f32 %v5265
        %v5330 = vcvt.s32.f32 %v5266
        %v5331 = vcvt.s32.f32 %v5267
        %v5332 = vcvt.s32.f32 %v5268
        %v5333 = vcvt.s32.f32 %v5269
        %v5334 = vcvt.s32.f32 %v5270
        %v5335 = vcvt.s32.f32 %v5271
        %v5336 = vcvt.s32.f32 %v5272
        %v5337 = vcvt.s32.f32 %v5273
        %v5338 = vcvt.s32.f32 %v5274
        %v5339 = vcvt.s32.f32 %v5275
        %v5340 = vcvt.s32.f32 %v5276
        %v5341 = vcvt.s32.f32 %v5277
        %v5342 = vcvt.s32.f32 %v5278
        %v5343 = vcvt.s32.f32 %v5279
        %v5344 = vcvt.s32.f32 %v5280
        %v5345 = vcvt.s32.f32 %v5281
        %v5346 = vcvt.s32.f32 %v5282
        %v5347 = vcvt.s32.f32 %v5283
        %v5348 = vcvt.s32.f32 %v5284
        %v5349 = vcvt.s32.f32 %v5285
        %v5350 = vcvt.s32.f32 %v5286
        %v5351 = vcvt.s32.f32 %v5287
        %v5352 = vcvt.s32.f32 %v5288
        %v5353 = vcvt.s32.f32 %v5289
        %v5354 = vcvt.s32.f32 %v5290
        %v5355 = vcvt.s32.f32 %v5291
        %v5356 = vcvt.s32.f32 %v5292
        %v5357 = vcvt.s32.f32 %v5293
        %v5358 = vcvt.s32.f32 %v5294
        %v5359 = vcvt.s32.f32 %v5295
        %v5360 = vcvt.s32.f32 %v5296
        %v5361 = vcvt.s32.f32 %v5297
        %v5362 = vcvt.s32.f32 %v5298
        %v5363 = vcvt.s32.f32 %v5299
        %v5364 = vcvt.s32.f32 %v5300
        %v5365 = vcvt.s32.f32 %v5301
        %v5366 = vcvt.s32.f32 %v5302
        %v5367 = vcvt.s32.f32 %v5303
        %v5368 = vcvt.s32.f32 %v5304
        %v5369 = vcvt.s32.f32 %v5305
        %v5370 = vcvt.s32.f32 %v5306
        %v5371 = vcvt.s32.f32 %v5307
        %v5372 = vcvt.s32.f32 %v5308
        %v5373 = vcvt.s32.f32 %v5309
        %v5374 = vcvt.s32.f32 %v5310
        %v5375 = vcvt.s32.f32 %v5311
        %v5376 = vcvt.s32.f32 %v5312
        %v5377 = vcvt.s32.f32 %v5313
        %v5378 = vcvt.s32.f32 %v5314
        %v5379 = vcvt.s32.f32 %v5315
        %v5380 = vcvt.s32.f32 %v5316
        %v5381 = vcvt.s32.f32 %v5317
        %v5382 = vcvt.s32.f32 %v5318
        %v5383 = vcvt.s32.f32 %v5319
        %v5384 = vcvt.s32.f32 %v5320
        %v5385 = vcvt.s32.f32 %v5321
        %v5386 = vcvt.s32.f32 %v5322
        %v5387 = vcvt.s32.f32 %v5323
        %v5388 = vcvt.s32.f32 %v5324
        %v5389 = vcvt.s32.f32 %v5325
        %v5390 = vcvt.s32.f32 %v5326
        %v5391 = vcvt.s32.f32 %v5327
        %vm5392 = vcmp.lt.s32.totalorder %v5136, 240
        %vm5393 = vcmp.lt.s32.totalorder %v5137, 240
        %vm5394 = vcmp.lt.s32.totalorder %v5138, 240
        %vm5395 = vcmp.lt.s32.totalorder %v5139, 240
        %vm5396 = vcmp.lt.s32.totalorder %v5140, 240
        %vm5397 = vcmp.lt.s32.totalorder %v5141, 240
        %vm5398 = vcmp.lt.s32.totalorder %v5142, 240
        %vm5399 = vcmp.lt.s32.totalorder %v5143, 240
        %vm5400 = vcmp.lt.s32.totalorder %v5144, 240
        %vm5401 = vcmp.lt.s32.totalorder %v5145, 240
        %vm5402 = vcmp.lt.s32.totalorder %v5146, 240
        %vm5403 = vcmp.lt.s32.totalorder %v5147, 240
        %vm5404 = vcmp.lt.s32.totalorder %v5148, 240
        %vm5405 = vcmp.lt.s32.totalorder %v5149, 240
        %vm5406 = vcmp.lt.s32.totalorder %v5150, 240
        %vm5407 = vcmp.lt.s32.totalorder %v5151, 240
        %vm5408 = vcmp.lt.s32.totalorder %v5152, 240
        %vm5409 = vcmp.lt.s32.totalorder %v5153, 240
        %vm5410 = vcmp.lt.s32.totalorder %v5154, 240
        %vm5411 = vcmp.lt.s32.totalorder %v5155, 240
        %vm5412 = vcmp.lt.s32.totalorder %v5156, 240
        %vm5413 = vcmp.lt.s32.totalorder %v5157, 240
        %vm5414 = vcmp.lt.s32.totalorder %v5158, 240
        %vm5415 = vcmp.lt.s32.totalorder %v5159, 240
        %vm5416 = vcmp.lt.s32.totalorder %v5160, 240
        %vm5417 = vcmp.lt.s32.totalorder %v5161, 240
        %vm5418 = vcmp.lt.s32.totalorder %v5162, 240
        %vm5419 = vcmp.lt.s32.totalorder %v5163, 240
        %vm5420 = vcmp.lt.s32.totalorder %v5164, 240
        %vm5421 = vcmp.lt.s32.totalorder %v5165, 240
        %vm5422 = vcmp.lt.s32.totalorder %v5166, 240
        %vm5423 = vcmp.lt.s32.totalorder %v5167, 240
        %vm5424 = vcmp.lt.s32.totalorder %v5168, 240
        %vm5425 = vcmp.lt.s32.totalorder %v5169, 240
        %vm5426 = vcmp.lt.s32.totalorder %v5170, 240
        %vm5427 = vcmp.lt.s32.totalorder %v5171, 240
        %vm5428 = vcmp.lt.s32.totalorder %v5172, 240
        %vm5429 = vcmp.lt.s32.totalorder %v5173, 240
        %vm5430 = vcmp.lt.s32.totalorder %v5174, 240
        %vm5431 = vcmp.lt.s32.totalorder %v5175, 240
        %vm5432 = vcmp.lt.s32.totalorder %v5176, 240
        %vm5433 = vcmp.lt.s32.totalorder %v5177, 240
        %vm5434 = vcmp.lt.s32.totalorder %v5178, 240
        %vm5435 = vcmp.lt.s32.totalorder %v5179, 240
        %vm5436 = vcmp.lt.s32.totalorder %v5180, 240
        %vm5437 = vcmp.lt.s32.totalorder %v5181, 240
        %vm5438 = vcmp.lt.s32.totalorder %v5182, 240
        %vm5439 = vcmp.lt.s32.totalorder %v5183, 240
        %vm5440 = vcmp.lt.s32.totalorder %v5184, 240
        %vm5441 = vcmp.lt.s32.totalorder %v5185, 240
        %vm5442 = vcmp.lt.s32.totalorder %v5186, 240
        %vm5443 = vcmp.lt.s32.totalorder %v5187, 240
        %vm5444 = vcmp.lt.s32.totalorder %v5188, 240
        %vm5445 = vcmp.lt.s32.totalorder %v5189, 240
        %vm5446 = vcmp.lt.s32.totalorder %v5190, 240
        %vm5447 = vcmp.lt.s32.totalorder %v5191, 240
        %vm5448 = vcmp.lt.s32.totalorder %v5192, 240
        %vm5449 = vcmp.lt.s32.totalorder %v5193, 240
        %vm5450 = vcmp.lt.s32.totalorder %v5194, 240
        %vm5451 = vcmp.lt.s32.totalorder %v5195, 240
        %vm5452 = vcmp.lt.s32.totalorder %v5196, 240
        %vm5453 = vcmp.lt.s32.totalorder %v5197, 240
        %vm5454 = vcmp.lt.s32.totalorder %v5198, 240
        %vm5455 = vcmp.lt.s32.totalorder %v5199, 240
        %v5456 = vsel %vm5392, 1, 0
        %v5457 = vsel %vm5393, 1, 0
        %v5458 = vsel %vm5394, 1, 0
        %v5459 = vsel %vm5395, 1, 0
        %v5460 = vsel %vm5396, 1, 0
        %v5461 = vsel %vm5397, 1, 0
        %v5462 = vsel %vm5398, 1, 0
        %v5463 = vsel %vm5399, 1, 0
        %v5464 = vsel %vm5400, 1, 0
        %v5465 = vsel %vm5401, 1, 0
        %v5466 = vsel %vm5402, 1, 0
        %v5467 = vsel %vm5403, 1, 0
        %v5468 = vsel %vm5404, 1, 0
        %v5469 = vsel %vm5405, 1, 0
        %v5470 = vsel %vm5406, 1, 0
        %v5471 = vsel %vm5407, 1, 0
        %v5472 = vsel %vm5408, 1, 0
        %v5473 = vsel %vm5409, 1, 0
        %v5474 = vsel %vm5410, 1, 0
        %v5475 = vsel %vm5411, 1, 0
        %v5476 = vsel %vm5412, 1, 0
        %v5477 = vsel %vm5413, 1, 0
        %v5478 = vsel %vm5414, 1, 0
        %v5479 = vsel %vm5415, 1, 0
        %v5480 = vsel %vm5416, 1, 0
        %v5481 = vsel %vm5417, 1, 0
        %v5482 = vsel %vm5418, 1, 0
        %v5483 = vsel %vm5419, 1, 0
        %v5484 = vsel %vm5420, 1, 0
        %v5485 = vsel %vm5421, 1, 0
        %v5486 = vsel %vm5422, 1, 0
        %v5487 = vsel %vm5423, 1, 0
        %v5488 = vsel %vm5424, 1, 0
        %v5489 = vsel %vm5425, 1, 0
        %v5490 = vsel %vm5426, 1, 0
        %v5491 = vsel %vm5427, 1, 0
        %v5492 = vsel %vm5428, 1, 0
        %v5493 = vsel %vm5429, 1, 0
        %v5494 = vsel %vm5430, 1, 0
        %v5495 = vsel %vm5431, 1, 0
        %v5496 = vsel %vm5432, 1, 0
        %v5497 = vsel %vm5433, 1, 0
        %v5498 = vsel %vm5434, 1, 0
        %v5499 = vsel %vm5435, 1, 0
        %v5500 = vsel %vm5436, 1, 0
        %v5501 = vsel %vm5437, 1, 0
        %v5502 = vsel %vm5438, 1, 0
        %v5503 = vsel %vm5439, 1, 0
        %v5504 = vsel %vm5440, 1, 0
        %v5505 = vsel %vm5441, 1, 0
        %v5506 = vsel %vm5442, 1, 0
        %v5507 = vsel %vm5443, 1, 0
        %v5508 = vsel %vm5444, 1, 0
        %v5509 = vsel %vm5445, 1, 0
        %v5510 = vsel %vm5446, 1, 0
        %v5511 = vsel %vm5447, 1, 0
        %v5512 = vsel %vm5448, 1, 0
        %v5513 = vsel %vm5449, 1, 0
        %v5514 = vsel %vm5450, 1, 0
        %v5515 = vsel %vm5451, 1, 0
        %v5516 = vsel %vm5452, 1, 0
        %v5517 = vsel %vm5453, 1, 0
        %v5518 = vsel %vm5454, 1, 0
        %v5519 = vsel %vm5455, 1, 0
        %v5520 = vcvt.s32.f32 %v5456
        %v5521 = vcvt.s32.f32 %v5457
        %v5522 = vcvt.s32.f32 %v5458
        %v5523 = vcvt.s32.f32 %v5459
        %v5524 = vcvt.s32.f32 %v5460
        %v5525 = vcvt.s32.f32 %v5461
        %v5526 = vcvt.s32.f32 %v5462
        %v5527 = vcvt.s32.f32 %v5463
        %v5528 = vcvt.s32.f32 %v5464
        %v5529 = vcvt.s32.f32 %v5465
        %v5530 = vcvt.s32.f32 %v5466
        %v5531 = vcvt.s32.f32 %v5467
        %v5532 = vcvt.s32.f32 %v5468
        %v5533 = vcvt.s32.f32 %v5469
        %v5534 = vcvt.s32.f32 %v5470
        %v5535 = vcvt.s32.f32 %v5471
        %v5536 = vcvt.s32.f32 %v5472
        %v5537 = vcvt.s32.f32 %v5473
        %v5538 = vcvt.s32.f32 %v5474
        %v5539 = vcvt.s32.f32 %v5475
        %v5540 = vcvt.s32.f32 %v5476
        %v5541 = vcvt.s32.f32 %v5477
        %v5542 = vcvt.s32.f32 %v5478
        %v5543 = vcvt.s32.f32 %v5479
        %v5544 = vcvt.s32.f32 %v5480
        %v5545 = vcvt.s32.f32 %v5481
        %v5546 = vcvt.s32.f32 %v5482
        %v5547 = vcvt.s32.f32 %v5483
        %v5548 = vcvt.s32.f32 %v5484
        %v5549 = vcvt.s32.f32 %v5485
        %v5550 = vcvt.s32.f32 %v5486
        %v5551 = vcvt.s32.f32 %v5487
        %v5552 = vcvt.s32.f32 %v5488
        %v5553 = vcvt.s32.f32 %v5489
        %v5554 = vcvt.s32.f32 %v5490
        %v5555 = vcvt.s32.f32 %v5491
        %v5556 = vcvt.s32.f32 %v5492
        %v5557 = vcvt.s32.f32 %v5493
        %v5558 = vcvt.s32.f32 %v5494
        %v5559 = vcvt.s32.f32 %v5495
        %v5560 = vcvt.s32.f32 %v5496
        %v5561 = vcvt.s32.f32 %v5497
        %v5562 = vcvt.s32.f32 %v5498
        %v5563 = vcvt.s32.f32 %v5499
        %v5564 = vcvt.s32.f32 %v5500
        %v5565 = vcvt.s32.f32 %v5501
        %v5566 = vcvt.s32.f32 %v5502
        %v5567 = vcvt.s32.f32 %v5503
        %v5568 = vcvt.s32.f32 %v5504
        %v5569 = vcvt.s32.f32 %v5505
        %v5570 = vcvt.s32.f32 %v5506
        %v5571 = vcvt.s32.f32 %v5507
        %v5572 = vcvt.s32.f32 %v5508
        %v5573 = vcvt.s32.f32 %v5509
        %v5574 = vcvt.s32.f32 %v5510
        %v5575 = vcvt.s32.f32 %v5511
        %v5576 = vcvt.s32.f32 %v5512
        %v5577 = vcvt.s32.f32 %v5513
        %v5578 = vcvt.s32.f32 %v5514
        %v5579 = vcvt.s32.f32 %v5515
        %v5580 = vcvt.s32.f32 %v5516
        %v5581 = vcvt.s32.f32 %v5517
        %v5582 = vcvt.s32.f32 %v5518
        %v5583 = vcvt.s32.f32 %v5519
        %v5584 = vmul.f32 %v5328, %v3608
        %v5585 = vmul.f32 %v5329, %v3611
        %v5586 = vmul.f32 %v5330, %v3360
        %v5587 = vmul.f32 %v5331, %v3363
        %v5588 = vmul.f32 %v5332, %v3368
        %v5589 = vmul.f32 %v5333, %v3371
        %v5590 = vmul.f32 %v5334, %v3376
        %v5591 = vmul.f32 %v5335, %v3379
        %v5592 = vmul.f32 %v5336, %v3384
        %v5593 = vmul.f32 %v5337, %v3387
        %v5594 = vmul.f32 %v5338, %v3392
        %v5595 = vmul.f32 %v5339, %v3395
        %v5596 = vmul.f32 %v5340, %v3400
        %v5597 = vmul.f32 %v5341, %v3403
        %v5598 = vmul.f32 %v5342, %v3408
        %v5599 = vmul.f32 %v5343, %v3411
        %v5600 = vmul.f32 %v5344, %v3416
        %v5601 = vmul.f32 %v5345, %v3419
        %v5602 = vmul.f32 %v5346, %v3424
        %v5603 = vmul.f32 %v5347, %v3427
        %v5604 = vmul.f32 %v5348, %v3432
        %v5605 = vmul.f32 %v5349, %v3435
        %v5606 = vmul.f32 %v5350, %v3440
        %v5607 = vmul.f32 %v5351, %v3443
        %v5608 = vmul.f32 %v5352, %v3448
        %v5609 = vmul.f32 %v5353, %v3451
        %v5610 = vmul.f32 %v5354, %v3456
        %v5611 = vmul.f32 %v5355, %v3459
        %v5612 = vmul.f32 %v5356, %v3464
        %v5613 = vmul.f32 %v5357, %v3467
        %v5614 = vmul.f32 %v5358, %v3472
        %v5615 = vmul.f32 %v5359, %v3475
        %v5616 = vmul.f32 %v5360, %v3480
        %v5617 = vmul.f32 %v5361, %v3483
        %v5618 = vmul.f32 %v5362, %v3488
        %v5619 = vmul.f32 %v5363, %v3491
        %v5620 = vmul.f32 %v5364, %v3496
        %v5621 = vmul.f32 %v5365, %v3499
        %v5622 = vmul.f32 %v5366, %v3504
        %v5623 = vmul.f32 %v5367, %v3507
        %v5624 = vmul.f32 %v5368, %v3512
        %v5625 = vmul.f32 %v5369, %v3515
        %v5626 = vmul.f32 %v5370, %v3520
        %v5627 = vmul.f32 %v5371, %v3523
        %v5628 = vmul.f32 %v5372, %v3528
        %v5629 = vmul.f32 %v5373, %v3531
        %v5630 = vmul.f32 %v5374, %v3536
        %v5631 = vmul.f32 %v5375, %v3539
        %v5632 = vmul.f32 %v5376, %v3544
        %v5633 = vmul.f32 %v5377, %v3547
        %v5634 = vmul.f32 %v5378, %v3552
        %v5635 = vmul.f32 %v5379, %v3555
        %v5636 = vmul.f32 %v5380, %v3560
        %v5637 = vmul.f32 %v5381, %v3563
        %v5638 = vmul.f32 %v5382, %v3568
        %v5639 = vmul.f32 %v5383, %v3571
        %v5640 = vmul.f32 %v5384, %v3576
        %v5641 = vmul.f32 %v5385, %v3579
        %v5642 = vmul.f32 %v5386, %v3584
        %v5643 = vmul.f32 %v5387, %v3587
        %v5644 = vmul.f32 %v5388, %v3592
        %v5645 = vmul.f32 %v5389, %v3595
        %v5646 = vmul.f32 %v5390, %v3600
        %v5647 = vmul.f32 %v5391, %v3603
        %v5696 = vunpack.c.l.b16 %v3614
        %v5697 = vunpack.c.l.b16 %v3615
        %v5698 = vunpack.c.l.b16 %v3616
        %v5699 = vunpack.c.l.b16 %v3617
        %v5700 = vunpack.c.l.b16 %v3618
        %v5701 = vunpack.c.l.b16 %v3619
        %v5702 = vunpack.c.l.b16 %v3620
        %v5703 = vunpack.c.l.b16 %v3621
        %v5704 = vunpack.c.l.b16 %v3622
        %v5705 = vunpack.c.l.b16 %v3623
        %v5706 = vunpack.c.l.b16 %v3624
        %v5707 = vunpack.c.l.b16 %v3625
        %v5708 = vunpack.c.l.b16 %v3626
        %v5709 = vunpack.c.l.b16 %v3627
        %v5710 = vunpack.c.l.b16 %v3628
        %v5711 = vunpack.c.l.b16 %v3629
        %v5712 = vunpack.c.l.b16 %v3630
        %v5713 = vunpack.c.l.b16 %v3631
        %v5714 = vunpack.c.l.b16 %v3632
        %v5715 = vunpack.c.l.b16 %v3633
        %v5716 = vunpack.c.l.b16 %v3634
        %v5717 = vunpack.c.l.b16 %v3635
        %v5718 = vunpack.c.l.b16 %v3636
        %v5719 = vunpack.c.l.b16 %v3637
        %v5720 = vunpack.c.l.b16 %v3638
        %v5721 = vunpack.c.l.b16 %v3639
        %v5722 = vunpack.c.l.b16 %v3640
        %v5723 = vunpack.c.l.b16 %v3641
        %v5724 = vunpack.c.l.b16 %v3642
        %v5725 = vunpack.c.l.b16 %v3643
        %v5726 = vunpack.c.l.b16 %v3644
        %v5727 = vunpack.c.l.b16 %v3645
        %v5728 = vunpack.c.l.b16 %v3646
        %v5729 = vunpack.c.l.b16 %v3647
        %v5730 = vunpack.c.l.b16 %v3648
        %v5731 = vunpack.c.l.b16 %v3649
        %v5732 = vunpack.c.l.b16 %v3650
        %v5733 = vunpack.c.l.b16 %v3651
        %v5734 = vunpack.c.l.b16 %v3652
        %v5735 = vunpack.c.l.b16 %v3653
        %v5736 = vunpack.c.l.b16 %v3654
        %v5737 = vunpack.c.l.b16 %v3655
        %v5738 = vunpack.c.l.b16 %v3656
        %v5739 = vunpack.c.l.b16 %v3657
        %v5740 = vunpack.c.l.b16 %v3658
        %v5741 = vunpack.c.l.b16 %v3659
        %v5742 = vunpack.c.l.b16 %v3660
        %v5743 = vunpack.c.l.b16 %v3661
        %v5744 = vpack.c.b16 %v5697, %v5696
        %v5745 = vpack.c.b16 %v5699, %v5698
        %v5746 = vpack.c.b16 %v5701, %v5700
        %v5747 = vpack.c.b16 %v5703, %v5702
        %v5748 = vpack.c.b16 %v5705, %v5704
        %v5749 = vpack.c.b16 %v5707, %v5706
        %v5750 = vpack.c.b16 %v5709, %v5708
        %v5751 = vpack.c.b16 %v5711, %v5710
        %v5752 = vpack.c.b16 %v5713, %v5712
        %v5753 = vpack.c.b16 %v5715, %v5714
        %v5754 = vpack.c.b16 %v5717, %v5716
        %v5755 = vpack.c.b16 %v5719, %v5718
        %v5756 = vpack.c.b16 %v5721, %v5720
        %v5757 = vpack.c.b16 %v5723, %v5722
        %v5758 = vpack.c.b16 %v5725, %v5724
        %v5759 = vpack.c.b16 %v5727, %v5726
        %v5760 = vpack.c.b16 %v5729, %v5728
        %v5761 = vpack.c.b16 %v5731, %v5730
        %v5762 = vpack.c.b16 %v5733, %v5732
        %v5763 = vpack.c.b16 %v5735, %v5734
        %v5764 = vpack.c.b16 %v5737, %v5736
        %v5765 = vpack.c.b16 %v5739, %v5738
        %v5766 = vpack.c.b16 %v5741, %v5740
        %v5767 = vpack.c.b16 %v5743, %v5742
        %5792 = vmatprep.subr.bf16.mxu0 0
        %5793 = vmatpush1.bf16.msra.mxu0 %v5744
        %5794 = vmatprep.subr.bf16.mxu0 0
        %5795 = vmatpush1.bf16.msra.mxu0 %v5745
        %5796 = vmatprep.subr.bf16.mxu0 0
        %5797 = vmatpush1.bf16.msra.mxu0 %v5746
        %5798 = vmatprep.subr.bf16.mxu0 0
        %5799 = vmatpush1.bf16.msra.mxu0 %v5747
        %5800 = vmatprep.subr.bf16.mxu0 0
        %5801 = vmatpush1.bf16.msra.mxu0 %v5748
        %5802 = vmatprep.subr.bf16.mxu0 0
        %5803 = vmatpush1.bf16.msra.mxu0 %v5749
        %5804 = vmatprep.subr.bf16.mxu0 0
        %5805 = vmatpush1.bf16.msra.mxu0 %v5750
        %5806 = vmatprep.subr.bf16.mxu0 0
        %5807 = vmatpush1.bf16.msra.mxu0 %v5751
        %5808 = vmatprep.subr.bf16.mxu0 0
        %5809 = vmatpush1.bf16.msra.mxu0 %v5752
        %5810 = vmatprep.subr.bf16.mxu0 0
        %5811 = vmatpush1.bf16.msra.mxu0 %v5753
        %5812 = vmatprep.subr.bf16.mxu0 0
        %5813 = vmatpush1.bf16.msra.mxu0 %v5754
        %5814 = vmatprep.subr.bf16.mxu0 0
        %5815 = vmatpush1.bf16.msra.mxu0 %v5755
        %5816 = vmatprep.subr.bf16.mxu0 0
        %5817 = vmatpush1.bf16.msra.mxu0 %v5756
        %5818 = vmatprep.subr.bf16.mxu0 0
        %5819 = vmatpush1.bf16.msra.mxu0 %v5757
        %5820 = vmatprep.subr.bf16.mxu0 0
        %5821 = vmatpush1.bf16.msra.mxu0 %v5758
        %5822 = vmatprep.subr.bf16.mxu0 0
        %5823 = vmatpush1.bf16.msra.mxu0 %v5759
        %5824 = vmatprep.mubr.bf16.mxu0 %v2780
        %5825 = vmatmul.mubr.bf16.gmra.mrb[0].mxu0 %v2748
        %v5826 = vpop.f32.mrb[0].mxu0
        %v5827 = vadd.f32 %v5584, %v5826
        %v5828 = vpop.f32.mrb[0].mxu0
        %v5829 = vpop.f32.mrb[0].mxu0
        %v5830 = vadd.f32 %v5585, %v5829
        %v5831 = vpop.f32.mrb[0].mxu0
        %5832 = vmatprep.mubr.bf16.mxu0 %v2781
        %5833 = vmatmul.mubr.bf16.gmra.mrb[0].mxu0 %v2749
        %v5834 = vpop.f32.mrb[0].mxu0
        %v5835 = vadd.f32 %v5586, %v5834
        %v5836 = vpop.f32.mrb[0].mxu0
        %v5837 = vpop.f32.mrb[0].mxu0
        %v5838 = vadd.f32 %v5587, %v5837
        %v5839 = vpop.f32.mrb[0].mxu0
        %5840 = vmatprep.mubr.bf16.mxu0 %v2782
        %5841 = vmatmul.mubr.bf16.gmra.mrb[0].mxu0 %v2750
        %v5842 = vpop.f32.mrb[0].mxu0
        %v5843 = vadd.f32 %v5588, %v5842
        %v5844 = vpop.f32.mrb[0].mxu0
        %v5845 = vpop.f32.mrb[0].mxu0
        %v5846 = vadd.f32 %v5589, %v5845
        %v5847 = vpop.f32.mrb[0].mxu0
        %5848 = vmatprep.mubr.bf16.mxu0 %v2783
        %5849 = vmatmul.mubr.bf16.gmra.mrb[0].mxu0 %v2751
        %v5850 = vpop.f32.mrb[0].mxu0
        %v5851 = vadd.f32 %v5590, %v5850
        %v5852 = vpop.f32.mrb[0].mxu0
        %v5853 = vpop.f32.mrb[0].mxu0
        %v5854 = vadd.f32 %v5591, %v5853
        %v5855 = vpop.f32.mrb[0].mxu0
        %5856 = vmatprep.mubr.bf16.mxu0 %v2784
        %5857 = vmatmul.mubr.bf16.gmra.mrb[0].mxu0 %v2752
        %v5858 = vpop.f32.mrb[0].mxu0
        %v5859 = vadd.f32 %v5592, %v5858
        %v5860 = vpop.f32.mrb[0].mxu0
        %v5861 = vpop.f32.mrb[0].mxu0
        %v5862 = vadd.f32 %v5593, %v5861
        %v5863 = vpop.f32.mrb[0].mxu0
        %5864 = vmatprep.mubr.bf16.mxu0 %v2785
        %5865 = vmatmul.mubr.bf16.gmra.mrb[0].mxu0 %v2753
        %v5866 = vpop.f32.mrb[0].mxu0
        %v5867 = vadd.f32 %v5594, %v5866
        %v5868 = vpop.f32.mrb[0].mxu0
        %v5869 = vpop.f32.mrb[0].mxu0
        %v5870 = vadd.f32 %v5595, %v5869
        %v5871 = vpop.f32.mrb[0].mxu0
        %5872 = vmatprep.mubr.bf16.mxu0 %v2786
        %5873 = vmatmul.mubr.bf16.gmra.mrb[0].mxu0 %v2754
        %v5874 = vpop.f32.mrb[0].mxu0
        %v5875 = vadd.f32 %v5596, %v5874
        %v5876 = vpop.f32.mrb[0].mxu0
        %v5877 = vpop.f32.mrb[0].mxu0
        %v5878 = vadd.f32 %v5597, %v5877
        %v5879 = vpop.f32.mrb[0].mxu0
        %5880 = vmatprep.mubr.bf16.mxu0 %v2787
        %5881 = vmatmul.mubr.bf16.gmra.mrb[0].mxu0 %v2755
        %v5882 = vpop.f32.mrb[0].mxu0
        %v5883 = vadd.f32 %v5598, %v5882
        %v5884 = vpop.f32.mrb[0].mxu0
        %v5885 = vpop.f32.mrb[0].mxu0
        %v5886 = vadd.f32 %v5599, %v5885
        %v5887 = vpop.f32.mrb[0].mxu0
        %5888 = vmatprep.mubr.bf16.mxu0 %v2788
        %5889 = vmatmul.mubr.bf16.gmra.mrb[0].mxu0 %v2756
        %v5890 = vpop.f32.mrb[0].mxu0
        %v5891 = vadd.f32 %v5600, %v5890
        %v5892 = vpop.f32.mrb[0].mxu0
        %v5893 = vpop.f32.mrb[0].mxu0
        %v5894 = vadd.f32 %v5601, %v5893
        %v5895 = vpop.f32.mrb[0].mxu0
        %5896 = vmatprep.mubr.bf16.mxu0 %v2789
        %5897 = vmatmul.mubr.bf16.gmra.mrb[0].mxu0 %v2757
        %v5898 = vpop.f32.mrb[0].mxu0
        %v5899 = vadd.f32 %v5602, %v5898
        %v5900 = vpop.f32.mrb[0].mxu0
        %v5901 = vpop.f32.mrb[0].mxu0
        %v5902 = vadd.f32 %v5603, %v5901
        %v5903 = vpop.f32.mrb[0].mxu0
        %5904 = vmatprep.mubr.bf16.mxu0 %v2790
        %5905 = vmatmul.mubr.bf16.gmra.mrb[0].mxu0 %v2758
        %v5906 = vpop.f32.mrb[0].mxu0
        %v5907 = vadd.f32 %v5604, %v5906
        %v5908 = vpop.f32.mrb[0].mxu0
        %v5909 = vpop.f32.mrb[0].mxu0
        %v5910 = vadd.f32 %v5605, %v5909
        %v5911 = vpop.f32.mrb[0].mxu0
        %5912 = vmatprep.mubr.bf16.mxu0 %v2791
        %5913 = vmatmul.mubr.bf16.gmra.mrb[0].mxu0 %v2759
        %v5914 = vpop.f32.mrb[0].mxu0
        %v5915 = vadd.f32 %v5606, %v5914
        %v5916 = vpop.f32.mrb[0].mxu0
        %v5917 = vpop.f32.mrb[0].mxu0
        %v5918 = vadd.f32 %v5607, %v5917
        %v5919 = vpop.f32.mrb[0].mxu0
        %5920 = vmatprep.mubr.bf16.mxu0 %v2792
        %5921 = vmatmul.mubr.bf16.gmra.mrb[0].mxu0 %v2760
        %v5922 = vpop.f32.mrb[0].mxu0
        %v5923 = vadd.f32 %v5608, %v5922
        %v5924 = vpop.f32.mrb[0].mxu0
        %v5925 = vpop.f32.mrb[0].mxu0
        %v5926 = vadd.f32 %v5609, %v5925
        %v5927 = vpop.f32.mrb[0].mxu0
        %5928 = vmatprep.mubr.bf16.mxu0 %v2793
        %5929 = vmatmul.mubr.bf16.gmra.mrb[0].mxu0 %v2761
        %v5930 = vpop.f32.mrb[0].mxu0
        %v5931 = vadd.f32 %v5610, %v5930
        %v5932 = vpop.f32.mrb[0].mxu0
        %v5933 = vpop.f32.mrb[0].mxu0
        %v5934 = vadd.f32 %v5611, %v5933
        %v5935 = vpop.f32.mrb[0].mxu0
        %5936 = vmatprep.mubr.bf16.mxu0 %v2794
        %5937 = vmatmul.mubr.bf16.gmra.mrb[0].mxu0 %v2762
        %v5938 = vpop.f32.mrb[0].mxu0
        %v5939 = vadd.f32 %v5612, %v5938
        %v5940 = vpop.f32.mrb[0].mxu0
        %v5941 = vpop.f32.mrb[0].mxu0
        %v5942 = vadd.f32 %v5613, %v5941
        %v5943 = vpop.f32.mrb[0].mxu0
        %5944 = vmatprep.mubr.bf16.mxu0 %v2795
        %5945 = vmatmul.mubr.bf16.gmra.mrb[0].mxu0 %v2763
        %v5946 = vpop.f32.mrb[0].mxu0
        %v5947 = vadd.f32 %v5614, %v5946
        %v5948 = vpop.f32.mrb[0].mxu0
        %v5949 = vpop.f32.mrb[0].mxu0
        %v5950 = vadd.f32 %v5615, %v5949
        %v5951 = vpop.f32.mrb[0].mxu0
        %5952 = vmatprep.mubr.bf16.mxu0 %v2796
        %5953 = vmatmul.mubr.bf16.gmra.mrb[0].mxu0 %v2764
        %v5954 = vpop.f32.mrb[0].mxu0
        %v5955 = vadd.f32 %v5616, %v5954
        %v5956 = vpop.f32.mrb[0].mxu0
        %v5957 = vpop.f32.mrb[0].mxu0
        %v5958 = vadd.f32 %v5617, %v5957
        %v5959 = vpop.f32.mrb[0].mxu0
        %5960 = vmatprep.mubr.bf16.mxu0 %v2797
        %5961 = vmatmul.mubr.bf16.gmra.mrb[0].mxu0 %v2765
        %v5962 = vpop.f32.mrb[0].mxu0
        %v5963 = vadd.f32 %v5618, %v5962
        %v5964 = vpop.f32.mrb[0].mxu0
        %v5965 = vpop.f32.mrb[0].mxu0
        %v5966 = vadd.f32 %v5619, %v5965
        %v5967 = vpop.f32.mrb[0].mxu0
        %5968 = vmatprep.mubr.bf16.mxu0 %v2798
        %5969 = vmatmul.mubr.bf16.gmra.mrb[0].mxu0 %v2766
        %v5970 = vpop.f32.mrb[0].mxu0
        %v5971 = vadd.f32 %v5620, %v5970
        %v5972 = vpop.f32.mrb[0].mxu0
        %v5973 = vpop.f32.mrb[0].mxu0
        %v5974 = vadd.f32 %v5621, %v5973
        %v5975 = vpop.f32.mrb[0].mxu0
        %5976 = vmatprep.mubr.bf16.mxu0 %v2799
        %5977 = vmatmul.mubr.bf16.gmra.mrb[0].mxu0 %v2767
        %v5978 = vpop.f32.mrb[0].mxu0
        %v5979 = vadd.f32 %v5622, %v5978
        %v5980 = vpop.f32.mrb[0].mxu0
        %v5981 = vpop.f32.mrb[0].mxu0
        %v5982 = vadd.f32 %v5623, %v5981
        %v5983 = vpop.f32.mrb[0].mxu0
        %5984 = vmatprep.mubr.bf16.mxu0 %v2800
        %5985 = vmatmul.mubr.bf16.gmra.mrb[0].mxu0 %v2768
        %v5986 = vpop.f32.mrb[0].mxu0
        %v5987 = vadd.f32 %v5624, %v5986
        %v5988 = vpop.f32.mrb[0].mxu0
        %v5989 = vpop.f32.mrb[0].mxu0
        %v5990 = vadd.f32 %v5625, %v5989
        %v5991 = vpop.f32.mrb[0].mxu0
        %5992 = vmatprep.mubr.bf16.mxu0 %v2801
        %5993 = vmatmul.mubr.bf16.gmra.mrb[0].mxu0 %v2769
        %v5994 = vpop.f32.mrb[0].mxu0
        %v5995 = vadd.f32 %v5626, %v5994
        %v5996 = vpop.f32.mrb[0].mxu0
        %v5997 = vpop.f32.mrb[0].mxu0
        %v5998 = vadd.f32 %v5627, %v5997
        %v5999 = vpop.f32.mrb[0].mxu0
        %6000 = vmatprep.mubr.bf16.mxu0 %v2802
        %6001 = vmatmul.mubr.bf16.gmra.mrb[0].mxu0 %v2770
        %v6002 = vpop.f32.mrb[0].mxu0
        %v6003 = vadd.f32 %v5628, %v6002
        %v6004 = vpop.f32.mrb[0].mxu0
        %v6005 = vpop.f32.mrb[0].mxu0
        %v6006 = vadd.f32 %v5629, %v6005
        %v6007 = vpop.f32.mrb[0].mxu0
        %6008 = vmatprep.mubr.bf16.mxu0 %v2803
        %6009 = vmatmul.mubr.bf16.gmra.mrb[0].mxu0 %v2771
        %v6010 = vpop.f32.mrb[0].mxu0
        %v6011 = vadd.f32 %v5630, %v6010
        %v6012 = vpop.f32.mrb[0].mxu0
        %v6013 = vpop.f32.mrb[0].mxu0
        %v6014 = vadd.f32 %v5631, %v6013
        %v6015 = vpop.f32.mrb[0].mxu0
        %6016 = vmatprep.mubr.bf16.mxu0 %v2804
        %6017 = vmatmul.mubr.bf16.gmra.mrb[0].mxu0 %v2772
        %v6018 = vpop.f32.mrb[0].mxu0
        %v6019 = vadd.f32 %v5632, %v6018
        %v6020 = vpop.f32.mrb[0].mxu0
        %v6021 = vpop.f32.mrb[0].mxu0
        %v6022 = vadd.f32 %v5633, %v6021
        %v6023 = vpop.f32.mrb[0].mxu0
        %6024 = vmatprep.mubr.bf16.mxu0 %v2805
        %6025 = vmatmul.mubr.bf16.gmra.mrb[0].mxu0 %v2773
        %v6026 = vpop.f32.mrb[0].mxu0
        %v6027 = vadd.f32 %v5634, %v6026
        %v6028 = vpop.f32.mrb[0].mxu0
        %v6029 = vpop.f32.mrb[0].mxu0
        %v6030 = vadd.f32 %v5635, %v6029
        %v6031 = vpop.f32.mrb[0].mxu0
        %6032 = vmatprep.mubr.bf16.mxu0 %v2806
        %6033 = vmatmul.mubr.bf16.gmra.mrb[0].mxu0 %v2774
        %v6034 = vpop.f32.mrb[0].mxu0
        %v6035 = vadd.f32 %v5636, %v6034
        %v6036 = vpop.f32.mrb[0].mxu0
        %v6037 = vpop.f32.mrb[0].mxu0
        %v6038 = vadd.f32 %v5637, %v6037
        %v6039 = vpop.f32.mrb[0].mxu0
        %6040 = vmatprep.mubr.bf16.mxu0 %v2807
        %6041 = vmatmul.mubr.bf16.gmra.mrb[0].mxu0 %v2775
        %v6042 = vpop.f32.mrb[0].mxu0
        %v6043 = vadd.f32 %v5638, %v6042
        %v6044 = vpop.f32.mrb[0].mxu0
        %v6045 = vpop.f32.mrb[0].mxu0
        %v6046 = vadd.f32 %v5639, %v6045
        %v6047 = vpop.f32.mrb[0].mxu0
        %6048 = vmatprep.mubr.bf16.mxu0 %v2808
        %6049 = vmatmul.mubr.bf16.gmra.mrb[0].mxu0 %v2776
        %v6050 = vpop.f32.mrb[0].mxu0
        %v6051 = vadd.f32 %v5640, %v6050
        %v6052 = vpop.f32.mrb[0].mxu0
        %v6053 = vpop.f32.mrb[0].mxu0
        %v6054 = vadd.f32 %v5641, %v6053
        %v6055 = vpop.f32.mrb[0].mxu0
        %6056 = vmatprep.mubr.bf16.mxu0 %v2809
        %6057 = vmatmul.mubr.bf16.gmra.mrb[0].mxu0 %v2777
        %v6058 = vpop.f32.mrb[0].mxu0
        %v6059 = vadd.f32 %v5642, %v6058
        %v6060 = vpop.f32.mrb[0].mxu0
        %v6061 = vpop.f32.mrb[0].mxu0
        %v6062 = vadd.f32 %v5643, %v6061
        %v6063 = vpop.f32.mrb[0].mxu0
        %6064 = vmatprep.mubr.bf16.mxu0 %v2810
        %6065 = vmatmul.mubr.bf16.gmra.mrb[0].mxu0 %v2778
        %v6066 = vpop.f32.mrb[0].mxu0
        %v6067 = vadd.f32 %v5644, %v6066
        %v6068 = vpop.f32.mrb[0].mxu0
        %v6069 = vpop.f32.mrb[0].mxu0
        %v6070 = vadd.f32 %v5645, %v6069
        %v6071 = vpop.f32.mrb[0].mxu0
        %6072 = vmatprep.mubr.bf16.mxu0 %v2811
        %6073 = vmatmul.mubr.bf16.gmra.mrb[0].mxu0 %v2779
        %v6074 = vpop.f32.mrb[0].mxu0
        %v6075 = vadd.f32 %v5646, %v6074
        %v6076 = vpop.f32.mrb[0].mxu0
        %v6077 = vpop.f32.mrb[0].mxu0
        %v6078 = vadd.f32 %v5647, %v6077
        %v6079 = vpop.f32.mrb[0].mxu0
        %6080 = vdwg.mxu0
        %6081 = vmatprep.subr.bf16.mxu0 0
        %6082 = vmatpush1.bf16.msra.mxu0 %v5760
        %6083 = vmatprep.subr.bf16.mxu0 0
        %6084 = vmatpush1.bf16.msra.mxu0 %v5761
        %6085 = vmatprep.subr.bf16.mxu0 0
        %6086 = vmatpush1.bf16.msra.mxu0 %v5762
        %6087 = vmatprep.subr.bf16.mxu0 0
        %6088 = vmatpush1.bf16.msra.mxu0 %v5763
        %6089 = vmatprep.subr.bf16.mxu0 0
        %6090 = vmatpush1.bf16.msra.mxu0 %v5764
        %6091 = vmatprep.subr.bf16.mxu0 0
        %6092 = vmatpush1.bf16.msra.mxu0 %v5765
        %6093 = vmatprep.subr.bf16.mxu0 0
        %6094 = vmatpush1.bf16.msra.mxu0 %v5766
        %6095 = vmatprep.subr.bf16.mxu0 0
        %6096 = vmatpush1.bf16.msra.mxu0 %v5767
        %6097 = vmatprep.subr.bf16.mxu0 0
        %6098 = vmatpush1.bf16.msra.mxu0 0
        %6099 = vmatprep.subr.bf16.mxu0 0
        %6100 = vmatpush1.bf16.msra.mxu0 0
        %6101 = vmatprep.subr.bf16.mxu0 0
        %6102 = vmatpush1.bf16.msra.mxu0 0
        %6103 = vmatprep.subr.bf16.mxu0 0
        %6104 = vmatpush1.bf16.msra.mxu0 0
        %6105 = vmatprep.subr.bf16.mxu0 0
        %6106 = vmatpush1.bf16.msra.mxu0 0
        %6107 = vmatprep.subr.bf16.mxu0 0
        %6108 = vmatpush1.bf16.msra.mxu0 0
        %6109 = vmatprep.subr.bf16.mxu0 0
        %6110 = vmatpush1.bf16.msra.mxu0 0
        %6111 = vmatprep.subr.bf16.mxu0 0
        %6112 = vmatpush1.bf16.msra.mxu0 0
        %6113 = vmatprep.mubr.bf16.mxu0 0
        %6114 = vmatmul.mubr.bf16.gmra.mrb[0].mxu0 %v2812
        %v6115 = vpop.f32.mrb[0].mxu0
        %v6116 = vadd.f32 %v5827, %v6115
        %v6117 = vpop.f32.mrb[0].mxu0
        %v6118 = vpop.f32.mrb[0].mxu0
        %v6119 = vadd.f32 %v5830, %v6118
        %v6120 = vpop.f32.mrb[0].mxu0
        %6121 = vmatprep.mubr.bf16.mxu0 0
        %6122 = vmatmul.mubr.bf16.gmra.mrb[0].mxu0 %v2813
        %v6123 = vpop.f32.mrb[0].mxu0
        %v6124 = vadd.f32 %v5835, %v6123
        %v6125 = vpop.f32.mrb[0].mxu0
        %v6126 = vpop.f32.mrb[0].mxu0
        %v6127 = vadd.f32 %v5838, %v6126
        %v6128 = vpop.f32.mrb[0].mxu0
        %6129 = vmatprep.mubr.bf16.mxu0 0
        %6130 = vmatmul.mubr.bf16.gmra.mrb[0].mxu0 %v2814
        %v6131 = vpop.f32.mrb[0].mxu0
        %v6132 = vadd.f32 %v5843, %v6131
        %v6133 = vpop.f32.mrb[0].mxu0
        %v6134 = vpop.f32.mrb[0].mxu0
        %v6135 = vadd.f32 %v5846, %v6134
        %v6136 = vpop.f32.mrb[0].mxu0
        %6137 = vmatprep.mubr.bf16.mxu0 0
        %6138 = vmatmul.mubr.bf16.gmra.mrb[0].mxu0 %v2815
        %v6139 = vpop.f32.mrb[0].mxu0
        %v6140 = vadd.f32 %v5851, %v6139
        %v6141 = vpop.f32.mrb[0].mxu0
        %v6142 = vpop.f32.mrb[0].mxu0
        %v6143 = vadd.f32 %v5854, %v6142
        %v6144 = vpop.f32.mrb[0].mxu0
        %6145 = vmatprep.mubr.bf16.mxu0 0
        %6146 = vmatmul.mubr.bf16.gmra.mrb[0].mxu0 %v2816
        %v6147 = vpop.f32.mrb[0].mxu0
        %v6148 = vadd.f32 %v5859, %v6147
        %v6149 = vpop.f32.mrb[0].mxu0
        %v6150 = vpop.f32.mrb[0].mxu0
        %v6151 = vadd.f32 %v5862, %v6150
        %v6152 = vpop.f32.mrb[0].mxu0
        %6153 = vmatprep.mubr.bf16.mxu0 0
        %6154 = vmatmul.mubr.bf16.gmra.mrb[0].mxu0 %v2817
        %v6155 = vpop.f32.mrb[0].mxu0
        %v6156 = vadd.f32 %v5867, %v6155
        %v6157 = vpop.f32.mrb[0].mxu0
        %v6158 = vpop.f32.mrb[0].mxu0
        %v6159 = vadd.f32 %v5870, %v6158
        %v6160 = vpop.f32.mrb[0].mxu0
        %6161 = vmatprep.mubr.bf16.mxu0 0
        %6162 = vmatmul.mubr.bf16.gmra.mrb[0].mxu0 %v2818
        %v6163 = vpop.f32.mrb[0].mxu0
        %v6164 = vadd.f32 %v5875, %v6163
        %v6165 = vpop.f32.mrb[0].mxu0
        %v6166 = vpop.f32.mrb[0].mxu0
        %v6167 = vadd.f32 %v5878, %v6166
        %v6168 = vpop.f32.mrb[0].mxu0
        %6169 = vmatprep.mubr.bf16.mxu0 0
        %6170 = vmatmul.mubr.bf16.gmra.mrb[0].mxu0 %v2819
        %v6171 = vpop.f32.mrb[0].mxu0
        %v6172 = vadd.f32 %v5883, %v6171
        %v6173 = vpop.f32.mrb[0].mxu0
        %v6174 = vpop.f32.mrb[0].mxu0
        %v6175 = vadd.f32 %v5886, %v6174
        %v6176 = vpop.f32.mrb[0].mxu0
        %6177 = vmatprep.mubr.bf16.mxu0 0
        %6178 = vmatmul.mubr.bf16.gmra.mrb[0].mxu0 %v2820
        %v6179 = vpop.f32.mrb[0].mxu0
        %v6180 = vadd.f32 %v5891, %v6179
        %v6181 = vpop.f32.mrb[0].mxu0
        %v6182 = vpop.f32.mrb[0].mxu0
        %v6183 = vadd.f32 %v5894, %v6182
        %v6184 = vpop.f32.mrb[0].mxu0
        %6185 = vmatprep.mubr.bf16.mxu0 0
        %6186 = vmatmul.mubr.bf16.gmra.mrb[0].mxu0 %v2821
        %v6187 = vpop.f32.mrb[0].mxu0
        %v6188 = vadd.f32 %v5899, %v6187
        %v6189 = vpop.f32.mrb[0].mxu0
        %v6190 = vpop.f32.mrb[0].mxu0
        %v6191 = vadd.f32 %v5902, %v6190
        %v6192 = vpop.f32.mrb[0].mxu0
        %6193 = vmatprep.mubr.bf16.mxu0 0
        %6194 = vmatmul.mubr.bf16.gmra.mrb[0].mxu0 %v2822
        %v6195 = vpop.f32.mrb[0].mxu0
        %v6196 = vadd.f32 %v5907, %v6195
        %v6197 = vpop.f32.mrb[0].mxu0
        %v6198 = vpop.f32.mrb[0].mxu0
        %v6199 = vadd.f32 %v5910, %v6198
        %v6200 = vpop.f32.mrb[0].mxu0
        %6201 = vmatprep.mubr.bf16.mxu0 0
        %6202 = vmatmul.mubr.bf16.gmra.mrb[0].mxu0 %v2823
        %v6203 = vpop.f32.mrb[0].mxu0
        %v6204 = vadd.f32 %v5915, %v6203
        %v6205 = vpop.f32.mrb[0].mxu0
        %v6206 = vpop.f32.mrb[0].mxu0
        %v6207 = vadd.f32 %v5918, %v6206
        %v6208 = vpop.f32.mrb[0].mxu0
        %6209 = vmatprep.mubr.bf16.mxu0 0
        %6210 = vmatmul.mubr.bf16.gmra.mrb[0].mxu0 %v2824
        %v6211 = vpop.f32.mrb[0].mxu0
        %v6212 = vadd.f32 %v5923, %v6211
        %v6213 = vpop.f32.mrb[0].mxu0
        %v6214 = vpop.f32.mrb[0].mxu0
        %v6215 = vadd.f32 %v5926, %v6214
        %v6216 = vpop.f32.mrb[0].mxu0
        %6217 = vmatprep.mubr.bf16.mxu0 0
        %6218 = vmatmul.mubr.bf16.gmra.mrb[0].mxu0 %v2825
        %v6219 = vpop.f32.mrb[0].mxu0
        %v6220 = vadd.f32 %v5931, %v6219
        %v6221 = vpop.f32.mrb[0].mxu0
        %v6222 = vpop.f32.mrb[0].mxu0
        %v6223 = vadd.f32 %v5934, %v6222
        %v6224 = vpop.f32.mrb[0].mxu0
        %6225 = vmatprep.mubr.bf16.mxu0 0
        %6226 = vmatmul.mubr.bf16.gmra.mrb[0].mxu0 %v2826
        %v6227 = vpop.f32.mrb[0].mxu0
        %v6228 = vadd.f32 %v5939, %v6227
        %v6229 = vpop.f32.mrb[0].mxu0
        %v6230 = vpop.f32.mrb[0].mxu0
        %v6231 = vadd.f32 %v5942, %v6230
        %v6232 = vpop.f32.mrb[0].mxu0
        %6233 = vmatprep.mubr.bf16.mxu0 0
        %6234 = vmatmul.mubr.bf16.gmra.mrb[0].mxu0 %v2827
        %v6235 = vpop.f32.mrb[0].mxu0
        %v6236 = vadd.f32 %v5947, %v6235
        %v6237 = vpop.f32.mrb[0].mxu0
        %v6238 = vpop.f32.mrb[0].mxu0
        %v6239 = vadd.f32 %v5950, %v6238
        %v6240 = vpop.f32.mrb[0].mxu0
        %6241 = vmatprep.mubr.bf16.mxu0 0
        %6242 = vmatmul.mubr.bf16.gmra.mrb[0].mxu0 %v2828
        %v6243 = vpop.f32.mrb[0].mxu0
        %v6244 = vadd.f32 %v5955, %v6243
        %v6245 = vpop.f32.mrb[0].mxu0
        %v6246 = vpop.f32.mrb[0].mxu0
        %v6247 = vadd.f32 %v5958, %v6246
        %v6248 = vpop.f32.mrb[0].mxu0
        %6249 = vmatprep.mubr.bf16.mxu0 0
        %6250 = vmatmul.mubr.bf16.gmra.mrb[0].mxu0 %v2829
        %v6251 = vpop.f32.mrb[0].mxu0
        %v6252 = vadd.f32 %v5963, %v6251
        %v6253 = vpop.f32.mrb[0].mxu0
        %v6254 = vpop.f32.mrb[0].mxu0
        %v6255 = vadd.f32 %v5966, %v6254
        %v6256 = vpop.f32.mrb[0].mxu0
        %6257 = vmatprep.mubr.bf16.mxu0 0
        %6258 = vmatmul.mubr.bf16.gmra.mrb[0].mxu0 %v2830
        %v6259 = vpop.f32.mrb[0].mxu0
        %v6260 = vadd.f32 %v5971, %v6259
        %v6261 = vpop.f32.mrb[0].mxu0
        %v6262 = vpop.f32.mrb[0].mxu0
        %v6263 = vadd.f32 %v5974, %v6262
        %v6264 = vpop.f32.mrb[0].mxu0
        %6265 = vmatprep.mubr.bf16.mxu0 0
        %6266 = vmatmul.mubr.bf16.gmra.mrb[0].mxu0 %v2831
        %v6267 = vpop.f32.mrb[0].mxu0
        %v6268 = vadd.f32 %v5979, %v6267
        %v6269 = vpop.f32.mrb[0].mxu0
        %v6270 = vpop.f32.mrb[0].mxu0
        %v6271 = vadd.f32 %v5982, %v6270
        %v6272 = vpop.f32.mrb[0].mxu0
        %6273 = vmatprep.mubr.bf16.mxu0 0
        %6274 = vmatmul.mubr.bf16.gmra.mrb[0].mxu0 %v2832
        %v6275 = vpop.f32.mrb[0].mxu0
        %v6276 = vadd.f32 %v5987, %v6275
        %v6277 = vpop.f32.mrb[0].mxu0
        %v6278 = vpop.f32.mrb[0].mxu0
        %v6279 = vadd.f32 %v5990, %v6278
        %v6280 = vpop.f32.mrb[0].mxu0
        %6281 = vmatprep.mubr.bf16.mxu0 0
        %6282 = vmatmul.mubr.bf16.gmra.mrb[0].mxu0 %v2833
        %v6283 = vpop.f32.mrb[0].mxu0
        %v6284 = vadd.f32 %v5995, %v6283
        %v6285 = vpop.f32.mrb[0].mxu0
        %v6286 = vpop.f32.mrb[0].mxu0
        %v6287 = vadd.f32 %v5998, %v6286
        %v6288 = vpop.f32.mrb[0].mxu0
        %6289 = vmatprep.mubr.bf16.mxu0 0
        %6290 = vmatmul.mubr.bf16.gmra.mrb[0].mxu0 %v2834
        %v6291 = vpop.f32.mrb[0].mxu0
        %v6292 = vadd.f32 %v6003, %v6291
        %v6293 = vpop.f32.mrb[0].mxu0
        %v6294 = vpop.f32.mrb[0].mxu0
        %v6295 = vadd.f32 %v6006, %v6294
        %v6296 = vpop.f32.mrb[0].mxu0
        %6297 = vmatprep.mubr.bf16.mxu0 0
        %6298 = vmatmul.mubr.bf16.gmra.mrb[0].mxu0 %v2835
        %v6299 = vpop.f32.mrb[0].mxu0
        %v6300 = vadd.f32 %v6011, %v6299
        %v6301 = vpop.f32.mrb[0].mxu0
        %v6302 = vpop.f32.mrb[0].mxu0
        %v6303 = vadd.f32 %v6014, %v6302
        %v6304 = vpop.f32.mrb[0].mxu0
        %6305 = vmatprep.mubr.bf16.mxu0 0
        %6306 = vmatmul.mubr.bf16.gmra.mrb[0].mxu0 %v2836
        %v6307 = vpop.f32.mrb[0].mxu0
        %v6308 = vadd.f32 %v6019, %v6307
        %v6309 = vpop.f32.mrb[0].mxu0
        %v6310 = vpop.f32.mrb[0].mxu0
        %v6311 = vadd.f32 %v6022, %v6310
        %v6312 = vpop.f32.mrb[0].mxu0
        %6313 = vmatprep.mubr.bf16.mxu0 0
        %6314 = vmatmul.mubr.bf16.gmra.mrb[0].mxu0 %v2837
        %v6315 = vpop.f32.mrb[0].mxu0
        %v6316 = vadd.f32 %v6027, %v6315
        %v6317 = vpop.f32.mrb[0].mxu0
        %v6318 = vpop.f32.mrb[0].mxu0
        %v6319 = vadd.f32 %v6030, %v6318
        %v6320 = vpop.f32.mrb[0].mxu0
        %6321 = vmatprep.mubr.bf16.mxu0 0
        %6322 = vmatmul.mubr.bf16.gmra.mrb[0].mxu0 %v2838
        %v6323 = vpop.f32.mrb[0].mxu0
        %v6324 = vadd.f32 %v6035, %v6323
        %v6325 = vpop.f32.mrb[0].mxu0
        %v6326 = vpop.f32.mrb[0].mxu0
        %v6327 = vadd.f32 %v6038, %v6326
        %v6328 = vpop.f32.mrb[0].mxu0
        %6329 = vmatprep.mubr.bf16.mxu0 0
        %6330 = vmatmul.mubr.bf16.gmra.mrb[0].mxu0 %v2839
        %v6331 = vpop.f32.mrb[0].mxu0
        %v6332 = vadd.f32 %v6043, %v6331
        %v6333 = vpop.f32.mrb[0].mxu0
        %v6334 = vpop.f32.mrb[0].mxu0
        %v6335 = vadd.f32 %v6046, %v6334
        %v6336 = vpop.f32.mrb[0].mxu0
        %6337 = vmatprep.mubr.bf16.mxu0 0
        %6338 = vmatmul.mubr.bf16.gmra.mrb[0].mxu0 %v2840
        %v6339 = vpop.f32.mrb[0].mxu0
        %v6340 = vadd.f32 %v6051, %v6339
        %v6341 = vpop.f32.mrb[0].mxu0
        %v6342 = vpop.f32.mrb[0].mxu0
        %v6343 = vadd.f32 %v6054, %v6342
        %v6344 = vpop.f32.mrb[0].mxu0
        %6345 = vmatprep.mubr.bf16.mxu0 0
        %6346 = vmatmul.mubr.bf16.gmra.mrb[0].mxu0 %v2841
        %v6347 = vpop.f32.mrb[0].mxu0
        %v6348 = vadd.f32 %v6059, %v6347
        %v6349 = vpop.f32.mrb[0].mxu0
        %v6350 = vpop.f32.mrb[0].mxu0
        %v6351 = vadd.f32 %v6062, %v6350
        %v6352 = vpop.f32.mrb[0].mxu0
        %6353 = vmatprep.mubr.bf16.mxu0 0
        %6354 = vmatmul.mubr.bf16.gmra.mrb[0].mxu0 %v2842
        %v6355 = vpop.f32.mrb[0].mxu0
        %v6356 = vadd.f32 %v6067, %v6355
        %v6357 = vpop.f32.mrb[0].mxu0
        %v6358 = vpop.f32.mrb[0].mxu0
        %v6359 = vadd.f32 %v6070, %v6358
        %v6360 = vpop.f32.mrb[0].mxu0
        %6361 = vmatprep.mubr.bf16.mxu0 0
        %6362 = vmatmul.mubr.bf16.gmra.mrb[0].mxu0 %v2843
        %v6363 = vpop.f32.mrb[0].mxu0
        %v6364 = vadd.f32 %v6075, %v6363
        %v6365 = vpop.f32.mrb[0].mxu0
        %v6366 = vpop.f32.mrb[0].mxu0
        %v6367 = vadd.f32 %v6078, %v6366
        %v6368 = vpop.f32.mrb[0].mxu0
        %6369 = vdwg.mxu0
        %v6370 = vmul.f32 %v5520, %v4186
        %v6371 = vmul.f32 %v5521, %v4189
        %v6372 = vmul.f32 %v5522, %v4194
        %v6373 = vmul.f32 %v5523, %v4197
        %v6374 = vmul.f32 %v5524, %v4202
        %v6375 = vmul.f32 %v5525, %v4205
        %v6376 = vmul.f32 %v5526, %v4210
        %v6377 = vmul.f32 %v5527, %v4213
        %v6378 = vmul.f32 %v5528, %v4218
        %v6379 = vmul.f32 %v5529, %v4221
        %v6380 = vmul.f32 %v5530, %v4226
        %v6381 = vmul.f32 %v5531, %v4229
        %v6382 = vmul.f32 %v5532, %v4234
        %v6383 = vmul.f32 %v5533, %v4237
        %v6384 = vmul.f32 %v5534, %v4242
        %v6385 = vmul.f32 %v5535, %v4245
        %v6386 = vmul.f32 %v5536, %v4250
        %v6387 = vmul.f32 %v5537, %v4253
        %v6388 = vmul.f32 %v5538, %v4258
        %v6389 = vmul.f32 %v5539, %v4261
        %v6390 = vmul.f32 %v5540, %v4266
        %v6391 = vmul.f32 %v5541, %v4269
        %v6392 = vmul.f32 %v5542, %v4274
        %v6393 = vmul.f32 %v5543, %v4277
        %v6394 = vmul.f32 %v5544, %v4282
        %v6395 = vmul.f32 %v5545, %v4285
        %v6396 = vmul.f32 %v5546, %v4290
        %v6397 = vmul.f32 %v5547, %v4293
        %v6398 = vmul.f32 %v5548, %v4298
        %v6399 = vmul.f32 %v5549, %v4301
        %v6400 = vmul.f32 %v5550, %v4306
        %v6401 = vmul.f32 %v5551, %v4309
        %v6402 = vmul.f32 %v5552, %v4314
        %v6403 = vmul.f32 %v5553, %v4317
        %v6404 = vmul.f32 %v5554, %v4322
        %v6405 = vmul.f32 %v5555, %v4325
        %v6406 = vmul.f32 %v5556, %v4330
        %v6407 = vmul.f32 %v5557, %v4333
        %v6408 = vmul.f32 %v5558, %v4338
        %v6409 = vmul.f32 %v5559, %v4341
        %v6410 = vmul.f32 %v5560, %v4346
        %v6411 = vmul.f32 %v5561, %v4349
        %v6412 = vmul.f32 %v5562, %v4354
        %v6413 = vmul.f32 %v5563, %v4357
        %v6414 = vmul.f32 %v5564, %v4362
        %v6415 = vmul.f32 %v5565, %v4365
        %v6416 = vmul.f32 %v5566, %v4370
        %v6417 = vmul.f32 %v5567, %v4373
        %v6418 = vmul.f32 %v5568, %v4378
        %v6419 = vmul.f32 %v5569, %v4381
        %v6420 = vmul.f32 %v5570, %v4386
        %v6421 = vmul.f32 %v5571, %v4389
        %v6422 = vmul.f32 %v5572, %v4394
        %v6423 = vmul.f32 %v5573, %v4397
        %v6424 = vmul.f32 %v5574, %v4402
        %v6425 = vmul.f32 %v5575, %v4405
        %v6426 = vmul.f32 %v5576, %v4410
        %v6427 = vmul.f32 %v5577, %v4413
        %v6428 = vmul.f32 %v5578, %v4418
        %v6429 = vmul.f32 %v5579, %v4421
        %v6430 = vmul.f32 %v5580, %v4426
        %v6431 = vmul.f32 %v5581, %v4429
        %v6432 = vmul.f32 %v5582, %v4178
        %v6433 = vmul.f32 %v5583, %v4181
        %v6434 = vadd.f32 %v6116, %v6370
        %v6435 = vadd.f32 %v6119, %v6371
        %v6436 = vadd.f32 %v6124, %v6372
        %v6437 = vadd.f32 %v6127, %v6373
        %v6438 = vadd.f32 %v6132, %v6374
        %v6439 = vadd.f32 %v6135, %v6375
        %v6440 = vadd.f32 %v6140, %v6376
        %v6441 = vadd.f32 %v6143, %v6377
        %v6442 = vadd.f32 %v6148, %v6378
        %v6443 = vadd.f32 %v6151, %v6379
        %v6444 = vadd.f32 %v6156, %v6380
        %v6445 = vadd.f32 %v6159, %v6381
        %v6446 = vadd.f32 %v6164, %v6382
        %v6447 = vadd.f32 %v6167, %v6383
        %v6448 = vadd.f32 %v6172, %v6384
        %v6449 = vadd.f32 %v6175, %v6385
        %v6450 = vadd.f32 %v6180, %v6386
        %v6451 = vadd.f32 %v6183, %v6387
        %v6452 = vadd.f32 %v6188, %v6388
        %v6453 = vadd.f32 %v6191, %v6389
        %v6454 = vadd.f32 %v6196, %v6390
        %v6455 = vadd.f32 %v6199, %v6391
        %v6456 = vadd.f32 %v6204, %v6392
        %v6457 = vadd.f32 %v6207, %v6393
        %v6458 = vadd.f32 %v6212, %v6394
        %v6459 = vadd.f32 %v6215, %v6395
        %v6460 = vadd.f32 %v6220, %v6396
        %v6461 = vadd.f32 %v6223, %v6397
        %v6462 = vadd.f32 %v6228, %v6398
        %v6463 = vadd.f32 %v6231, %v6399
        %v6464 = vadd.f32 %v6236, %v6400
        %v6465 = vadd.f32 %v6239, %v6401
        %v6466 = vadd.f32 %v6244, %v6402
        %v6467 = vadd.f32 %v6247, %v6403
        %v6468 = vadd.f32 %v6252, %v6404
        %v6469 = vadd.f32 %v6255, %v6405
        %v6470 = vadd.f32 %v6260, %v6406
        %v6471 = vadd.f32 %v6263, %v6407
        %v6472 = vadd.f32 %v6268, %v6408
        %v6473 = vadd.f32 %v6271, %v6409
        %v6474 = vadd.f32 %v6276, %v6410
        %v6475 = vadd.f32 %v6279, %v6411
        %v6476 = vadd.f32 %v6284, %v6412
        %v6477 = vadd.f32 %v6287, %v6413
        %v6478 = vadd.f32 %v6292, %v6414
        %v6479 = vadd.f32 %v6295, %v6415
        %v6480 = vadd.f32 %v6300, %v6416
        %v6481 = vadd.f32 %v6303, %v6417
        %v6482 = vadd.f32 %v6308, %v6418
        %v6483 = vadd.f32 %v6311, %v6419
        %v6484 = vadd.f32 %v6316, %v6420
        %v6485 = vadd.f32 %v6319, %v6421
        %v6486 = vadd.f32 %v6324, %v6422
        %v6487 = vadd.f32 %v6327, %v6423
        %v6488 = vadd.f32 %v6332, %v6424
        %v6489 = vadd.f32 %v6335, %v6425
        %v6490 = vadd.f32 %v6340, %v6426
        %v6491 = vadd.f32 %v6343, %v6427
        %v6492 = vadd.f32 %v6348, %v6428
        %v6493 = vadd.f32 %v6351, %v6429
        %v6494 = vadd.f32 %v6356, %v6430
        %v6495 = vadd.f32 %v6359, %v6431
        %v6496 = vadd.f32 %v6364, %v6432
        %v6497 = vadd.f32 %v6367, %v6433
        %v6498 = vld [vmem:[#allocation13] sm:$0x1]
        %v6500 = vlaneseq
        %v6501 = vshrl.u32 %v6500, 7
        %v6502 = vsub.s32 0, %v6501
        %v6503 = vrot.slane %v6498, %v6502
        %v6505 = vadd.f32 %v6434, %v6503
        %v6506 = vadd.f32 %v6435, %v6503
        %v6507 = vadd.f32 %v6436, %v6503
        %v6508 = vadd.f32 %v6437, %v6503
        %v6509 = vadd.f32 %v6438, %v6503
        %v6510 = vadd.f32 %v6439, %v6503
        %v6511 = vadd.f32 %v6440, %v6503
        %v6512 = vadd.f32 %v6441, %v6503
        %v6513 = vadd.f32 %v6442, %v6503
        %v6514 = vadd.f32 %v6443, %v6503
        %v6515 = vadd.f32 %v6444, %v6503
        %v6516 = vadd.f32 %v6445, %v6503
        %v6517 = vadd.f32 %v6446, %v6503
        %v6518 = vadd.f32 %v6447, %v6503
        %v6519 = vadd.f32 %v6448, %v6503
        %v6520 = vadd.f32 %v6449, %v6503
        %v6521 = vadd.f32 %v6450, %v6503
        %v6522 = vadd.f32 %v6451, %v6503
        %v6523 = vadd.f32 %v6452, %v6503
        %v6524 = vadd.f32 %v6453, %v6503
        %v6525 = vadd.f32 %v6454, %v6503
        %v6526 = vadd.f32 %v6455, %v6503
        %v6527 = vadd.f32 %v6456, %v6503
        %v6528 = vadd.f32 %v6457, %v6503
        %v6529 = vadd.f32 %v6458, %v6503
        %v6530 = vadd.f32 %v6459, %v6503
        %v6531 = vadd.f32 %v6460, %v6503
        %v6532 = vadd.f32 %v6461, %v6503
        %v6533 = vadd.f32 %v6462, %v6503
        %v6534 = vadd.f32 %v6463, %v6503
        %v6535 = vadd.f32 %v6464, %v6503
        %v6536 = vadd.f32 %v6465, %v6503
        %v6537 = vadd.f32 %v6466, %v6503
        %v6538 = vadd.f32 %v6467, %v6503
        %v6539 = vadd.f32 %v6468, %v6503
        %v6540 = vadd.f32 %v6469, %v6503
        %v6541 = vadd.f32 %v6470, %v6503
        %v6542 = vadd.f32 %v6471, %v6503
        %v6543 = vadd.f32 %v6472, %v6503
        %v6544 = vadd.f32 %v6473, %v6503
        %v6545 = vadd.f32 %v6474, %v6503
        %v6546 = vadd.f32 %v6475, %v6503
        %v6547 = vadd.f32 %v6476, %v6503
        %v6548 = vadd.f32 %v6477, %v6503
        %v6549 = vadd.f32 %v6478, %v6503
        %v6550 = vadd.f32 %v6479, %v6503
        %v6551 = vadd.f32 %v6480, %v6503
        %v6552 = vadd.f32 %v6481, %v6503
        %v6553 = vadd.f32 %v6482, %v6503
        %v6554 = vadd.f32 %v6483, %v6503
        %v6555 = vadd.f32 %v6484, %v6503
        %v6556 = vadd.f32 %v6485, %v6503
        %v6557 = vadd.f32 %v6486, %v6503
        %v6558 = vadd.f32 %v6487, %v6503
        %v6559 = vadd.f32 %v6488, %v6503
        %v6560 = vadd.f32 %v6489, %v6503
        %v6561 = vadd.f32 %v6490, %v6503
        %v6562 = vadd.f32 %v6491, %v6503
        %v6563 = vadd.f32 %v6492, %v6503
        %v6564 = vadd.f32 %v6493, %v6503
        %v6565 = vadd.f32 %v6494, %v6503
        %v6566 = vadd.f32 %v6495, %v6503
        %v6567 = vadd.f32 %v6496, %v6503
        %v6568 = vadd.f32 %v6497, %v6503
        %v6569 = vmax.f32 %v6505, 0.0
        %v6570 = vmax.f32 %v6506, 0.0
        %v6571 = vmax.f32 %v6507, 0.0
        %v6572 = vmax.f32 %v6508, 0.0
        %v6573 = vmax.f32 %v6509, 0.0
        %v6574 = vmax.f32 %v6510, 0.0
        %v6575 = vmax.f32 %v6511, 0.0
        %v6576 = vmax.f32 %v6512, 0.0
        %v6577 = vmax.f32 %v6513, 0.0
        %v6578 = vmax.f32 %v6514, 0.0
        %v6579 = vmax.f32 %v6515, 0.0
        %v6580 = vmax.f32 %v6516, 0.0
        %v6581 = vmax.f32 %v6517, 0.0
        %v6582 = vmax.f32 %v6518, 0.0
        %v6583 = vmax.f32 %v6519, 0.0
        %v6584 = vmax.f32 %v6520, 0.0
        %v6585 = vmax.f32 %v6521, 0.0
        %v6586 = vmax.f32 %v6522, 0.0
        %v6587 = vmax.f32 %v6523, 0.0
        %v6588 = vmax.f32 %v6524, 0.0
        %v6589 = vmax.f32 %v6525, 0.0
        %v6590 = vmax.f32 %v6526, 0.0
        %v6591 = vmax.f32 %v6527, 0.0
        %v6592 = vmax.f32 %v6528, 0.0
        %v6593 = vmax.f32 %v6529, 0.0
        %v6594 = vmax.f32 %v6530, 0.0
        %v6595 = vmax.f32 %v6531, 0.0
        %v6596 = vmax.f32 %v6532, 0.0
        %v6597 = vmax.f32 %v6533, 0.0
        %v6598 = vmax.f32 %v6534, 0.0
        %v6599 = vmax.f32 %v6535, 0.0
        %v6600 = vmax.f32 %v6536, 0.0
        %v6601 = vmax.f32 %v6537, 0.0
        %v6602 = vmax.f32 %v6538, 0.0
        %v6603 = vmax.f32 %v6539, 0.0
        %v6604 = vmax.f32 %v6540, 0.0
        %v6605 = vmax.f32 %v6541, 0.0
        %v6606 = vmax.f32 %v6542, 0.0
        %v6607 = vmax.f32 %v6543, 0.0
        %v6608 = vmax.f32 %v6544, 0.0
        %v6609 = vmax.f32 %v6545, 0.0
        %v6610 = vmax.f32 %v6546, 0.0
        %v6611 = vmax.f32 %v6547, 0.0
        %v6612 = vmax.f32 %v6548, 0.0
        %v6613 = vmax.f32 %v6549, 0.0
        %v6614 = vmax.f32 %v6550, 0.0
        %v6615 = vmax.f32 %v6551, 0.0
        %v6616 = vmax.f32 %v6552, 0.0
        %v6617 = vmax.f32 %v6553, 0.0
        %v6618 = vmax.f32 %v6554, 0.0
        %v6619 = vmax.f32 %v6555, 0.0
        %v6620 = vmax.f32 %v6556, 0.0
        %v6621 = vmax.f32 %v6557, 0.0
        %v6622 = vmax.f32 %v6558, 0.0
        %v6623 = vmax.f32 %v6559, 0.0
        %v6624 = vmax.f32 %v6560, 0.0
        %v6625 = vmax.f32 %v6561, 0.0
        %v6626 = vmax.f32 %v6562, 0.0
        %v6627 = vmax.f32 %v6563, 0.0
        %v6628 = vmax.f32 %v6564, 0.0
        %v6629 = vmax.f32 %v6565, 0.0
        %v6630 = vmax.f32 %v6566, 0.0
        %v6631 = vmax.f32 %v6567, 0.0
        %v6632 = vmax.f32 %v6568, 0.0
        %v6633 = vpack.c.bf16 %v6570, %v6569
        %v6634 = vpack.c.bf16 %v6572, %v6571
        %v6635 = vpack.c.bf16 %v6574, %v6573
        %v6636 = vpack.c.bf16 %v6576, %v6575
        %v6637 = vpack.c.bf16 %v6578, %v6577
        %v6638 = vpack.c.bf16 %v6580, %v6579
        %v6639 = vpack.c.bf16 %v6582, %v6581
        %v6640 = vpack.c.bf16 %v6584, %v6583
        %v6641 = vpack.c.bf16 %v6586, %v6585
        %v6642 = vpack.c.bf16 %v6588, %v6587
        %v6643 = vpack.c.bf16 %v6590, %v6589
        %v6644 = vpack.c.bf16 %v6592, %v6591
        %v6645 = vpack.c.bf16 %v6594, %v6593
        %v6646 = vpack.c.bf16 %v6596, %v6595
        %v6647 = vpack.c.bf16 %v6598, %v6597
        %v6648 = vpack.c.bf16 %v6600, %v6599
        %v6649 = vpack.c.bf16 %v6602, %v6601
        %v6650 = vpack.c.bf16 %v6604, %v6603
        %v6651 = vpack.c.bf16 %v6606, %v6605
        %v6652 = vpack.c.bf16 %v6608, %v6607
        %v6653 = vpack.c.bf16 %v6610, %v6609
        %v6654 = vpack.c.bf16 %v6612, %v6611
        %v6655 = vpack.c.bf16 %v6614, %v6613
        %v6656 = vpack.c.bf16 %v6616, %v6615
        %v6657 = vpack.c.bf16 %v6618, %v6617
        %v6658 = vpack.c.bf16 %v6620, %v6619
        %v6659 = vpack.c.bf16 %v6622, %v6621
        %v6660 = vpack.c.bf16 %v6624, %v6623
        %v6661 = vpack.c.bf16 %v6626, %v6625
        %v6662 = vpack.c.bf16 %v6628, %v6627
        %v6663 = vpack.c.bf16 %v6630, %v6629
        %v6664 = vpack.c.bf16 %v6632, %v6631
        %v6665 = vld [vmem:[#allocation14] sm:$0xff]
        %v6666 = vld [vmem:[#allocation14 + $0x8] sm:$0xff]
        %v6667 = vld [vmem:[#allocation14 + $0x10] sm:$0xff]
        %v6668 = vld [vmem:[#allocation14 + $0x18] sm:$0xff]
        %v6669 = vld [vmem:[#allocation14 + $0x20] sm:$0xff]
        %v6670 = vld [vmem:[#allocation14 + $0x28] sm:$0xff]
        %v6671 = vld [vmem:[#allocation14 + $0x30] sm:$0xff]
        %v6672 = vld [vmem:[#allocation14 + $0x38] sm:$0xff]
        %v6673 = vld [vmem:[#allocation14 + $0x40] sm:$0xff]
        %v6674 = vld [vmem:[#allocation14 + $0x48] sm:$0xff]
        %v6675 = vld [vmem:[#allocation14 + $0x50] sm:$0xff]
        %v6676 = vld [vmem:[#allocation14 + $0x58] sm:$0xff]
        %v6677 = vld [vmem:[#allocation14 + $0x60] sm:$0xff]
        %v6678 = vld [vmem:[#allocation14 + $0x68] sm:$0xff]
        %v6679 = vld [vmem:[#allocation14 + $0x70] sm:$0xff]
        %v6680 = vld [vmem:[#allocation14 + $0x78] sm:$0xff]
        %v6681 = vld [vmem:[#allocation16] sm:$0x3]
        %v6683 = vlaneseq
        %v6684 = vshrl.u32 %v6683, 7
        %v6685 = vsub.s32 0, %v6684
        %v6686 = vrot.slane %v6681, %v6685
        %v6687 = vlaneseq
        %v6688 = vshrl.u32 %v6687, 7
        %v6689 = vsub.s32 1, %v6688
        %v6690 = vrot.slane %v6681, %v6689
        %v6709 = vunpack.c.l.b16 %v6665
        %v6710 = vunpack.c.h.b16 %v6665
        %v6711 = vunpack.c.l.b16 %v6666
        %v6712 = vunpack.c.h.b16 %v6666
        %v6713 = vunpack.c.l.b16 %v6667
        %v6714 = vunpack.c.h.b16 %v6667
        %v6715 = vunpack.c.l.b16 %v6668
        %v6716 = vunpack.c.h.b16 %v6668
        %v6717 = vunpack.c.l.b16 %v6669
        %v6718 = vunpack.c.h.b16 %v6669
        %v6719 = vunpack.c.l.b16 %v6670
        %v6720 = vunpack.c.h.b16 %v6670
        %v6721 = vunpack.c.l.b16 %v6671
        %v6722 = vunpack.c.h.b16 %v6671
        %v6723 = vunpack.c.l.b16 %v6672
        %v6724 = vunpack.c.h.b16 %v6672
        %v6725 = vunpack.c.l.b16 %v6673
        %v6726 = vunpack.c.h.b16 %v6673
        %v6727 = vunpack.c.l.b16 %v6674
        %v6728 = vunpack.c.h.b16 %v6674
        %v6729 = vunpack.c.l.b16 %v6675
        %v6730 = vunpack.c.h.b16 %v6675
        %v6731 = vunpack.c.l.b16 %v6676
        %v6732 = vunpack.c.h.b16 %v6676
        %v6733 = vunpack.c.l.b16 %v6677
        %v6734 = vunpack.c.h.b16 %v6677
        %v6735 = vunpack.c.l.b16 %v6678
        %v6736 = vunpack.c.h.b16 %v6678
        %v6737 = vunpack.c.l.b16 %v6679
        %v6738 = vunpack.c.h.b16 %v6679
        %v6739 = vunpack.c.l.b16 %v6680
        %v6740 = vunpack.c.h.b16 %v6680
        %v6741 = vpack.c.b16 %v6711, %v6709
        %v6742 = vpack.c.b16 %v6712, %v6710
        %v6743 = vpack.c.b16 %v6715, %v6713
        %v6744 = vpack.c.b16 %v6716, %v6714
        %v6745 = vpack.c.b16 %v6719, %v6717
        %v6746 = vpack.c.b16 %v6720, %v6718
        %v6747 = vpack.c.b16 %v6723, %v6721
        %v6748 = vpack.c.b16 %v6724, %v6722
        %v6749 = vpack.c.b16 %v6727, %v6725
        %v6750 = vpack.c.b16 %v6728, %v6726
        %v6751 = vpack.c.b16 %v6731, %v6729
        %v6752 = vpack.c.b16 %v6732, %v6730
        %v6753 = vpack.c.b16 %v6735, %v6733
        %v6754 = vpack.c.b16 %v6736, %v6734
        %v6755 = vpack.c.b16 %v6739, %v6737
        %v6756 = vpack.c.b16 %v6740, %v6738
        %6773 = vmatprep.subr.bf16.mxu0 %v6742
        %6774 = vmatpush1.bf16.msra.mxu0 %v6741
        %6775 = vmatprep.subr.bf16.mxu0 %v6744
        %6776 = vmatpush1.bf16.msra.mxu0 %v6743
        %6777 = vmatprep.subr.bf16.mxu0 %v6746
        %6778 = vmatpush1.bf16.msra.mxu0 %v6745
        %6779 = vmatprep.subr.bf16.mxu0 %v6748
        %6780 = vmatpush1.bf16.msra.mxu0 %v6747
        %6781 = vmatprep.subr.bf16.mxu0 %v6750
        %6782 = vmatpush1.bf16.msra.mxu0 %v6749
        %6783 = vmatprep.subr.bf16.mxu0 %v6752
        %6784 = vmatpush1.bf16.msra.mxu0 %v6751
        %6785 = vmatprep.subr.bf16.mxu0 %v6754
        %6786 = vmatpush1.bf16.msra.mxu0 %v6753
        %6787 = vmatprep.subr.bf16.mxu0 %v6756
        %6788 = vmatpush1.bf16.msra.mxu0 %v6755
        %6789 = vmatprep.subr.bf16.mxu0 0
        %6790 = vmatpush1.bf16.msra.mxu0 0
        %6791 = vmatprep.subr.bf16.mxu0 0
        %6792 = vmatpush1.bf16.msra.mxu0 0
        %6793 = vmatprep.subr.bf16.mxu0 0
        %6794 = vmatpush1.bf16.msra.mxu0 0
        %6795 = vmatprep.subr.bf16.mxu0 0
        %6796 = vmatpush1.bf16.msra.mxu0 0
        %6797 = vmatprep.subr.bf16.mxu0 0
        %6798 = vmatpush1.bf16.msra.mxu0 0
        %6799 = vmatprep.subr.bf16.mxu0 0
        %6800 = vmatpush1.bf16.msra.mxu0 0
        %6801 = vmatprep.subr.bf16.mxu0 0
        %6802 = vmatpush1.bf16.msra.mxu0 0
        %6803 = vmatprep.subr.bf16.mxu0 0
        %6804 = vmatpush1.bf16.msra.mxu0 0
        %6805 = vmatprep.mubr.bf16.mxu0 0
        %6806 = vmatmul.mubr.bf16.gmra.mrb[0].mxu0 %v6633
        %v6807 = vpop.f32.mrb[0].mxu0
        %v6808 = vadd.f32 %v6686, %v6807
        %v6809 = vpop.f32.mrb[0].mxu0
        %v6810 = vadd.f32 %v6690, %v6809
        %v6811 = vpop.f32.mrb[0].mxu0
        %v6812 = vadd.f32 %v6686, %v6811
        %v6813 = vpop.f32.mrb[0].mxu0
        %v6814 = vadd.f32 %v6690, %v6813
        %6815 = vmatprep.mubr.bf16.mxu0 0
        %6816 = vmatmul.mubr.bf16.gmra.mrb[0].mxu0 %v6634
        %v6817 = vpop.f32.mrb[0].mxu0
        %v6818 = vadd.f32 %v6686, %v6817
        %v6819 = vpop.f32.mrb[0].mxu0
        %v6820 = vadd.f32 %v6690, %v6819
        %v6821 = vpop.f32.mrb[0].mxu0
        %v6822 = vadd.f32 %v6686, %v6821
        %v6823 = vpop.f32.mrb[0].mxu0
        %v6824 = vadd.f32 %v6690, %v6823
        %6825 = vmatprep.mubr.bf16.mxu0 0
        %6826 = vmatmul.mubr.bf16.gmra.mrb[0].mxu0 %v6635
        %v6827 = vpop.f32.mrb[0].mxu0
        %v6828 = vadd.f32 %v6686, %v6827
        %v6829 = vpop.f32.mrb[0].mxu0
        %v6830 = vadd.f32 %v6690, %v6829
        %v6831 = vpop.f32.mrb[0].mxu0
        %v6832 = vadd.f32 %v6686, %v6831
        %v6833 = vpop.f32.mrb[0].mxu0
        %v6834 = vadd.f32 %v6690, %v6833
        %6835 = vmatprep.mubr.bf16.mxu0 0
        %6836 = vmatmul.mubr.bf16.gmra.mrb[0].mxu0 %v6636
        %v6837 = vpop.f32.mrb[0].mxu0
        %v6838 = vadd.f32 %v6686, %v6837
        %v6839 = vpop.f32.mrb[0].mxu0
        %v6840 = vadd.f32 %v6690, %v6839
        %v6841 = vpop.f32.mrb[0].mxu0
        %v6842 = vadd.f32 %v6686, %v6841
        %v6843 = vpop.f32.mrb[0].mxu0
        %v6844 = vadd.f32 %v6690, %v6843
        %6845 = vmatprep.mubr.bf16.mxu0 0
        %6846 = vmatmul.mubr.bf16.gmra.mrb[0].mxu0 %v6637
        %v6847 = vpop.f32.mrb[0].mxu0
        %v6848 = vadd.f32 %v6686, %v6847
        %v6849 = vpop.f32.mrb[0].mxu0
        %v6850 = vadd.f32 %v6690, %v6849
        %v6851 = vpop.f32.mrb[0].mxu0
        %v6852 = vadd.f32 %v6686, %v6851
        %v6853 = vpop.f32.mrb[0].mxu0
        %v6854 = vadd.f32 %v6690, %v6853
        %6855 = vmatprep.mubr.bf16.mxu0 0
        %6856 = vmatmul.mubr.bf16.gmra.mrb[0].mxu0 %v6638
        %v6857 = vpop.f32.mrb[0].mxu0
        %v6858 = vadd.f32 %v6686, %v6857
        %v6859 = vpop.f32.mrb[0].mxu0
        %v6860 = vadd.f32 %v6690, %v6859
        %v6861 = vpop.f32.mrb[0].mxu0
        %v6862 = vadd.f32 %v6686, %v6861
        %v6863 = vpop.f32.mrb[0].mxu0
        %v6864 = vadd.f32 %v6690, %v6863
        %6865 = vmatprep.mubr.bf16.mxu0 0
        %6866 = vmatmul.mubr.bf16.gmra.mrb[0].mxu0 %v6639
        %v6867 = vpop.f32.mrb[0].mxu0
        %v6868 = vadd.f32 %v6686, %v6867
        %v6869 = vpop.f32.mrb[0].mxu0
        %v6870 = vadd.f32 %v6690, %v6869
        %v6871 = vpop.f32.mrb[0].mxu0
        %v6872 = vadd.f32 %v6686, %v6871
        %v6873 = vpop.f32.mrb[0].mxu0
        %v6874 = vadd.f32 %v6690, %v6873
        %6875 = vmatprep.mubr.bf16.mxu0 0
        %6876 = vmatmul.mubr.bf16.gmra.mrb[0].mxu0 %v6640
        %v6877 = vpop.f32.mrb[0].mxu0
        %v6878 = vadd.f32 %v6686, %v6877
        %v6879 = vpop.f32.mrb[0].mxu0
        %v6880 = vadd.f32 %v6690, %v6879
        %v6881 = vpop.f32.mrb[0].mxu0
        %v6882 = vadd.f32 %v6686, %v6881
        %v6883 = vpop.f32.mrb[0].mxu0
        %v6884 = vadd.f32 %v6690, %v6883
        %6885 = vmatprep.mubr.bf16.mxu0 0
        %6886 = vmatmul.mubr.bf16.gmra.mrb[0].mxu0 %v6641
        %v6887 = vpop.f32.mrb[0].mxu0
        %v6888 = vadd.f32 %v6686, %v6887
        %v6889 = vpop.f32.mrb[0].mxu0
        %v6890 = vadd.f32 %v6690, %v6889
        %v6891 = vpop.f32.mrb[0].mxu0
        %v6892 = vadd.f32 %v6686, %v6891
        %v6893 = vpop.f32.mrb[0].mxu0
        %v6894 = vadd.f32 %v6690, %v6893
        %6895 = vmatprep.mubr.bf16.mxu0 0
        %6896 = vmatmul.mubr.bf16.gmra.mrb[0].mxu0 %v6642
        %v6897 = vpop.f32.mrb[0].mxu0
        %v6898 = vadd.f32 %v6686, %v6897
        %v6899 = vpop.f32.mrb[0].mxu0
        %v6900 = vadd.f32 %v6690, %v6899
        %v6901 = vpop.f32.mrb[0].mxu0
        %v6902 = vadd.f32 %v6686, %v6901
        %v6903 = vpop.f32.mrb[0].mxu0
        %v6904 = vadd.f32 %v6690, %v6903
        %6905 = vmatprep.mubr.bf16.mxu0 0
        %6906 = vmatmul.mubr.bf16.gmra.mrb[0].mxu0 %v6643
        %v6907 = vpop.f32.mrb[0].mxu0
        %v6908 = vadd.f32 %v6686, %v6907
        %v6909 = vpop.f32.mrb[0].mxu0
        %v6910 = vadd.f32 %v6690, %v6909
        %v6911 = vpop.f32.mrb[0].mxu0
        %v6912 = vadd.f32 %v6686, %v6911
        %v6913 = vpop.f32.mrb[0].mxu0
        %v6914 = vadd.f32 %v6690, %v6913
        %6915 = vmatprep.mubr.bf16.mxu0 0
        %6916 = vmatmul.mubr.bf16.gmra.mrb[0].mxu0 %v6644
        %v6917 = vpop.f32.mrb[0].mxu0
        %v6918 = vadd.f32 %v6686, %v6917
        %v6919 = vpop.f32.mrb[0].mxu0
        %v6920 = vadd.f32 %v6690, %v6919
        %v6921 = vpop.f32.mrb[0].mxu0
        %v6922 = vadd.f32 %v6686, %v6921
        %v6923 = vpop.f32.mrb[0].mxu0
        %v6924 = vadd.f32 %v6690, %v6923
        %6925 = vmatprep.mubr.bf16.mxu0 0
        %6926 = vmatmul.mubr.bf16.gmra.mrb[0].mxu0 %v6645
        %v6927 = vpop.f32.mrb[0].mxu0
        %v6928 = vadd.f32 %v6686, %v6927
        %v6929 = vpop.f32.mrb[0].mxu0
        %v6930 = vadd.f32 %v6690, %v6929
        %v6931 = vpop.f32.mrb[0].mxu0
        %v6932 = vadd.f32 %v6686, %v6931
        %v6933 = vpop.f32.mrb[0].mxu0
        %v6934 = vadd.f32 %v6690, %v6933
        %6935 = vmatprep.mubr.bf16.mxu0 0
        %6936 = vmatmul.mubr.bf16.gmra.mrb[0].mxu0 %v6646
        %v6937 = vpop.f32.mrb[0].mxu0
        %v6938 = vadd.f32 %v6686, %v6937
        %v6939 = vpop.f32.mrb[0].mxu0
        %v6940 = vadd.f32 %v6690, %v6939
        %v6941 = vpop.f32.mrb[0].mxu0
        %v6942 = vadd.f32 %v6686, %v6941
        %v6943 = vpop.f32.mrb[0].mxu0
        %v6944 = vadd.f32 %v6690, %v6943
        %6945 = vmatprep.mubr.bf16.mxu0 0
        %6946 = vmatmul.mubr.bf16.gmra.mrb[0].mxu0 %v6647
        %v6947 = vpop.f32.mrb[0].mxu0
        %v6948 = vadd.f32 %v6686, %v6947
        %v6949 = vpop.f32.mrb[0].mxu0
        %v6950 = vadd.f32 %v6690, %v6949
        %v6951 = vpop.f32.mrb[0].mxu0
        %v6952 = vadd.f32 %v6686, %v6951
        %v6953 = vpop.f32.mrb[0].mxu0
        %v6954 = vadd.f32 %v6690, %v6953
        %6955 = vmatprep.mubr.bf16.mxu0 0
        %6956 = vmatmul.mubr.bf16.gmra.mrb[0].mxu0 %v6648
        %v6957 = vpop.f32.mrb[0].mxu0
        %v6958 = vadd.f32 %v6686, %v6957
        %v6959 = vpop.f32.mrb[0].mxu0
        %v6960 = vadd.f32 %v6690, %v6959
        %v6961 = vpop.f32.mrb[0].mxu0
        %v6962 = vadd.f32 %v6686, %v6961
        %v6963 = vpop.f32.mrb[0].mxu0
        %v6964 = vadd.f32 %v6690, %v6963
        %6965 = vmatprep.mubr.bf16.mxu0 0
        %6966 = vmatmul.mubr.bf16.gmra.mrb[0].mxu0 %v6649
        %v6967 = vpop.f32.mrb[0].mxu0
        %v6968 = vadd.f32 %v6686, %v6967
        %v6969 = vpop.f32.mrb[0].mxu0
        %v6970 = vadd.f32 %v6690, %v6969
        %v6971 = vpop.f32.mrb[0].mxu0
        %v6972 = vadd.f32 %v6686, %v6971
        %v6973 = vpop.f32.mrb[0].mxu0
        %v6974 = vadd.f32 %v6690, %v6973
        %6975 = vmatprep.mubr.bf16.mxu0 0
        %6976 = vmatmul.mubr.bf16.gmra.mrb[0].mxu0 %v6650
        %v6977 = vpop.f32.mrb[0].mxu0
        %v6978 = vadd.f32 %v6686, %v6977
        %v6979 = vpop.f32.mrb[0].mxu0
        %v6980 = vadd.f32 %v6690, %v6979
        %v6981 = vpop.f32.mrb[0].mxu0
        %v6982 = vadd.f32 %v6686, %v6981
        %v6983 = vpop.f32.mrb[0].mxu0
        %v6984 = vadd.f32 %v6690, %v6983
        %6985 = vmatprep.mubr.bf16.mxu0 0
        %6986 = vmatmul.mubr.bf16.gmra.mrb[0].mxu0 %v6651
        %v6987 = vpop.f32.mrb[0].mxu0
        %v6988 = vadd.f32 %v6686, %v6987
        %v6989 = vpop.f32.mrb[0].mxu0
        %v6990 = vadd.f32 %v6690, %v6989
        %v6991 = vpop.f32.mrb[0].mxu0
        %v6992 = vadd.f32 %v6686, %v6991
        %v6993 = vpop.f32.mrb[0].mxu0
        %v6994 = vadd.f32 %v6690, %v6993
        %6995 = vmatprep.mubr.bf16.mxu0 0
        %6996 = vmatmul.mubr.bf16.gmra.mrb[0].mxu0 %v6652
        %v6997 = vpop.f32.mrb[0].mxu0
        %v6998 = vadd.f32 %v6686, %v6997
        %v6999 = vpop.f32.mrb[0].mxu0
        %v7000 = vadd.f32 %v6690, %v6999
        %v7001 = vpop.f32.mrb[0].mxu0
        %v7002 = vadd.f32 %v6686, %v7001
        %v7003 = vpop.f32.mrb[0].mxu0
        %v7004 = vadd.f32 %v6690, %v7003
        %7005 = vmatprep.mubr.bf16.mxu0 0
        %7006 = vmatmul.mubr.bf16.gmra.mrb[0].mxu0 %v6653
        %v7007 = vpop.f32.mrb[0].mxu0
        %v7008 = vadd.f32 %v6686, %v7007
        %v7009 = vpop.f32.mrb[0].mxu0
        %v7010 = vadd.f32 %v6690, %v7009
        %v7011 = vpop.f32.mrb[0].mxu0
        %v7012 = vadd.f32 %v6686, %v7011
        %v7013 = vpop.f32.mrb[0].mxu0
        %v7014 = vadd.f32 %v6690, %v7013
        %7015 = vmatprep.mubr.bf16.mxu0 0
        %7016 = vmatmul.mubr.bf16.gmra.mrb[0].mxu0 %v6654
        %v7017 = vpop.f32.mrb[0].mxu0
        %v7018 = vadd.f32 %v6686, %v7017
        %v7019 = vpop.f32.mrb[0].mxu0
        %v7020 = vadd.f32 %v6690, %v7019
        %v7021 = vpop.f32.mrb[0].mxu0
        %v7022 = vadd.f32 %v6686, %v7021
        %v7023 = vpop.f32.mrb[0].mxu0
        %v7024 = vadd.f32 %v6690, %v7023
        %7025 = vmatprep.mubr.bf16.mxu0 0
        %7026 = vmatmul.mubr.bf16.gmra.mrb[0].mxu0 %v6655
        %v7027 = vpop.f32.mrb[0].mxu0
        %v7028 = vadd.f32 %v6686, %v7027
        %v7029 = vpop.f32.mrb[0].mxu0
        %v7030 = vadd.f32 %v6690, %v7029
        %v7031 = vpop.f32.mrb[0].mxu0
        %v7032 = vadd.f32 %v6686, %v7031
        %v7033 = vpop.f32.mrb[0].mxu0
        %v7034 = vadd.f32 %v6690, %v7033
        %7035 = vmatprep.mubr.bf16.mxu0 0
        %7036 = vmatmul.mubr.bf16.gmra.mrb[0].mxu0 %v6656
        %v7037 = vpop.f32.mrb[0].mxu0
        %v7038 = vadd.f32 %v6686, %v7037
        %v7039 = vpop.f32.mrb[0].mxu0
        %v7040 = vadd.f32 %v6690, %v7039
        %v7041 = vpop.f32.mrb[0].mxu0
        %v7042 = vadd.f32 %v6686, %v7041
        %v7043 = vpop.f32.mrb[0].mxu0
        %v7044 = vadd.f32 %v6690, %v7043
        %7045 = vmatprep.mubr.bf16.mxu0 0
        %7046 = vmatmul.mubr.bf16.gmra.mrb[0].mxu0 %v6657
        %v7047 = vpop.f32.mrb[0].mxu0
        %v7048 = vadd.f32 %v6686, %v7047
        %v7049 = vpop.f32.mrb[0].mxu0
        %v7050 = vadd.f32 %v6690, %v7049
        %v7051 = vpop.f32.mrb[0].mxu0
        %v7052 = vadd.f32 %v6686, %v7051
        %v7053 = vpop.f32.mrb[0].mxu0
        %v7054 = vadd.f32 %v6690, %v7053
        %7055 = vmatprep.mubr.bf16.mxu0 0
        %7056 = vmatmul.mubr.bf16.gmra.mrb[0].mxu0 %v6658
        %v7057 = vpop.f32.mrb[0].mxu0
        %v7058 = vadd.f32 %v6686, %v7057
        %v7059 = vpop.f32.mrb[0].mxu0
        %v7060 = vadd.f32 %v6690, %v7059
        %v7061 = vpop.f32.mrb[0].mxu0
        %v7062 = vadd.f32 %v6686, %v7061
        %v7063 = vpop.f32.mrb[0].mxu0
        %v7064 = vadd.f32 %v6690, %v7063
        %7065 = vmatprep.mubr.bf16.mxu0 0
        %7066 = vmatmul.mubr.bf16.gmra.mrb[0].mxu0 %v6659
        %v7067 = vpop.f32.mrb[0].mxu0
        %v7068 = vadd.f32 %v6686, %v7067
        %v7069 = vpop.f32.mrb[0].mxu0
        %v7070 = vadd.f32 %v6690, %v7069
        %v7071 = vpop.f32.mrb[0].mxu0
        %v7072 = vadd.f32 %v6686, %v7071
        %v7073 = vpop.f32.mrb[0].mxu0
        %v7074 = vadd.f32 %v6690, %v7073
        %7075 = vmatprep.mubr.bf16.mxu0 0
        %7076 = vmatmul.mubr.bf16.gmra.mrb[0].mxu0 %v6660
        %v7077 = vpop.f32.mrb[0].mxu0
        %v7078 = vadd.f32 %v6686, %v7077
        %v7079 = vpop.f32.mrb[0].mxu0
        %v7080 = vadd.f32 %v6690, %v7079
        %v7081 = vpop.f32.mrb[0].mxu0
        %v7082 = vadd.f32 %v6686, %v7081
        %v7083 = vpop.f32.mrb[0].mxu0
        %v7084 = vadd.f32 %v6690, %v7083
        %7085 = vmatprep.mubr.bf16.mxu0 0
        %7086 = vmatmul.mubr.bf16.gmra.mrb[0].mxu0 %v6661
        %v7087 = vpop.f32.mrb[0].mxu0
        %v7088 = vadd.f32 %v6686, %v7087
        %v7089 = vpop.f32.mrb[0].mxu0
        %v7090 = vadd.f32 %v6690, %v7089
        %v7091 = vpop.f32.mrb[0].mxu0
        %v7092 = vadd.f32 %v6686, %v7091
        %v7093 = vpop.f32.mrb[0].mxu0
        %v7094 = vadd.f32 %v6690, %v7093
        %7095 = vmatprep.mubr.bf16.mxu0 0
        %7096 = vmatmul.mubr.bf16.gmra.mrb[0].mxu0 %v6662
        %v7097 = vpop.f32.mrb[0].mxu0
        %v7098 = vadd.f32 %v6686, %v7097
        %v7099 = vpop.f32.mrb[0].mxu0
        %v7100 = vadd.f32 %v6690, %v7099
        %v7101 = vpop.f32.mrb[0].mxu0
        %v7102 = vadd.f32 %v6686, %v7101
        %v7103 = vpop.f32.mrb[0].mxu0
        %v7104 = vadd.f32 %v6690, %v7103
        %7105 = vmatprep.mubr.bf16.mxu0 0
        %7106 = vmatmul.mubr.bf16.gmra.mrb[0].mxu0 %v6663
        %v7107 = vpop.f32.mrb[0].mxu0
        %v7108 = vadd.f32 %v6686, %v7107
        %v7109 = vpop.f32.mrb[0].mxu0
        %v7110 = vadd.f32 %v6690, %v7109
        %v7111 = vpop.f32.mrb[0].mxu0
        %v7112 = vadd.f32 %v6686, %v7111
        %v7113 = vpop.f32.mrb[0].mxu0
        %v7114 = vadd.f32 %v6690, %v7113
        %7115 = vmatprep.mubr.bf16.mxu0 0
        %7116 = vmatmul.mubr.bf16.gmra.mrb[0].mxu0 %v6664
        %v7117 = vpop.f32.mrb[0].mxu0
        %v7118 = vadd.f32 %v6686, %v7117
        %v7119 = vpop.f32.mrb[0].mxu0
        %v7120 = vadd.f32 %v6690, %v7119
        %v7121 = vpop.f32.mrb[0].mxu0
        %v7122 = vadd.f32 %v6686, %v7121
        %v7123 = vpop.f32.mrb[0].mxu0
        %v7124 = vadd.f32 %v6690, %v7123
        %7125 = vdwg.mxu0
        %v7126 = vadd.f32 %v6808, %v465
        %v7127 = vadd.f32 %v6810, %v466
        %v7128 = vadd.f32 %v6812, %v467
        %v7129 = vadd.f32 %v6814, %v468
        %v7130 = vadd.f32 %v6818, %v469
        %v7131 = vadd.f32 %v6820, %v470
        %v7132 = vadd.f32 %v6822, %v471
        %v7133 = vadd.f32 %v6824, %v472
        %v7134 = vadd.f32 %v6828, %v473
        %v7135 = vadd.f32 %v6830, %v474
        %v7136 = vadd.f32 %v6832, %v475
        %v7137 = vadd.f32 %v6834, %v476
        %v7138 = vadd.f32 %v6838, %v477
        %v7139 = vadd.f32 %v6840, %v478
        %v7140 = vadd.f32 %v6842, %v479
        %v7141 = vadd.f32 %v6844, %v480
        %v7142 = vadd.f32 %v6848, %v481
        %v7143 = vadd.f32 %v6850, %v482
        %v7144 = vadd.f32 %v6852, %v483
        %v7145 = vadd.f32 %v6854, %v484
        %v7146 = vadd.f32 %v6858, %v485
        %v7147 = vadd.f32 %v6860, %v486
        %v7148 = vadd.f32 %v6862, %v487
        %v7149 = vadd.f32 %v6864, %v488
        %v7150 = vadd.f32 %v6868, %v489
        %v7151 = vadd.f32 %v6870, %v490
        %v7152 = vadd.f32 %v6872, %v491
        %v7153 = vadd.f32 %v6874, %v492
        %v7154 = vadd.f32 %v6878, %v493
        %v7155 = vadd.f32 %v6880, %v494
        %v7156 = vadd.f32 %v6882, %v495
        %v7157 = vadd.f32 %v6884, %v496
        %v7158 = vadd.f32 %v6888, %v497
        %v7159 = vadd.f32 %v6890, %v498
        %v7160 = vadd.f32 %v6892, %v499
        %v7161 = vadd.f32 %v6894, %v500
        %v7162 = vadd.f32 %v6898, %v501
        %v7163 = vadd.f32 %v6900, %v502
        %v7164 = vadd.f32 %v6902, %v503
        %v7165 = vadd.f32 %v6904, %v504
        %v7166 = vadd.f32 %v6908, %v505
        %v7167 = vadd.f32 %v6910, %v506
        %v7168 = vadd.f32 %v6912, %v507
        %v7169 = vadd.f32 %v6914, %v508
        %v7170 = vadd.f32 %v6918, %v509
        %v7171 = vadd.f32 %v6920, %v510
        %v7172 = vadd.f32 %v6922, %v511
        %v7173 = vadd.f32 %v6924, %v512
        %v7174 = vadd.f32 %v6928, %v513
        %v7175 = vadd.f32 %v6930, %v514
        %v7176 = vadd.f32 %v6932, %v515
        %v7177 = vadd.f32 %v6934, %v516
        %v7178 = vadd.f32 %v6938, %v517
        %v7179 = vadd.f32 %v6940, %v518
        %v7180 = vadd.f32 %v6942, %v519
        %v7181 = vadd.f32 %v6944, %v520
        %v7182 = vadd.f32 %v6948, %v521
        %v7183 = vadd.f32 %v6950, %v522
        %v7184 = vadd.f32 %v6952, %v523
        %v7185 = vadd.f32 %v6954, %v524
        %v7186 = vadd.f32 %v6958, %v525
        %v7187 = vadd.f32 %v6960, %v526
        %v7188 = vadd.f32 %v6962, %v527
        %v7189 = vadd.f32 %v6964, %v528
        %v7190 = vadd.f32 %v6968, %v529
        %v7191 = vadd.f32 %v6970, %v530
        %v7192 = vadd.f32 %v6972, %v531
        %v7193 = vadd.f32 %v6974, %v532
        %v7194 = vadd.f32 %v6978, %v533
        %v7195 = vadd.f32 %v6980, %v534
        %v7196 = vadd.f32 %v6982, %v535
        %v7197 = vadd.f32 %v6984, %v536
        %v7198 = vadd.f32 %v6988, %v537
        %v7199 = vadd.f32 %v6990, %v538
        %v7200 = vadd.f32 %v6992, %v539
        %v7201 = vadd.f32 %v6994, %v540
        %v7202 = vadd.f32 %v6998, %v541
        %v7203 = vadd.f32 %v7000, %v542
        %v7204 = vadd.f32 %v7002, %v543
        %v7205 = vadd.f32 %v7004, %v544
        %v7206 = vadd.f32 %v7008, %v545
        %v7207 = vadd.f32 %v7010, %v546
        %v7208 = vadd.f32 %v7012, %v547
        %v7209 = vadd.f32 %v7014, %v548
        %v7210 = vadd.f32 %v7018, %v549
        %v7211 = vadd.f32 %v7020, %v550
        %v7212 = vadd.f32 %v7022, %v551
        %v7213 = vadd.f32 %v7024, %v552
        %v7214 = vadd.f32 %v7028, %v553
        %v7215 = vadd.f32 %v7030, %v554
        %v7216 = vadd.f32 %v7032, %v555
        %v7217 = vadd.f32 %v7034, %v556
        %v7218 = vadd.f32 %v7038, %v557
        %v7219 = vadd.f32 %v7040, %v558
        %v7220 = vadd.f32 %v7042, %v559
        %v7221 = vadd.f32 %v7044, %v560
        %v7222 = vadd.f32 %v7048, %v561
        %v7223 = vadd.f32 %v7050, %v562
        %v7224 = vadd.f32 %v7052, %v563
        %v7225 = vadd.f32 %v7054, %v564
        %v7226 = vadd.f32 %v7058, %v565
        %v7227 = vadd.f32 %v7060, %v566
        %v7228 = vadd.f32 %v7062, %v567
        %v7229 = vadd.f32 %v7064, %v568
        %v7230 = vadd.f32 %v7068, %v569
        %v7231 = vadd.f32 %v7070, %v570
        %v7232 = vadd.f32 %v7072, %v571
        %v7233 = vadd.f32 %v7074, %v572
        %v7234 = vadd.f32 %v7078, %v573
        %v7235 = vadd.f32 %v7080, %v574
        %v7236 = vadd.f32 %v7082, %v575
        %v7237 = vadd.f32 %v7084, %v576
        %v7238 = vadd.f32 %v7088, %v577
        %v7239 = vadd.f32 %v7090, %v578
        %v7240 = vadd.f32 %v7092, %v579
        %v7241 = vadd.f32 %v7094, %v580
        %v7242 = vadd.f32 %v7098, %v581
        %v7243 = vadd.f32 %v7100, %v582
        %v7244 = vadd.f32 %v7102, %v583
        %v7245 = vadd.f32 %v7104, %v584
        %v7246 = vadd.f32 %v7108, %v585
        %v7247 = vadd.f32 %v7110, %v586
        %v7248 = vadd.f32 %v7112, %v587
        %v7249 = vadd.f32 %v7114, %v588
        %v7250 = vadd.f32 %v7118, %v589
        %v7251 = vadd.f32 %v7120, %v590
        %v7252 = vadd.f32 %v7122, %v591
        %v7253 = vadd.f32 %v7124, %v592
        %v7254 = vmax.f32 %v7126, 0.0
        %v7255 = vmax.f32 %v7127, 0.0
        %v7256 = vmax.f32 %v7128, 0.0
        %v7257 = vmax.f32 %v7129, 0.0
        %v7258 = vmax.f32 %v7130, 0.0
        %v7259 = vmax.f32 %v7131, 0.0
        %v7260 = vmax.f32 %v7132, 0.0
        %v7261 = vmax.f32 %v7133, 0.0
        %v7262 = vmax.f32 %v7134, 0.0
        %v7263 = vmax.f32 %v7135, 0.0
        %v7264 = vmax.f32 %v7136, 0.0
        %v7265 = vmax.f32 %v7137, 0.0
        %v7266 = vmax.f32 %v7138, 0.0
        %v7267 = vmax.f32 %v7139, 0.0
        %v7268 = vmax.f32 %v7140, 0.0
        %v7269 = vmax.f32 %v7141, 0.0
        %v7270 = vmax.f32 %v7142, 0.0
        %v7271 = vmax.f32 %v7143, 0.0
        %v7272 = vmax.f32 %v7144, 0.0
        %v7273 = vmax.f32 %v7145, 0.0
        %v7274 = vmax.f32 %v7146, 0.0
        %v7275 = vmax.f32 %v7147, 0.0
        %v7276 = vmax.f32 %v7148, 0.0
        %v7277 = vmax.f32 %v7149, 0.0
        %v7278 = vmax.f32 %v7150, 0.0
        %v7279 = vmax.f32 %v7151, 0.0
        %v7280 = vmax.f32 %v7152, 0.0
        %v7281 = vmax.f32 %v7153, 0.0
        %v7282 = vmax.f32 %v7154, 0.0
        %v7283 = vmax.f32 %v7155, 0.0
        %v7284 = vmax.f32 %v7156, 0.0
        %v7285 = vmax.f32 %v7157, 0.0
        %v7286 = vmax.f32 %v7158, 0.0
        %v7287 = vmax.f32 %v7159, 0.0
        %v7288 = vmax.f32 %v7160, 0.0
        %v7289 = vmax.f32 %v7161, 0.0
        %v7290 = vmax.f32 %v7162, 0.0
        %v7291 = vmax.f32 %v7163, 0.0
        %v7292 = vmax.f32 %v7164, 0.0
        %v7293 = vmax.f32 %v7165, 0.0
        %v7294 = vmax.f32 %v7166, 0.0
        %v7295 = vmax.f32 %v7167, 0.0
        %v7296 = vmax.f32 %v7168, 0.0
        %v7297 = vmax.f32 %v7169, 0.0
        %v7298 = vmax.f32 %v7170, 0.0
        %v7299 = vmax.f32 %v7171, 0.0
        %v7300 = vmax.f32 %v7172, 0.0
        %v7301 = vmax.f32 %v7173, 0.0
        %v7302 = vmax.f32 %v7174, 0.0
        %v7303 = vmax.f32 %v7175, 0.0
        %v7304 = vmax.f32 %v7176, 0.0
        %v7305 = vmax.f32 %v7177, 0.0
        %v7306 = vmax.f32 %v7178, 0.0
        %v7307 = vmax.f32 %v7179, 0.0
        %v7308 = vmax.f32 %v7180, 0.0
        %v7309 = vmax.f32 %v7181, 0.0
        %v7310 = vmax.f32 %v7182, 0.0
        %v7311 = vmax.f32 %v7183, 0.0
        %v7312 = vmax.f32 %v7184, 0.0
        %v7313 = vmax.f32 %v7185, 0.0
        %v7314 = vmax.f32 %v7186, 0.0
        %v7315 = vmax.f32 %v7187, 0.0
        %v7316 = vmax.f32 %v7188, 0.0
        %v7317 = vmax.f32 %v7189, 0.0
        %v7318 = vmax.f32 %v7190, 0.0
        %v7319 = vmax.f32 %v7191, 0.0
        %v7320 = vmax.f32 %v7192, 0.0
        %v7321 = vmax.f32 %v7193, 0.0
        %v7322 = vmax.f32 %v7194, 0.0
        %v7323 = vmax.f32 %v7195, 0.0
        %v7324 = vmax.f32 %v7196, 0.0
        %v7325 = vmax.f32 %v7197, 0.0
        %v7326 = vmax.f32 %v7198, 0.0
        %v7327 = vmax.f32 %v7199, 0.0
        %v7328 = vmax.f32 %v7200, 0.0
        %v7329 = vmax.f32 %v7201, 0.0
        %v7330 = vmax.f32 %v7202, 0.0
        %v7331 = vmax.f32 %v7203, 0.0
        %v7332 = vmax.f32 %v7204, 0.0
        %v7333 = vmax.f32 %v7205, 0.0
        %v7334 = vmax.f32 %v7206, 0.0
        %v7335 = vmax.f32 %v7207, 0.0
        %v7336 = vmax.f32 %v7208, 0.0
        %v7337 = vmax.f32 %v7209, 0.0
        %v7338 = vmax.f32 %v7210, 0.0
        %v7339 = vmax.f32 %v7211, 0.0
        %v7340 = vmax.f32 %v7212, 0.0
        %v7341 = vmax.f32 %v7213, 0.0
        %v7342 = vmax.f32 %v7214, 0.0
        %v7343 = vmax.f32 %v7215, 0.0
        %v7344 = vmax.f32 %v7216, 0.0
        %v7345 = vmax.f32 %v7217, 0.0
        %v7346 = vmax.f32 %v7218, 0.0
        %v7347 = vmax.f32 %v7219, 0.0
        %v7348 = vmax.f32 %v7220, 0.0
        %v7349 = vmax.f32 %v7221, 0.0
        %v7350 = vmax.f32 %v7222, 0.0
        %v7351 = vmax.f32 %v7223, 0.0
        %v7352 = vmax.f32 %v7224, 0.0
        %v7353 = vmax.f32 %v7225, 0.0
        %v7354 = vmax.f32 %v7226, 0.0
        %v7355 = vmax.f32 %v7227, 0.0
        %v7356 = vmax.f32 %v7228, 0.0
        %v7357 = vmax.f32 %v7229, 0.0
        %v7358 = vmax.f32 %v7230, 0.0
        %v7359 = vmax.f32 %v7231, 0.0
        %v7360 = vmax.f32 %v7232, 0.0
        %v7361 = vmax.f32 %v7233, 0.0
        %v7362 = vmax.f32 %v7234, 0.0
        %v7363 = vmax.f32 %v7235, 0.0
        %v7364 = vmax.f32 %v7236, 0.0
        %v7365 = vmax.f32 %v7237, 0.0
        %v7366 = vmax.f32 %v7238, 0.0
        %v7367 = vmax.f32 %v7239, 0.0
        %v7368 = vmax.f32 %v7240, 0.0
        %v7369 = vmax.f32 %v7241, 0.0
        %v7370 = vmax.f32 %v7242, 0.0
        %v7371 = vmax.f32 %v7243, 0.0
        %v7372 = vmax.f32 %v7244, 0.0
        %v7373 = vmax.f32 %v7245, 0.0
        %v7374 = vmax.f32 %v7246, 0.0
        %v7375 = vmax.f32 %v7247, 0.0
        %v7376 = vmax.f32 %v7248, 0.0
        %v7377 = vmax.f32 %v7249, 0.0
        %v7378 = vmax.f32 %v7250, 0.0
        %v7379 = vmax.f32 %v7251, 0.0
        %v7380 = vmax.f32 %v7252, 0.0
        %v7381 = vmax.f32 %v7253, 0.0
        %7382 = vst [vmem:[%s461] sm:$0xff] %v7254
        %7383 = vst [vmem:[%s461 + $0x8] sm:$0xff] %v7255
        %7384 = vst [vmem:[%s461 + $0x10] sm:$0xff] %v7256
        %7385 = vst [vmem:[%s461 + $0x18] sm:$0xff] %v7257
        %7386 = vst [vmem:[%s461 + $0x20] sm:$0xff] %v7258
        %7387 = vst [vmem:[%s461 + $0x28] sm:$0xff] %v7259
        %7388 = vst [vmem:[%s461 + $0x30] sm:$0xff] %v7260
        %7389 = vst [vmem:[%s461 + $0x38] sm:$0xff] %v7261
        %7390 = vst [vmem:[%s461 + $0x40] sm:$0xff] %v7262
        %7391 = vst [vmem:[%s461 + $0x48] sm:$0xff] %v7263
        %7392 = vst [vmem:[%s461 + $0x50] sm:$0xff] %v7264
        %7393 = vst [vmem:[%s461 + $0x58] sm:$0xff] %v7265
        %7394 = vst [vmem:[%s461 + $0x60] sm:$0xff] %v7266
        %7395 = vst [vmem:[%s461 + $0x68] sm:$0xff] %v7267
        %7396 = vst [vmem:[%s461 + $0x70] sm:$0xff] %v7268
        %7397 = vst [vmem:[%s461 + $0x78] sm:$0xff] %v7269
        %7398 = vst [vmem:[%s461 + $0x80] sm:$0xff] %v7270
        %7399 = vst [vmem:[%s461 + $0x88] sm:$0xff] %v7271
        %7400 = vst [vmem:[%s461 + $0x90] sm:$0xff] %v7272
        %7401 = vst [vmem:[%s461 + $0x98] sm:$0xff] %v7273
        %7402 = vst [vmem:[%s461 + $0xa0] sm:$0xff] %v7274
        %7403 = vst [vmem:[%s461 + $0xa8] sm:$0xff] %v7275
        %7404 = vst [vmem:[%s461 + $0xb0] sm:$0xff] %v7276
        %7405 = vst [vmem:[%s461 + $0xb8] sm:$0xff] %v7277
        %7406 = vst [vmem:[%s461 + $0xc0] sm:$0xff] %v7278
        %7407 = vst [vmem:[%s461 + $0xc8] sm:$0xff] %v7279
        %7408 = vst [vmem:[%s461 + $0xd0] sm:$0xff] %v7280
        %7409 = vst [vmem:[%s461 + $0xd8] sm:$0xff] %v7281
        %7410 = vst [vmem:[%s461 + $0xe0] sm:$0xff] %v7282
        %7411 = vst [vmem:[%s461 + $0xe8] sm:$0xff] %v7283
        %7412 = vst [vmem:[%s461 + $0xf0] sm:$0xff] %v7284
        %7413 = vst [vmem:[%s461 + $0xf8] sm:$0xff] %v7285
        %7414 = vst [vmem:[%s461 + $0x100] sm:$0xff] %v7286
        %7415 = vst [vmem:[%s461 + $0x108] sm:$0xff] %v7287
        %7416 = vst [vmem:[%s461 + $0x110] sm:$0xff] %v7288
        %7417 = vst [vmem:[%s461 + $0x118] sm:$0xff] %v7289
        %7418 = vst [vmem:[%s461 + $0x120] sm:$0xff] %v7290
        %7419 = vst [vmem:[%s461 + $0x128] sm:$0xff] %v7291
        %7420 = vst [vmem:[%s461 + $0x130] sm:$0xff] %v7292
        %7421 = vst [vmem:[%s461 + $0x138] sm:$0xff] %v7293
        %7422 = vst [vmem:[%s461 + $0x140] sm:$0xff] %v7294
        %7423 = vst [vmem:[%s461 + $0x148] sm:$0xff] %v7295
        %7424 = vst [vmem:[%s461 + $0x150] sm:$0xff] %v7296
        %7425 = vst [vmem:[%s461 + $0x158] sm:$0xff] %v7297
        %7426 = vst [vmem:[%s461 + $0x160] sm:$0xff] %v7298
        %7427 = vst [vmem:[%s461 + $0x168] sm:$0xff] %v7299
        %7428 = vst [vmem:[%s461 + $0x170] sm:$0xff] %v7300
        %7429 = vst [vmem:[%s461 + $0x178] sm:$0xff] %v7301
        %7430 = vst [vmem:[%s461 + $0x180] sm:$0xff] %v7302
        %7431 = vst [vmem:[%s461 + $0x188] sm:$0xff] %v7303
        %7432 = vst [vmem:[%s461 + $0x190] sm:$0xff] %v7304
        %7433 = vst [vmem:[%s461 + $0x198] sm:$0xff] %v7305
        %7434 = vst [vmem:[%s461 + $0x1a0] sm:$0xff] %v7306
        %7435 = vst [vmem:[%s461 + $0x1a8] sm:$0xff] %v7307
        %7436 = vst [vmem:[%s461 + $0x1b0] sm:$0xff] %v7308
        %7437 = vst [vmem:[%s461 + $0x1b8] sm:$0xff] %v7309
        %7438 = vst [vmem:[%s461 + $0x1c0] sm:$0xff] %v7310
        %7439 = vst [vmem:[%s461 + $0x1c8] sm:$0xff] %v7311
        %7440 = vst [vmem:[%s461 + $0x1d0] sm:$0xff] %v7312
        %7441 = vst [vmem:[%s461 + $0x1d8] sm:$0xff] %v7313
        %7442 = vst [vmem:[%s461 + $0x1e0] sm:$0xff] %v7314
        %7443 = vst [vmem:[%s461 + $0x1e8] sm:$0xff] %v7315
        %7444 = vst [vmem:[%s461 + $0x1f0] sm:$0xff] %v7316
        %7445 = vst [vmem:[%s461 + $0x1f8] sm:$0xff] %v7317
        %7446 = vst [vmem:[%s461 + $0x200] sm:$0xff] %v7318
        %7447 = vst [vmem:[%s461 + $0x208] sm:$0xff] %v7319
        %7448 = vst [vmem:[%s461 + $0x210] sm:$0xff] %v7320
        %7449 = vst [vmem:[%s461 + $0x218] sm:$0xff] %v7321
        %7450 = vst [vmem:[%s461 + $0x220] sm:$0xff] %v7322
        %7451 = vst [vmem:[%s461 + $0x228] sm:$0xff] %v7323
        %7452 = vst [vmem:[%s461 + $0x230] sm:$0xff] %v7324
        %7453 = vst [vmem:[%s461 + $0x238] sm:$0xff] %v7325
        %7454 = vst [vmem:[%s461 + $0x240] sm:$0xff] %v7326
        %7455 = vst [vmem:[%s461 + $0x248] sm:$0xff] %v7327
        %7456 = vst [vmem:[%s461 + $0x250] sm:$0xff] %v7328
        %7457 = vst [vmem:[%s461 + $0x258] sm:$0xff] %v7329
        %7458 = vst [vmem:[%s461 + $0x260] sm:$0xff] %v7330
        %7459 = vst [vmem:[%s461 + $0x268] sm:$0xff] %v7331
        %7460 = vst [vmem:[%s461 + $0x270] sm:$0xff] %v7332
        %7461 = vst [vmem:[%s461 + $0x278] sm:$0xff] %v7333
        %7462 = vst [vmem:[%s461 + $0x280] sm:$0xff] %v7334
        %7463 = vst [vmem:[%s461 + $0x288] sm:$0xff] %v7335
        %7464 = vst [vmem:[%s461 + $0x290] sm:$0xff] %v7336
        %7465 = vst [vmem:[%s461 + $0x298] sm:$0xff] %v7337
        %7466 = vst [vmem:[%s461 + $0x2a0] sm:$0xff] %v7338
        %7467 = vst [vmem:[%s461 + $0x2a8] sm:$0xff] %v7339
        %7468 = vst [vmem:[%s461 + $0x2b0] sm:$0xff] %v7340
        %7469 = vst [vmem:[%s461 + $0x2b8] sm:$0xff] %v7341
        %7470 = vst [vmem:[%s461 + $0x2c0] sm:$0xff] %v7342
        %7471 = vst [vmem:[%s461 + $0x2c8] sm:$0xff] %v7343
        %7472 = vst [vmem:[%s461 + $0x2d0] sm:$0xff] %v7344
        %7473 = vst [vmem:[%s461 + $0x2d8] sm:$0xff] %v7345
        %7474 = vst [vmem:[%s461 + $0x2e0] sm:$0xff] %v7346
        %7475 = vst [vmem:[%s461 + $0x2e8] sm:$0xff] %v7347
        %7476 = vst [vmem:[%s461 + $0x2f0] sm:$0xff] %v7348
        %7477 = vst [vmem:[%s461 + $0x2f8] sm:$0xff] %v7349
        %7478 = vst [vmem:[%s461 + $0x300] sm:$0xff] %v7350
        %7479 = vst [vmem:[%s461 + $0x308] sm:$0xff] %v7351
        %7480 = vst [vmem:[%s461 + $0x310] sm:$0xff] %v7352
        %7481 = vst [vmem:[%s461 + $0x318] sm:$0xff] %v7353
        %7482 = vst [vmem:[%s461 + $0x320] sm:$0xff] %v7354
        %7483 = vst [vmem:[%s461 + $0x328] sm:$0xff] %v7355
        %7484 = vst [vmem:[%s461 + $0x330] sm:$0xff] %v7356
        %7485 = vst [vmem:[%s461 + $0x338] sm:$0xff] %v7357
        %7486 = vst [vmem:[%s461 + $0x340] sm:$0xff] %v7358
        %7487 = vst [vmem:[%s461 + $0x348] sm:$0xff] %v7359
        %7488 = vst [vmem:[%s461 + $0x350] sm:$0xff] %v7360
        %7489 = vst [vmem:[%s461 + $0x358] sm:$0xff] %v7361
        %7490 = vst [vmem:[%s461 + $0x360] sm:$0xff] %v7362
        %7491 = vst [vmem:[%s461 + $0x368] sm:$0xff] %v7363
        %7492 = vst [vmem:[%s461 + $0x370] sm:$0xff] %v7364
        %7493 = vst [vmem:[%s461 + $0x378] sm:$0xff] %v7365
        %7494 = vst [vmem:[%s461 + $0x380] sm:$0xff] %v7366
        %7495 = vst [vmem:[%s461 + $0x388] sm:$0xff] %v7367
        %7496 = vst [vmem:[%s461 + $0x390] sm:$0xff] %v7368
        %7497 = vst [vmem:[%s461 + $0x398] sm:$0xff] %v7369
        %7498 = vst [vmem:[%s461 + $0x3a0] sm:$0xff] %v7370
        %7499 = vst [vmem:[%s461 + $0x3a8] sm:$0xff] %v7371
        %7500 = vst [vmem:[%s461 + $0x3b0] sm:$0xff] %v7372
        %7501 = vst [vmem:[%s461 + $0x3b8] sm:$0xff] %v7373
        %7502 = vst [vmem:[%s461 + $0x3c0] sm:$0xff] %v7374
        %7503 = vst [vmem:[%s461 + $0x3c8] sm:$0xff] %v7375
        %7504 = vst [vmem:[%s461 + $0x3d0] sm:$0xff] %v7376
        %7505 = vst [vmem:[%s461 + $0x3d8] sm:$0xff] %v7377
        %7506 = vst [vmem:[%s461 + $0x3e0] sm:$0xff] %v7378
        %7507 = vst [vmem:[%s461 + $0x3e8] sm:$0xff] %v7379
        %7508 = vst [vmem:[%s461 + $0x3f0] sm:$0xff] %v7380
        %7509 = vst [vmem:[%s461 + $0x3f8] sm:$0xff] %v7381
        %s7510 = sand.u32 %s232, 1
        %s7511 = scalar_lea.sflag [#allocation4], %s7510
        %s7512 = sand.u32 %s232, 1
        %s7513 = smul.addr %s7512, 1024
        %s7514 = scalar_lea.vmem [#allocation17], %s7513
        // Predicated region
        $region93: #{tpu_custom_call.1} parent=55 // pred_check
          %p7515 = pneg %p242
        $region94: #{tpu_custom_call.1} parent=55 // pred_check_branch
          %7517 = sbr.rel (%p7515) target = $region96
        $region95: #{tpu_custom_call.1} parent=55 // pred_region
          %s7518 = smul.u32 2, %s30
          %s7520 = ssub.s32 16384, 16384
          %7521 = vsyncadd %s7511, %s7520
          %s7522 = smul.addr %s7518, 64
          %s7523 = smul.addr %s7522, 128
          %s7524 = scalar_lea.hbm %s9, %s7523
          %s7525 = sshll.u32 %s7514, 4
          %s7526 = int_to_ptr.vmem [resolvable:$true] %s7525
          %7531 = dma.vmem_to_hbm [thread:$0]  %s7526, 16384, %s7524, %s7511, 256, 256, 16
        $region96: #{tpu_custom_call.1} parent=55 // pred_fallthru
          _
      $region56: #{tpu_custom_call.1} parent=5 // pred_fallthru
        _
      %p7532 = scmp.le.s32.totalorder 2, %s25
      // Predicated region
      $region97: #{tpu_custom_call.1} parent=5 // pred_check
        %p7533 = pneg %p7532
      $region98: #{tpu_custom_call.1} parent=5 // pred_check_branch
        %7535 = sbr.rel (%p7533) target = $region100
      $region99: #{tpu_custom_call.1} parent=5 // pred_region
        %s7536 = ssub.s32 %s25, 2
        // Predicated region
        $region101: #{tpu_custom_call.1} parent=99 // pred_check
          %p7537 = pneg %p248
        $region102: #{tpu_custom_call.1} parent=99 // pred_check_branch
          %7539 = sbr.rel (%p7537) target = $region104
        $region103: #{tpu_custom_call.1} parent=99 // pred_region
          %s7540 = sand.u32 %s233, 1
          %s7541 = scalar_lea.sflag [#allocation4], %s7540
          %s7542 = sand.u32 %s233, 1
          %s7543 = smul.addr %s7542, 1024
          %s7544 = scalar_lea.vmem [#allocation17], %s7543
          %7545 = dma.done %s7541, 16384
        $region104: #{tpu_custom_call.1} parent=99 // pred_fallthru
          _
      $region100: #{tpu_custom_call.1} parent=5 // pred_fallthru
        _
    $region6: #{tpu_custom_call.1} parent=1 // loop_footer
      %s29 = sadd.s32 1, %s25
    $region7: #{tpu_custom_call.1} parent=1 // loop_footer_branch
      %24 = sbr.rel target = $region3
    $region8: #{tpu_custom_call.1} parent=1 // loop_exit
      _
    %7546 = vsyncpa [#allocation3], 1
    %s7547 = scalar_lea.sflag [#allocation3], 1
    %7548 = vsyncpa %s7547, 1
    %7549 = vsyncpa [#allocation6], 1
    %7550 = vsyncpa [#allocation9], 1
    %7551 = vsyncpa [#allocation12], 1
    %7552 = vsyncpa [#allocation15], 1
    %7553 = vsyncpa [#allocation4], 1
    %s7554 = scalar_lea.sflag [#allocation4], 1
    %7555 = vsyncpa %s7554, 1

</llo_original>
